<compile_context>
chip_gen: v5e
topology: v5e:2x2
jax: 0.10.0
libtpu: 0.0.40
codegen_flags: <defaults>
</compile_context>

<pallas_src>
import functools

import jax
import jax.numpy as jnp
from jax.experimental import pallas as pl
from jax.experimental.pallas import tpu as pltpu


# MXU operand dtype (weights + im2col patches).  bf16 ~doubles MXU throughput on
# v6e/v7x and halves the im2col VMEM footprint / patch store traffic (the
# saturating resources of this kernel); accumulation stays f32 via
# preferred_element_type.  Mask multiplies and the BN shift + ReLU epilogue stay
# in f32 (v5e has no bf16 VPU).
_MATMUL_DTYPE = jnp.bfloat16


def _select_mm_dtype(C2, Cin, Co):
    """bf16 im2col patches need 16-row (packed sublane tile) aligned stores;
    fall back to f32 for channel counts that are not multiples of 16."""
    if C2 % 16 == 0 and Cin % 16 == 0 and Co % 16 == 0:
        return _MATMUL_DTYPE
    return jnp.float32


# --------------------------------------------------------------------------- #
# Fused Pallas kernel:
#   concat(x2, x1u) -> conv3x3x3 + BN + ReLU -> conv3x3x3 + BN + ReLU
# --------------------------------------------------------------------------- #
def _up3d_double_conv_kernel(x2_ref, x1_ref, m_ref, w1_ref, w2_ref,
                             b1_ref, b2_ref, o_ref, patch_ref,
                             *, C2, C1, Co, P, deltas, patch_dtype):
    # x2_ref : (1, C2, P) f32     skip connection            (P = D*H*W, lanes)
    # x1_ref : (1, C1, P) f32     upsampled + padded x1
    # m_ref  : (27, P)    f32     precomputed per-tap boundary masks (0/1)
    # w1_ref : (Co, 27*Cin)       im2col weight of conv1, BN scale folded in
    # w2_ref : (Co, 27*Co)        im2col weight of conv2, BN scale folded in
    # b*_ref : (Co, 1)    f32     folded BatchNorm shift
    # o_ref  : (1, Co, P) f32     lane-dense output, i.e. NC(DHW) order
    # patch_ref : (27*max(Cin,Co), P) scratch, reused by both convs
    Cin = C2 + C1
    CENTER = 13                       # tap (kd, kh, kw) == (0, 0, 0)

    x2 = x2_ref[0]                    # (C2, P)
    x1 = x1_ref[0]                    # (C1, P)

    def shifted_masked(v, t, delta):
        # out[:, p] = v[:, p + delta], zeroed where the (kd,kh,kw) neighbour is
        # outside the volume (implicit zero padding).  pltpu.roll -> XLU slot;
        # mask multiply in f32 on the VPU.
        if t == CENTER:
            return v
        rolled = pltpu.roll(v, (-delta) % P, axis=1)
        return rolled * m_ref[t:t + 1, :]

    def conv_bn_relu(k_rows, w_ref, b_ref):
        acc = jnp.dot(w_ref[...],                      # (Co, k_rows)
                      patch_ref[:k_rows, :],           # (k_rows, P)
                      preferred_element_type=jnp.float32)
        # BN scale is already folded into the weights; shift + ReLU in f32.
        return jnp.maximum(acc + b_ref[...], 0.0)      # (Co, P)

    # ---- conv1: the channel concat is expressed by writing both channel
    #      groups of every tap directly into the patch (no (Cin, P) copy).
    for t, delta in enumerate(deltas):
        row = t * Cin
        patch_ref[row:row + C2, :] = shifted_masked(x2, t, delta).astype(patch_dtype)
        patch_ref[row + C2:row + Cin, :] = shifted_masked(x1, t, delta).astype(patch_dtype)
    h1 = conv_bn_relu(27 * Cin, w1_ref, b1_ref)        # (Co, P) f32, stays in VMEM

    # ---- conv2: reuse the same scratch (conv1's patch is dead after its dot).
    for t, delta in enumerate(deltas):
        patch_ref[t * Co:(t + 1) * Co, :] = shifted_masked(h1, t, delta).astype(patch_dtype)
    h2 = conv_bn_relu(27 * Co, w2_ref, b2_ref)         # (Co, P)

    o_ref[...] = h2[None].astype(o_ref.dtype)


def _make_double_conv_call(N, C2, C1, Co, D, H, W, mm_dtype):
    P = D * H * W
    Cin = C2 + C1
    maxC = max(Cin, Co)
    itemsize = 2 if mm_dtype == jnp.bfloat16 else 4
    deltas = tuple((kd * H + kh) * W + kw
                   for kd in (-1, 0, 1) for kh in (-1, 0, 1) for kw in (-1, 0, 1))

    kernel = functools.partial(_up3d_double_conv_kernel,
                               C2=C2, C1=C1, Co=Co, P=P,
                               deltas=deltas, patch_dtype=mm_dtype)

    # Explicit scoped-VMEM budget (review item): patch scratch + double-buffered
    # blocks + constants, with generous headroom, capped under v7x's 64 MiB.
    patch_bytes = 27 * maxC * P * itemsize
    block_bytes = (C2 + C1 + Co) * P * 4
    const_bytes = 27 * P * 4 + 27 * (Cin + Co) * Co * itemsize + 8 * Co
    vmem_limit = int(min(max(4 * (patch_bytes + 2 * block_bytes + const_bytes),
                             32 << 20), 48 << 20))

    cost = pl.CostEstimate(
        flops=2 * N * 27 * Co * (Cin + Co) * P,
        transcendentals=0,
        bytes_accessed=4 * N * (Cin + 2 * Co) * P + 27 * P * 4
                       + 27 * (Cin + Co) * Co * itemsize)

    return pl.pallas_call(
        kernel,
        out_shape=jax.ShapeDtypeStruct((N, Co, P), jnp.float32),
        grid_spec=pltpu.PrefetchScalarGridSpec(
            num_scalar_prefetch=0,
            grid=(N,),
            in_specs=[
                pl.BlockSpec((1, C2, P), lambda n: (n, 0, 0)),
                pl.BlockSpec((1, C1, P), lambda n: (n, 0, 0)),
                pl.BlockSpec((27, P), lambda n: (0, 0)),          # tap masks
                pl.BlockSpec((Co, 27 * Cin), lambda n: (0, 0)),   # conv1 weights
                pl.BlockSpec((Co, 27 * Co), lambda n: (0, 0)),    # conv2 weights
                pl.BlockSpec((Co, 1), lambda n: (0, 0)),          # shift1
                pl.BlockSpec((Co, 1), lambda n: (0, 0)),          # shift2
            ],
            out_specs=pl.BlockSpec((1, Co, P), lambda n: (n, 0, 0)),
            scratch_shapes=[
                pltpu.VMEM((27 * maxC, P), mm_dtype),   # shared im2col patch
            ],
        ),
        compiler_params=pltpu.CompilerParams(
            # batch axis is independent -> shard it across v7x's 2 TensorCores
            dimension_semantics=("parallel",),
            vmem_limit_bytes=vmem_limit),
        cost_estimate=cost,
    )


# --------------------------------------------------------------------------- #
# Precomputed per-tap boundary masks (hoisted out of the kernel)
# --------------------------------------------------------------------------- #
def _tap_masks(D, H, W):
    P = D * H * W
    pos = jnp.arange(P, dtype=jnp.int32)
    d = pos // (H * W)
    h = (pos // W) % H
    w = pos % W
    rows = []
    for kd in (-1, 0, 1):
        for kh in (-1, 0, 1):
            for kw in (-1, 0, 1):
                m = ((d + kd >= 0) & (d + kd < D) &
                     (h + kh >= 0) & (h + kh < H) &
                     (w + kw >= 0) & (w + kw < W))
                rows.append(m)
    return jnp.stack(rows).astype(jnp.float32)          # (27, P)


# --------------------------------------------------------------------------- #
# Trilinear 2x upsample (align_corners=True) with the F.pad folded in
# --------------------------------------------------------------------------- #
def _interp_pad_matrix(in_size, up_size, target_size):
    """1-D align_corners=True linear in_size->up_size upsample followed by the
    symmetric zero pad (or crop) to target_size, as one (target, in) matrix."""
    lo = (target_size - up_size) // 2
    t = jnp.arange(target_size, dtype=jnp.float32)
    u = t - lo                                      # position on the 2x grid
    valid = (u >= 0) & (u <= up_size - 1)
    if up_size == 1:
        coord = jnp.zeros_like(u)
    else:
        coord = u * (in_size - 1) / (up_size - 1)
    coord = jnp.clip(coord, 0.0, in_size - 1)
    low = jnp.clip(jnp.floor(coord).astype(jnp.int32), 0, in_size - 1)
    high = jnp.clip(low + 1, 0, in_size - 1)
    frac = coord - low.astype(jnp.float32)
    rows = jnp.arange(target_size)
    m = jnp.zeros((target_size, in_size), jnp.float32)
    m = m.at[rows, low].add(jnp.where(valid, 1.0 - frac, 0.0))
    m = m.at[rows, high].add(jnp.where(valid, frac, 0.0))
    return m


def _upsample_pad_x1(x1, target_dhw):
    """(N, C, d, h, w) -> (N, C, D, H, W): trilinear 2x, align_corners=True,
    with the following symmetric F.pad folded into the interpolation matrices."""
    _, _, d, h, w = x1.shape
    D, H, W = target_dhw
    md = _interp_pad_matrix(d, 2 * d, D)
    mh = _interp_pad_matrix(h, 2 * h, H)
    mw = _interp_pad_matrix(w, 2 * w, W)
    y = jnp.einsum('ad,ncdhw->ncahw', md, x1)
    y = jnp.einsum('bh,ncahw->ncabw', mh, y)
    y = jnp.einsum('ew,ncabw->ncabe', mw, y)
    return y


# --------------------------------------------------------------------------- #
# Up3D forward
# --------------------------------------------------------------------------- #
@jax.jit
def up3d_forward(params, x1_ncdhw, x2_ncdhw):
    x1 = x1_ncdhw.astype(jnp.float32)
    x2 = x2_ncdhw.astype(jnp.float32)
    N, C2, D, H, W = x2.shape
    C1 = x1.shape[1]
    Cin = C2 + C1
    w1 = params['w1']                      # (Co, Cin, 3, 3, 3)  PyTorch layout
    w2 = params['w2']                      # (Co, Co,  3, 3, 3)
    Co = w1.shape[0]
    P = D * H * W

    mm_dtype = _select_mm_dtype(C2, Cin, Co)

    x1u = _upsample_pad_x1(x1, (D, H, W))

    # im2col weight matrices (tap-major, channel-minor) with the eval-mode BN
    # scale folded in:  scale * (W @ patch) == (scale * W) @ patch.
    w1m = (jnp.transpose(w1, (0, 2, 3, 4, 1)).reshape(Co, 27 * Cin)
           * params['scale1'][:, None]).astype(mm_dtype)
    w2m = (jnp.transpose(w2, (0, 2, 3, 4, 1)).reshape(Co, 27 * Co)
           * params['scale2'][:, None]).astype(mm_dtype)

    masks = _tap_masks(D, H, W)            # (27, P), DMA'd once (constant spec)

    call = _make_double_conv_call(N, C2, C1, Co, D, H, W, mm_dtype)
    out = call(x2.reshape(N, C2, P), x1u.reshape(N, C1, P), masks,
               w1m, w2m,
               params['shift1'].reshape(Co, 1),
               params['shift2'].reshape(Co, 1))
    return out.reshape(N, Co, D, H, W)


# --------------------------------------------------------------------------- #
# Deterministic synthetic parameters (conv weights + eval-mode BN, folded)
# --------------------------------------------------------------------------- #
def init_params(key, in_channels, out_channels, eps=1e-5):
    ks = jax.random.split(key, 12)

    def fold(gamma, beta, mean, var, bias):
        scale = gamma / jnp.sqrt(var + eps)
        shift = beta + (bias - mean) * scale
        return scale, shift

    w1 = 0.1 * jax.random.normal(ks[0], (out_channels, in_channels, 3, 3, 3),
                                 jnp.float32)
    b1 = 0.05 * jax.random.normal(ks[1], (out_channels,), jnp.float32)
    g1 = 1.0 + 0.1 * jax.random.normal(ks[2], (out_channels,), jnp.float32)
    be1 = 0.05 * jax.random.normal(ks[3], (out_channels,), jnp.float32)
    m1 = 0.05 * jax.random.normal(ks[4], (out_channels,), jnp.float32)
    v1 = 0.5 + jax.random.uniform(ks[5], (out_channels,), jnp.float32)
    scale1, shift1 = fold(g1, be1, m1, v1, b1)

    w2 = 0.1 * jax.random.normal(ks[6], (out_channels, out_channels, 3, 3, 3),
                                 jnp.float32)
    b2 = 0.05 * jax.random.normal(ks[7], (out_channels,), jnp.float32)
    g2 = 1.0 + 0.1 * jax.random.normal(ks[8], (out_channels,), jnp.float32)
    be2 = 0.05 * jax.random.normal(ks[9], (out_channels,), jnp.float32)
    m2 = 0.05 * jax.random.normal(ks[10], (out_channels,), jnp.float32)
    v2 = 0.5 + jax.random.uniform(ks[11], (out_channels,), jnp.float32)
    scale2, shift2 = fold(g2, be2, m2, v2, b2)

    return dict(w1=w1, scale1=scale1, shift1=shift1,
                w2=w2, scale2=scale2, shift2=shift2)


# --------------------------------------------------------------------------- #
# Plain-JAX references (self-check only)
# --------------------------------------------------------------------------- #
def _ref_conv_bn_relu(x, w, scale, shift, mm_dtype):
    conv = functools.partial(
        jax.lax.conv_general_dilated, window_strides=(1, 1, 1),
        padding=((1, 1), (1, 1), (1, 1)),
        dimension_numbers=('NCDHW', 'OIDHW', 'NCDHW'))
    if mm_dtype is None:
        # Exact eval-mode module semantics in f32.
        y = conv(x, w)
        y = y * scale[None, :, None, None, None] + shift[None, :, None, None, None]
    else:
        # Operand-quantization-matched to the Pallas kernel (same bf16 rounding
        # of activations and scale-folded weights; f32 accumulation).
        wf = (w * scale[:, None, None, None, None]).astype(mm_dtype).astype(jnp.float32)
        y = conv(x.astype(mm_dtype).astype(jnp.float32), wf)
        y = y + shift[None, :, None, None, None]
    return jnp.maximum(y, 0.0)


def _ref_forward(params, x1_ncdhw, x2_ncdhw, mm_dtype=None):
    x1 = x1_ncdhw.astype(jnp.float32)
    x2 = x2_ncdhw.astype(jnp.float32)
    D, H, W = x2.shape[2:]
    x1u = _upsample_pad_x1(x1, (D, H, W))
    x = jnp.concatenate([x2, x1u], axis=1)
    h = _ref_conv_bn_relu(x, params['w1'], params['scale1'], params['shift1'], mm_dtype)
    h = _ref_conv_bn_relu(h, params['w2'], params['scale2'], params['shift2'], mm_dtype)
    return h


# --------------------------------------------------------------------------- #
if __name__ == "__main__":
    key = jax.random.PRNGKey(0)
    k1, k2 = jax.random.split(key)

    N = 2
    in_channels, out_channels = 32, 16   # UNet-decoder-like; multiples of 16 so
    c_half = in_channels // 2            # the bf16 fast path is exercised
    d1 = h1 = w1 = 4                     # low-res feature map
    d2 = h2 = w2 = 8                     # skip-connection feature map (2x)

    x1 = jax.random.normal(k1, (N, c_half, d1, h1, w1), jnp.float32)   # NCDHW
    x2 = jax.random.normal(k2, (N, c_half, d2, h2, w2), jnp.float32)   # NCDHW

    params = init_params(jax.random.PRNGKey(42), in_channels, out_channels)

    out = jax.block_until_ready(up3d_forward(params, x1, x2))
    assert out.shape == (N, out_channels, d2, h2, w2), out.shape

    mm = _select_mm_dtype(c_half, in_channels, out_channels)

    # Tight check against a reference with the same bf16 operand quantization
    # (catches any wiring / indexing / mask bug).
    ref_q = jax.block_until_ready(_ref_forward(params, x1, x2, mm))
    err_q = float(jnp.max(jnp.abs(out - ref_q)))
    assert jnp.allclose(out, ref_q, atol=2e-2, rtol=2e-2), err_q

    # Loose check against the exact f32 module semantics (bf16 MXU operands
    # per the perf review => looser tolerance than a pure-f32 kernel).
    ref = jax.block_until_ready(_ref_forward(params, x1, x2))
    err = float(jnp.max(jnp.abs(out - ref)))
    assert jnp.allclose(out, ref, atol=1.5e-1, rtol=5e-2), err

    print("KERNEL_OK")
</pallas_src>

<mosaic_0001>
module attributes {stable_mosaic.version = 11 : i64} {
  func.func @_up3d_double_conv_kernel(%arg0: i32, %arg1: memref<1x16x512xf32, #tpu.memory_space<vmem>>, %arg2: memref<1x16x512xf32, #tpu.memory_space<vmem>>, %arg3: memref<27x512xf32, #tpu.memory_space<vmem>>, %arg4: memref<16x864xbf16, #tpu.memory_space<vmem>>, %arg5: memref<16x432xbf16, #tpu.memory_space<vmem>>, %arg6: memref<16x1xf32, #tpu.memory_space<vmem>>, %arg7: memref<16x1xf32, #tpu.memory_space<vmem>>, %arg8: memref<1x16x512xf32, #tpu.memory_space<vmem>>, %arg9: memref<864x512xbf16, #tpu.memory_space<vmem>>) attributes {dimension_semantics = [#tpu.dimension_semantics<parallel>], iteration_bounds = array<i64: 2>, scalar_prefetch = 0 : i64, scratch_operands = 1 : i64, tpu.core_type = #tpu.core_type<tc>, window_params = [{transform_indices = @transform_0, window_bounds = array<i64: 1, 16, 512>}, {transform_indices = @transform_1, window_bounds = array<i64: 1, 16, 512>}, {pipeline_mode = #tpu.pipeline_mode<synchronous>, transform_indices = @transform_2, window_bounds = array<i64: 27, 512>}, {pipeline_mode = #tpu.pipeline_mode<synchronous>, transform_indices = @transform_3, window_bounds = array<i64: 16, 864>}, {pipeline_mode = #tpu.pipeline_mode<synchronous>, transform_indices = @transform_4, window_bounds = array<i64: 16, 432>}, {pipeline_mode = #tpu.pipeline_mode<synchronous>, transform_indices = @transform_5, window_bounds = array<i64: 16, 1>}, {pipeline_mode = #tpu.pipeline_mode<synchronous>, transform_indices = @transform_6, window_bounds = array<i64: 16, 1>}, {transform_indices = @transform_7, window_bounds = array<i64: 1, 16, 512>}]} {
    %c0 = arith.constant 0 : index
    %c0_0 = arith.constant 0 : index
    %c0_1 = arith.constant 0 : index
    %0 = vector.load %arg1[%c0, %c0_0, %c0_1] : memref<1x16x512xf32, #tpu.memory_space<vmem>>, vector<1x16x512xf32>
    %1 = vector.shape_cast %0 : vector<1x16x512xf32> to vector<16x512xf32>
    %c0_2 = arith.constant 0 : index
    %c0_3 = arith.constant 0 : index
    %c0_4 = arith.constant 0 : index
    %2 = vector.load %arg2[%c0_2, %c0_3, %c0_4] : memref<1x16x512xf32, #tpu.memory_space<vmem>>, vector<1x16x512xf32>
    %3 = vector.shape_cast %2 : vector<1x16x512xf32> to vector<16x512xf32>
    %c73_i32 = arith.constant 73 : i32
    %4 = tpu.dynamic_rotate %1 by %c73_i32 dim 1 : vector<16x512xf32>, i32 -> vector<16x512xf32>
    %c0_5 = arith.constant 0 : index
    %c0_6 = arith.constant 0 : index
    %5 = vector.load %arg3[%c0_5, %c0_6] : memref<27x512xf32, #tpu.memory_space<vmem>>, vector<1x512xf32>
    %6 = vector.broadcast %5 : vector<1x512xf32> to vector<16x512xf32>
    %7 = arith.mulf %4, %6 : vector<16x512xf32>
    %8 = arith.truncf %7 : vector<16x512xf32> to vector<16x512xbf16>
    %c0_7 = arith.constant 0 : index
    %c0_8 = arith.constant 0 : index
    %9 = vector.load %arg9[%c0_7, %c0_8] : memref<864x512xbf16, #tpu.memory_space<vmem>>, vector<16x512xbf16>
    tpu.vector_store %arg9[%c0_7, %c0_8], %8 {strides = array<i32>} : memref<864x512xbf16, #tpu.memory_space<vmem>>, vector<16x512xbf16>,
    %c73_i32_9 = arith.constant 73 : i32
    %10 = tpu.dynamic_rotate %3 by %c73_i32_9 dim 1 : vector<16x512xf32>, i32 -> vector<16x512xf32>
    %c0_10 = arith.constant 0 : index
    %c0_11 = arith.constant 0 : index
    %11 = vector.load %arg3[%c0_10, %c0_11] : memref<27x512xf32, #tpu.memory_space<vmem>>, vector<1x512xf32>
    %12 = vector.broadcast %11 : vector<1x512xf32> to vector<16x512xf32>
    %13 = arith.mulf %10, %12 : vector<16x512xf32>
    %14 = arith.truncf %13 : vector<16x512xf32> to vector<16x512xbf16>
    %c16 = arith.constant 16 : index
    %c0_12 = arith.constant 0 : index
    %15 = vector.load %arg9[%c16, %c0_12] : memref<864x512xbf16, #tpu.memory_space<vmem>>, vector<16x512xbf16>
    tpu.vector_store %arg9[%c16, %c0_12], %14 {strides = array<i32>} : memref<864x512xbf16, #tpu.memory_space<vmem>>, vector<16x512xbf16>,
    %c72_i32 = arith.constant 72 : i32
    %16 = tpu.dynamic_rotate %1 by %c72_i32 dim 1 : vector<16x512xf32>, i32 -> vector<16x512xf32>
    %c1 = arith.constant 1 : index
    %c0_13 = arith.constant 0 : index
    %17 = vector.load %arg3[%c1, %c0_13] : memref<27x512xf32, #tpu.memory_space<vmem>>, vector<1x512xf32>
    %18 = vector.broadcast %17 : vector<1x512xf32> to vector<16x512xf32>
    %19 = arith.mulf %16, %18 : vector<16x512xf32>
    %20 = arith.truncf %19 : vector<16x512xf32> to vector<16x512xbf16>
    %c32 = arith.constant 32 : index
    %c0_14 = arith.constant 0 : index
    %21 = vector.load %arg9[%c32, %c0_14] : memref<864x512xbf16, #tpu.memory_space<vmem>>, vector<16x512xbf16>
    tpu.vector_store %arg9[%c32, %c0_14], %20 {strides = array<i32>} : memref<864x512xbf16, #tpu.memory_space<vmem>>, vector<16x512xbf16>,
    %c72_i32_15 = arith.constant 72 : i32
    %22 = tpu.dynamic_rotate %3 by %c72_i32_15 dim 1 : vector<16x512xf32>, i32 -> vector<16x512xf32>
    %c1_16 = arith.constant 1 : index
    %c0_17 = arith.constant 0 : index
    %23 = vector.load %arg3[%c1_16, %c0_17] : memref<27x512xf32, #tpu.memory_space<vmem>>, vector<1x512xf32>
    %24 = vector.broadcast %23 : vector<1x512xf32> to vector<16x512xf32>
    %25 = arith.mulf %22, %24 : vector<16x512xf32>
    %26 = arith.truncf %25 : vector<16x512xf32> to vector<16x512xbf16>
    %c48 = arith.constant 48 : index
    %c0_18 = arith.constant 0 : index
    %27 = vector.load %arg9[%c48, %c0_18] : memref<864x512xbf16, #tpu.memory_space<vmem>>, vector<16x512xbf16>
    tpu.vector_store %arg9[%c48, %c0_18], %26 {strides = array<i32>} : memref<864x512xbf16, #tpu.memory_space<vmem>>, vector<16x512xbf16>,
    %c71_i32 = arith.constant 71 : i32
    %28 = tpu.dynamic_rotate %1 by %c71_i32 dim 1 : vector<16x512xf32>, i32 -> vector<16x512xf32>
    %c2 = arith.constant 2 : index
    %c0_19 = arith.constant 0 : index
    %29 = vector.load %arg3[%c2, %c0_19] : memref<27x512xf32, #tpu.memory_space<vmem>>, vector<1x512xf32>
    %30 = vector.broadcast %29 : vector<1x512xf32> to vector<16x512xf32>
    %31 = arith.mulf %28, %30 : vector<16x512xf32>
    %32 = arith.truncf %31 : vector<16x512xf32> to vector<16x512xbf16>
    %c64 = arith.constant 64 : index
    %c0_20 = arith.constant 0 : index
    %33 = vector.load %arg9[%c64, %c0_20] : memref<864x512xbf16, #tpu.memory_space<vmem>>, vector<16x512xbf16>
    tpu.vector_store %arg9[%c64, %c0_20], %32 {strides = array<i32>} : memref<864x512xbf16, #tpu.memory_space<vmem>>, vector<16x512xbf16>,
    %c71_i32_21 = arith.constant 71 : i32
    %34 = tpu.dynamic_rotate %3 by %c71_i32_21 dim 1 : vector<16x512xf32>, i32 -> vector<16x512xf32>
    %c2_22 = arith.constant 2 : index
    %c0_23 = arith.constant 0 : index
    %35 = vector.load %arg3[%c2_22, %c0_23] : memref<27x512xf32, #tpu.memory_space<vmem>>, vector<1x512xf32>
    %36 = vector.broadcast %35 : vector<1x512xf32> to vector<16x512xf32>
    %37 = arith.mulf %34, %36 : vector<16x512xf32>
    %38 = arith.truncf %37 : vector<16x512xf32> to vector<16x512xbf16>
    %c80 = arith.constant 80 : index
    %c0_24 = arith.constant 0 : index
    %39 = vector.load %arg9[%c80, %c0_24] : memref<864x512xbf16, #tpu.memory_space<vmem>>, vector<16x512xbf16>
    tpu.vector_store %arg9[%c80, %c0_24], %38 {strides = array<i32>} : memref<864x512xbf16, #tpu.memory_space<vmem>>, vector<16x512xbf16>,
    %c65_i32 = arith.constant 65 : i32
    %40 = tpu.dynamic_rotate %1 by %c65_i32 dim 1 : vector<16x512xf32>, i32 -> vector<16x512xf32>
    %c3 = arith.constant 3 : index
    %c0_25 = arith.constant 0 : index
    %41 = vector.load %arg3[%c3, %c0_25] : memref<27x512xf32, #tpu.memory_space<vmem>>, vector<1x512xf32>
    %42 = vector.broadcast %41 : vector<1x512xf32> to vector<16x512xf32>
    %43 = arith.mulf %40, %42 : vector<16x512xf32>
    %44 = arith.truncf %43 : vector<16x512xf32> to vector<16x512xbf16>
    %c96 = arith.constant 96 : index
    %c0_26 = arith.constant 0 : index
    %45 = vector.load %arg9[%c96, %c0_26] : memref<864x512xbf16, #tpu.memory_space<vmem>>, vector<16x512xbf16>
    tpu.vector_store %arg9[%c96, %c0_26], %44 {strides = array<i32>} : memref<864x512xbf16, #tpu.memory_space<vmem>>, vector<16x512xbf16>,
    %c65_i32_27 = arith.constant 65 : i32
    %46 = tpu.dynamic_rotate %3 by %c65_i32_27 dim 1 : vector<16x512xf32>, i32 -> vector<16x512xf32>
    %c3_28 = arith.constant 3 : index
    %c0_29 = arith.constant 0 : index
    %47 = vector.load %arg3[%c3_28, %c0_29] : memref<27x512xf32, #tpu.memory_space<vmem>>, vector<1x512xf32>
    %48 = vector.broadcast %47 : vector<1x512xf32> to vector<16x512xf32>
    %49 = arith.mulf %46, %48 : vector<16x512xf32>
    %50 = arith.truncf %49 : vector<16x512xf32> to vector<16x512xbf16>
    %c112 = arith.constant 112 : index
    %c0_30 = arith.constant 0 : index
    %51 = vector.load %arg9[%c112, %c0_30] : memref<864x512xbf16, #tpu.memory_space<vmem>>, vector<16x512xbf16>
    tpu.vector_store %arg9[%c112, %c0_30], %50 {strides = array<i32>} : memref<864x512xbf16, #tpu.memory_space<vmem>>, vector<16x512xbf16>,
    %c64_i32 = arith.constant 64 : i32
    %52 = tpu.dynamic_rotate %1 by %c64_i32 dim 1 : vector<16x512xf32>, i32 -> vector<16x512xf32>
    %c4 = arith.constant 4 : index
    %c0_31 = arith.constant 0 : index
    %53 = vector.load %arg3[%c4, %c0_31] : memref<27x512xf32, #tpu.memory_space<vmem>>, vector<1x512xf32>
    %54 = vector.broadcast %53 : vector<1x512xf32> to vector<16x512xf32>
    %55 = arith.mulf %52, %54 : vector<16x512xf32>
    %56 = arith.truncf %55 : vector<16x512xf32> to vector<16x512xbf16>
    %c128 = arith.constant 128 : index
    %c0_32 = arith.constant 0 : index
    %57 = vector.load %arg9[%c128, %c0_32] : memref<864x512xbf16, #tpu.memory_space<vmem>>, vector<16x512xbf16>
    tpu.vector_store %arg9[%c128, %c0_32], %56 {strides = array<i32>} : memref<864x512xbf16, #tpu.memory_space<vmem>>, vector<16x512xbf16>,
    %c64_i32_33 = arith.constant 64 : i32
    %58 = tpu.dynamic_rotate %3 by %c64_i32_33 dim 1 : vector<16x512xf32>, i32 -> vector<16x512xf32>
    %c4_34 = arith.constant 4 : index
    %c0_35 = arith.constant 0 : index
    %59 = vector.load %arg3[%c4_34, %c0_35] : memref<27x512xf32, #tpu.memory_space<vmem>>, vector<1x512xf32>
    %60 = vector.broadcast %59 : vector<1x512xf32> to vector<16x512xf32>
    %61 = arith.mulf %58, %60 : vector<16x512xf32>
    %62 = arith.truncf %61 : vector<16x512xf32> to vector<16x512xbf16>
    %c144 = arith.constant 144 : index
    %c0_36 = arith.constant 0 : index
    %63 = vector.load %arg9[%c144, %c0_36] : memref<864x512xbf16, #tpu.memory_space<vmem>>, vector<16x512xbf16>
    tpu.vector_store %arg9[%c144, %c0_36], %62 {strides = array<i32>} : memref<864x512xbf16, #tpu.memory_space<vmem>>, vector<16x512xbf16>,
    %c63_i32 = arith.constant 63 : i32
    %64 = tpu.dynamic_rotate %1 by %c63_i32 dim 1 : vector<16x512xf32>, i32 -> vector<16x512xf32>
    %c5 = arith.constant 5 : index
    %c0_37 = arith.constant 0 : index
    %65 = vector.load %arg3[%c5, %c0_37] : memref<27x512xf32, #tpu.memory_space<vmem>>, vector<1x512xf32>
    %66 = vector.broadcast %65 : vector<1x512xf32> to vector<16x512xf32>
    %67 = arith.mulf %64, %66 : vector<16x512xf32>
    %68 = arith.truncf %67 : vector<16x512xf32> to vector<16x512xbf16>
    %c160 = arith.constant 160 : index
    %c0_38 = arith.constant 0 : index
    %69 = vector.load %arg9[%c160, %c0_38] : memref<864x512xbf16, #tpu.memory_space<vmem>>, vector<16x512xbf16>
    tpu.vector_store %arg9[%c160, %c0_38], %68 {strides = array<i32>} : memref<864x512xbf16, #tpu.memory_space<vmem>>, vector<16x512xbf16>,
    %c63_i32_39 = arith.constant 63 : i32
    %70 = tpu.dynamic_rotate %3 by %c63_i32_39 dim 1 : vector<16x512xf32>, i32 -> vector<16x512xf32>
    %c5_40 = arith.constant 5 : index
    %c0_41 = arith.constant 0 : index
    %71 = vector.load %arg3[%c5_40, %c0_41] : memref<27x512xf32, #tpu.memory_space<vmem>>, vector<1x512xf32>
    %72 = vector.broadcast %71 : vector<1x512xf32> to vector<16x512xf32>
    %73 = arith.mulf %70, %72 : vector<16x512xf32>
    %74 = arith.truncf %73 : vector<16x512xf32> to vector<16x512xbf16>
    %c176 = arith.constant 176 : index
    %c0_42 = arith.constant 0 : index
    %75 = vector.load %arg9[%c176, %c0_42] : memref<864x512xbf16, #tpu.memory_space<vmem>>, vector<16x512xbf16>
    tpu.vector_store %arg9[%c176, %c0_42], %74 {strides = array<i32>} : memref<864x512xbf16, #tpu.memory_space<vmem>>, vector<16x512xbf16>,
    %c57_i32 = arith.constant 57 : i32
    %76 = tpu.dynamic_rotate %1 by %c57_i32 dim 1 : vector<16x512xf32>, i32 -> vector<16x512xf32>
    %c6 = arith.constant 6 : index
    %c0_43 = arith.constant 0 : index
    %77 = vector.load %arg3[%c6, %c0_43] : memref<27x512xf32, #tpu.memory_space<vmem>>, vector<1x512xf32>
    %78 = vector.broadcast %77 : vector<1x512xf32> to vector<16x512xf32>
    %79 = arith.mulf %76, %78 : vector<16x512xf32>
    %80 = arith.truncf %79 : vector<16x512xf32> to vector<16x512xbf16>
    %c192 = arith.constant 192 : index
    %c0_44 = arith.constant 0 : index
    %81 = vector.load %arg9[%c192, %c0_44] : memref<864x512xbf16, #tpu.memory_space<vmem>>, vector<16x512xbf16>
    tpu.vector_store %arg9[%c192, %c0_44], %80 {strides = array<i32>} : memref<864x512xbf16, #tpu.memory_space<vmem>>, vector<16x512xbf16>,
    %c57_i32_45 = arith.constant 57 : i32
    %82 = tpu.dynamic_rotate %3 by %c57_i32_45 dim 1 : vector<16x512xf32>, i32 -> vector<16x512xf32>
    %c6_46 = arith.constant 6 : index
    %c0_47 = arith.constant 0 : index
    %83 = vector.load %arg3[%c6_46, %c0_47] : memref<27x512xf32, #tpu.memory_space<vmem>>, vector<1x512xf32>
    %84 = vector.broadcast %83 : vector<1x512xf32> to vector<16x512xf32>
    %85 = arith.mulf %82, %84 : vector<16x512xf32>
    %86 = arith.truncf %85 : vector<16x512xf32> to vector<16x512xbf16>
    %c208 = arith.constant 208 : index
    %c0_48 = arith.constant 0 : index
    %87 = vector.load %arg9[%c208, %c0_48] : memref<864x512xbf16, #tpu.memory_space<vmem>>, vector<16x512xbf16>
    tpu.vector_store %arg9[%c208, %c0_48], %86 {strides = array<i32>} : memref<864x512xbf16, #tpu.memory_space<vmem>>, vector<16x512xbf16>,
    %c56_i32 = arith.constant 56 : i32
    %88 = tpu.dynamic_rotate %1 by %c56_i32 dim 1 : vector<16x512xf32>, i32 -> vector<16x512xf32>
    %c7 = arith.constant 7 : index
    %c0_49 = arith.constant 0 : index
    %89 = vector.load %arg3[%c7, %c0_49] : memref<27x512xf32, #tpu.memory_space<vmem>>, vector<1x512xf32>
    %90 = vector.broadcast %89 : vector<1x512xf32> to vector<16x512xf32>
    %91 = arith.mulf %88, %90 : vector<16x512xf32>
    %92 = arith.truncf %91 : vector<16x512xf32> to vector<16x512xbf16>
    %c224 = arith.constant 224 : index
    %c0_50 = arith.constant 0 : index
    %93 = vector.load %arg9[%c224, %c0_50] : memref<864x512xbf16, #tpu.memory_space<vmem>>, vector<16x512xbf16>
    tpu.vector_store %arg9[%c224, %c0_50], %92 {strides = array<i32>} : memref<864x512xbf16, #tpu.memory_space<vmem>>, vector<16x512xbf16>,
    %c56_i32_51 = arith.constant 56 : i32
    %94 = tpu.dynamic_rotate %3 by %c56_i32_51 dim 1 : vector<16x512xf32>, i32 -> vector<16x512xf32>
    %c7_52 = arith.constant 7 : index
    %c0_53 = arith.constant 0 : index
    %95 = vector.load %arg3[%c7_52, %c0_53] : memref<27x512xf32, #tpu.memory_space<vmem>>, vector<1x512xf32>
    %96 = vector.broadcast %95 : vector<1x512xf32> to vector<16x512xf32>
    %97 = arith.mulf %94, %96 : vector<16x512xf32>
    %98 = arith.truncf %97 : vector<16x512xf32> to vector<16x512xbf16>
    %c240 = arith.constant 240 : index
    %c0_54 = arith.constant 0 : index
    %99 = vector.load %arg9[%c240, %c0_54] : memref<864x512xbf16, #tpu.memory_space<vmem>>, vector<16x512xbf16>
    tpu.vector_store %arg9[%c240, %c0_54], %98 {strides = array<i32>} : memref<864x512xbf16, #tpu.memory_space<vmem>>, vector<16x512xbf16>,
    %c55_i32 = arith.constant 55 : i32
    %100 = tpu.dynamic_rotate %1 by %c55_i32 dim 1 : vector<16x512xf32>, i32 -> vector<16x512xf32>
    %c8 = arith.constant 8 : index
    %c0_55 = arith.constant 0 : index
    %101 = vector.load %arg3[%c8, %c0_55] : memref<27x512xf32, #tpu.memory_space<vmem>>, vector<1x512xf32>
    %102 = vector.broadcast %101 : vector<1x512xf32> to vector<16x512xf32>
    %103 = arith.mulf %100, %102 : vector<16x512xf32>
    %104 = arith.truncf %103 : vector<16x512xf32> to vector<16x512xbf16>
    %c256 = arith.constant 256 : index
    %c0_56 = arith.constant 0 : index
    %105 = vector.load %arg9[%c256, %c0_56] : memref<864x512xbf16, #tpu.memory_space<vmem>>, vector<16x512xbf16>
    tpu.vector_store %arg9[%c256, %c0_56], %104 {strides = array<i32>} : memref<864x512xbf16, #tpu.memory_space<vmem>>, vector<16x512xbf16>,
    %c55_i32_57 = arith.constant 55 : i32
    %106 = tpu.dynamic_rotate %3 by %c55_i32_57 dim 1 : vector<16x512xf32>, i32 -> vector<16x512xf32>
    %c8_58 = arith.constant 8 : index
    %c0_59 = arith.constant 0 : index
    %107 = vector.load %arg3[%c8_58, %c0_59] : memref<27x512xf32, #tpu.memory_space<vmem>>, vector<1x512xf32>
    %108 = vector.broadcast %107 : vector<1x512xf32> to vector<16x512xf32>
    %109 = arith.mulf %106, %108 : vector<16x512xf32>
    %110 = arith.truncf %109 : vector<16x512xf32> to vector<16x512xbf16>
    %c272 = arith.constant 272 : index
    %c0_60 = arith.constant 0 : index
    %111 = vector.load %arg9[%c272, %c0_60] : memref<864x512xbf16, #tpu.memory_space<vmem>>, vector<16x512xbf16>
    tpu.vector_store %arg9[%c272, %c0_60], %110 {strides = array<i32>} : memref<864x512xbf16, #tpu.memory_space<vmem>>, vector<16x512xbf16>,
    %c9_i32 = arith.constant 9 : i32
    %112 = tpu.dynamic_rotate %1 by %c9_i32 dim 1 : vector<16x512xf32>, i32 -> vector<16x512xf32>
    %c9 = arith.constant 9 : index
    %c0_61 = arith.constant 0 : index
    %113 = vector.load %arg3[%c9, %c0_61] : memref<27x512xf32, #tpu.memory_space<vmem>>, vector<1x512xf32>
    %114 = vector.broadcast %113 : vector<1x512xf32> to vector<16x512xf32>
    %115 = arith.mulf %112, %114 : vector<16x512xf32>
    %116 = arith.truncf %115 : vector<16x512xf32> to vector<16x512xbf16>
    %c288 = arith.constant 288 : index
    %c0_62 = arith.constant 0 : index
    %117 = vector.load %arg9[%c288, %c0_62] : memref<864x512xbf16, #tpu.memory_space<vmem>>, vector<16x512xbf16>
    tpu.vector_store %arg9[%c288, %c0_62], %116 {strides = array<i32>} : memref<864x512xbf16, #tpu.memory_space<vmem>>, vector<16x512xbf16>,
    %c9_i32_63 = arith.constant 9 : i32
    %118 = tpu.dynamic_rotate %3 by %c9_i32_63 dim 1 : vector<16x512xf32>, i32 -> vector<16x512xf32>
    %c9_64 = arith.constant 9 : index
    %c0_65 = arith.constant 0 : index
    %119 = vector.load %arg3[%c9_64, %c0_65] : memref<27x512xf32, #tpu.memory_space<vmem>>, vector<1x512xf32>
    %120 = vector.broadcast %119 : vector<1x512xf32> to vector<16x512xf32>
    %121 = arith.mulf %118, %120 : vector<16x512xf32>
    %122 = arith.truncf %121 : vector<16x512xf32> to vector<16x512xbf16>
    %c304 = arith.constant 304 : index
    %c0_66 = arith.constant 0 : index
    %123 = vector.load %arg9[%c304, %c0_66] : memref<864x512xbf16, #tpu.memory_space<vmem>>, vector<16x512xbf16>
    tpu.vector_store %arg9[%c304, %c0_66], %122 {strides = array<i32>} : memref<864x512xbf16, #tpu.memory_space<vmem>>, vector<16x512xbf16>,
    %c8_i32 = arith.constant 8 : i32
    %124 = tpu.dynamic_rotate %1 by %c8_i32 dim 1 : vector<16x512xf32>, i32 -> vector<16x512xf32>
    %c10 = arith.constant 10 : index
    %c0_67 = arith.constant 0 : index
    %125 = vector.load %arg3[%c10, %c0_67] : memref<27x512xf32, #tpu.memory_space<vmem>>, vector<1x512xf32>
    %126 = vector.broadcast %125 : vector<1x512xf32> to vector<16x512xf32>
    %127 = arith.mulf %124, %126 : vector<16x512xf32>
    %128 = arith.truncf %127 : vector<16x512xf32> to vector<16x512xbf16>
    %c320 = arith.constant 320 : index
    %c0_68 = arith.constant 0 : index
    %129 = vector.load %arg9[%c320, %c0_68] : memref<864x512xbf16, #tpu.memory_space<vmem>>, vector<16x512xbf16>
    tpu.vector_store %arg9[%c320, %c0_68], %128 {strides = array<i32>} : memref<864x512xbf16, #tpu.memory_space<vmem>>, vector<16x512xbf16>,
    %c8_i32_69 = arith.constant 8 : i32
    %130 = tpu.dynamic_rotate %3 by %c8_i32_69 dim 1 : vector<16x512xf32>, i32 -> vector<16x512xf32>
    %c10_70 = arith.constant 10 : index
    %c0_71 = arith.constant 0 : index
    %131 = vector.load %arg3[%c10_70, %c0_71] : memref<27x512xf32, #tpu.memory_space<vmem>>, vector<1x512xf32>
    %132 = vector.broadcast %131 : vector<1x512xf32> to vector<16x512xf32>
    %133 = arith.mulf %130, %132 : vector<16x512xf32>
    %134 = arith.truncf %133 : vector<16x512xf32> to vector<16x512xbf16>
    %c336 = arith.constant 336 : index
    %c0_72 = arith.constant 0 : index
    %135 = vector.load %arg9[%c336, %c0_72] : memref<864x512xbf16, #tpu.memory_space<vmem>>, vector<16x512xbf16>
    tpu.vector_store %arg9[%c336, %c0_72], %134 {strides = array<i32>} : memref<864x512xbf16, #tpu.memory_space<vmem>>, vector<16x512xbf16>,
    %c7_i32 = arith.constant 7 : i32
    %136 = tpu.dynamic_rotate %1 by %c7_i32 dim 1 : vector<16x512xf32>, i32 -> vector<16x512xf32>
    %c11 = arith.constant 11 : index
    %c0_73 = arith.constant 0 : index
    %137 = vector.load %arg3[%c11, %c0_73] : memref<27x512xf32, #tpu.memory_space<vmem>>, vector<1x512xf32>
    %138 = vector.broadcast %137 : vector<1x512xf32> to vector<16x512xf32>
    %139 = arith.mulf %136, %138 : vector<16x512xf32>
    %140 = arith.truncf %139 : vector<16x512xf32> to vector<16x512xbf16>
    %c352 = arith.constant 352 : index
    %c0_74 = arith.constant 0 : index
    %141 = vector.load %arg9[%c352, %c0_74] : memref<864x512xbf16, #tpu.memory_space<vmem>>, vector<16x512xbf16>
    tpu.vector_store %arg9[%c352, %c0_74], %140 {strides = array<i32>} : memref<864x512xbf16, #tpu.memory_space<vmem>>, vector<16x512xbf16>,
    %c7_i32_75 = arith.constant 7 : i32
    %142 = tpu.dynamic_rotate %3 by %c7_i32_75 dim 1 : vector<16x512xf32>, i32 -> vector<16x512xf32>
    %c11_76 = arith.constant 11 : index
    %c0_77 = arith.constant 0 : index
    %143 = vector.load %arg3[%c11_76, %c0_77] : memref<27x512xf32, #tpu.memory_space<vmem>>, vector<1x512xf32>
    %144 = vector.broadcast %143 : vector<1x512xf32> to vector<16x512xf32>
    %145 = arith.mulf %142, %144 : vector<16x512xf32>
    %146 = arith.truncf %145 : vector<16x512xf32> to vector<16x512xbf16>
    %c368 = arith.constant 368 : index
    %c0_78 = arith.constant 0 : index
    %147 = vector.load %arg9[%c368, %c0_78] : memref<864x512xbf16, #tpu.memory_space<vmem>>, vector<16x512xbf16>
    tpu.vector_store %arg9[%c368, %c0_78], %146 {strides = array<i32>} : memref<864x512xbf16, #tpu.memory_space<vmem>>, vector<16x512xbf16>,
    %c1_i32 = arith.constant 1 : i32
    %148 = tpu.dynamic_rotate %1 by %c1_i32 dim 1 : vector<16x512xf32>, i32 -> vector<16x512xf32>
    %c12 = arith.constant 12 : index
    %c0_79 = arith.constant 0 : index
    %149 = vector.load %arg3[%c12, %c0_79] : memref<27x512xf32, #tpu.memory_space<vmem>>, vector<1x512xf32>
    %150 = vector.broadcast %149 : vector<1x512xf32> to vector<16x512xf32>
    %151 = arith.mulf %148, %150 : vector<16x512xf32>
    %152 = arith.truncf %151 : vector<16x512xf32> to vector<16x512xbf16>
    %c384 = arith.constant 384 : index
    %c0_80 = arith.constant 0 : index
    %153 = vector.load %arg9[%c384, %c0_80] : memref<864x512xbf16, #tpu.memory_space<vmem>>, vector<16x512xbf16>
    tpu.vector_store %arg9[%c384, %c0_80], %152 {strides = array<i32>} : memref<864x512xbf16, #tpu.memory_space<vmem>>, vector<16x512xbf16>,
    %c1_i32_81 = arith.constant 1 : i32
    %154 = tpu.dynamic_rotate %3 by %c1_i32_81 dim 1 : vector<16x512xf32>, i32 -> vector<16x512xf32>
    %c12_82 = arith.constant 12 : index
    %c0_83 = arith.constant 0 : index
    %155 = vector.load %arg3[%c12_82, %c0_83] : memref<27x512xf32, #tpu.memory_space<vmem>>, vector<1x512xf32>
    %156 = vector.broadcast %155 : vector<1x512xf32> to vector<16x512xf32>
    %157 = arith.mulf %154, %156 : vector<16x512xf32>
    %158 = arith.truncf %157 : vector<16x512xf32> to vector<16x512xbf16>
    %c400 = arith.constant 400 : index
    %c0_84 = arith.constant 0 : index
    %159 = vector.load %arg9[%c400, %c0_84] : memref<864x512xbf16, #tpu.memory_space<vmem>>, vector<16x512xbf16>
    tpu.vector_store %arg9[%c400, %c0_84], %158 {strides = array<i32>} : memref<864x512xbf16, #tpu.memory_space<vmem>>, vector<16x512xbf16>,
    %160 = arith.truncf %1 : vector<16x512xf32> to vector<16x512xbf16>
    %c416 = arith.constant 416 : index
    %c0_85 = arith.constant 0 : index
    %161 = vector.load %arg9[%c416, %c0_85] : memref<864x512xbf16, #tpu.memory_space<vmem>>, vector<16x512xbf16>
    tpu.vector_store %arg9[%c416, %c0_85], %160 {strides = array<i32>} : memref<864x512xbf16, #tpu.memory_space<vmem>>, vector<16x512xbf16>,
    %162 = arith.truncf %3 : vector<16x512xf32> to vector<16x512xbf16>
    %c432 = arith.constant 432 : index
    %c0_86 = arith.constant 0 : index
    %163 = vector.load %arg9[%c432, %c0_86] : memref<864x512xbf16, #tpu.memory_space<vmem>>, vector<16x512xbf16>
    tpu.vector_store %arg9[%c432, %c0_86], %162 {strides = array<i32>} : memref<864x512xbf16, #tpu.memory_space<vmem>>, vector<16x512xbf16>,
    %c511_i32 = arith.constant 511 : i32
    %164 = tpu.dynamic_rotate %1 by %c511_i32 dim 1 : vector<16x512xf32>, i32 -> vector<16x512xf32>
    %c14 = arith.constant 14 : index
    %c0_87 = arith.constant 0 : index
    %165 = vector.load %arg3[%c14, %c0_87] : memref<27x512xf32, #tpu.memory_space<vmem>>, vector<1x512xf32>
    %166 = vector.broadcast %165 : vector<1x512xf32> to vector<16x512xf32>
    %167 = arith.mulf %164, %166 : vector<16x512xf32>
    %168 = arith.truncf %167 : vector<16x512xf32> to vector<16x512xbf16>
    %c448 = arith.constant 448 : index
    %c0_88 = arith.constant 0 : index
    %169 = vector.load %arg9[%c448, %c0_88] : memref<864x512xbf16, #tpu.memory_space<vmem>>, vector<16x512xbf16>
    tpu.vector_store %arg9[%c448, %c0_88], %168 {strides = array<i32>} : memref<864x512xbf16, #tpu.memory_space<vmem>>, vector<16x512xbf16>,
    %c511_i32_89 = arith.constant 511 : i32
    %170 = tpu.dynamic_rotate %3 by %c511_i32_89 dim 1 : vector<16x512xf32>, i32 -> vector<16x512xf32>
    %c14_90 = arith.constant 14 : index
    %c0_91 = arith.constant 0 : index
    %171 = vector.load %arg3[%c14_90, %c0_91] : memref<27x512xf32, #tpu.memory_space<vmem>>, vector<1x512xf32>
    %172 = vector.broadcast %171 : vector<1x512xf32> to vector<16x512xf32>
    %173 = arith.mulf %170, %172 : vector<16x512xf32>
    %174 = arith.truncf %173 : vector<16x512xf32> to vector<16x512xbf16>
    %c464 = arith.constant 464 : index
    %c0_92 = arith.constant 0 : index
    %175 = vector.load %arg9[%c464, %c0_92] : memref<864x512xbf16, #tpu.memory_space<vmem>>, vector<16x512xbf16>
    tpu.vector_store %arg9[%c464, %c0_92], %174 {strides = array<i32>} : memref<864x512xbf16, #tpu.memory_space<vmem>>, vector<16x512xbf16>,
    %c505_i32 = arith.constant 505 : i32
    %176 = tpu.dynamic_rotate %1 by %c505_i32 dim 1 : vector<16x512xf32>, i32 -> vector<16x512xf32>
    %c15 = arith.constant 15 : index
    %c0_93 = arith.constant 0 : index
    %177 = vector.load %arg3[%c15, %c0_93] : memref<27x512xf32, #tpu.memory_space<vmem>>, vector<1x512xf32>
    %178 = vector.broadcast %177 : vector<1x512xf32> to vector<16x512xf32>
    %179 = arith.mulf %176, %178 : vector<16x512xf32>
    %180 = arith.truncf %179 : vector<16x512xf32> to vector<16x512xbf16>
    %c480 = arith.constant 480 : index
    %c0_94 = arith.constant 0 : index
    %181 = vector.load %arg9[%c480, %c0_94] : memref<864x512xbf16, #tpu.memory_space<vmem>>, vector<16x512xbf16>
    tpu.vector_store %arg9[%c480, %c0_94], %180 {strides = array<i32>} : memref<864x512xbf16, #tpu.memory_space<vmem>>, vector<16x512xbf16>,
    %c505_i32_95 = arith.constant 505 : i32
    %182 = tpu.dynamic_rotate %3 by %c505_i32_95 dim 1 : vector<16x512xf32>, i32 -> vector<16x512xf32>
    %c15_96 = arith.constant 15 : index
    %c0_97 = arith.constant 0 : index
    %183 = vector.load %arg3[%c15_96, %c0_97] : memref<27x512xf32, #tpu.memory_space<vmem>>, vector<1x512xf32>
    %184 = vector.broadcast %183 : vector<1x512xf32> to vector<16x512xf32>
    %185 = arith.mulf %182, %184 : vector<16x512xf32>
    %186 = arith.truncf %185 : vector<16x512xf32> to vector<16x512xbf16>
    %c496 = arith.constant 496 : index
    %c0_98 = arith.constant 0 : index
    %187 = vector.load %arg9[%c496, %c0_98] : memref<864x512xbf16, #tpu.memory_space<vmem>>, vector<16x512xbf16>
    tpu.vector_store %arg9[%c496, %c0_98], %186 {strides = array<i32>} : memref<864x512xbf16, #tpu.memory_space<vmem>>, vector<16x512xbf16>,
    %c504_i32 = arith.constant 504 : i32
    %188 = tpu.dynamic_rotate %1 by %c504_i32 dim 1 : vector<16x512xf32>, i32 -> vector<16x512xf32>
    %c16_99 = arith.constant 16 : index
    %c0_100 = arith.constant 0 : index
    %189 = vector.load %arg3[%c16_99, %c0_100] : memref<27x512xf32, #tpu.memory_space<vmem>>, vector<1x512xf32>
    %190 = vector.broadcast %189 : vector<1x512xf32> to vector<16x512xf32>
    %191 = arith.mulf %188, %190 : vector<16x512xf32>
    %192 = arith.truncf %191 : vector<16x512xf32> to vector<16x512xbf16>
    %c512 = arith.constant 512 : index
    %c0_101 = arith.constant 0 : index
    %193 = vector.load %arg9[%c512, %c0_101] : memref<864x512xbf16, #tpu.memory_space<vmem>>, vector<16x512xbf16>
    tpu.vector_store %arg9[%c512, %c0_101], %192 {strides = array<i32>} : memref<864x512xbf16, #tpu.memory_space<vmem>>, vector<16x512xbf16>,
    %c504_i32_102 = arith.constant 504 : i32
    %194 = tpu.dynamic_rotate %3 by %c504_i32_102 dim 1 : vector<16x512xf32>, i32 -> vector<16x512xf32>
    %c16_103 = arith.constant 16 : index
    %c0_104 = arith.constant 0 : index
    %195 = vector.load %arg3[%c16_103, %c0_104] : memref<27x512xf32, #tpu.memory_space<vmem>>, vector<1x512xf32>
    %196 = vector.broadcast %195 : vector<1x512xf32> to vector<16x512xf32>
    %197 = arith.mulf %194, %196 : vector<16x512xf32>
    %198 = arith.truncf %197 : vector<16x512xf32> to vector<16x512xbf16>
    %c528 = arith.constant 528 : index
    %c0_105 = arith.constant 0 : index
    %199 = vector.load %arg9[%c528, %c0_105] : memref<864x512xbf16, #tpu.memory_space<vmem>>, vector<16x512xbf16>
    tpu.vector_store %arg9[%c528, %c0_105], %198 {strides = array<i32>} : memref<864x512xbf16, #tpu.memory_space<vmem>>, vector<16x512xbf16>,
    %c503_i32 = arith.constant 503 : i32
    %200 = tpu.dynamic_rotate %1 by %c503_i32 dim 1 : vector<16x512xf32>, i32 -> vector<16x512xf32>
    %c17 = arith.constant 17 : index
    %c0_106 = arith.constant 0 : index
    %201 = vector.load %arg3[%c17, %c0_106] : memref<27x512xf32, #tpu.memory_space<vmem>>, vector<1x512xf32>
    %202 = vector.broadcast %201 : vector<1x512xf32> to vector<16x512xf32>
    %203 = arith.mulf %200, %202 : vector<16x512xf32>
    %204 = arith.truncf %203 : vector<16x512xf32> to vector<16x512xbf16>
    %c544 = arith.constant 544 : index
    %c0_107 = arith.constant 0 : index
    %205 = vector.load %arg9[%c544, %c0_107] : memref<864x512xbf16, #tpu.memory_space<vmem>>, vector<16x512xbf16>
    tpu.vector_store %arg9[%c544, %c0_107], %204 {strides = array<i32>} : memref<864x512xbf16, #tpu.memory_space<vmem>>, vector<16x512xbf16>,
    %c503_i32_108 = arith.constant 503 : i32
    %206 = tpu.dynamic_rotate %3 by %c503_i32_108 dim 1 : vector<16x512xf32>, i32 -> vector<16x512xf32>
    %c17_109 = arith.constant 17 : index
    %c0_110 = arith.constant 0 : index
    %207 = vector.load %arg3[%c17_109, %c0_110] : memref<27x512xf32, #tpu.memory_space<vmem>>, vector<1x512xf32>
    %208 = vector.broadcast %207 : vector<1x512xf32> to vector<16x512xf32>
    %209 = arith.mulf %206, %208 : vector<16x512xf32>
    %210 = arith.truncf %209 : vector<16x512xf32> to vector<16x512xbf16>
    %c560 = arith.constant 560 : index
    %c0_111 = arith.constant 0 : index
    %211 = vector.load %arg9[%c560, %c0_111] : memref<864x512xbf16, #tpu.memory_space<vmem>>, vector<16x512xbf16>
    tpu.vector_store %arg9[%c560, %c0_111], %210 {strides = array<i32>} : memref<864x512xbf16, #tpu.memory_space<vmem>>, vector<16x512xbf16>,
    %c457_i32 = arith.constant 457 : i32
    %212 = tpu.dynamic_rotate %1 by %c457_i32 dim 1 : vector<16x512xf32>, i32 -> vector<16x512xf32>
    %c18 = arith.constant 18 : index
    %c0_112 = arith.constant 0 : index
    %213 = vector.load %arg3[%c18, %c0_112] : memref<27x512xf32, #tpu.memory_space<vmem>>, vector<1x512xf32>
    %214 = vector.broadcast %213 : vector<1x512xf32> to vector<16x512xf32>
    %215 = arith.mulf %212, %214 : vector<16x512xf32>
    %216 = arith.truncf %215 : vector<16x512xf32> to vector<16x512xbf16>
    %c576 = arith.constant 576 : index
    %c0_113 = arith.constant 0 : index
    %217 = vector.load %arg9[%c576, %c0_113] : memref<864x512xbf16, #tpu.memory_space<vmem>>, vector<16x512xbf16>
    tpu.vector_store %arg9[%c576, %c0_113], %216 {strides = array<i32>} : memref<864x512xbf16, #tpu.memory_space<vmem>>, vector<16x512xbf16>,
    %c457_i32_114 = arith.constant 457 : i32
    %218 = tpu.dynamic_rotate %3 by %c457_i32_114 dim 1 : vector<16x512xf32>, i32 -> vector<16x512xf32>
    %c18_115 = arith.constant 18 : index
    %c0_116 = arith.constant 0 : index
    %219 = vector.load %arg3[%c18_115, %c0_116] : memref<27x512xf32, #tpu.memory_space<vmem>>, vector<1x512xf32>
    %220 = vector.broadcast %219 : vector<1x512xf32> to vector<16x512xf32>
    %221 = arith.mulf %218, %220 : vector<16x512xf32>
    %222 = arith.truncf %221 : vector<16x512xf32> to vector<16x512xbf16>
    %c592 = arith.constant 592 : index
    %c0_117 = arith.constant 0 : index
    %223 = vector.load %arg9[%c592, %c0_117] : memref<864x512xbf16, #tpu.memory_space<vmem>>, vector<16x512xbf16>
    tpu.vector_store %arg9[%c592, %c0_117], %222 {strides = array<i32>} : memref<864x512xbf16, #tpu.memory_space<vmem>>, vector<16x512xbf16>,
    %c456_i32 = arith.constant 456 : i32
    %224 = tpu.dynamic_rotate %1 by %c456_i32 dim 1 : vector<16x512xf32>, i32 -> vector<16x512xf32>
    %c19 = arith.constant 19 : index
    %c0_118 = arith.constant 0 : index
    %225 = vector.load %arg3[%c19, %c0_118] : memref<27x512xf32, #tpu.memory_space<vmem>>, vector<1x512xf32>
    %226 = vector.broadcast %225 : vector<1x512xf32> to vector<16x512xf32>
    %227 = arith.mulf %224, %226 : vector<16x512xf32>
    %228 = arith.truncf %227 : vector<16x512xf32> to vector<16x512xbf16>
    %c608 = arith.constant 608 : index
    %c0_119 = arith.constant 0 : index
    %229 = vector.load %arg9[%c608, %c0_119] : memref<864x512xbf16, #tpu.memory_space<vmem>>, vector<16x512xbf16>
    tpu.vector_store %arg9[%c608, %c0_119], %228 {strides = array<i32>} : memref<864x512xbf16, #tpu.memory_space<vmem>>, vector<16x512xbf16>,
    %c456_i32_120 = arith.constant 456 : i32
    %230 = tpu.dynamic_rotate %3 by %c456_i32_120 dim 1 : vector<16x512xf32>, i32 -> vector<16x512xf32>
    %c19_121 = arith.constant 19 : index
    %c0_122 = arith.constant 0 : index
    %231 = vector.load %arg3[%c19_121, %c0_122] : memref<27x512xf32, #tpu.memory_space<vmem>>, vector<1x512xf32>
    %232 = vector.broadcast %231 : vector<1x512xf32> to vector<16x512xf32>
    %233 = arith.mulf %230, %232 : vector<16x512xf32>
    %234 = arith.truncf %233 : vector<16x512xf32> to vector<16x512xbf16>
    %c624 = arith.constant 624 : index
    %c0_123 = arith.constant 0 : index
    %235 = vector.load %arg9[%c624, %c0_123] : memref<864x512xbf16, #tpu.memory_space<vmem>>, vector<16x512xbf16>
    tpu.vector_store %arg9[%c624, %c0_123], %234 {strides = array<i32>} : memref<864x512xbf16, #tpu.memory_space<vmem>>, vector<16x512xbf16>,
    %c455_i32 = arith.constant 455 : i32
    %236 = tpu.dynamic_rotate %1 by %c455_i32 dim 1 : vector<16x512xf32>, i32 -> vector<16x512xf32>
    %c20 = arith.constant 20 : index
    %c0_124 = arith.constant 0 : index
    %237 = vector.load %arg3[%c20, %c0_124] : memref<27x512xf32, #tpu.memory_space<vmem>>, vector<1x512xf32>
    %238 = vector.broadcast %237 : vector<1x512xf32> to vector<16x512xf32>
    %239 = arith.mulf %236, %238 : vector<16x512xf32>
    %240 = arith.truncf %239 : vector<16x512xf32> to vector<16x512xbf16>
    %c640 = arith.constant 640 : index
    %c0_125 = arith.constant 0 : index
    %241 = vector.load %arg9[%c640, %c0_125] : memref<864x512xbf16, #tpu.memory_space<vmem>>, vector<16x512xbf16>
    tpu.vector_store %arg9[%c640, %c0_125], %240 {strides = array<i32>} : memref<864x512xbf16, #tpu.memory_space<vmem>>, vector<16x512xbf16>,
    %c455_i32_126 = arith.constant 455 : i32
    %242 = tpu.dynamic_rotate %3 by %c455_i32_126 dim 1 : vector<16x512xf32>, i32 -> vector<16x512xf32>
    %c20_127 = arith.constant 20 : index
    %c0_128 = arith.constant 0 : index
    %243 = vector.load %arg3[%c20_127, %c0_128] : memref<27x512xf32, #tpu.memory_space<vmem>>, vector<1x512xf32>
    %244 = vector.broadcast %243 : vector<1x512xf32> to vector<16x512xf32>
    %245 = arith.mulf %242, %244 : vector<16x512xf32>
    %246 = arith.truncf %245 : vector<16x512xf32> to vector<16x512xbf16>
    %c656 = arith.constant 656 : index
    %c0_129 = arith.constant 0 : index
    %247 = vector.load %arg9[%c656, %c0_129] : memref<864x512xbf16, #tpu.memory_space<vmem>>, vector<16x512xbf16>
    tpu.vector_store %arg9[%c656, %c0_129], %246 {strides = array<i32>} : memref<864x512xbf16, #tpu.memory_space<vmem>>, vector<16x512xbf16>,
    %c449_i32 = arith.constant 449 : i32
    %248 = tpu.dynamic_rotate %1 by %c449_i32 dim 1 : vector<16x512xf32>, i32 -> vector<16x512xf32>
    %c21 = arith.constant 21 : index
    %c0_130 = arith.constant 0 : index
    %249 = vector.load %arg3[%c21, %c0_130] : memref<27x512xf32, #tpu.memory_space<vmem>>, vector<1x512xf32>
    %250 = vector.broadcast %249 : vector<1x512xf32> to vector<16x512xf32>
    %251 = arith.mulf %248, %250 : vector<16x512xf32>
    %252 = arith.truncf %251 : vector<16x512xf32> to vector<16x512xbf16>
    %c672 = arith.constant 672 : index
    %c0_131 = arith.constant 0 : index
    %253 = vector.load %arg9[%c672, %c0_131] : memref<864x512xbf16, #tpu.memory_space<vmem>>, vector<16x512xbf16>
    tpu.vector_store %arg9[%c672, %c0_131], %252 {strides = array<i32>} : memref<864x512xbf16, #tpu.memory_space<vmem>>, vector<16x512xbf16>,
    %c449_i32_132 = arith.constant 449 : i32
    %254 = tpu.dynamic_rotate %3 by %c449_i32_132 dim 1 : vector<16x512xf32>, i32 -> vector<16x512xf32>
    %c21_133 = arith.constant 21 : index
    %c0_134 = arith.constant 0 : index
    %255 = vector.load %arg3[%c21_133, %c0_134] : memref<27x512xf32, #tpu.memory_space<vmem>>, vector<1x512xf32>
    %256 = vector.broadcast %255 : vector<1x512xf32> to vector<16x512xf32>
    %257 = arith.mulf %254, %256 : vector<16x512xf32>
    %258 = arith.truncf %257 : vector<16x512xf32> to vector<16x512xbf16>
    %c688 = arith.constant 688 : index
    %c0_135 = arith.constant 0 : index
    %259 = vector.load %arg9[%c688, %c0_135] : memref<864x512xbf16, #tpu.memory_space<vmem>>, vector<16x512xbf16>
    tpu.vector_store %arg9[%c688, %c0_135], %258 {strides = array<i32>} : memref<864x512xbf16, #tpu.memory_space<vmem>>, vector<16x512xbf16>,
    %c448_i32 = arith.constant 448 : i32
    %260 = tpu.dynamic_rotate %1 by %c448_i32 dim 1 : vector<16x512xf32>, i32 -> vector<16x512xf32>
    %c22 = arith.constant 22 : index
    %c0_136 = arith.constant 0 : index
    %261 = vector.load %arg3[%c22, %c0_136] : memref<27x512xf32, #tpu.memory_space<vmem>>, vector<1x512xf32>
    %262 = vector.broadcast %261 : vector<1x512xf32> to vector<16x512xf32>
    %263 = arith.mulf %260, %262 : vector<16x512xf32>
    %264 = arith.truncf %263 : vector<16x512xf32> to vector<16x512xbf16>
    %c704 = arith.constant 704 : index
    %c0_137 = arith.constant 0 : index
    %265 = vector.load %arg9[%c704, %c0_137] : memref<864x512xbf16, #tpu.memory_space<vmem>>, vector<16x512xbf16>
    tpu.vector_store %arg9[%c704, %c0_137], %264 {strides = array<i32>} : memref<864x512xbf16, #tpu.memory_space<vmem>>, vector<16x512xbf16>,
    %c448_i32_138 = arith.constant 448 : i32
    %266 = tpu.dynamic_rotate %3 by %c448_i32_138 dim 1 : vector<16x512xf32>, i32 -> vector<16x512xf32>
    %c22_139 = arith.constant 22 : index
    %c0_140 = arith.constant 0 : index
    %267 = vector.load %arg3[%c22_139, %c0_140] : memref<27x512xf32, #tpu.memory_space<vmem>>, vector<1x512xf32>
    %268 = vector.broadcast %267 : vector<1x512xf32> to vector<16x512xf32>
    %269 = arith.mulf %266, %268 : vector<16x512xf32>
    %270 = arith.truncf %269 : vector<16x512xf32> to vector<16x512xbf16>
    %c720 = arith.constant 720 : index
    %c0_141 = arith.constant 0 : index
    %271 = vector.load %arg9[%c720, %c0_141] : memref<864x512xbf16, #tpu.memory_space<vmem>>, vector<16x512xbf16>
    tpu.vector_store %arg9[%c720, %c0_141], %270 {strides = array<i32>} : memref<864x512xbf16, #tpu.memory_space<vmem>>, vector<16x512xbf16>,
    %c447_i32 = arith.constant 447 : i32
    %272 = tpu.dynamic_rotate %1 by %c447_i32 dim 1 : vector<16x512xf32>, i32 -> vector<16x512xf32>
    %c23 = arith.constant 23 : index
    %c0_142 = arith.constant 0 : index
    %273 = vector.load %arg3[%c23, %c0_142] : memref<27x512xf32, #tpu.memory_space<vmem>>, vector<1x512xf32>
    %274 = vector.broadcast %273 : vector<1x512xf32> to vector<16x512xf32>
    %275 = arith.mulf %272, %274 : vector<16x512xf32>
    %276 = arith.truncf %275 : vector<16x512xf32> to vector<16x512xbf16>
    %c736 = arith.constant 736 : index
    %c0_143 = arith.constant 0 : index
    %277 = vector.load %arg9[%c736, %c0_143] : memref<864x512xbf16, #tpu.memory_space<vmem>>, vector<16x512xbf16>
    tpu.vector_store %arg9[%c736, %c0_143], %276 {strides = array<i32>} : memref<864x512xbf16, #tpu.memory_space<vmem>>, vector<16x512xbf16>,
    %c447_i32_144 = arith.constant 447 : i32
    %278 = tpu.dynamic_rotate %3 by %c447_i32_144 dim 1 : vector<16x512xf32>, i32 -> vector<16x512xf32>
    %c23_145 = arith.constant 23 : index
    %c0_146 = arith.constant 0 : index
    %279 = vector.load %arg3[%c23_145, %c0_146] : memref<27x512xf32, #tpu.memory_space<vmem>>, vector<1x512xf32>
    %280 = vector.broadcast %279 : vector<1x512xf32> to vector<16x512xf32>
    %281 = arith.mulf %278, %280 : vector<16x512xf32>
    %282 = arith.truncf %281 : vector<16x512xf32> to vector<16x512xbf16>
    %c752 = arith.constant 752 : index
    %c0_147 = arith.constant 0 : index
    %283 = vector.load %arg9[%c752, %c0_147] : memref<864x512xbf16, #tpu.memory_space<vmem>>, vector<16x512xbf16>
    tpu.vector_store %arg9[%c752, %c0_147], %282 {strides = array<i32>} : memref<864x512xbf16, #tpu.memory_space<vmem>>, vector<16x512xbf16>,
    %c441_i32 = arith.constant 441 : i32
    %284 = tpu.dynamic_rotate %1 by %c441_i32 dim 1 : vector<16x512xf32>, i32 -> vector<16x512xf32>
    %c24 = arith.constant 24 : index
    %c0_148 = arith.constant 0 : index
    %285 = vector.load %arg3[%c24, %c0_148] : memref<27x512xf32, #tpu.memory_space<vmem>>, vector<1x512xf32>
    %286 = vector.broadcast %285 : vector<1x512xf32> to vector<16x512xf32>
    %287 = arith.mulf %284, %286 : vector<16x512xf32>
    %288 = arith.truncf %287 : vector<16x512xf32> to vector<16x512xbf16>
    %c768 = arith.constant 768 : index
    %c0_149 = arith.constant 0 : index
    %289 = vector.load %arg9[%c768, %c0_149] : memref<864x512xbf16, #tpu.memory_space<vmem>>, vector<16x512xbf16>
    tpu.vector_store %arg9[%c768, %c0_149], %288 {strides = array<i32>} : memref<864x512xbf16, #tpu.memory_space<vmem>>, vector<16x512xbf16>,
    %c441_i32_150 = arith.constant 441 : i32
    %290 = tpu.dynamic_rotate %3 by %c441_i32_150 dim 1 : vector<16x512xf32>, i32 -> vector<16x512xf32>
    %c24_151 = arith.constant 24 : index
    %c0_152 = arith.constant 0 : index
    %291 = vector.load %arg3[%c24_151, %c0_152] : memref<27x512xf32, #tpu.memory_space<vmem>>, vector<1x512xf32>
    %292 = vector.broadcast %291 : vector<1x512xf32> to vector<16x512xf32>
    %293 = arith.mulf %290, %292 : vector<16x512xf32>
    %294 = arith.truncf %293 : vector<16x512xf32> to vector<16x512xbf16>
    %c784 = arith.constant 784 : index
    %c0_153 = arith.constant 0 : index
    %295 = vector.load %arg9[%c784, %c0_153] : memref<864x512xbf16, #tpu.memory_space<vmem>>, vector<16x512xbf16>
    tpu.vector_store %arg9[%c784, %c0_153], %294 {strides = array<i32>} : memref<864x512xbf16, #tpu.memory_space<vmem>>, vector<16x512xbf16>,
    %c440_i32 = arith.constant 440 : i32
    %296 = tpu.dynamic_rotate %1 by %c440_i32 dim 1 : vector<16x512xf32>, i32 -> vector<16x512xf32>
    %c25 = arith.constant 25 : index
    %c0_154 = arith.constant 0 : index
    %297 = vector.load %arg3[%c25, %c0_154] : memref<27x512xf32, #tpu.memory_space<vmem>>, vector<1x512xf32>
    %298 = vector.broadcast %297 : vector<1x512xf32> to vector<16x512xf32>
    %299 = arith.mulf %296, %298 : vector<16x512xf32>
    %300 = arith.truncf %299 : vector<16x512xf32> to vector<16x512xbf16>
    %c800 = arith.constant 800 : index
    %c0_155 = arith.constant 0 : index
    %301 = vector.load %arg9[%c800, %c0_155] : memref<864x512xbf16, #tpu.memory_space<vmem>>, vector<16x512xbf16>
    tpu.vector_store %arg9[%c800, %c0_155], %300 {strides = array<i32>} : memref<864x512xbf16, #tpu.memory_space<vmem>>, vector<16x512xbf16>,
    %c440_i32_156 = arith.constant 440 : i32
    %302 = tpu.dynamic_rotate %3 by %c440_i32_156 dim 1 : vector<16x512xf32>, i32 -> vector<16x512xf32>
    %c25_157 = arith.constant 25 : index
    %c0_158 = arith.constant 0 : index
    %303 = vector.load %arg3[%c25_157, %c0_158] : memref<27x512xf32, #tpu.memory_space<vmem>>, vector<1x512xf32>
    %304 = vector.broadcast %303 : vector<1x512xf32> to vector<16x512xf32>
    %305 = arith.mulf %302, %304 : vector<16x512xf32>
    %306 = arith.truncf %305 : vector<16x512xf32> to vector<16x512xbf16>
    %c816 = arith.constant 816 : index
    %c0_159 = arith.constant 0 : index
    %307 = vector.load %arg9[%c816, %c0_159] : memref<864x512xbf16, #tpu.memory_space<vmem>>, vector<16x512xbf16>
    tpu.vector_store %arg9[%c816, %c0_159], %306 {strides = array<i32>} : memref<864x512xbf16, #tpu.memory_space<vmem>>, vector<16x512xbf16>,
    %c439_i32 = arith.constant 439 : i32
    %308 = tpu.dynamic_rotate %1 by %c439_i32 dim 1 : vector<16x512xf32>, i32 -> vector<16x512xf32>
    %c26 = arith.constant 26 : index
    %c0_160 = arith.constant 0 : index
    %309 = vector.load %arg3[%c26, %c0_160] : memref<27x512xf32, #tpu.memory_space<vmem>>, vector<1x512xf32>
    %310 = vector.broadcast %309 : vector<1x512xf32> to vector<16x512xf32>
    %311 = arith.mulf %308, %310 : vector<16x512xf32>
    %312 = arith.truncf %311 : vector<16x512xf32> to vector<16x512xbf16>
    %c832 = arith.constant 832 : index
    %c0_161 = arith.constant 0 : index
    %313 = vector.load %arg9[%c832, %c0_161] : memref<864x512xbf16, #tpu.memory_space<vmem>>, vector<16x512xbf16>
    tpu.vector_store %arg9[%c832, %c0_161], %312 {strides = array<i32>} : memref<864x512xbf16, #tpu.memory_space<vmem>>, vector<16x512xbf16>,
    %c439_i32_162 = arith.constant 439 : i32
    %314 = tpu.dynamic_rotate %3 by %c439_i32_162 dim 1 : vector<16x512xf32>, i32 -> vector<16x512xf32>
    %c26_163 = arith.constant 26 : index
    %c0_164 = arith.constant 0 : index
    %315 = vector.load %arg3[%c26_163, %c0_164] : memref<27x512xf32, #tpu.memory_space<vmem>>, vector<1x512xf32>
    %316 = vector.broadcast %315 : vector<1x512xf32> to vector<16x512xf32>
    %317 = arith.mulf %314, %316 : vector<16x512xf32>
    %318 = arith.truncf %317 : vector<16x512xf32> to vector<16x512xbf16>
    %c848 = arith.constant 848 : index
    %c0_165 = arith.constant 0 : index
    %319 = vector.load %arg9[%c848, %c0_165] : memref<864x512xbf16, #tpu.memory_space<vmem>>, vector<16x512xbf16>
    tpu.vector_store %arg9[%c848, %c0_165], %318 {strides = array<i32>} : memref<864x512xbf16, #tpu.memory_space<vmem>>, vector<16x512xbf16>,
    %c0_166 = arith.constant 0 : index
    %c0_167 = arith.constant 0 : index
    %320 = vector.load %arg4[%c0_166, %c0_167] : memref<16x864xbf16, #tpu.memory_space<vmem>>, vector<16x864xbf16>
    %c0_168 = arith.constant 0 : index
    %c0_169 = arith.constant 0 : index
    %321 = vector.load %arg9[%c0_168, %c0_169] : memref<864x512xbf16, #tpu.memory_space<vmem>>, vector<864x512xbf16>
    %cst = arith.constant dense<0.000000e+00> : vector<16x512xf32>
    %322 = tpu.matmul %320, %321, %cst {dimension_numbers = #tpu.dot_dimension_numbers<[1], [0], [0], [1], [0, 0, 1, 1], [], []>} : vector<16x864xbf16>, vector<864x512xbf16>, vector<16x512xf32> -> vector<16x512xf32>
    %c0_170 = arith.constant 0 : index
    %c0_171 = arith.constant 0 : index
    %323 = vector.load %arg6[%c0_170, %c0_171] : memref<16x1xf32, #tpu.memory_space<vmem>>, vector<16x1xf32>
    %324 = vector.broadcast %323 : vector<16x1xf32> to vector<16x512xf32>
    %325 = arith.addf %322, %324 : vector<16x512xf32>
    %cst_172 = arith.constant 0.000000e+00 : f32
    %326 = vector.broadcast %cst_172 : f32 to vector<16x512xf32>
    %327 = arith.maximumf %325, %326 : vector<16x512xf32>
    %c73_i32_173 = arith.constant 73 : i32
    %328 = tpu.dynamic_rotate %327 by %c73_i32_173 dim 1 : vector<16x512xf32>, i32 -> vector<16x512xf32>
    %c0_174 = arith.constant 0 : index
    %c0_175 = arith.constant 0 : index
    %329 = vector.load %arg3[%c0_174, %c0_175] : memref<27x512xf32, #tpu.memory_space<vmem>>, vector<1x512xf32>
    %330 = vector.broadcast %329 : vector<1x512xf32> to vector<16x512xf32>
    %331 = arith.mulf %328, %330 : vector<16x512xf32>
    %332 = arith.truncf %331 : vector<16x512xf32> to vector<16x512xbf16>
    %c0_176 = arith.constant 0 : index
    %c0_177 = arith.constant 0 : index
    %333 = vector.load %arg9[%c0_176, %c0_177] : memref<864x512xbf16, #tpu.memory_space<vmem>>, vector<16x512xbf16>
    tpu.vector_store %arg9[%c0_176, %c0_177], %332 {strides = array<i32>} : memref<864x512xbf16, #tpu.memory_space<vmem>>, vector<16x512xbf16>,
    %c72_i32_178 = arith.constant 72 : i32
    %334 = tpu.dynamic_rotate %327 by %c72_i32_178 dim 1 : vector<16x512xf32>, i32 -> vector<16x512xf32>
    %c1_179 = arith.constant 1 : index
    %c0_180 = arith.constant 0 : index
    %335 = vector.load %arg3[%c1_179, %c0_180] : memref<27x512xf32, #tpu.memory_space<vmem>>, vector<1x512xf32>
    %336 = vector.broadcast %335 : vector<1x512xf32> to vector<16x512xf32>
    %337 = arith.mulf %334, %336 : vector<16x512xf32>
    %338 = arith.truncf %337 : vector<16x512xf32> to vector<16x512xbf16>
    %c16_181 = arith.constant 16 : index
    %c0_182 = arith.constant 0 : index
    %339 = vector.load %arg9[%c16_181, %c0_182] : memref<864x512xbf16, #tpu.memory_space<vmem>>, vector<16x512xbf16>
    tpu.vector_store %arg9[%c16_181, %c0_182], %338 {strides = array<i32>} : memref<864x512xbf16, #tpu.memory_space<vmem>>, vector<16x512xbf16>,
    %c71_i32_183 = arith.constant 71 : i32
    %340 = tpu.dynamic_rotate %327 by %c71_i32_183 dim 1 : vector<16x512xf32>, i32 -> vector<16x512xf32>
    %c2_184 = arith.constant 2 : index
    %c0_185 = arith.constant 0 : index
    %341 = vector.load %arg3[%c2_184, %c0_185] : memref<27x512xf32, #tpu.memory_space<vmem>>, vector<1x512xf32>
    %342 = vector.broadcast %341 : vector<1x512xf32> to vector<16x512xf32>
    %343 = arith.mulf %340, %342 : vector<16x512xf32>
    %344 = arith.truncf %343 : vector<16x512xf32> to vector<16x512xbf16>
    %c32_186 = arith.constant 32 : index
    %c0_187 = arith.constant 0 : index
    %345 = vector.load %arg9[%c32_186, %c0_187] : memref<864x512xbf16, #tpu.memory_space<vmem>>, vector<16x512xbf16>
    tpu.vector_store %arg9[%c32_186, %c0_187], %344 {strides = array<i32>} : memref<864x512xbf16, #tpu.memory_space<vmem>>, vector<16x512xbf16>,
    %c65_i32_188 = arith.constant 65 : i32
    %346 = tpu.dynamic_rotate %327 by %c65_i32_188 dim 1 : vector<16x512xf32>, i32 -> vector<16x512xf32>
    %c3_189 = arith.constant 3 : index
    %c0_190 = arith.constant 0 : index
    %347 = vector.load %arg3[%c3_189, %c0_190] : memref<27x512xf32, #tpu.memory_space<vmem>>, vector<1x512xf32>
    %348 = vector.broadcast %347 : vector<1x512xf32> to vector<16x512xf32>
    %349 = arith.mulf %346, %348 : vector<16x512xf32>
    %350 = arith.truncf %349 : vector<16x512xf32> to vector<16x512xbf16>
    %c48_191 = arith.constant 48 : index
    %c0_192 = arith.constant 0 : index
    %351 = vector.load %arg9[%c48_191, %c0_192] : memref<864x512xbf16, #tpu.memory_space<vmem>>, vector<16x512xbf16>
    tpu.vector_store %arg9[%c48_191, %c0_192], %350 {strides = array<i32>} : memref<864x512xbf16, #tpu.memory_space<vmem>>, vector<16x512xbf16>,
    %c64_i32_193 = arith.constant 64 : i32
    %352 = tpu.dynamic_rotate %327 by %c64_i32_193 dim 1 : vector<16x512xf32>, i32 -> vector<16x512xf32>
    %c4_194 = arith.constant 4 : index
    %c0_195 = arith.constant 0 : index
    %353 = vector.load %arg3[%c4_194, %c0_195] : memref<27x512xf32, #tpu.memory_space<vmem>>, vector<1x512xf32>
    %354 = vector.broadcast %353 : vector<1x512xf32> to vector<16x512xf32>
    %355 = arith.mulf %352, %354 : vector<16x512xf32>
    %356 = arith.truncf %355 : vector<16x512xf32> to vector<16x512xbf16>
    %c64_196 = arith.constant 64 : index
    %c0_197 = arith.constant 0 : index
    %357 = vector.load %arg9[%c64_196, %c0_197] : memref<864x512xbf16, #tpu.memory_space<vmem>>, vector<16x512xbf16>
    tpu.vector_store %arg9[%c64_196, %c0_197], %356 {strides = array<i32>} : memref<864x512xbf16, #tpu.memory_space<vmem>>, vector<16x512xbf16>,
    %c63_i32_198 = arith.constant 63 : i32
    %358 = tpu.dynamic_rotate %327 by %c63_i32_198 dim 1 : vector<16x512xf32>, i32 -> vector<16x512xf32>
    %c5_199 = arith.constant 5 : index
    %c0_200 = arith.constant 0 : index
    %359 = vector.load %arg3[%c5_199, %c0_200] : memref<27x512xf32, #tpu.memory_space<vmem>>, vector<1x512xf32>
    %360 = vector.broadcast %359 : vector<1x512xf32> to vector<16x512xf32>
    %361 = arith.mulf %358, %360 : vector<16x512xf32>
    %362 = arith.truncf %361 : vector<16x512xf32> to vector<16x512xbf16>
    %c80_201 = arith.constant 80 : index
    %c0_202 = arith.constant 0 : index
    %363 = vector.load %arg9[%c80_201, %c0_202] : memref<864x512xbf16, #tpu.memory_space<vmem>>, vector<16x512xbf16>
    tpu.vector_store %arg9[%c80_201, %c0_202], %362 {strides = array<i32>} : memref<864x512xbf16, #tpu.memory_space<vmem>>, vector<16x512xbf16>,
    %c57_i32_203 = arith.constant 57 : i32
    %364 = tpu.dynamic_rotate %327 by %c57_i32_203 dim 1 : vector<16x512xf32>, i32 -> vector<16x512xf32>
    %c6_204 = arith.constant 6 : index
    %c0_205 = arith.constant 0 : index
    %365 = vector.load %arg3[%c6_204, %c0_205] : memref<27x512xf32, #tpu.memory_space<vmem>>, vector<1x512xf32>
    %366 = vector.broadcast %365 : vector<1x512xf32> to vector<16x512xf32>
    %367 = arith.mulf %364, %366 : vector<16x512xf32>
    %368 = arith.truncf %367 : vector<16x512xf32> to vector<16x512xbf16>
    %c96_206 = arith.constant 96 : index
    %c0_207 = arith.constant 0 : index
    %369 = vector.load %arg9[%c96_206, %c0_207] : memref<864x512xbf16, #tpu.memory_space<vmem>>, vector<16x512xbf16>
    tpu.vector_store %arg9[%c96_206, %c0_207], %368 {strides = array<i32>} : memref<864x512xbf16, #tpu.memory_space<vmem>>, vector<16x512xbf16>,
    %c56_i32_208 = arith.constant 56 : i32
    %370 = tpu.dynamic_rotate %327 by %c56_i32_208 dim 1 : vector<16x512xf32>, i32 -> vector<16x512xf32>
    %c7_209 = arith.constant 7 : index
    %c0_210 = arith.constant 0 : index
    %371 = vector.load %arg3[%c7_209, %c0_210] : memref<27x512xf32, #tpu.memory_space<vmem>>, vector<1x512xf32>
    %372 = vector.broadcast %371 : vector<1x512xf32> to vector<16x512xf32>
    %373 = arith.mulf %370, %372 : vector<16x512xf32>
    %374 = arith.truncf %373 : vector<16x512xf32> to vector<16x512xbf16>
    %c112_211 = arith.constant 112 : index
    %c0_212 = arith.constant 0 : index
    %375 = vector.load %arg9[%c112_211, %c0_212] : memref<864x512xbf16, #tpu.memory_space<vmem>>, vector<16x512xbf16>
    tpu.vector_store %arg9[%c112_211, %c0_212], %374 {strides = array<i32>} : memref<864x512xbf16, #tpu.memory_space<vmem>>, vector<16x512xbf16>,
    %c55_i32_213 = arith.constant 55 : i32
    %376 = tpu.dynamic_rotate %327 by %c55_i32_213 dim 1 : vector<16x512xf32>, i32 -> vector<16x512xf32>
    %c8_214 = arith.constant 8 : index
    %c0_215 = arith.constant 0 : index
    %377 = vector.load %arg3[%c8_214, %c0_215] : memref<27x512xf32, #tpu.memory_space<vmem>>, vector<1x512xf32>
    %378 = vector.broadcast %377 : vector<1x512xf32> to vector<16x512xf32>
    %379 = arith.mulf %376, %378 : vector<16x512xf32>
    %380 = arith.truncf %379 : vector<16x512xf32> to vector<16x512xbf16>
    %c128_216 = arith.constant 128 : index
    %c0_217 = arith.constant 0 : index
    %381 = vector.load %arg9[%c128_216, %c0_217] : memref<864x512xbf16, #tpu.memory_space<vmem>>, vector<16x512xbf16>
    tpu.vector_store %arg9[%c128_216, %c0_217], %380 {strides = array<i32>} : memref<864x512xbf16, #tpu.memory_space<vmem>>, vector<16x512xbf16>,
    %c9_i32_218 = arith.constant 9 : i32
    %382 = tpu.dynamic_rotate %327 by %c9_i32_218 dim 1 : vector<16x512xf32>, i32 -> vector<16x512xf32>
    %c9_219 = arith.constant 9 : index
    %c0_220 = arith.constant 0 : index
    %383 = vector.load %arg3[%c9_219, %c0_220] : memref<27x512xf32, #tpu.memory_space<vmem>>, vector<1x512xf32>
    %384 = vector.broadcast %383 : vector<1x512xf32> to vector<16x512xf32>
    %385 = arith.mulf %382, %384 : vector<16x512xf32>
    %386 = arith.truncf %385 : vector<16x512xf32> to vector<16x512xbf16>
    %c144_221 = arith.constant 144 : index
    %c0_222 = arith.constant 0 : index
    %387 = vector.load %arg9[%c144_221, %c0_222] : memref<864x512xbf16, #tpu.memory_space<vmem>>, vector<16x512xbf16>
    tpu.vector_store %arg9[%c144_221, %c0_222], %386 {strides = array<i32>} : memref<864x512xbf16, #tpu.memory_space<vmem>>, vector<16x512xbf16>,
    %c8_i32_223 = arith.constant 8 : i32
    %388 = tpu.dynamic_rotate %327 by %c8_i32_223 dim 1 : vector<16x512xf32>, i32 -> vector<16x512xf32>
    %c10_224 = arith.constant 10 : index
    %c0_225 = arith.constant 0 : index
    %389 = vector.load %arg3[%c10_224, %c0_225] : memref<27x512xf32, #tpu.memory_space<vmem>>, vector<1x512xf32>
    %390 = vector.broadcast %389 : vector<1x512xf32> to vector<16x512xf32>
    %391 = arith.mulf %388, %390 : vector<16x512xf32>
    %392 = arith.truncf %391 : vector<16x512xf32> to vector<16x512xbf16>
    %c160_226 = arith.constant 160 : index
    %c0_227 = arith.constant 0 : index
    %393 = vector.load %arg9[%c160_226, %c0_227] : memref<864x512xbf16, #tpu.memory_space<vmem>>, vector<16x512xbf16>
    tpu.vector_store %arg9[%c160_226, %c0_227], %392 {strides = array<i32>} : memref<864x512xbf16, #tpu.memory_space<vmem>>, vector<16x512xbf16>,
    %c7_i32_228 = arith.constant 7 : i32
    %394 = tpu.dynamic_rotate %327 by %c7_i32_228 dim 1 : vector<16x512xf32>, i32 -> vector<16x512xf32>
    %c11_229 = arith.constant 11 : index
    %c0_230 = arith.constant 0 : index
    %395 = vector.load %arg3[%c11_229, %c0_230] : memref<27x512xf32, #tpu.memory_space<vmem>>, vector<1x512xf32>
    %396 = vector.broadcast %395 : vector<1x512xf32> to vector<16x512xf32>
    %397 = arith.mulf %394, %396 : vector<16x512xf32>
    %398 = arith.truncf %397 : vector<16x512xf32> to vector<16x512xbf16>
    %c176_231 = arith.constant 176 : index
    %c0_232 = arith.constant 0 : index
    %399 = vector.load %arg9[%c176_231, %c0_232] : memref<864x512xbf16, #tpu.memory_space<vmem>>, vector<16x512xbf16>
    tpu.vector_store %arg9[%c176_231, %c0_232], %398 {strides = array<i32>} : memref<864x512xbf16, #tpu.memory_space<vmem>>, vector<16x512xbf16>,
    %c1_i32_233 = arith.constant 1 : i32
    %400 = tpu.dynamic_rotate %327 by %c1_i32_233 dim 1 : vector<16x512xf32>, i32 -> vector<16x512xf32>
    %c12_234 = arith.constant 12 : index
    %c0_235 = arith.constant 0 : index
    %401 = vector.load %arg3[%c12_234, %c0_235] : memref<27x512xf32, #tpu.memory_space<vmem>>, vector<1x512xf32>
    %402 = vector.broadcast %401 : vector<1x512xf32> to vector<16x512xf32>
    %403 = arith.mulf %400, %402 : vector<16x512xf32>
    %404 = arith.truncf %403 : vector<16x512xf32> to vector<16x512xbf16>
    %c192_236 = arith.constant 192 : index
    %c0_237 = arith.constant 0 : index
    %405 = vector.load %arg9[%c192_236, %c0_237] : memref<864x512xbf16, #tpu.memory_space<vmem>>, vector<16x512xbf16>
    tpu.vector_store %arg9[%c192_236, %c0_237], %404 {strides = array<i32>} : memref<864x512xbf16, #tpu.memory_space<vmem>>, vector<16x512xbf16>,
    %406 = arith.truncf %327 : vector<16x512xf32> to vector<16x512xbf16>
    %c208_238 = arith.constant 208 : index
    %c0_239 = arith.constant 0 : index
    %407 = vector.load %arg9[%c208_238, %c0_239] : memref<864x512xbf16, #tpu.memory_space<vmem>>, vector<16x512xbf16>
    tpu.vector_store %arg9[%c208_238, %c0_239], %406 {strides = array<i32>} : memref<864x512xbf16, #tpu.memory_space<vmem>>, vector<16x512xbf16>,
    %c511_i32_240 = arith.constant 511 : i32
    %408 = tpu.dynamic_rotate %327 by %c511_i32_240 dim 1 : vector<16x512xf32>, i32 -> vector<16x512xf32>
    %c14_241 = arith.constant 14 : index
    %c0_242 = arith.constant 0 : index
    %409 = vector.load %arg3[%c14_241, %c0_242] : memref<27x512xf32, #tpu.memory_space<vmem>>, vector<1x512xf32>
    %410 = vector.broadcast %409 : vector<1x512xf32> to vector<16x512xf32>
    %411 = arith.mulf %408, %410 : vector<16x512xf32>
    %412 = arith.truncf %411 : vector<16x512xf32> to vector<16x512xbf16>
    %c224_243 = arith.constant 224 : index
    %c0_244 = arith.constant 0 : index
    %413 = vector.load %arg9[%c224_243, %c0_244] : memref<864x512xbf16, #tpu.memory_space<vmem>>, vector<16x512xbf16>
    tpu.vector_store %arg9[%c224_243, %c0_244], %412 {strides = array<i32>} : memref<864x512xbf16, #tpu.memory_space<vmem>>, vector<16x512xbf16>,
    %c505_i32_245 = arith.constant 505 : i32
    %414 = tpu.dynamic_rotate %327 by %c505_i32_245 dim 1 : vector<16x512xf32>, i32 -> vector<16x512xf32>
    %c15_246 = arith.constant 15 : index
    %c0_247 = arith.constant 0 : index
    %415 = vector.load %arg3[%c15_246, %c0_247] : memref<27x512xf32, #tpu.memory_space<vmem>>, vector<1x512xf32>
    %416 = vector.broadcast %415 : vector<1x512xf32> to vector<16x512xf32>
    %417 = arith.mulf %414, %416 : vector<16x512xf32>
    %418 = arith.truncf %417 : vector<16x512xf32> to vector<16x512xbf16>
    %c240_248 = arith.constant 240 : index
    %c0_249 = arith.constant 0 : index
    %419 = vector.load %arg9[%c240_248, %c0_249] : memref<864x512xbf16, #tpu.memory_space<vmem>>, vector<16x512xbf16>
    tpu.vector_store %arg9[%c240_248, %c0_249], %418 {strides = array<i32>} : memref<864x512xbf16, #tpu.memory_space<vmem>>, vector<16x512xbf16>,
    %c504_i32_250 = arith.constant 504 : i32
    %420 = tpu.dynamic_rotate %327 by %c504_i32_250 dim 1 : vector<16x512xf32>, i32 -> vector<16x512xf32>
    %c16_251 = arith.constant 16 : index
    %c0_252 = arith.constant 0 : index
    %421 = vector.load %arg3[%c16_251, %c0_252] : memref<27x512xf32, #tpu.memory_space<vmem>>, vector<1x512xf32>
    %422 = vector.broadcast %421 : vector<1x512xf32> to vector<16x512xf32>
    %423 = arith.mulf %420, %422 : vector<16x512xf32>
    %424 = arith.truncf %423 : vector<16x512xf32> to vector<16x512xbf16>
    %c256_253 = arith.constant 256 : index
    %c0_254 = arith.constant 0 : index
    %425 = vector.load %arg9[%c256_253, %c0_254] : memref<864x512xbf16, #tpu.memory_space<vmem>>, vector<16x512xbf16>
    tpu.vector_store %arg9[%c256_253, %c0_254], %424 {strides = array<i32>} : memref<864x512xbf16, #tpu.memory_space<vmem>>, vector<16x512xbf16>,
    %c503_i32_255 = arith.constant 503 : i32
    %426 = tpu.dynamic_rotate %327 by %c503_i32_255 dim 1 : vector<16x512xf32>, i32 -> vector<16x512xf32>
    %c17_256 = arith.constant 17 : index
    %c0_257 = arith.constant 0 : index
    %427 = vector.load %arg3[%c17_256, %c0_257] : memref<27x512xf32, #tpu.memory_space<vmem>>, vector<1x512xf32>
    %428 = vector.broadcast %427 : vector<1x512xf32> to vector<16x512xf32>
    %429 = arith.mulf %426, %428 : vector<16x512xf32>
    %430 = arith.truncf %429 : vector<16x512xf32> to vector<16x512xbf16>
    %c272_258 = arith.constant 272 : index
    %c0_259 = arith.constant 0 : index
    %431 = vector.load %arg9[%c272_258, %c0_259] : memref<864x512xbf16, #tpu.memory_space<vmem>>, vector<16x512xbf16>
    tpu.vector_store %arg9[%c272_258, %c0_259], %430 {strides = array<i32>} : memref<864x512xbf16, #tpu.memory_space<vmem>>, vector<16x512xbf16>,
    %c457_i32_260 = arith.constant 457 : i32
    %432 = tpu.dynamic_rotate %327 by %c457_i32_260 dim 1 : vector<16x512xf32>, i32 -> vector<16x512xf32>
    %c18_261 = arith.constant 18 : index
    %c0_262 = arith.constant 0 : index
    %433 = vector.load %arg3[%c18_261, %c0_262] : memref<27x512xf32, #tpu.memory_space<vmem>>, vector<1x512xf32>
    %434 = vector.broadcast %433 : vector<1x512xf32> to vector<16x512xf32>
    %435 = arith.mulf %432, %434 : vector<16x512xf32>
    %436 = arith.truncf %435 : vector<16x512xf32> to vector<16x512xbf16>
    %c288_263 = arith.constant 288 : index
    %c0_264 = arith.constant 0 : index
    %437 = vector.load %arg9[%c288_263, %c0_264] : memref<864x512xbf16, #tpu.memory_space<vmem>>, vector<16x512xbf16>
    tpu.vector_store %arg9[%c288_263, %c0_264], %436 {strides = array<i32>} : memref<864x512xbf16, #tpu.memory_space<vmem>>, vector<16x512xbf16>,
    %c456_i32_265 = arith.constant 456 : i32
    %438 = tpu.dynamic_rotate %327 by %c456_i32_265 dim 1 : vector<16x512xf32>, i32 -> vector<16x512xf32>
    %c19_266 = arith.constant 19 : index
    %c0_267 = arith.constant 0 : index
    %439 = vector.load %arg3[%c19_266, %c0_267] : memref<27x512xf32, #tpu.memory_space<vmem>>, vector<1x512xf32>
    %440 = vector.broadcast %439 : vector<1x512xf32> to vector<16x512xf32>
    %441 = arith.mulf %438, %440 : vector<16x512xf32>
    %442 = arith.truncf %441 : vector<16x512xf32> to vector<16x512xbf16>
    %c304_268 = arith.constant 304 : index
    %c0_269 = arith.constant 0 : index
    %443 = vector.load %arg9[%c304_268, %c0_269] : memref<864x512xbf16, #tpu.memory_space<vmem>>, vector<16x512xbf16>
    tpu.vector_store %arg9[%c304_268, %c0_269], %442 {strides = array<i32>} : memref<864x512xbf16, #tpu.memory_space<vmem>>, vector<16x512xbf16>,
    %c455_i32_270 = arith.constant 455 : i32
    %444 = tpu.dynamic_rotate %327 by %c455_i32_270 dim 1 : vector<16x512xf32>, i32 -> vector<16x512xf32>
    %c20_271 = arith.constant 20 : index
    %c0_272 = arith.constant 0 : index
    %445 = vector.load %arg3[%c20_271, %c0_272] : memref<27x512xf32, #tpu.memory_space<vmem>>, vector<1x512xf32>
    %446 = vector.broadcast %445 : vector<1x512xf32> to vector<16x512xf32>
    %447 = arith.mulf %444, %446 : vector<16x512xf32>
    %448 = arith.truncf %447 : vector<16x512xf32> to vector<16x512xbf16>
    %c320_273 = arith.constant 320 : index
    %c0_274 = arith.constant 0 : index
    %449 = vector.load %arg9[%c320_273, %c0_274] : memref<864x512xbf16, #tpu.memory_space<vmem>>, vector<16x512xbf16>
    tpu.vector_store %arg9[%c320_273, %c0_274], %448 {strides = array<i32>} : memref<864x512xbf16, #tpu.memory_space<vmem>>, vector<16x512xbf16>,
    %c449_i32_275 = arith.constant 449 : i32
    %450 = tpu.dynamic_rotate %327 by %c449_i32_275 dim 1 : vector<16x512xf32>, i32 -> vector<16x512xf32>
    %c21_276 = arith.constant 21 : index
    %c0_277 = arith.constant 0 : index
    %451 = vector.load %arg3[%c21_276, %c0_277] : memref<27x512xf32, #tpu.memory_space<vmem>>, vector<1x512xf32>
    %452 = vector.broadcast %451 : vector<1x512xf32> to vector<16x512xf32>
    %453 = arith.mulf %450, %452 : vector<16x512xf32>
    %454 = arith.truncf %453 : vector<16x512xf32> to vector<16x512xbf16>
    %c336_278 = arith.constant 336 : index
    %c0_279 = arith.constant 0 : index
    %455 = vector.load %arg9[%c336_278, %c0_279] : memref<864x512xbf16, #tpu.memory_space<vmem>>, vector<16x512xbf16>
    tpu.vector_store %arg9[%c336_278, %c0_279], %454 {strides = array<i32>} : memref<864x512xbf16, #tpu.memory_space<vmem>>, vector<16x512xbf16>,
    %c448_i32_280 = arith.constant 448 : i32
    %456 = tpu.dynamic_rotate %327 by %c448_i32_280 dim 1 : vector<16x512xf32>, i32 -> vector<16x512xf32>
    %c22_281 = arith.constant 22 : index
    %c0_282 = arith.constant 0 : index
    %457 = vector.load %arg3[%c22_281, %c0_282] : memref<27x512xf32, #tpu.memory_space<vmem>>, vector<1x512xf32>
    %458 = vector.broadcast %457 : vector<1x512xf32> to vector<16x512xf32>
    %459 = arith.mulf %456, %458 : vector<16x512xf32>
    %460 = arith.truncf %459 : vector<16x512xf32> to vector<16x512xbf16>
    %c352_283 = arith.constant 352 : index
    %c0_284 = arith.constant 0 : index
    %461 = vector.load %arg9[%c352_283, %c0_284] : memref<864x512xbf16, #tpu.memory_space<vmem>>, vector<16x512xbf16>
    tpu.vector_store %arg9[%c352_283, %c0_284], %460 {strides = array<i32>} : memref<864x512xbf16, #tpu.memory_space<vmem>>, vector<16x512xbf16>,
    %c447_i32_285 = arith.constant 447 : i32
    %462 = tpu.dynamic_rotate %327 by %c447_i32_285 dim 1 : vector<16x512xf32>, i32 -> vector<16x512xf32>
    %c23_286 = arith.constant 23 : index
    %c0_287 = arith.constant 0 : index
    %463 = vector.load %arg3[%c23_286, %c0_287] : memref<27x512xf32, #tpu.memory_space<vmem>>, vector<1x512xf32>
    %464 = vector.broadcast %463 : vector<1x512xf32> to vector<16x512xf32>
    %465 = arith.mulf %462, %464 : vector<16x512xf32>
    %466 = arith.truncf %465 : vector<16x512xf32> to vector<16x512xbf16>
    %c368_288 = arith.constant 368 : index
    %c0_289 = arith.constant 0 : index
    %467 = vector.load %arg9[%c368_288, %c0_289] : memref<864x512xbf16, #tpu.memory_space<vmem>>, vector<16x512xbf16>
    tpu.vector_store %arg9[%c368_288, %c0_289], %466 {strides = array<i32>} : memref<864x512xbf16, #tpu.memory_space<vmem>>, vector<16x512xbf16>,
    %c441_i32_290 = arith.constant 441 : i32
    %468 = tpu.dynamic_rotate %327 by %c441_i32_290 dim 1 : vector<16x512xf32>, i32 -> vector<16x512xf32>
    %c24_291 = arith.constant 24 : index
    %c0_292 = arith.constant 0 : index
    %469 = vector.load %arg3[%c24_291, %c0_292] : memref<27x512xf32, #tpu.memory_space<vmem>>, vector<1x512xf32>
    %470 = vector.broadcast %469 : vector<1x512xf32> to vector<16x512xf32>
    %471 = arith.mulf %468, %470 : vector<16x512xf32>
    %472 = arith.truncf %471 : vector<16x512xf32> to vector<16x512xbf16>
    %c384_293 = arith.constant 384 : index
    %c0_294 = arith.constant 0 : index
    %473 = vector.load %arg9[%c384_293, %c0_294] : memref<864x512xbf16, #tpu.memory_space<vmem>>, vector<16x512xbf16>
    tpu.vector_store %arg9[%c384_293, %c0_294], %472 {strides = array<i32>} : memref<864x512xbf16, #tpu.memory_space<vmem>>, vector<16x512xbf16>,
    %c440_i32_295 = arith.constant 440 : i32
    %474 = tpu.dynamic_rotate %327 by %c440_i32_295 dim 1 : vector<16x512xf32>, i32 -> vector<16x512xf32>
    %c25_296 = arith.constant 25 : index
    %c0_297 = arith.constant 0 : index
    %475 = vector.load %arg3[%c25_296, %c0_297] : memref<27x512xf32, #tpu.memory_space<vmem>>, vector<1x512xf32>
    %476 = vector.broadcast %475 : vector<1x512xf32> to vector<16x512xf32>
    %477 = arith.mulf %474, %476 : vector<16x512xf32>
    %478 = arith.truncf %477 : vector<16x512xf32> to vector<16x512xbf16>
    %c400_298 = arith.constant 400 : index
    %c0_299 = arith.constant 0 : index
    %479 = vector.load %arg9[%c400_298, %c0_299] : memref<864x512xbf16, #tpu.memory_space<vmem>>, vector<16x512xbf16>
    tpu.vector_store %arg9[%c400_298, %c0_299], %478 {strides = array<i32>} : memref<864x512xbf16, #tpu.memory_space<vmem>>, vector<16x512xbf16>,
    %c439_i32_300 = arith.constant 439 : i32
    %480 = tpu.dynamic_rotate %327 by %c439_i32_300 dim 1 : vector<16x512xf32>, i32 -> vector<16x512xf32>
    %c26_301 = arith.constant 26 : index
    %c0_302 = arith.constant 0 : index
    %481 = vector.load %arg3[%c26_301, %c0_302] : memref<27x512xf32, #tpu.memory_space<vmem>>, vector<1x512xf32>
    %482 = vector.broadcast %481 : vector<1x512xf32> to vector<16x512xf32>
    %483 = arith.mulf %480, %482 : vector<16x512xf32>
    %484 = arith.truncf %483 : vector<16x512xf32> to vector<16x512xbf16>
    %c416_303 = arith.constant 416 : index
    %c0_304 = arith.constant 0 : index
    %485 = vector.load %arg9[%c416_303, %c0_304] : memref<864x512xbf16, #tpu.memory_space<vmem>>, vector<16x512xbf16>
    tpu.vector_store %arg9[%c416_303, %c0_304], %484 {strides = array<i32>} : memref<864x512xbf16, #tpu.memory_space<vmem>>, vector<16x512xbf16>,
    %c0_305 = arith.constant 0 : index
    %c0_306 = arith.constant 0 : index
    %486 = vector.load %arg5[%c0_305, %c0_306] : memref<16x432xbf16, #tpu.memory_space<vmem>>, vector<16x432xbf16>
    %c0_307 = arith.constant 0 : index
    %c0_308 = arith.constant 0 : index
    %487 = vector.load %arg9[%c0_307, %c0_308] : memref<864x512xbf16, #tpu.memory_space<vmem>>, vector<432x512xbf16>
    %cst_309 = arith.constant dense<0.000000e+00> : vector<16x512xf32>
    %488 = tpu.matmul %486, %487, %cst_309 {dimension_numbers = #tpu.dot_dimension_numbers<[1], [0], [0], [1], [0, 0, 1, 1], [], []>} : vector<16x432xbf16>, vector<432x512xbf16>, vector<16x512xf32> -> vector<16x512xf32>
    %c0_310 = arith.constant 0 : index
    %c0_311 = arith.constant 0 : index
    %489 = vector.load %arg7[%c0_310, %c0_311] : memref<16x1xf32, #tpu.memory_space<vmem>>, vector<16x1xf32>
    %490 = vector.broadcast %489 : vector<16x1xf32> to vector<16x512xf32>
    %491 = arith.addf %488, %490 : vector<16x512xf32>
    %cst_312 = arith.constant 0.000000e+00 : f32
    %492 = vector.broadcast %cst_312 : f32 to vector<16x512xf32>
    %493 = arith.maximumf %491, %492 : vector<16x512xf32>
    %494 = vector.shape_cast %493 : vector<16x512xf32> to vector<1x16x512xf32>
    %c0_313 = arith.constant 0 : index
    %c0_314 = arith.constant 0 : index
    %c0_315 = arith.constant 0 : index
    %495 = vector.load %arg8[%c0_313, %c0_314, %c0_315] : memref<1x16x512xf32, #tpu.memory_space<vmem>>, vector<1x16x512xf32>
    tpu.vector_store %arg8[%c0_313, %c0_314, %c0_315], %494 {strides = array<i32>} : memref<1x16x512xf32, #tpu.memory_space<vmem>>, vector<1x16x512xf32>,
    return
  }
  func.func @transform_0(%arg0: i32) -> (i32, i32, i32) {
    %c0_i32 = arith.constant 0 : i32
    %c0_i32_0 = arith.constant 0 : i32
    %c0_i32_1 = arith.constant 0 : i32
    return %arg0, %c0_i32, %c0_i32_0 : i32, i32, i32
  }
  func.func @transform_1(%arg0: i32) -> (i32, i32, i32) {
    %c0_i32 = arith.constant 0 : i32
    %c0_i32_0 = arith.constant 0 : i32
    %c0_i32_1 = arith.constant 0 : i32
    return %arg0, %c0_i32, %c0_i32_0 : i32, i32, i32
  }
  func.func @transform_2(%arg0: i32) -> (i32, i32) {
    %c0_i32 = arith.constant 0 : i32
    %c0_i32_0 = arith.constant 0 : i32
    %c0_i32_1 = arith.constant 0 : i32
    return %c0_i32, %c0_i32_0 : i32, i32
  }
  func.func @transform_3(%arg0: i32) -> (i32, i32) {
    %c0_i32 = arith.constant 0 : i32
    %c0_i32_0 = arith.constant 0 : i32
    %c0_i32_1 = arith.constant 0 : i32
    return %c0_i32, %c0_i32_0 : i32, i32
  }
  func.func @transform_4(%arg0: i32) -> (i32, i32) {
    %c0_i32 = arith.constant 0 : i32
    %c0_i32_0 = arith.constant 0 : i32
    %c0_i32_1 = arith.constant 0 : i32
    return %c0_i32, %c0_i32_0 : i32, i32
  }
  func.func @transform_5(%arg0: i32) -> (i32, i32) {
    %c0_i32 = arith.constant 0 : i32
    %c0_i32_0 = arith.constant 0 : i32
    %c0_i32_1 = arith.constant 0 : i32
    return %c0_i32, %c0_i32_0 : i32, i32
  }
  func.func @transform_6(%arg0: i32) -> (i32, i32) {
    %c0_i32 = arith.constant 0 : i32
    %c0_i32_0 = arith.constant 0 : i32
    %c0_i32_1 = arith.constant 0 : i32
    return %c0_i32, %c0_i32_0 : i32, i32
  }
  func.func @transform_7(%arg0: i32) -> (i32, i32, i32) {
    %c0_i32 = arith.constant 0 : i32
    %c0_i32_0 = arith.constant 0 : i32
    %c0_i32_1 = arith.constant 0 : i32
    return %arg0, %c0_i32, %c0_i32_0 : i32, i32, i32
  }
}

</mosaic_0001>

<llo_original>
// kernel: up3d_forward.1
$region0: #{up3d_forward.1}
  #allocation0 [shape = 'u32[]', space=smem, size = 0x4, offset = 0x4, fixed_abs, tag = 'smem constant byte address 0x4 - core index']
  #allocation1 [shape = 'u32[72,128]{1,0:T(1,128)}', space=vmem, size = 0x9000, scoped, tag = 'internal scratch']
  #allocation2 [shape = 'bf16[864,512]{1,0:T(8,128)(2,1)}', space=vmem, size = 0xd8000, scoped, tag = 'scratch operand']
  %s0 = inlined_call_operand.vmem [shape: f32[2,16,512], index: 0, kind: input, shape index: {}]
  %s1 = inlined_call_operand.vmem [shape: f32[2,16,512], index: 1, kind: input, shape index: {}]
  %s2 = inlined_call_operand.vmem [shape: f32[27,512], index: 2, kind: input, shape index: {}]
  %s3 = inlined_call_operand.vmem [shape: bf16[16,864], index: 3, kind: input, shape index: {}]
  %s4 = inlined_call_operand.vmem [shape: bf16[16,432], index: 4, kind: input, shape index: {}]
  %s5 = inlined_call_operand.vmem [shape: f32[16,1], index: 5, kind: input, shape index: {}]
  %s6 = inlined_call_operand.vmem [shape: f32[16,1], index: 6, kind: input, shape index: {}]
  %s7 = inlined_call_operand.vmem [shape: f32[2,16,512], index: 7, kind: output, shape index: {}]
  %s8 = sld [smem:[#allocation0]]
  $region61: #{up3d_forward.1} parent=0
    _
  %s10 = ssub.s32 1, %s8
  %s11 = scalar_select 0, %s10, %s8
  loop: start=0, step=1, limit=4
  $region2: #{up3d_forward.1} parent=0 // loop_pre_header
    _
  $region3: #{up3d_forward.1} parent=0 // loop_header
    %s13 = sphi 0, %s17
    %p14 = scmp.ge.s32.totalorder %s13, 4
    %s23 = sphi 0, %s25
    %s26 = sphi 0, %s23
    %s27 = sphi 0, %s26
    %s43 = sphi 0, %s27
    %s49 = sphi 0, %s51
    %s52 = sphi 0, %s49
    %s53 = sphi 0, %s52
    %s69 = sphi 0, %s53
    %s73 = sphi 0, %s73
    %s75 = sphi 0, %s73
    %s76 = sphi 0, %s75
    %s90 = sphi 0, %s76
    %s94 = sphi 0, %s94
    %s96 = sphi 0, %s94
    %s97 = sphi 0, %s96
    %s111 = sphi 0, %s97
    %s115 = sphi 0, %s115
    %s117 = sphi 0, %s115
    %s118 = sphi 0, %s117
    %s132 = sphi 0, %s118
    %s136 = sphi 0, %s136
    %s138 = sphi 0, %s136
    %s139 = sphi 0, %s138
    %s153 = sphi 0, %s139
    %s157 = sphi 0, %s157
    %s159 = sphi 0, %s157
    %s160 = sphi 0, %s159
    %s174 = sphi 0, %s160
    %s180 = sphi 0, %s182
    %s183 = sphi 0, %s180
    %s184 = sphi 0, %s183
    %s200 = sphi 0, %s184
  $region4: #{up3d_forward.1} parent=0 // loop_header_branch
    %16 = sbr.rel (%p14) target = $region8
  $region5: #{up3d_forward.1} parent=0 // loop_body
    %s18 = ssub.s32 %s13, 1
    %s19 = ssub.s32 %s13, 2
    %s20 = sadd.s32 %s13, 1
    %s21 = ssub.s32 %s13, %s20
    %p22 = scmp.eq.s32.totalorder %s21, 0
    %s24 = sadd.s32 %s23, 1
    %s25 = scalar_select %p22, %s23, %s24
    %p28 = pneg %p22
    %p29 = scmp.eq.s32.totalorder %s13, 1
    %p30 = por %p28, %p29
    %p31 = scmp.ne.s32.totalorder %s23, %s26
    %p32 = scmp.eq.s32.totalorder %s13, 0
    %p33 = por %p31, %p32
    %p34 = scmp.ne.s32.totalorder %s23, %s26
    %p35 = scmp.eq.s32.totalorder %s18, 1
    %p36 = por %p34, %p35
    %p37 = scmp.ne.s32.totalorder %s26, %s27
    %p38 = scmp.eq.s32.totalorder %s18, 0
    %p39 = por %p37, %p38
    %p40 = scmp.ne.s32.totalorder %s26, %s27
    %p41 = scmp.eq.s32.totalorder %s19, 1
    %p42 = por %p40, %p41
    %p44 = scmp.ne.s32.totalorder %s27, %s43
    %p45 = scmp.eq.s32.totalorder %s19, 0
    %p46 = por %p44, %p45
    %s47 = ssub.s32 %s13, %s20
    %p48 = scmp.eq.s32.totalorder %s47, 0
    %s50 = sadd.s32 %s49, 1
    %s51 = scalar_select %p48, %s49, %s50
    %p54 = pneg %p48
    %p55 = scmp.eq.s32.totalorder %s13, 1
    %p56 = por %p54, %p55
    %p57 = scmp.ne.s32.totalorder %s49, %s52
    %p58 = scmp.eq.s32.totalorder %s13, 0
    %p59 = por %p57, %p58
    %p60 = scmp.ne.s32.totalorder %s49, %s52
    %p61 = scmp.eq.s32.totalorder %s18, 1
    %p62 = por %p60, %p61
    %p63 = scmp.ne.s32.totalorder %s52, %s53
    %p64 = scmp.eq.s32.totalorder %s18, 0
    %p65 = por %p63, %p64
    %p66 = scmp.ne.s32.totalorder %s52, %s53
    %p67 = scmp.eq.s32.totalorder %s19, 1
    %p68 = por %p66, %p67
    %p70 = scmp.ne.s32.totalorder %s53, %s69
    %p71 = scmp.eq.s32.totalorder %s19, 0
    %p72 = por %p70, %p71
    %s74 = sadd.s32 %s73, 1
    %p77 = scmp.eq.s32.totalorder %s13, 1
    %p78 = scmp.ne.s32.totalorder %s73, %s75
    %p79 = scmp.eq.s32.totalorder %s13, 0
    %p80 = por %p78, %p79
    %p81 = scmp.ne.s32.totalorder %s73, %s75
    %p82 = scmp.eq.s32.totalorder %s18, 1
    %p83 = por %p81, %p82
    %p84 = scmp.ne.s32.totalorder %s75, %s76
    %p85 = scmp.eq.s32.totalorder %s18, 0
    %p86 = por %p84, %p85
    %p87 = scmp.ne.s32.totalorder %s75, %s76
    %p88 = scmp.eq.s32.totalorder %s19, 1
    %p89 = por %p87, %p88
    %p91 = scmp.ne.s32.totalorder %s76, %s90
    %p92 = scmp.eq.s32.totalorder %s19, 0
    %p93 = por %p91, %p92
    %s95 = sadd.s32 %s94, 1
    %p98 = scmp.eq.s32.totalorder %s13, 1
    %p99 = scmp.ne.s32.totalorder %s94, %s96
    %p100 = scmp.eq.s32.totalorder %s13, 0
    %p101 = por %p99, %p100
    %p102 = scmp.ne.s32.totalorder %s94, %s96
    %p103 = scmp.eq.s32.totalorder %s18, 1
    %p104 = por %p102, %p103
    %p105 = scmp.ne.s32.totalorder %s96, %s97
    %p106 = scmp.eq.s32.totalorder %s18, 0
    %p107 = por %p105, %p106
    %p108 = scmp.ne.s32.totalorder %s96, %s97
    %p109 = scmp.eq.s32.totalorder %s19, 1
    %p110 = por %p108, %p109
    %p112 = scmp.ne.s32.totalorder %s97, %s111
    %p113 = scmp.eq.s32.totalorder %s19, 0
    %p114 = por %p112, %p113
    %s116 = sadd.s32 %s115, 1
    %p119 = scmp.eq.s32.totalorder %s13, 1
    %p120 = scmp.ne.s32.totalorder %s115, %s117
    %p121 = scmp.eq.s32.totalorder %s13, 0
    %p122 = por %p120, %p121
    %p123 = scmp.ne.s32.totalorder %s115, %s117
    %p124 = scmp.eq.s32.totalorder %s18, 1
    %p125 = por %p123, %p124
    %p126 = scmp.ne.s32.totalorder %s117, %s118
    %p127 = scmp.eq.s32.totalorder %s18, 0
    %p128 = por %p126, %p127
    %p129 = scmp.ne.s32.totalorder %s117, %s118
    %p130 = scmp.eq.s32.totalorder %s19, 1
    %p131 = por %p129, %p130
    %p133 = scmp.ne.s32.totalorder %s118, %s132
    %p134 = scmp.eq.s32.totalorder %s19, 0
    %p135 = por %p133, %p134
    %s137 = sadd.s32 %s136, 1
    %p140 = scmp.eq.s32.totalorder %s13, 1
    %p141 = scmp.ne.s32.totalorder %s136, %s138
    %p142 = scmp.eq.s32.totalorder %s13, 0
    %p143 = por %p141, %p142
    %p144 = scmp.ne.s32.totalorder %s136, %s138
    %p145 = scmp.eq.s32.totalorder %s18, 1
    %p146 = por %p144, %p145
    %p147 = scmp.ne.s32.totalorder %s138, %s139
    %p148 = scmp.eq.s32.totalorder %s18, 0
    %p149 = por %p147, %p148
    %p150 = scmp.ne.s32.totalorder %s138, %s139
    %p151 = scmp.eq.s32.totalorder %s19, 1
    %p152 = por %p150, %p151
    %p154 = scmp.ne.s32.totalorder %s139, %s153
    %p155 = scmp.eq.s32.totalorder %s19, 0
    %p156 = por %p154, %p155
    %s158 = sadd.s32 %s157, 1
    %p161 = scmp.eq.s32.totalorder %s13, 1
    %p162 = scmp.ne.s32.totalorder %s157, %s159
    %p163 = scmp.eq.s32.totalorder %s13, 0
    %p164 = por %p162, %p163
    %p165 = scmp.ne.s32.totalorder %s157, %s159
    %p166 = scmp.eq.s32.totalorder %s18, 1
    %p167 = por %p165, %p166
    %p168 = scmp.ne.s32.totalorder %s159, %s160
    %p169 = scmp.eq.s32.totalorder %s18, 0
    %p170 = por %p168, %p169
    %p171 = scmp.ne.s32.totalorder %s159, %s160
    %p172 = scmp.eq.s32.totalorder %s19, 1
    %p173 = por %p171, %p172
    %p175 = scmp.ne.s32.totalorder %s160, %s174
    %p176 = scmp.eq.s32.totalorder %s19, 0
    %p177 = por %p175, %p176
    %s178 = ssub.s32 %s13, %s20
    %p179 = scmp.eq.s32.totalorder %s178, 0
    %s181 = sadd.s32 %s180, 1
    %s182 = scalar_select %p179, %s180, %s181
    %p185 = pneg %p179
    %p186 = scmp.eq.s32.totalorder %s13, 1
    %p187 = por %p185, %p186
    %p188 = scmp.ne.s32.totalorder %s180, %s183
    %p189 = scmp.eq.s32.totalorder %s13, 0
    %p190 = por %p188, %p189
    %p191 = scmp.ne.s32.totalorder %s180, %s183
    %p192 = scmp.eq.s32.totalorder %s18, 1
    %p193 = por %p191, %p192
    %p194 = scmp.ne.s32.totalorder %s183, %s184
    %p195 = scmp.eq.s32.totalorder %s18, 0
    %p196 = por %p194, %p195
    %p197 = scmp.ne.s32.totalorder %s183, %s184
    %p198 = scmp.eq.s32.totalorder %s19, 1
    %p199 = por %p197, %p198
    %p201 = scmp.ne.s32.totalorder %s184, %s200
    %p202 = scmp.eq.s32.totalorder %s19, 0
    %p203 = por %p201, %p202
    %p204 = scmp.le.s32.totalorder 1, %s13
    %p205 = scmp.lt.s32.totalorder %s13, 3
    %p206 = pnand %p204, %p205
    %p207 = pneg %p206
    // Predicated region
    $region9: #{up3d_forward.1} parent=5 // pred_check
      _
    $region10: #{up3d_forward.1} parent=5 // pred_check_branch
      %209 = sbr.rel (%p206) target = $region12
    $region11: #{up3d_forward.1} parent=5 // pred_region
      %s210 = ssub.s32 %s13, 1
      // Predicated region
      $region13: #{up3d_forward.1} parent=11 // pred_check
        %p211 = pneg %p86
      $region14: #{up3d_forward.1} parent=11 // pred_check_branch
        %213 = sbr.rel (%p211) target = $region16
      $region15: #{up3d_forward.1} parent=11 // pred_region
        _
      $region16: #{up3d_forward.1} parent=11 // pred_fallthru
        _
      // Predicated region
      $region17: #{up3d_forward.1} parent=11 // pred_check
        %p214 = pneg %p107
      $region18: #{up3d_forward.1} parent=11 // pred_check_branch
        %216 = sbr.rel (%p214) target = $region20
      $region19: #{up3d_forward.1} parent=11 // pred_region
        _
      $region20: #{up3d_forward.1} parent=11 // pred_fallthru
        _
      // Predicated region
      $region21: #{up3d_forward.1} parent=11 // pred_check
        %p217 = pneg %p128
      $region22: #{up3d_forward.1} parent=11 // pred_check_branch
        %219 = sbr.rel (%p217) target = $region24
      $region23: #{up3d_forward.1} parent=11 // pred_region
        _
      $region24: #{up3d_forward.1} parent=11 // pred_fallthru
        _
      // Predicated region
      $region25: #{up3d_forward.1} parent=11 // pred_check
        %p220 = pneg %p149
      $region26: #{up3d_forward.1} parent=11 // pred_check_branch
        %222 = sbr.rel (%p220) target = $region28
      $region27: #{up3d_forward.1} parent=11 // pred_region
        _
      $region28: #{up3d_forward.1} parent=11 // pred_fallthru
        _
      // Predicated region
      $region29: #{up3d_forward.1} parent=11 // pred_check
        %p223 = pneg %p170
      $region30: #{up3d_forward.1} parent=11 // pred_check_branch
        %225 = sbr.rel (%p223) target = $region32
      $region31: #{up3d_forward.1} parent=11 // pred_region
        _
      $region32: #{up3d_forward.1} parent=11 // pred_fallthru
        _
    $region12: #{up3d_forward.1} parent=5 // pred_fallthru
      _
    %p226 = scmp.lt.s32.totalorder %s13, 2
    // Predicated region
    $region33: #{up3d_forward.1} parent=5 // pred_check
      %p227 = pneg %p226
    $region34: #{up3d_forward.1} parent=5 // pred_check_branch
      %229 = sbr.rel (%p227) target = $region36
    $region35: #{up3d_forward.1} parent=5 // pred_region
      // Predicated region
      $region37: #{up3d_forward.1} parent=35 // pred_check
        %p230 = pneg %p33
      $region38: #{up3d_forward.1} parent=35 // pred_check_branch
        %232 = sbr.rel (%p230) target = $region40
      $region39: #{up3d_forward.1} parent=35 // pred_region
        %p233 = scmp.lt.s32.totalorder %s13, 1
        %s234 = scalar_select %p233, %s13, 1
        %s235 = smul.addr %s234, 8
        %s236 = smul.addr %s235, 8
        %s237 = scalar_lea.vmem %s0, %s236
      $region40: #{up3d_forward.1} parent=35 // pred_fallthru
        _
      // Predicated region
      $region41: #{up3d_forward.1} parent=35 // pred_check
        %p238 = pneg %p59
      $region42: #{up3d_forward.1} parent=35 // pred_check_branch
        %240 = sbr.rel (%p238) target = $region44
      $region43: #{up3d_forward.1} parent=35 // pred_region
        %p241 = scmp.lt.s32.totalorder %s13, 1
        %s242 = scalar_select %p241, %s13, 1
        %s243 = smul.addr %s242, 8
        %s244 = smul.addr %s243, 8
        %s245 = scalar_lea.vmem %s1, %s244
      $region44: #{up3d_forward.1} parent=35 // pred_fallthru
        _
    $region36: #{up3d_forward.1} parent=5 // pred_fallthru
      _
    %p246 = scmp.le.s32.totalorder 1, %s13
    %p247 = scmp.lt.s32.totalorder %s13, 3
    %p248 = pnand %p246, %p247
    %p249 = pneg %p248
    // Predicated region
    $region45: #{up3d_forward.1} parent=5 // pred_check
      _
    $region46: #{up3d_forward.1} parent=5 // pred_check_branch
      %251 = sbr.rel (%p248) target = $region48
    $region47: #{up3d_forward.1} parent=5 // pred_region
      %s252 = ssub.s32 %s13, 1
      %p253 = scmp.lt.s32.totalorder %s18, 1
      %s254 = scalar_select %p253, %s18, 1
      %s255 = smul.addr %s254, 8
      %s256 = smul.addr %s255, 8
      %s257 = scalar_lea.vmem %s0, %s256
      %p258 = pneg %p39
      %p259 = pneg %p36
      %p260 = scmp.lt.s32.totalorder %s18, 1
      %s261 = scalar_select %p260, %s18, 1
      %s262 = smul.addr %s261, 8
      %s263 = smul.addr %s262, 8
      %s264 = scalar_lea.vmem %s1, %s263
      %p265 = pneg %p65
      %p266 = pneg %p62
      %p267 = pneg %p86
      %p268 = pneg %p83
      %p269 = pneg %p107
      %p270 = pneg %p104
      %p271 = pneg %p128
      %p272 = pneg %p125
      %p273 = pneg %p149
      %p274 = pneg %p146
      %p275 = pneg %p170
      %p276 = pneg %p167
      %p277 = pneg %p196
      %p278 = pneg %p193
      %p279 = scmp.lt.s32.totalorder %s18, 1
      %s280 = scalar_select %p279, %s18, 1
      %s281 = smul.addr %s280, 8
      %s282 = smul.addr %s281, 8
      %s283 = scalar_lea.vmem %s7, %s282
      %p284 = scmp.lt.s32.totalorder %s18, 1
      %s285 = scalar_select %p284, %s18, 1
      %s286 = smul.addr %s285, 8
      %s287 = smul.addr %s286, 8
      %s288 = scalar_lea.vmem %s0, %s287
      %p289 = scmp.lt.s32.totalorder %s18, 1
      %s290 = scalar_select %p289, %s18, 1
      %s291 = smul.addr %s290, 8
      %s292 = smul.addr %s291, 8
      %s293 = scalar_lea.vmem %s1, %s292
      %p294 = scmp.lt.s32.totalorder %s18, 1
      %s295 = scalar_select %p294, %s18, 1
      %s296 = smul.addr %s295, 8
      %s297 = smul.addr %s296, 8
      %s298 = scalar_lea.vmem %s7, %s297
      %v300 = vld [vmem:[%s288] sm:$0xff]
      %v301 = vld [vmem:[%s288 + $0x8] sm:$0xff]
      %v302 = vld [vmem:[%s288 + $0x10] sm:$0xff]
      %v303 = vld [vmem:[%s288 + $0x18] sm:$0xff]
      %v304 = vld [vmem:[%s288 + $0x20] sm:$0xff]
      %v305 = vld [vmem:[%s288 + $0x28] sm:$0xff]
      %v306 = vld [vmem:[%s288 + $0x30] sm:$0xff]
      %v307 = vld [vmem:[%s288 + $0x38] sm:$0xff]
      %v308 = vld [vmem:[%s293] sm:$0xff]
      %v309 = vld [vmem:[%s293 + $0x8] sm:$0xff]
      %v310 = vld [vmem:[%s293 + $0x10] sm:$0xff]
      %v311 = vld [vmem:[%s293 + $0x18] sm:$0xff]
      %v312 = vld [vmem:[%s293 + $0x20] sm:$0xff]
      %v313 = vld [vmem:[%s293 + $0x28] sm:$0xff]
      %v314 = vld [vmem:[%s293 + $0x30] sm:$0xff]
      %v315 = vld [vmem:[%s293 + $0x38] sm:$0xff]
      %316 = vrot.lane.b32.xlu0 %v300, 73
      %v317 = vpop.permute.xlu0 %316
      %318 = vrot.lane.b32.xlu0 %v304, 73
      %v319 = vpop.permute.xlu0 %318
      %320 = vrot.lane.b32.xlu0 %v301, 73
      %v321 = vpop.permute.xlu0 %320
      %322 = vrot.lane.b32.xlu0 %v305, 73
      %v323 = vpop.permute.xlu0 %322
      %324 = vrot.lane.b32.xlu0 %v302, 73
      %v325 = vpop.permute.xlu0 %324
      %326 = vrot.lane.b32.xlu0 %v306, 73
      %v327 = vpop.permute.xlu0 %326
      %328 = vrot.lane.b32.xlu0 %v303, 73
      %v329 = vpop.permute.xlu0 %328
      %330 = vrot.lane.b32.xlu0 %v307, 73
      %v331 = vpop.permute.xlu0 %330
      %v332 = vlaneseq
      %v333 = vand.u32 %v332, 127
      %vm334 = vcmp.lt.s32.totalorder %v333, 73
      %v335 = vsel %vm334, %v325, %v329
      %v336 = vsel %vm334, %v327, %v331
      %v337 = vsel %vm334, %v321, %v325
      %v338 = vsel %vm334, %v323, %v327
      %v339 = vsel %vm334, %v317, %v321
      %v340 = vsel %vm334, %v319, %v323
      %v341 = vsel %vm334, %v329, %v317
      %v342 = vsel %vm334, %v331, %v319
      %v343 = vld [vmem:[%s2] ss:$8 sm:$0xf]
      %v345 = vperm.slane %v343, 0
      %v346 = vperm.slane %v343, 1
      %v347 = vperm.slane %v343, 2
      %v348 = vperm.slane %v343, 3
      %v353 = vmul.f32 %v341, %v345
      %v354 = vmul.f32 %v339, %v346
      %v355 = vmul.f32 %v337, %v347
      %v356 = vmul.f32 %v335, %v348
      %v357 = vmul.f32 %v342, %v345
      %v358 = vmul.f32 %v340, %v346
      %v359 = vmul.f32 %v338, %v347
      %v360 = vmul.f32 %v336, %v348
      %v361 = vpack.c.bf16 %v354, %v353
      %v362 = vpack.c.bf16 %v356, %v355
      %v363 = vpack.c.bf16 %v358, %v357
      %v364 = vpack.c.bf16 %v360, %v359
      %365 = vst [vmem:[#allocation2] sm:$0xff] %v361
      %366 = vst [vmem:[#allocation2 + $0x8] sm:$0xff] %v362
      %367 = vst [vmem:[#allocation2 + $0x10] sm:$0xff] %v363
      %368 = vst [vmem:[#allocation2 + $0x18] sm:$0xff] %v364
      %369 = vrot.lane.b32.xlu0 %v308, 73
      %v370 = vpop.permute.xlu0 %369
      %371 = vrot.lane.b32.xlu0 %v312, 73
      %v372 = vpop.permute.xlu0 %371
      %373 = vrot.lane.b32.xlu0 %v309, 73
      %v374 = vpop.permute.xlu0 %373
      %375 = vrot.lane.b32.xlu0 %v313, 73
      %v376 = vpop.permute.xlu0 %375
      %377 = vrot.lane.b32.xlu0 %v310, 73
      %v378 = vpop.permute.xlu0 %377
      %379 = vrot.lane.b32.xlu0 %v314, 73
      %v380 = vpop.permute.xlu0 %379
      %381 = vrot.lane.b32.xlu0 %v311, 73
      %v382 = vpop.permute.xlu0 %381
      %383 = vrot.lane.b32.xlu0 %v315, 73
      %v384 = vpop.permute.xlu0 %383
      %v385 = vsel %vm334, %v378, %v382
      %v386 = vsel %vm334, %v380, %v384
      %v387 = vsel %vm334, %v374, %v378
      %v388 = vsel %vm334, %v376, %v380
      %v389 = vsel %vm334, %v370, %v374
      %v390 = vsel %vm334, %v372, %v376
      %v391 = vsel %vm334, %v382, %v370
      %v392 = vsel %vm334, %v384, %v372
      %v393 = vld [vmem:[%s2] ss:$8 sm:$0xf]
      %v395 = vperm.slane %v393, 0
      %v396 = vperm.slane %v393, 1
      %v397 = vperm.slane %v393, 2
      %v398 = vperm.slane %v393, 3
      %v403 = vmul.f32 %v391, %v395
      %v404 = vmul.f32 %v389, %v396
      %v405 = vmul.f32 %v387, %v397
      %v406 = vmul.f32 %v385, %v398
      %v407 = vmul.f32 %v392, %v395
      %v408 = vmul.f32 %v390, %v396
      %v409 = vmul.f32 %v388, %v397
      %v410 = vmul.f32 %v386, %v398
      %v411 = vpack.c.bf16 %v404, %v403
      %v412 = vpack.c.bf16 %v406, %v405
      %v413 = vpack.c.bf16 %v408, %v407
      %v414 = vpack.c.bf16 %v410, %v409
      %415 = vst [vmem:[#allocation2 + $0x20] sm:$0xff] %v411
      %416 = vst [vmem:[#allocation2 + $0x28] sm:$0xff] %v412
      %417 = vst [vmem:[#allocation2 + $0x30] sm:$0xff] %v413
      %418 = vst [vmem:[#allocation2 + $0x38] sm:$0xff] %v414
      %419 = vrot.lane.b32.xlu0 %v300, 72
      %v420 = vpop.permute.xlu0 %419
      %421 = vrot.lane.b32.xlu0 %v304, 72
      %v422 = vpop.permute.xlu0 %421
      %423 = vrot.lane.b32.xlu0 %v301, 72
      %v424 = vpop.permute.xlu0 %423
      %425 = vrot.lane.b32.xlu0 %v305, 72
      %v426 = vpop.permute.xlu0 %425
      %427 = vrot.lane.b32.xlu0 %v302, 72
      %v428 = vpop.permute.xlu0 %427
      %429 = vrot.lane.b32.xlu0 %v306, 72
      %v430 = vpop.permute.xlu0 %429
      %431 = vrot.lane.b32.xlu0 %v303, 72
      %v432 = vpop.permute.xlu0 %431
      %433 = vrot.lane.b32.xlu0 %v307, 72
      %v434 = vpop.permute.xlu0 %433
      %vm435 = vcmp.lt.s32.totalorder %v333, 72
      %v436 = vsel %vm435, %v428, %v432
      %v437 = vsel %vm435, %v430, %v434
      %v438 = vsel %vm435, %v424, %v428
      %v439 = vsel %vm435, %v426, %v430
      %v440 = vsel %vm435, %v420, %v424
      %v441 = vsel %vm435, %v422, %v426
      %v442 = vsel %vm435, %v432, %v420
      %v443 = vsel %vm435, %v434, %v422
      %s444 = scalar_lea.vmem %s2, 1
      %v445 = vld [vmem:[%s444] ss:$8 sm:$0xf]
      %v447 = vperm.slane %v445, 0
      %v448 = vperm.slane %v445, 1
      %v449 = vperm.slane %v445, 2
      %v450 = vperm.slane %v445, 3
      %v455 = vmul.f32 %v442, %v447
      %v456 = vmul.f32 %v440, %v448
      %v457 = vmul.f32 %v438, %v449
      %v458 = vmul.f32 %v436, %v450
      %v459 = vmul.f32 %v443, %v447
      %v460 = vmul.f32 %v441, %v448
      %v461 = vmul.f32 %v439, %v449
      %v462 = vmul.f32 %v437, %v450
      %v463 = vpack.c.bf16 %v456, %v455
      %v464 = vpack.c.bf16 %v458, %v457
      %v465 = vpack.c.bf16 %v460, %v459
      %v466 = vpack.c.bf16 %v462, %v461
      %467 = vst [vmem:[#allocation2 + $0x40] sm:$0xff] %v463
      %468 = vst [vmem:[#allocation2 + $0x48] sm:$0xff] %v464
      %469 = vst [vmem:[#allocation2 + $0x50] sm:$0xff] %v465
      %470 = vst [vmem:[#allocation2 + $0x58] sm:$0xff] %v466
      %471 = vrot.lane.b32.xlu0 %v308, 72
      %v472 = vpop.permute.xlu0 %471
      %473 = vrot.lane.b32.xlu0 %v312, 72
      %v474 = vpop.permute.xlu0 %473
      %475 = vrot.lane.b32.xlu0 %v309, 72
      %v476 = vpop.permute.xlu0 %475
      %477 = vrot.lane.b32.xlu0 %v313, 72
      %v478 = vpop.permute.xlu0 %477
      %479 = vrot.lane.b32.xlu0 %v310, 72
      %v480 = vpop.permute.xlu0 %479
      %481 = vrot.lane.b32.xlu0 %v314, 72
      %v482 = vpop.permute.xlu0 %481
      %483 = vrot.lane.b32.xlu0 %v311, 72
      %v484 = vpop.permute.xlu0 %483
      %485 = vrot.lane.b32.xlu0 %v315, 72
      %v486 = vpop.permute.xlu0 %485
      %v487 = vsel %vm435, %v480, %v484
      %v488 = vsel %vm435, %v482, %v486
      %v489 = vsel %vm435, %v476, %v480
      %v490 = vsel %vm435, %v478, %v482
      %v491 = vsel %vm435, %v472, %v476
      %v492 = vsel %vm435, %v474, %v478
      %v493 = vsel %vm435, %v484, %v472
      %v494 = vsel %vm435, %v486, %v474
      %v495 = vld [vmem:[%s444] ss:$8 sm:$0xf]
      %v497 = vperm.slane %v495, 0
      %v498 = vperm.slane %v495, 1
      %v499 = vperm.slane %v495, 2
      %v500 = vperm.slane %v495, 3
      %v505 = vmul.f32 %v493, %v497
      %v506 = vmul.f32 %v491, %v498
      %v507 = vmul.f32 %v489, %v499
      %v508 = vmul.f32 %v487, %v500
      %v509 = vmul.f32 %v494, %v497
      %v510 = vmul.f32 %v492, %v498
      %v511 = vmul.f32 %v490, %v499
      %v512 = vmul.f32 %v488, %v500
      %v513 = vpack.c.bf16 %v506, %v505
      %v514 = vpack.c.bf16 %v508, %v507
      %v515 = vpack.c.bf16 %v510, %v509
      %v516 = vpack.c.bf16 %v512, %v511
      %517 = vst [vmem:[#allocation2 + $0x60] sm:$0xff] %v513
      %518 = vst [vmem:[#allocation2 + $0x68] sm:$0xff] %v514
      %519 = vst [vmem:[#allocation2 + $0x70] sm:$0xff] %v515
      %520 = vst [vmem:[#allocation2 + $0x78] sm:$0xff] %v516
      %521 = vrot.lane.b32.xlu0 %v300, 71
      %v522 = vpop.permute.xlu0 %521
      %523 = vrot.lane.b32.xlu0 %v304, 71
      %v524 = vpop.permute.xlu0 %523
      %525 = vrot.lane.b32.xlu0 %v301, 71
      %v526 = vpop.permute.xlu0 %525
      %527 = vrot.lane.b32.xlu0 %v305, 71
      %v528 = vpop.permute.xlu0 %527
      %529 = vrot.lane.b32.xlu0 %v302, 71
      %v530 = vpop.permute.xlu0 %529
      %531 = vrot.lane.b32.xlu0 %v306, 71
      %v532 = vpop.permute.xlu0 %531
      %533 = vrot.lane.b32.xlu0 %v303, 71
      %v534 = vpop.permute.xlu0 %533
      %535 = vrot.lane.b32.xlu0 %v307, 71
      %v536 = vpop.permute.xlu0 %535
      %vm537 = vcmp.lt.s32.totalorder %v333, 71
      %v538 = vsel %vm537, %v530, %v534
      %v539 = vsel %vm537, %v532, %v536
      %v540 = vsel %vm537, %v526, %v530
      %v541 = vsel %vm537, %v528, %v532
      %v542 = vsel %vm537, %v522, %v526
      %v543 = vsel %vm537, %v524, %v528
      %v544 = vsel %vm537, %v534, %v522
      %v545 = vsel %vm537, %v536, %v524
      %s546 = scalar_lea.vmem %s2, 2
      %v547 = vld [vmem:[%s546] ss:$8 sm:$0xf]
      %v549 = vperm.slane %v547, 0
      %v550 = vperm.slane %v547, 1
      %v551 = vperm.slane %v547, 2
      %v552 = vperm.slane %v547, 3
      %v557 = vmul.f32 %v544, %v549
      %v558 = vmul.f32 %v542, %v550
      %v559 = vmul.f32 %v540, %v551
      %v560 = vmul.f32 %v538, %v552
      %v561 = vmul.f32 %v545, %v549
      %v562 = vmul.f32 %v543, %v550
      %v563 = vmul.f32 %v541, %v551
      %v564 = vmul.f32 %v539, %v552
      %v565 = vpack.c.bf16 %v558, %v557
      %v566 = vpack.c.bf16 %v560, %v559
      %v567 = vpack.c.bf16 %v562, %v561
      %v568 = vpack.c.bf16 %v564, %v563
      %569 = vst [vmem:[#allocation2 + $0x80] sm:$0xff] %v565
      %570 = vst [vmem:[#allocation2 + $0x88] sm:$0xff] %v566
      %571 = vst [vmem:[#allocation2 + $0x90] sm:$0xff] %v567
      %572 = vst [vmem:[#allocation2 + $0x98] sm:$0xff] %v568
      %573 = vrot.lane.b32.xlu0 %v308, 71
      %v574 = vpop.permute.xlu0 %573
      %575 = vrot.lane.b32.xlu0 %v312, 71
      %v576 = vpop.permute.xlu0 %575
      %577 = vrot.lane.b32.xlu0 %v309, 71
      %v578 = vpop.permute.xlu0 %577
      %579 = vrot.lane.b32.xlu0 %v313, 71
      %v580 = vpop.permute.xlu0 %579
      %581 = vrot.lane.b32.xlu0 %v310, 71
      %v582 = vpop.permute.xlu0 %581
      %583 = vrot.lane.b32.xlu0 %v314, 71
      %v584 = vpop.permute.xlu0 %583
      %585 = vrot.lane.b32.xlu0 %v311, 71
      %v586 = vpop.permute.xlu0 %585
      %587 = vrot.lane.b32.xlu0 %v315, 71
      %v588 = vpop.permute.xlu0 %587
      %v589 = vsel %vm537, %v582, %v586
      %v590 = vsel %vm537, %v584, %v588
      %v591 = vsel %vm537, %v578, %v582
      %v592 = vsel %vm537, %v580, %v584
      %v593 = vsel %vm537, %v574, %v578
      %v594 = vsel %vm537, %v576, %v580
      %v595 = vsel %vm537, %v586, %v574
      %v596 = vsel %vm537, %v588, %v576
      %v597 = vld [vmem:[%s546] ss:$8 sm:$0xf]
      %v599 = vperm.slane %v597, 0
      %v600 = vperm.slane %v597, 1
      %v601 = vperm.slane %v597, 2
      %v602 = vperm.slane %v597, 3
      %v607 = vmul.f32 %v595, %v599
      %v608 = vmul.f32 %v593, %v600
      %v609 = vmul.f32 %v591, %v601
      %v610 = vmul.f32 %v589, %v602
      %v611 = vmul.f32 %v596, %v599
      %v612 = vmul.f32 %v594, %v600
      %v613 = vmul.f32 %v592, %v601
      %v614 = vmul.f32 %v590, %v602
      %v615 = vpack.c.bf16 %v608, %v607
      %v616 = vpack.c.bf16 %v610, %v609
      %v617 = vpack.c.bf16 %v612, %v611
      %v618 = vpack.c.bf16 %v614, %v613
      %619 = vst [vmem:[#allocation2 + $0xa0] sm:$0xff] %v615
      %620 = vst [vmem:[#allocation2 + $0xa8] sm:$0xff] %v616
      %621 = vst [vmem:[#allocation2 + $0xb0] sm:$0xff] %v617
      %622 = vst [vmem:[#allocation2 + $0xb8] sm:$0xff] %v618
      %623 = vrot.lane.b32.xlu0 %v300, 65
      %v624 = vpop.permute.xlu0 %623
      %625 = vrot.lane.b32.xlu0 %v304, 65
      %v626 = vpop.permute.xlu0 %625
      %627 = vrot.lane.b32.xlu0 %v301, 65
      %v628 = vpop.permute.xlu0 %627
      %629 = vrot.lane.b32.xlu0 %v305, 65
      %v630 = vpop.permute.xlu0 %629
      %631 = vrot.lane.b32.xlu0 %v302, 65
      %v632 = vpop.permute.xlu0 %631
      %633 = vrot.lane.b32.xlu0 %v306, 65
      %v634 = vpop.permute.xlu0 %633
      %635 = vrot.lane.b32.xlu0 %v303, 65
      %v636 = vpop.permute.xlu0 %635
      %637 = vrot.lane.b32.xlu0 %v307, 65
      %v638 = vpop.permute.xlu0 %637
      %vm639 = vcmp.lt.s32.totalorder %v333, 65
      %v640 = vsel %vm639, %v632, %v636
      %v641 = vsel %vm639, %v634, %v638
      %v642 = vsel %vm639, %v628, %v632
      %v643 = vsel %vm639, %v630, %v634
      %v644 = vsel %vm639, %v624, %v628
      %v645 = vsel %vm639, %v626, %v630
      %v646 = vsel %vm639, %v636, %v624
      %v647 = vsel %vm639, %v638, %v626
      %s648 = scalar_lea.vmem %s2, 3
      %v649 = vld [vmem:[%s648] ss:$8 sm:$0xf]
      %v651 = vperm.slane %v649, 0
      %v652 = vperm.slane %v649, 1
      %v653 = vperm.slane %v649, 2
      %v654 = vperm.slane %v649, 3
      %v659 = vmul.f32 %v646, %v651
      %v660 = vmul.f32 %v644, %v652
      %v661 = vmul.f32 %v642, %v653
      %v662 = vmul.f32 %v640, %v654
      %v663 = vmul.f32 %v647, %v651
      %v664 = vmul.f32 %v645, %v652
      %v665 = vmul.f32 %v643, %v653
      %v666 = vmul.f32 %v641, %v654
      %v667 = vpack.c.bf16 %v660, %v659
      %v668 = vpack.c.bf16 %v662, %v661
      %v669 = vpack.c.bf16 %v664, %v663
      %v670 = vpack.c.bf16 %v666, %v665
      %671 = vst [vmem:[#allocation2 + $0xc0] sm:$0xff] %v667
      %672 = vst [vmem:[#allocation2 + $0xc8] sm:$0xff] %v668
      %673 = vst [vmem:[#allocation2 + $0xd0] sm:$0xff] %v669
      %674 = vst [vmem:[#allocation2 + $0xd8] sm:$0xff] %v670
      %675 = vrot.lane.b32.xlu0 %v308, 65
      %v676 = vpop.permute.xlu0 %675
      %677 = vrot.lane.b32.xlu0 %v312, 65
      %v678 = vpop.permute.xlu0 %677
      %679 = vrot.lane.b32.xlu0 %v309, 65
      %v680 = vpop.permute.xlu0 %679
      %681 = vrot.lane.b32.xlu0 %v313, 65
      %v682 = vpop.permute.xlu0 %681
      %683 = vrot.lane.b32.xlu0 %v310, 65
      %v684 = vpop.permute.xlu0 %683
      %685 = vrot.lane.b32.xlu0 %v314, 65
      %v686 = vpop.permute.xlu0 %685
      %687 = vrot.lane.b32.xlu0 %v311, 65
      %v688 = vpop.permute.xlu0 %687
      %689 = vrot.lane.b32.xlu0 %v315, 65
      %v690 = vpop.permute.xlu0 %689
      %v691 = vsel %vm639, %v684, %v688
      %v692 = vsel %vm639, %v686, %v690
      %v693 = vsel %vm639, %v680, %v684
      %v694 = vsel %vm639, %v682, %v686
      %v695 = vsel %vm639, %v676, %v680
      %v696 = vsel %vm639, %v678, %v682
      %v697 = vsel %vm639, %v688, %v676
      %v698 = vsel %vm639, %v690, %v678
      %v699 = vld [vmem:[%s648] ss:$8 sm:$0xf]
      %v701 = vperm.slane %v699, 0
      %v702 = vperm.slane %v699, 1
      %v703 = vperm.slane %v699, 2
      %v704 = vperm.slane %v699, 3
      %v709 = vmul.f32 %v697, %v701
      %v710 = vmul.f32 %v695, %v702
      %v711 = vmul.f32 %v693, %v703
      %v712 = vmul.f32 %v691, %v704
      %v713 = vmul.f32 %v698, %v701
      %v714 = vmul.f32 %v696, %v702
      %v715 = vmul.f32 %v694, %v703
      %v716 = vmul.f32 %v692, %v704
      %v717 = vpack.c.bf16 %v710, %v709
      %v718 = vpack.c.bf16 %v712, %v711
      %v719 = vpack.c.bf16 %v714, %v713
      %v720 = vpack.c.bf16 %v716, %v715
      %721 = vst [vmem:[#allocation2 + $0xe0] sm:$0xff] %v717
      %722 = vst [vmem:[#allocation2 + $0xe8] sm:$0xff] %v718
      %723 = vst [vmem:[#allocation2 + $0xf0] sm:$0xff] %v719
      %724 = vst [vmem:[#allocation2 + $0xf8] sm:$0xff] %v720
      %725 = vrot.lane.b32.xlu0 %v300, 64
      %v726 = vpop.permute.xlu0 %725
      %727 = vrot.lane.b32.xlu0 %v304, 64
      %v728 = vpop.permute.xlu0 %727
      %729 = vrot.lane.b32.xlu0 %v301, 64
      %v730 = vpop.permute.xlu0 %729
      %731 = vrot.lane.b32.xlu0 %v305, 64
      %v732 = vpop.permute.xlu0 %731
      %733 = vrot.lane.b32.xlu0 %v302, 64
      %v734 = vpop.permute.xlu0 %733
      %735 = vrot.lane.b32.xlu0 %v306, 64
      %v736 = vpop.permute.xlu0 %735
      %737 = vrot.lane.b32.xlu0 %v303, 64
      %v738 = vpop.permute.xlu0 %737
      %739 = vrot.lane.b32.xlu0 %v307, 64
      %v740 = vpop.permute.xlu0 %739
      %vm741 = vcmp.lt.s32.totalorder %v333, 64
      %v742 = vsel %vm741, %v734, %v738
      %v743 = vsel %vm741, %v736, %v740
      %v744 = vsel %vm741, %v730, %v734
      %v745 = vsel %vm741, %v732, %v736
      %v746 = vsel %vm741, %v726, %v730
      %v747 = vsel %vm741, %v728, %v732
      %v748 = vsel %vm741, %v738, %v726
      %v749 = vsel %vm741, %v740, %v728
      %s750 = scalar_lea.vmem %s2, 4
      %v751 = vld [vmem:[%s750] ss:$8 sm:$0xf]
      %v753 = vperm.slane %v751, 0
      %v754 = vperm.slane %v751, 1
      %v755 = vperm.slane %v751, 2
      %v756 = vperm.slane %v751, 3
      %v761 = vmul.f32 %v748, %v753
      %v762 = vmul.f32 %v746, %v754
      %v763 = vmul.f32 %v744, %v755
      %v764 = vmul.f32 %v742, %v756
      %v765 = vmul.f32 %v749, %v753
      %v766 = vmul.f32 %v747, %v754
      %v767 = vmul.f32 %v745, %v755
      %v768 = vmul.f32 %v743, %v756
      %v769 = vpack.c.bf16 %v762, %v761
      %v770 = vpack.c.bf16 %v764, %v763
      %v771 = vpack.c.bf16 %v766, %v765
      %v772 = vpack.c.bf16 %v768, %v767
      %773 = vst [vmem:[#allocation2 + $0x100] sm:$0xff] %v769
      %774 = vst [vmem:[#allocation2 + $0x108] sm:$0xff] %v770
      %775 = vst [vmem:[#allocation2 + $0x110] sm:$0xff] %v771
      %776 = vst [vmem:[#allocation2 + $0x118] sm:$0xff] %v772
      %777 = vrot.lane.b32.xlu0 %v308, 64
      %v778 = vpop.permute.xlu0 %777
      %779 = vrot.lane.b32.xlu0 %v312, 64
      %v780 = vpop.permute.xlu0 %779
      %781 = vrot.lane.b32.xlu0 %v309, 64
      %v782 = vpop.permute.xlu0 %781
      %783 = vrot.lane.b32.xlu0 %v313, 64
      %v784 = vpop.permute.xlu0 %783
      %785 = vrot.lane.b32.xlu0 %v310, 64
      %v786 = vpop.permute.xlu0 %785
      %787 = vrot.lane.b32.xlu0 %v314, 64
      %v788 = vpop.permute.xlu0 %787
      %789 = vrot.lane.b32.xlu0 %v311, 64
      %v790 = vpop.permute.xlu0 %789
      %791 = vrot.lane.b32.xlu0 %v315, 64
      %v792 = vpop.permute.xlu0 %791
      %v793 = vsel %vm741, %v786, %v790
      %v794 = vsel %vm741, %v788, %v792
      %v795 = vsel %vm741, %v782, %v786
      %v796 = vsel %vm741, %v784, %v788
      %v797 = vsel %vm741, %v778, %v782
      %v798 = vsel %vm741, %v780, %v784
      %v799 = vsel %vm741, %v790, %v778
      %v800 = vsel %vm741, %v792, %v780
      %v801 = vld [vmem:[%s750] ss:$8 sm:$0xf]
      %v803 = vperm.slane %v801, 0
      %v804 = vperm.slane %v801, 1
      %v805 = vperm.slane %v801, 2
      %v806 = vperm.slane %v801, 3
      %v811 = vmul.f32 %v799, %v803
      %v812 = vmul.f32 %v797, %v804
      %v813 = vmul.f32 %v795, %v805
      %v814 = vmul.f32 %v793, %v806
      %v815 = vmul.f32 %v800, %v803
      %v816 = vmul.f32 %v798, %v804
      %v817 = vmul.f32 %v796, %v805
      %v818 = vmul.f32 %v794, %v806
      %v819 = vpack.c.bf16 %v812, %v811
      %v820 = vpack.c.bf16 %v814, %v813
      %v821 = vpack.c.bf16 %v816, %v815
      %v822 = vpack.c.bf16 %v818, %v817
      %823 = vst [vmem:[#allocation2 + $0x120] sm:$0xff] %v819
      %824 = vst [vmem:[#allocation2 + $0x128] sm:$0xff] %v820
      %825 = vst [vmem:[#allocation2 + $0x130] sm:$0xff] %v821
      %826 = vst [vmem:[#allocation2 + $0x138] sm:$0xff] %v822
      %827 = vrot.lane.b32.xlu0 %v300, 63
      %v828 = vpop.permute.xlu0 %827
      %829 = vrot.lane.b32.xlu0 %v304, 63
      %v830 = vpop.permute.xlu0 %829
      %831 = vrot.lane.b32.xlu0 %v301, 63
      %v832 = vpop.permute.xlu0 %831
      %833 = vrot.lane.b32.xlu0 %v305, 63
      %v834 = vpop.permute.xlu0 %833
      %835 = vrot.lane.b32.xlu0 %v302, 63
      %v836 = vpop.permute.xlu0 %835
      %837 = vrot.lane.b32.xlu0 %v306, 63
      %v838 = vpop.permute.xlu0 %837
      %839 = vrot.lane.b32.xlu0 %v303, 63
      %v840 = vpop.permute.xlu0 %839
      %841 = vrot.lane.b32.xlu0 %v307, 63
      %v842 = vpop.permute.xlu0 %841
      %vm843 = vcmp.lt.s32.totalorder %v333, 63
      %v844 = vsel %vm843, %v836, %v840
      %v845 = vsel %vm843, %v838, %v842
      %v846 = vsel %vm843, %v832, %v836
      %v847 = vsel %vm843, %v834, %v838
      %v848 = vsel %vm843, %v828, %v832
      %v849 = vsel %vm843, %v830, %v834
      %v850 = vsel %vm843, %v840, %v828
      %v851 = vsel %vm843, %v842, %v830
      %s852 = scalar_lea.vmem %s2, 5
      %v853 = vld [vmem:[%s852] ss:$8 sm:$0xf]
      %v855 = vperm.slane %v853, 0
      %v856 = vperm.slane %v853, 1
      %v857 = vperm.slane %v853, 2
      %v858 = vperm.slane %v853, 3
      %v863 = vmul.f32 %v850, %v855
      %v864 = vmul.f32 %v848, %v856
      %v865 = vmul.f32 %v846, %v857
      %v866 = vmul.f32 %v844, %v858
      %v867 = vmul.f32 %v851, %v855
      %v868 = vmul.f32 %v849, %v856
      %v869 = vmul.f32 %v847, %v857
      %v870 = vmul.f32 %v845, %v858
      %v871 = vpack.c.bf16 %v864, %v863
      %v872 = vpack.c.bf16 %v866, %v865
      %v873 = vpack.c.bf16 %v868, %v867
      %v874 = vpack.c.bf16 %v870, %v869
      %875 = vst [vmem:[#allocation2 + $0x140] sm:$0xff] %v871
      %876 = vst [vmem:[#allocation2 + $0x148] sm:$0xff] %v872
      %877 = vst [vmem:[#allocation2 + $0x150] sm:$0xff] %v873
      %878 = vst [vmem:[#allocation2 + $0x158] sm:$0xff] %v874
      %879 = vrot.lane.b32.xlu0 %v308, 63
      %v880 = vpop.permute.xlu0 %879
      %881 = vrot.lane.b32.xlu0 %v312, 63
      %v882 = vpop.permute.xlu0 %881
      %883 = vrot.lane.b32.xlu0 %v309, 63
      %v884 = vpop.permute.xlu0 %883
      %885 = vrot.lane.b32.xlu0 %v313, 63
      %v886 = vpop.permute.xlu0 %885
      %887 = vrot.lane.b32.xlu0 %v310, 63
      %v888 = vpop.permute.xlu0 %887
      %889 = vrot.lane.b32.xlu0 %v314, 63
      %v890 = vpop.permute.xlu0 %889
      %891 = vrot.lane.b32.xlu0 %v311, 63
      %v892 = vpop.permute.xlu0 %891
      %893 = vrot.lane.b32.xlu0 %v315, 63
      %v894 = vpop.permute.xlu0 %893
      %v895 = vsel %vm843, %v888, %v892
      %v896 = vsel %vm843, %v890, %v894
      %v897 = vsel %vm843, %v884, %v888
      %v898 = vsel %vm843, %v886, %v890
      %v899 = vsel %vm843, %v880, %v884
      %v900 = vsel %vm843, %v882, %v886
      %v901 = vsel %vm843, %v892, %v880
      %v902 = vsel %vm843, %v894, %v882
      %v903 = vld [vmem:[%s852] ss:$8 sm:$0xf]
      %v905 = vperm.slane %v903, 0
      %v906 = vperm.slane %v903, 1
      %v907 = vperm.slane %v903, 2
      %v908 = vperm.slane %v903, 3
      %v913 = vmul.f32 %v901, %v905
      %v914 = vmul.f32 %v899, %v906
      %v915 = vmul.f32 %v897, %v907
      %v916 = vmul.f32 %v895, %v908
      %v917 = vmul.f32 %v902, %v905
      %v918 = vmul.f32 %v900, %v906
      %v919 = vmul.f32 %v898, %v907
      %v920 = vmul.f32 %v896, %v908
      %v921 = vpack.c.bf16 %v914, %v913
      %v922 = vpack.c.bf16 %v916, %v915
      %v923 = vpack.c.bf16 %v918, %v917
      %v924 = vpack.c.bf16 %v920, %v919
      %925 = vst [vmem:[#allocation2 + $0x160] sm:$0xff] %v921
      %926 = vst [vmem:[#allocation2 + $0x168] sm:$0xff] %v922
      %927 = vst [vmem:[#allocation2 + $0x170] sm:$0xff] %v923
      %928 = vst [vmem:[#allocation2 + $0x178] sm:$0xff] %v924
      %929 = vrot.lane.b32.xlu0 %v300, 57
      %v930 = vpop.permute.xlu0 %929
      %931 = vrot.lane.b32.xlu0 %v304, 57
      %v932 = vpop.permute.xlu0 %931
      %933 = vrot.lane.b32.xlu0 %v301, 57
      %v934 = vpop.permute.xlu0 %933
      %935 = vrot.lane.b32.xlu0 %v305, 57
      %v936 = vpop.permute.xlu0 %935
      %937 = vrot.lane.b32.xlu0 %v302, 57
      %v938 = vpop.permute.xlu0 %937
      %939 = vrot.lane.b32.xlu0 %v306, 57
      %v940 = vpop.permute.xlu0 %939
      %941 = vrot.lane.b32.xlu0 %v303, 57
      %v942 = vpop.permute.xlu0 %941
      %943 = vrot.lane.b32.xlu0 %v307, 57
      %v944 = vpop.permute.xlu0 %943
      %vm945 = vcmp.lt.s32.totalorder %v333, 57
      %v946 = vsel %vm945, %v938, %v942
      %v947 = vsel %vm945, %v940, %v944
      %v948 = vsel %vm945, %v934, %v938
      %v949 = vsel %vm945, %v936, %v940
      %v950 = vsel %vm945, %v930, %v934
      %v951 = vsel %vm945, %v932, %v936
      %v952 = vsel %vm945, %v942, %v930
      %v953 = vsel %vm945, %v944, %v932
      %s954 = scalar_lea.vmem %s2, 6
      %v955 = vld [vmem:[%s954] ss:$8 sm:$0xf]
      %v957 = vperm.slane %v955, 0
      %v958 = vperm.slane %v955, 1
      %v959 = vperm.slane %v955, 2
      %v960 = vperm.slane %v955, 3
      %v965 = vmul.f32 %v952, %v957
      %v966 = vmul.f32 %v950, %v958
      %v967 = vmul.f32 %v948, %v959
      %v968 = vmul.f32 %v946, %v960
      %v969 = vmul.f32 %v953, %v957
      %v970 = vmul.f32 %v951, %v958
      %v971 = vmul.f32 %v949, %v959
      %v972 = vmul.f32 %v947, %v960
      %v973 = vpack.c.bf16 %v966, %v965
      %v974 = vpack.c.bf16 %v968, %v967
      %v975 = vpack.c.bf16 %v970, %v969
      %v976 = vpack.c.bf16 %v972, %v971
      %977 = vst [vmem:[#allocation2 + $0x180] sm:$0xff] %v973
      %978 = vst [vmem:[#allocation2 + $0x188] sm:$0xff] %v974
      %979 = vst [vmem:[#allocation2 + $0x190] sm:$0xff] %v975
      %980 = vst [vmem:[#allocation2 + $0x198] sm:$0xff] %v976
      %981 = vrot.lane.b32.xlu0 %v308, 57
      %v982 = vpop.permute.xlu0 %981
      %983 = vrot.lane.b32.xlu0 %v312, 57
      %v984 = vpop.permute.xlu0 %983
      %985 = vrot.lane.b32.xlu0 %v309, 57
      %v986 = vpop.permute.xlu0 %985
      %987 = vrot.lane.b32.xlu0 %v313, 57
      %v988 = vpop.permute.xlu0 %987
      %989 = vrot.lane.b32.xlu0 %v310, 57
      %v990 = vpop.permute.xlu0 %989
      %991 = vrot.lane.b32.xlu0 %v314, 57
      %v992 = vpop.permute.xlu0 %991
      %993 = vrot.lane.b32.xlu0 %v311, 57
      %v994 = vpop.permute.xlu0 %993
      %995 = vrot.lane.b32.xlu0 %v315, 57
      %v996 = vpop.permute.xlu0 %995
      %v997 = vsel %vm945, %v990, %v994
      %v998 = vsel %vm945, %v992, %v996
      %v999 = vsel %vm945, %v986, %v990
      %v1000 = vsel %vm945, %v988, %v992
      %v1001 = vsel %vm945, %v982, %v986
      %v1002 = vsel %vm945, %v984, %v988
      %v1003 = vsel %vm945, %v994, %v982
      %v1004 = vsel %vm945, %v996, %v984
      %v1005 = vld [vmem:[%s954] ss:$8 sm:$0xf]
      %v1007 = vperm.slane %v1005, 0
      %v1008 = vperm.slane %v1005, 1
      %v1009 = vperm.slane %v1005, 2
      %v1010 = vperm.slane %v1005, 3
      %v1015 = vmul.f32 %v1003, %v1007
      %v1016 = vmul.f32 %v1001, %v1008
      %v1017 = vmul.f32 %v999, %v1009
      %v1018 = vmul.f32 %v997, %v1010
      %v1019 = vmul.f32 %v1004, %v1007
      %v1020 = vmul.f32 %v1002, %v1008
      %v1021 = vmul.f32 %v1000, %v1009
      %v1022 = vmul.f32 %v998, %v1010
      %v1023 = vpack.c.bf16 %v1016, %v1015
      %v1024 = vpack.c.bf16 %v1018, %v1017
      %v1025 = vpack.c.bf16 %v1020, %v1019
      %v1026 = vpack.c.bf16 %v1022, %v1021
      %1027 = vst [vmem:[#allocation2 + $0x1a0] sm:$0xff] %v1023
      %1028 = vst [vmem:[#allocation2 + $0x1a8] sm:$0xff] %v1024
      %1029 = vst [vmem:[#allocation2 + $0x1b0] sm:$0xff] %v1025
      %1030 = vst [vmem:[#allocation2 + $0x1b8] sm:$0xff] %v1026
      %1031 = vrot.lane.b32.xlu0 %v300, 56
      %v1032 = vpop.permute.xlu0 %1031
      %1033 = vrot.lane.b32.xlu0 %v304, 56
      %v1034 = vpop.permute.xlu0 %1033
      %1035 = vrot.lane.b32.xlu0 %v301, 56
      %v1036 = vpop.permute.xlu0 %1035
      %1037 = vrot.lane.b32.xlu0 %v305, 56
      %v1038 = vpop.permute.xlu0 %1037
      %1039 = vrot.lane.b32.xlu0 %v302, 56
      %v1040 = vpop.permute.xlu0 %1039
      %1041 = vrot.lane.b32.xlu0 %v306, 56
      %v1042 = vpop.permute.xlu0 %1041
      %1043 = vrot.lane.b32.xlu0 %v303, 56
      %v1044 = vpop.permute.xlu0 %1043
      %1045 = vrot.lane.b32.xlu0 %v307, 56
      %v1046 = vpop.permute.xlu0 %1045
      %vm1047 = vcmp.lt.s32.totalorder %v333, 56
      %v1048 = vsel %vm1047, %v1040, %v1044
      %v1049 = vsel %vm1047, %v1042, %v1046
      %v1050 = vsel %vm1047, %v1036, %v1040
      %v1051 = vsel %vm1047, %v1038, %v1042
      %v1052 = vsel %vm1047, %v1032, %v1036
      %v1053 = vsel %vm1047, %v1034, %v1038
      %v1054 = vsel %vm1047, %v1044, %v1032
      %v1055 = vsel %vm1047, %v1046, %v1034
      %s1056 = scalar_lea.vmem %s2, 7
      %v1057 = vld [vmem:[%s1056] ss:$8 sm:$0xf]
      %v1059 = vperm.slane %v1057, 0
      %v1060 = vperm.slane %v1057, 1
      %v1061 = vperm.slane %v1057, 2
      %v1062 = vperm.slane %v1057, 3
      %v1067 = vmul.f32 %v1054, %v1059
      %v1068 = vmul.f32 %v1052, %v1060
      %v1069 = vmul.f32 %v1050, %v1061
      %v1070 = vmul.f32 %v1048, %v1062
      %v1071 = vmul.f32 %v1055, %v1059
      %v1072 = vmul.f32 %v1053, %v1060
      %v1073 = vmul.f32 %v1051, %v1061
      %v1074 = vmul.f32 %v1049, %v1062
      %v1075 = vpack.c.bf16 %v1068, %v1067
      %v1076 = vpack.c.bf16 %v1070, %v1069
      %v1077 = vpack.c.bf16 %v1072, %v1071
      %v1078 = vpack.c.bf16 %v1074, %v1073
      %1079 = vst [vmem:[#allocation2 + $0x1c0] sm:$0xff] %v1075
      %1080 = vst [vmem:[#allocation2 + $0x1c8] sm:$0xff] %v1076
      %1081 = vst [vmem:[#allocation2 + $0x1d0] sm:$0xff] %v1077
      %1082 = vst [vmem:[#allocation2 + $0x1d8] sm:$0xff] %v1078
      %1083 = vrot.lane.b32.xlu0 %v308, 56
      %v1084 = vpop.permute.xlu0 %1083
      %1085 = vrot.lane.b32.xlu0 %v312, 56
      %v1086 = vpop.permute.xlu0 %1085
      %1087 = vrot.lane.b32.xlu0 %v309, 56
      %v1088 = vpop.permute.xlu0 %1087
      %1089 = vrot.lane.b32.xlu0 %v313, 56
      %v1090 = vpop.permute.xlu0 %1089
      %1091 = vrot.lane.b32.xlu0 %v310, 56
      %v1092 = vpop.permute.xlu0 %1091
      %1093 = vrot.lane.b32.xlu0 %v314, 56
      %v1094 = vpop.permute.xlu0 %1093
      %1095 = vrot.lane.b32.xlu0 %v311, 56
      %v1096 = vpop.permute.xlu0 %1095
      %1097 = vrot.lane.b32.xlu0 %v315, 56
      %v1098 = vpop.permute.xlu0 %1097
      %v1099 = vsel %vm1047, %v1092, %v1096
      %v1100 = vsel %vm1047, %v1094, %v1098
      %v1101 = vsel %vm1047, %v1088, %v1092
      %v1102 = vsel %vm1047, %v1090, %v1094
      %v1103 = vsel %vm1047, %v1084, %v1088
      %v1104 = vsel %vm1047, %v1086, %v1090
      %v1105 = vsel %vm1047, %v1096, %v1084
      %v1106 = vsel %vm1047, %v1098, %v1086
      %v1107 = vld [vmem:[%s1056] ss:$8 sm:$0xf]
      %v1109 = vperm.slane %v1107, 0
      %v1110 = vperm.slane %v1107, 1
      %v1111 = vperm.slane %v1107, 2
      %v1112 = vperm.slane %v1107, 3
      %v1117 = vmul.f32 %v1105, %v1109
      %v1118 = vmul.f32 %v1103, %v1110
      %v1119 = vmul.f32 %v1101, %v1111
      %v1120 = vmul.f32 %v1099, %v1112
      %v1121 = vmul.f32 %v1106, %v1109
      %v1122 = vmul.f32 %v1104, %v1110
      %v1123 = vmul.f32 %v1102, %v1111
      %v1124 = vmul.f32 %v1100, %v1112
      %v1125 = vpack.c.bf16 %v1118, %v1117
      %v1126 = vpack.c.bf16 %v1120, %v1119
      %v1127 = vpack.c.bf16 %v1122, %v1121
      %v1128 = vpack.c.bf16 %v1124, %v1123
      %1129 = vst [vmem:[#allocation2 + $0x1e0] sm:$0xff] %v1125
      %1130 = vst [vmem:[#allocation2 + $0x1e8] sm:$0xff] %v1126
      %1131 = vst [vmem:[#allocation2 + $0x1f0] sm:$0xff] %v1127
      %1132 = vst [vmem:[#allocation2 + $0x1f8] sm:$0xff] %v1128
      %1133 = vrot.lane.b32.xlu0 %v300, 55
      %v1134 = vpop.permute.xlu0 %1133
      %1135 = vrot.lane.b32.xlu0 %v304, 55
      %v1136 = vpop.permute.xlu0 %1135
      %1137 = vrot.lane.b32.xlu0 %v301, 55
      %v1138 = vpop.permute.xlu0 %1137
      %1139 = vrot.lane.b32.xlu0 %v305, 55
      %v1140 = vpop.permute.xlu0 %1139
      %1141 = vrot.lane.b32.xlu0 %v302, 55
      %v1142 = vpop.permute.xlu0 %1141
      %1143 = vrot.lane.b32.xlu0 %v306, 55
      %v1144 = vpop.permute.xlu0 %1143
      %1145 = vrot.lane.b32.xlu0 %v303, 55
      %v1146 = vpop.permute.xlu0 %1145
      %1147 = vrot.lane.b32.xlu0 %v307, 55
      %v1148 = vpop.permute.xlu0 %1147
      %vm1149 = vcmp.lt.s32.totalorder %v333, 55
      %v1150 = vsel %vm1149, %v1142, %v1146
      %v1151 = vsel %vm1149, %v1144, %v1148
      %v1152 = vsel %vm1149, %v1138, %v1142
      %v1153 = vsel %vm1149, %v1140, %v1144
      %v1154 = vsel %vm1149, %v1134, %v1138
      %v1155 = vsel %vm1149, %v1136, %v1140
      %v1156 = vsel %vm1149, %v1146, %v1134
      %v1157 = vsel %vm1149, %v1148, %v1136
      %s1158 = scalar_lea.vmem %s2, 32
      %v1159 = vld [vmem:[%s1158] ss:$8 sm:$0xf]
      %v1161 = vperm.slane %v1159, 0
      %v1162 = vperm.slane %v1159, 1
      %v1163 = vperm.slane %v1159, 2
      %v1164 = vperm.slane %v1159, 3
      %v1169 = vmul.f32 %v1156, %v1161
      %v1170 = vmul.f32 %v1154, %v1162
      %v1171 = vmul.f32 %v1152, %v1163
      %v1172 = vmul.f32 %v1150, %v1164
      %v1173 = vmul.f32 %v1157, %v1161
      %v1174 = vmul.f32 %v1155, %v1162
      %v1175 = vmul.f32 %v1153, %v1163
      %v1176 = vmul.f32 %v1151, %v1164
      %v1177 = vpack.c.bf16 %v1170, %v1169
      %v1178 = vpack.c.bf16 %v1172, %v1171
      %v1179 = vpack.c.bf16 %v1174, %v1173
      %v1180 = vpack.c.bf16 %v1176, %v1175
      %1181 = vst [vmem:[#allocation2 + $0x200] sm:$0xff] %v1177
      %1182 = vst [vmem:[#allocation2 + $0x208] sm:$0xff] %v1178
      %1183 = vst [vmem:[#allocation2 + $0x210] sm:$0xff] %v1179
      %1184 = vst [vmem:[#allocation2 + $0x218] sm:$0xff] %v1180
      %1185 = vrot.lane.b32.xlu0 %v308, 55
      %v1186 = vpop.permute.xlu0 %1185
      %1187 = vrot.lane.b32.xlu0 %v312, 55
      %v1188 = vpop.permute.xlu0 %1187
      %1189 = vrot.lane.b32.xlu0 %v309, 55
      %v1190 = vpop.permute.xlu0 %1189
      %1191 = vrot.lane.b32.xlu0 %v313, 55
      %v1192 = vpop.permute.xlu0 %1191
      %1193 = vrot.lane.b32.xlu0 %v310, 55
      %v1194 = vpop.permute.xlu0 %1193
      %1195 = vrot.lane.b32.xlu0 %v314, 55
      %v1196 = vpop.permute.xlu0 %1195
      %1197 = vrot.lane.b32.xlu0 %v311, 55
      %v1198 = vpop.permute.xlu0 %1197
      %1199 = vrot.lane.b32.xlu0 %v315, 55
      %v1200 = vpop.permute.xlu0 %1199
      %v1201 = vsel %vm1149, %v1194, %v1198
      %v1202 = vsel %vm1149, %v1196, %v1200
      %v1203 = vsel %vm1149, %v1190, %v1194
      %v1204 = vsel %vm1149, %v1192, %v1196
      %v1205 = vsel %vm1149, %v1186, %v1190
      %v1206 = vsel %vm1149, %v1188, %v1192
      %v1207 = vsel %vm1149, %v1198, %v1186
      %v1208 = vsel %vm1149, %v1200, %v1188
      %v1209 = vld [vmem:[%s1158] ss:$8 sm:$0xf]
      %v1211 = vperm.slane %v1209, 0
      %v1212 = vperm.slane %v1209, 1
      %v1213 = vperm.slane %v1209, 2
      %v1214 = vperm.slane %v1209, 3
      %v1219 = vmul.f32 %v1207, %v1211
      %v1220 = vmul.f32 %v1205, %v1212
      %v1221 = vmul.f32 %v1203, %v1213
      %v1222 = vmul.f32 %v1201, %v1214
      %v1223 = vmul.f32 %v1208, %v1211
      %v1224 = vmul.f32 %v1206, %v1212
      %v1225 = vmul.f32 %v1204, %v1213
      %v1226 = vmul.f32 %v1202, %v1214
      %v1227 = vpack.c.bf16 %v1220, %v1219
      %v1228 = vpack.c.bf16 %v1222, %v1221
      %v1229 = vpack.c.bf16 %v1224, %v1223
      %v1230 = vpack.c.bf16 %v1226, %v1225
      %1231 = vst [vmem:[#allocation2 + $0x220] sm:$0xff] %v1227
      %1232 = vst [vmem:[#allocation2 + $0x228] sm:$0xff] %v1228
      %1233 = vst [vmem:[#allocation2 + $0x230] sm:$0xff] %v1229
      %1234 = vst [vmem:[#allocation2 + $0x238] sm:$0xff] %v1230
      %1235 = vrot.lane.b32.xlu0 %v300, 9
      %v1236 = vpop.permute.xlu0 %1235
      %1237 = vrot.lane.b32.xlu0 %v304, 9
      %v1238 = vpop.permute.xlu0 %1237
      %1239 = vrot.lane.b32.xlu0 %v301, 9
      %v1240 = vpop.permute.xlu0 %1239
      %1241 = vrot.lane.b32.xlu0 %v305, 9
      %v1242 = vpop.permute.xlu0 %1241
      %1243 = vrot.lane.b32.xlu0 %v302, 9
      %v1244 = vpop.permute.xlu0 %1243
      %1245 = vrot.lane.b32.xlu0 %v306, 9
      %v1246 = vpop.permute.xlu0 %1245
      %1247 = vrot.lane.b32.xlu0 %v303, 9
      %v1248 = vpop.permute.xlu0 %1247
      %1249 = vrot.lane.b32.xlu0 %v307, 9
      %v1250 = vpop.permute.xlu0 %1249
      %vm1251 = vcmp.lt.s32.totalorder %v333, 9
      %v1252 = vsel %vm1251, %v1244, %v1248
      %v1253 = vsel %vm1251, %v1246, %v1250
      %v1254 = vsel %vm1251, %v1240, %v1244
      %v1255 = vsel %vm1251, %v1242, %v1246
      %v1256 = vsel %vm1251, %v1236, %v1240
      %v1257 = vsel %vm1251, %v1238, %v1242
      %v1258 = vsel %vm1251, %v1248, %v1236
      %v1259 = vsel %vm1251, %v1250, %v1238
      %s1260 = scalar_lea.vmem %s2, 33
      %v1261 = vld [vmem:[%s1260] ss:$8 sm:$0xf]
      %v1263 = vperm.slane %v1261, 0
      %v1264 = vperm.slane %v1261, 1
      %v1265 = vperm.slane %v1261, 2
      %v1266 = vperm.slane %v1261, 3
      %v1271 = vmul.f32 %v1258, %v1263
      %v1272 = vmul.f32 %v1256, %v1264
      %v1273 = vmul.f32 %v1254, %v1265
      %v1274 = vmul.f32 %v1252, %v1266
      %v1275 = vmul.f32 %v1259, %v1263
      %v1276 = vmul.f32 %v1257, %v1264
      %v1277 = vmul.f32 %v1255, %v1265
      %v1278 = vmul.f32 %v1253, %v1266
      %v1279 = vpack.c.bf16 %v1272, %v1271
      %v1280 = vpack.c.bf16 %v1274, %v1273
      %v1281 = vpack.c.bf16 %v1276, %v1275
      %v1282 = vpack.c.bf16 %v1278, %v1277
      %1283 = vst [vmem:[#allocation2 + $0x240] sm:$0xff] %v1279
      %1284 = vst [vmem:[#allocation2 + $0x248] sm:$0xff] %v1280
      %1285 = vst [vmem:[#allocation2 + $0x250] sm:$0xff] %v1281
      %1286 = vst [vmem:[#allocation2 + $0x258] sm:$0xff] %v1282
      %1287 = vrot.lane.b32.xlu0 %v308, 9
      %v1288 = vpop.permute.xlu0 %1287
      %1289 = vrot.lane.b32.xlu0 %v312, 9
      %v1290 = vpop.permute.xlu0 %1289
      %1291 = vrot.lane.b32.xlu0 %v309, 9
      %v1292 = vpop.permute.xlu0 %1291
      %1293 = vrot.lane.b32.xlu0 %v313, 9
      %v1294 = vpop.permute.xlu0 %1293
      %1295 = vrot.lane.b32.xlu0 %v310, 9
      %v1296 = vpop.permute.xlu0 %1295
      %1297 = vrot.lane.b32.xlu0 %v314, 9
      %v1298 = vpop.permute.xlu0 %1297
      %1299 = vrot.lane.b32.xlu0 %v311, 9
      %v1300 = vpop.permute.xlu0 %1299
      %1301 = vrot.lane.b32.xlu0 %v315, 9
      %v1302 = vpop.permute.xlu0 %1301
      %v1303 = vsel %vm1251, %v1296, %v1300
      %v1304 = vsel %vm1251, %v1298, %v1302
      %v1305 = vsel %vm1251, %v1292, %v1296
      %v1306 = vsel %vm1251, %v1294, %v1298
      %v1307 = vsel %vm1251, %v1288, %v1292
      %v1308 = vsel %vm1251, %v1290, %v1294
      %v1309 = vsel %vm1251, %v1300, %v1288
      %v1310 = vsel %vm1251, %v1302, %v1290
      %v1311 = vld [vmem:[%s1260] ss:$8 sm:$0xf]
      %v1313 = vperm.slane %v1311, 0
      %v1314 = vperm.slane %v1311, 1
      %v1315 = vperm.slane %v1311, 2
      %v1316 = vperm.slane %v1311, 3
      %v1321 = vmul.f32 %v1309, %v1313
      %v1322 = vmul.f32 %v1307, %v1314
      %v1323 = vmul.f32 %v1305, %v1315
      %v1324 = vmul.f32 %v1303, %v1316
      %v1325 = vmul.f32 %v1310, %v1313
      %v1326 = vmul.f32 %v1308, %v1314
      %v1327 = vmul.f32 %v1306, %v1315
      %v1328 = vmul.f32 %v1304, %v1316
      %v1329 = vpack.c.bf16 %v1322, %v1321
      %v1330 = vpack.c.bf16 %v1324, %v1323
      %v1331 = vpack.c.bf16 %v1326, %v1325
      %v1332 = vpack.c.bf16 %v1328, %v1327
      %1333 = vst [vmem:[#allocation2 + $0x260] sm:$0xff] %v1329
      %1334 = vst [vmem:[#allocation2 + $0x268] sm:$0xff] %v1330
      %1335 = vst [vmem:[#allocation2 + $0x270] sm:$0xff] %v1331
      %1336 = vst [vmem:[#allocation2 + $0x278] sm:$0xff] %v1332
      %1337 = vrot.lane.b32.xlu0 %v300, 8
      %v1338 = vpop.permute.xlu0 %1337
      %1339 = vrot.lane.b32.xlu0 %v304, 8
      %v1340 = vpop.permute.xlu0 %1339
      %1341 = vrot.lane.b32.xlu0 %v301, 8
      %v1342 = vpop.permute.xlu0 %1341
      %1343 = vrot.lane.b32.xlu0 %v305, 8
      %v1344 = vpop.permute.xlu0 %1343
      %1345 = vrot.lane.b32.xlu0 %v302, 8
      %v1346 = vpop.permute.xlu0 %1345
      %1347 = vrot.lane.b32.xlu0 %v306, 8
      %v1348 = vpop.permute.xlu0 %1347
      %1349 = vrot.lane.b32.xlu0 %v303, 8
      %v1350 = vpop.permute.xlu0 %1349
      %1351 = vrot.lane.b32.xlu0 %v307, 8
      %v1352 = vpop.permute.xlu0 %1351
      %vm1353 = vcmp.lt.s32.totalorder %v333, 8
      %v1354 = vsel %vm1353, %v1346, %v1350
      %v1355 = vsel %vm1353, %v1348, %v1352
      %v1356 = vsel %vm1353, %v1342, %v1346
      %v1357 = vsel %vm1353, %v1344, %v1348
      %v1358 = vsel %vm1353, %v1338, %v1342
      %v1359 = vsel %vm1353, %v1340, %v1344
      %v1360 = vsel %vm1353, %v1350, %v1338
      %v1361 = vsel %vm1353, %v1352, %v1340
      %s1362 = scalar_lea.vmem %s2, 34
      %v1363 = vld [vmem:[%s1362] ss:$8 sm:$0xf]
      %v1365 = vperm.slane %v1363, 0
      %v1366 = vperm.slane %v1363, 1
      %v1367 = vperm.slane %v1363, 2
      %v1368 = vperm.slane %v1363, 3
      %v1373 = vmul.f32 %v1360, %v1365
      %v1374 = vmul.f32 %v1358, %v1366
      %v1375 = vmul.f32 %v1356, %v1367
      %v1376 = vmul.f32 %v1354, %v1368
      %v1377 = vmul.f32 %v1361, %v1365
      %v1378 = vmul.f32 %v1359, %v1366
      %v1379 = vmul.f32 %v1357, %v1367
      %v1380 = vmul.f32 %v1355, %v1368
      %v1381 = vpack.c.bf16 %v1374, %v1373
      %v1382 = vpack.c.bf16 %v1376, %v1375
      %v1383 = vpack.c.bf16 %v1378, %v1377
      %v1384 = vpack.c.bf16 %v1380, %v1379
      %1385 = vst [vmem:[#allocation2 + $0x280] sm:$0xff] %v1381
      %1386 = vst [vmem:[#allocation2 + $0x288] sm:$0xff] %v1382
      %1387 = vst [vmem:[#allocation2 + $0x290] sm:$0xff] %v1383
      %1388 = vst [vmem:[#allocation2 + $0x298] sm:$0xff] %v1384
      %1389 = vrot.lane.b32.xlu0 %v308, 8
      %v1390 = vpop.permute.xlu0 %1389
      %1391 = vrot.lane.b32.xlu0 %v312, 8
      %v1392 = vpop.permute.xlu0 %1391
      %1393 = vrot.lane.b32.xlu0 %v309, 8
      %v1394 = vpop.permute.xlu0 %1393
      %1395 = vrot.lane.b32.xlu0 %v313, 8
      %v1396 = vpop.permute.xlu0 %1395
      %1397 = vrot.lane.b32.xlu0 %v310, 8
      %v1398 = vpop.permute.xlu0 %1397
      %1399 = vrot.lane.b32.xlu0 %v314, 8
      %v1400 = vpop.permute.xlu0 %1399
      %1401 = vrot.lane.b32.xlu0 %v311, 8
      %v1402 = vpop.permute.xlu0 %1401
      %1403 = vrot.lane.b32.xlu0 %v315, 8
      %v1404 = vpop.permute.xlu0 %1403
      %v1405 = vsel %vm1353, %v1398, %v1402
      %v1406 = vsel %vm1353, %v1400, %v1404
      %v1407 = vsel %vm1353, %v1394, %v1398
      %v1408 = vsel %vm1353, %v1396, %v1400
      %v1409 = vsel %vm1353, %v1390, %v1394
      %v1410 = vsel %vm1353, %v1392, %v1396
      %v1411 = vsel %vm1353, %v1402, %v1390
      %v1412 = vsel %vm1353, %v1404, %v1392
      %v1413 = vld [vmem:[%s1362] ss:$8 sm:$0xf]
      %v1415 = vperm.slane %v1413, 0
      %v1416 = vperm.slane %v1413, 1
      %v1417 = vperm.slane %v1413, 2
      %v1418 = vperm.slane %v1413, 3
      %v1423 = vmul.f32 %v1411, %v1415
      %v1424 = vmul.f32 %v1409, %v1416
      %v1425 = vmul.f32 %v1407, %v1417
      %v1426 = vmul.f32 %v1405, %v1418
      %v1427 = vmul.f32 %v1412, %v1415
      %v1428 = vmul.f32 %v1410, %v1416
      %v1429 = vmul.f32 %v1408, %v1417
      %v1430 = vmul.f32 %v1406, %v1418
      %v1431 = vpack.c.bf16 %v1424, %v1423
      %v1432 = vpack.c.bf16 %v1426, %v1425
      %v1433 = vpack.c.bf16 %v1428, %v1427
      %v1434 = vpack.c.bf16 %v1430, %v1429
      %1435 = vst [vmem:[#allocation2 + $0x2a0] sm:$0xff] %v1431
      %1436 = vst [vmem:[#allocation2 + $0x2a8] sm:$0xff] %v1432
      %1437 = vst [vmem:[#allocation2 + $0x2b0] sm:$0xff] %v1433
      %1438 = vst [vmem:[#allocation2 + $0x2b8] sm:$0xff] %v1434
      %1439 = vrot.lane.b32.xlu0 %v300, 7
      %v1440 = vpop.permute.xlu0 %1439
      %1441 = vrot.lane.b32.xlu0 %v304, 7
      %v1442 = vpop.permute.xlu0 %1441
      %1443 = vrot.lane.b32.xlu0 %v301, 7
      %v1444 = vpop.permute.xlu0 %1443
      %1445 = vrot.lane.b32.xlu0 %v305, 7
      %v1446 = vpop.permute.xlu0 %1445
      %1447 = vrot.lane.b32.xlu0 %v302, 7
      %v1448 = vpop.permute.xlu0 %1447
      %1449 = vrot.lane.b32.xlu0 %v306, 7
      %v1450 = vpop.permute.xlu0 %1449
      %1451 = vrot.lane.b32.xlu0 %v303, 7
      %v1452 = vpop.permute.xlu0 %1451
      %1453 = vrot.lane.b32.xlu0 %v307, 7
      %v1454 = vpop.permute.xlu0 %1453
      %vm1455 = vcmp.lt.s32.totalorder %v333, 7
      %v1456 = vsel %vm1455, %v1448, %v1452
      %v1457 = vsel %vm1455, %v1450, %v1454
      %v1458 = vsel %vm1455, %v1444, %v1448
      %v1459 = vsel %vm1455, %v1446, %v1450
      %v1460 = vsel %vm1455, %v1440, %v1444
      %v1461 = vsel %vm1455, %v1442, %v1446
      %v1462 = vsel %vm1455, %v1452, %v1440
      %v1463 = vsel %vm1455, %v1454, %v1442
      %s1464 = scalar_lea.vmem %s2, 35
      %v1465 = vld [vmem:[%s1464] ss:$8 sm:$0xf]
      %v1467 = vperm.slane %v1465, 0
      %v1468 = vperm.slane %v1465, 1
      %v1469 = vperm.slane %v1465, 2
      %v1470 = vperm.slane %v1465, 3
      %v1475 = vmul.f32 %v1462, %v1467
      %v1476 = vmul.f32 %v1460, %v1468
      %v1477 = vmul.f32 %v1458, %v1469
      %v1478 = vmul.f32 %v1456, %v1470
      %v1479 = vmul.f32 %v1463, %v1467
      %v1480 = vmul.f32 %v1461, %v1468
      %v1481 = vmul.f32 %v1459, %v1469
      %v1482 = vmul.f32 %v1457, %v1470
      %v1483 = vpack.c.bf16 %v1476, %v1475
      %v1484 = vpack.c.bf16 %v1478, %v1477
      %v1485 = vpack.c.bf16 %v1480, %v1479
      %v1486 = vpack.c.bf16 %v1482, %v1481
      %1487 = vst [vmem:[#allocation2 + $0x2c0] sm:$0xff] %v1483
      %1488 = vst [vmem:[#allocation2 + $0x2c8] sm:$0xff] %v1484
      %1489 = vst [vmem:[#allocation2 + $0x2d0] sm:$0xff] %v1485
      %1490 = vst [vmem:[#allocation2 + $0x2d8] sm:$0xff] %v1486
      %1491 = vrot.lane.b32.xlu0 %v308, 7
      %v1492 = vpop.permute.xlu0 %1491
      %1493 = vrot.lane.b32.xlu0 %v312, 7
      %v1494 = vpop.permute.xlu0 %1493
      %1495 = vrot.lane.b32.xlu0 %v309, 7
      %v1496 = vpop.permute.xlu0 %1495
      %1497 = vrot.lane.b32.xlu0 %v313, 7
      %v1498 = vpop.permute.xlu0 %1497
      %1499 = vrot.lane.b32.xlu0 %v310, 7
      %v1500 = vpop.permute.xlu0 %1499
      %1501 = vrot.lane.b32.xlu0 %v314, 7
      %v1502 = vpop.permute.xlu0 %1501
      %1503 = vrot.lane.b32.xlu0 %v311, 7
      %v1504 = vpop.permute.xlu0 %1503
      %1505 = vrot.lane.b32.xlu0 %v315, 7
      %v1506 = vpop.permute.xlu0 %1505
      %v1507 = vsel %vm1455, %v1500, %v1504
      %v1508 = vsel %vm1455, %v1502, %v1506
      %v1509 = vsel %vm1455, %v1496, %v1500
      %v1510 = vsel %vm1455, %v1498, %v1502
      %v1511 = vsel %vm1455, %v1492, %v1496
      %v1512 = vsel %vm1455, %v1494, %v1498
      %v1513 = vsel %vm1455, %v1504, %v1492
      %v1514 = vsel %vm1455, %v1506, %v1494
      %v1515 = vld [vmem:[%s1464] ss:$8 sm:$0xf]
      %v1517 = vperm.slane %v1515, 0
      %v1518 = vperm.slane %v1515, 1
      %v1519 = vperm.slane %v1515, 2
      %v1520 = vperm.slane %v1515, 3
      %v1525 = vmul.f32 %v1513, %v1517
      %v1526 = vmul.f32 %v1511, %v1518
      %v1527 = vmul.f32 %v1509, %v1519
      %v1528 = vmul.f32 %v1507, %v1520
      %v1529 = vmul.f32 %v1514, %v1517
      %v1530 = vmul.f32 %v1512, %v1518
      %v1531 = vmul.f32 %v1510, %v1519
      %v1532 = vmul.f32 %v1508, %v1520
      %v1533 = vpack.c.bf16 %v1526, %v1525
      %v1534 = vpack.c.bf16 %v1528, %v1527
      %v1535 = vpack.c.bf16 %v1530, %v1529
      %v1536 = vpack.c.bf16 %v1532, %v1531
      %1537 = vst [vmem:[#allocation2 + $0x2e0] sm:$0xff] %v1533
      %1538 = vst [vmem:[#allocation2 + $0x2e8] sm:$0xff] %v1534
      %1539 = vst [vmem:[#allocation2 + $0x2f0] sm:$0xff] %v1535
      %1540 = vst [vmem:[#allocation2 + $0x2f8] sm:$0xff] %v1536
      %1541 = vrot.lane.b32.xlu0 %v300, 1
      %v1542 = vpop.permute.xlu0 %1541
      %1543 = vrot.lane.b32.xlu0 %v304, 1
      %v1544 = vpop.permute.xlu0 %1543
      %1545 = vrot.lane.b32.xlu0 %v301, 1
      %v1546 = vpop.permute.xlu0 %1545
      %1547 = vrot.lane.b32.xlu0 %v305, 1
      %v1548 = vpop.permute.xlu0 %1547
      %1549 = vrot.lane.b32.xlu0 %v302, 1
      %v1550 = vpop.permute.xlu0 %1549
      %1551 = vrot.lane.b32.xlu0 %v306, 1
      %v1552 = vpop.permute.xlu0 %1551
      %1553 = vrot.lane.b32.xlu0 %v303, 1
      %v1554 = vpop.permute.xlu0 %1553
      %1555 = vrot.lane.b32.xlu0 %v307, 1
      %v1556 = vpop.permute.xlu0 %1555
      %vm1557 = vcmp.lt.s32.totalorder %v333, 1
      %v1558 = vsel %vm1557, %v1550, %v1554
      %v1559 = vsel %vm1557, %v1552, %v1556
      %v1560 = vsel %vm1557, %v1546, %v1550
      %v1561 = vsel %vm1557, %v1548, %v1552
      %v1562 = vsel %vm1557, %v1542, %v1546
      %v1563 = vsel %vm1557, %v1544, %v1548
      %v1564 = vsel %vm1557, %v1554, %v1542
      %v1565 = vsel %vm1557, %v1556, %v1544
      %s1566 = scalar_lea.vmem %s2, 36
      %v1567 = vld [vmem:[%s1566] ss:$8 sm:$0xf]
      %v1569 = vperm.slane %v1567, 0
      %v1570 = vperm.slane %v1567, 1
      %v1571 = vperm.slane %v1567, 2
      %v1572 = vperm.slane %v1567, 3
      %v1577 = vmul.f32 %v1564, %v1569
      %v1578 = vmul.f32 %v1562, %v1570
      %v1579 = vmul.f32 %v1560, %v1571
      %v1580 = vmul.f32 %v1558, %v1572
      %v1581 = vmul.f32 %v1565, %v1569
      %v1582 = vmul.f32 %v1563, %v1570
      %v1583 = vmul.f32 %v1561, %v1571
      %v1584 = vmul.f32 %v1559, %v1572
      %v1585 = vpack.c.bf16 %v1578, %v1577
      %v1586 = vpack.c.bf16 %v1580, %v1579
      %v1587 = vpack.c.bf16 %v1582, %v1581
      %v1588 = vpack.c.bf16 %v1584, %v1583
      %1589 = vst [vmem:[#allocation2 + $0x300] sm:$0xff] %v1585
      %1590 = vst [vmem:[#allocation2 + $0x308] sm:$0xff] %v1586
      %1591 = vst [vmem:[#allocation2 + $0x310] sm:$0xff] %v1587
      %1592 = vst [vmem:[#allocation2 + $0x318] sm:$0xff] %v1588
      %1593 = vrot.lane.b32.xlu0 %v308, 1
      %v1594 = vpop.permute.xlu0 %1593
      %1595 = vrot.lane.b32.xlu0 %v312, 1
      %v1596 = vpop.permute.xlu0 %1595
      %1597 = vrot.lane.b32.xlu0 %v309, 1
      %v1598 = vpop.permute.xlu0 %1597
      %1599 = vrot.lane.b32.xlu0 %v313, 1
      %v1600 = vpop.permute.xlu0 %1599
      %1601 = vrot.lane.b32.xlu0 %v310, 1
      %v1602 = vpop.permute.xlu0 %1601
      %1603 = vrot.lane.b32.xlu0 %v314, 1
      %v1604 = vpop.permute.xlu0 %1603
      %1605 = vrot.lane.b32.xlu0 %v311, 1
      %v1606 = vpop.permute.xlu0 %1605
      %1607 = vrot.lane.b32.xlu0 %v315, 1
      %v1608 = vpop.permute.xlu0 %1607
      %v1609 = vsel %vm1557, %v1602, %v1606
      %v1610 = vsel %vm1557, %v1604, %v1608
      %v1611 = vsel %vm1557, %v1598, %v1602
      %v1612 = vsel %vm1557, %v1600, %v1604
      %v1613 = vsel %vm1557, %v1594, %v1598
      %v1614 = vsel %vm1557, %v1596, %v1600
      %v1615 = vsel %vm1557, %v1606, %v1594
      %v1616 = vsel %vm1557, %v1608, %v1596
      %v1617 = vld [vmem:[%s1566] ss:$8 sm:$0xf]
      %v1619 = vperm.slane %v1617, 0
      %v1620 = vperm.slane %v1617, 1
      %v1621 = vperm.slane %v1617, 2
      %v1622 = vperm.slane %v1617, 3
      %v1627 = vmul.f32 %v1615, %v1619
      %v1628 = vmul.f32 %v1613, %v1620
      %v1629 = vmul.f32 %v1611, %v1621
      %v1630 = vmul.f32 %v1609, %v1622
      %v1631 = vmul.f32 %v1616, %v1619
      %v1632 = vmul.f32 %v1614, %v1620
      %v1633 = vmul.f32 %v1612, %v1621
      %v1634 = vmul.f32 %v1610, %v1622
      %v1635 = vpack.c.bf16 %v1628, %v1627
      %v1636 = vpack.c.bf16 %v1630, %v1629
      %v1637 = vpack.c.bf16 %v1632, %v1631
      %v1638 = vpack.c.bf16 %v1634, %v1633
      %1639 = vst [vmem:[#allocation2 + $0x320] sm:$0xff] %v1635
      %1640 = vst [vmem:[#allocation2 + $0x328] sm:$0xff] %v1636
      %1641 = vst [vmem:[#allocation2 + $0x330] sm:$0xff] %v1637
      %1642 = vst [vmem:[#allocation2 + $0x338] sm:$0xff] %v1638
      %v1643 = vpack.c.bf16 %v301, %v300
      %v1644 = vpack.c.bf16 %v303, %v302
      %v1645 = vpack.c.bf16 %v305, %v304
      %v1646 = vpack.c.bf16 %v307, %v306
      %1647 = vst [vmem:[#allocation2 + $0x340] sm:$0xff] %v1643
      %1648 = vst [vmem:[#allocation2 + $0x348] sm:$0xff] %v1644
      %1649 = vst [vmem:[#allocation2 + $0x350] sm:$0xff] %v1645
      %1650 = vst [vmem:[#allocation2 + $0x358] sm:$0xff] %v1646
      %v1651 = vpack.c.bf16 %v309, %v308
      %v1652 = vpack.c.bf16 %v311, %v310
      %v1653 = vpack.c.bf16 %v313, %v312
      %v1654 = vpack.c.bf16 %v315, %v314
      %1655 = vst [vmem:[#allocation2 + $0x360] sm:$0xff] %v1651
      %1656 = vst [vmem:[#allocation2 + $0x368] sm:$0xff] %v1652
      %1657 = vst [vmem:[#allocation2 + $0x370] sm:$0xff] %v1653
      %1658 = vst [vmem:[#allocation2 + $0x378] sm:$0xff] %v1654
      %1659 = vrot.lane.b32.xlu0 %v300, 127
      %v1660 = vpop.permute.xlu0 %1659
      %1661 = vrot.lane.b32.xlu0 %v304, 127
      %v1662 = vpop.permute.xlu0 %1661
      %1663 = vrot.lane.b32.xlu0 %v301, 127
      %v1664 = vpop.permute.xlu0 %1663
      %1665 = vrot.lane.b32.xlu0 %v305, 127
      %v1666 = vpop.permute.xlu0 %1665
      %1667 = vrot.lane.b32.xlu0 %v302, 127
      %v1668 = vpop.permute.xlu0 %1667
      %1669 = vrot.lane.b32.xlu0 %v306, 127
      %v1670 = vpop.permute.xlu0 %1669
      %1671 = vrot.lane.b32.xlu0 %v303, 127
      %v1672 = vpop.permute.xlu0 %1671
      %1673 = vrot.lane.b32.xlu0 %v307, 127
      %v1674 = vpop.permute.xlu0 %1673
      %vm1675 = vcmp.lt.s32.totalorder %v333, 127
      %v1676 = vsel %vm1675, %v1668, %v1672
      %v1677 = vsel %vm1675, %v1670, %v1674
      %v1678 = vsel %vm1675, %v1664, %v1668
      %v1679 = vsel %vm1675, %v1666, %v1670
      %v1680 = vsel %vm1675, %v1660, %v1664
      %v1681 = vsel %vm1675, %v1662, %v1666
      %v1682 = vsel %vm1675, %v1672, %v1660
      %v1683 = vsel %vm1675, %v1674, %v1662
      %s1684 = scalar_lea.vmem %s2, 38
      %v1685 = vld [vmem:[%s1684] ss:$8 sm:$0xf]
      %v1687 = vperm.slane %v1685, 0
      %v1688 = vperm.slane %v1685, 1
      %v1689 = vperm.slane %v1685, 2
      %v1690 = vperm.slane %v1685, 3
      %v1695 = vmul.f32 %v1680, %v1687
      %v1696 = vmul.f32 %v1678, %v1688
      %v1697 = vmul.f32 %v1676, %v1689
      %v1698 = vmul.f32 %v1682, %v1690
      %v1699 = vmul.f32 %v1681, %v1687
      %v1700 = vmul.f32 %v1679, %v1688
      %v1701 = vmul.f32 %v1677, %v1689
      %v1702 = vmul.f32 %v1683, %v1690
      %v1703 = vpack.c.bf16 %v1696, %v1695
      %v1704 = vpack.c.bf16 %v1698, %v1697
      %v1705 = vpack.c.bf16 %v1700, %v1699
      %v1706 = vpack.c.bf16 %v1702, %v1701
      %1707 = vst [vmem:[#allocation2 + $0x380] sm:$0xff] %v1703
      %1708 = vst [vmem:[#allocation2 + $0x388] sm:$0xff] %v1704
      %1709 = vst [vmem:[#allocation2 + $0x390] sm:$0xff] %v1705
      %1710 = vst [vmem:[#allocation2 + $0x398] sm:$0xff] %v1706
      %1711 = vrot.lane.b32.xlu0 %v308, 127
      %v1712 = vpop.permute.xlu0 %1711
      %1713 = vrot.lane.b32.xlu0 %v312, 127
      %v1714 = vpop.permute.xlu0 %1713
      %1715 = vrot.lane.b32.xlu0 %v309, 127
      %v1716 = vpop.permute.xlu0 %1715
      %1717 = vrot.lane.b32.xlu0 %v313, 127
      %v1718 = vpop.permute.xlu0 %1717
      %1719 = vrot.lane.b32.xlu0 %v310, 127
      %v1720 = vpop.permute.xlu0 %1719
      %1721 = vrot.lane.b32.xlu0 %v314, 127
      %v1722 = vpop.permute.xlu0 %1721
      %1723 = vrot.lane.b32.xlu0 %v311, 127
      %v1724 = vpop.permute.xlu0 %1723
      %1725 = vrot.lane.b32.xlu0 %v315, 127
      %v1726 = vpop.permute.xlu0 %1725
      %v1727 = vsel %vm1675, %v1720, %v1724
      %v1728 = vsel %vm1675, %v1722, %v1726
      %v1729 = vsel %vm1675, %v1716, %v1720
      %v1730 = vsel %vm1675, %v1718, %v1722
      %v1731 = vsel %vm1675, %v1712, %v1716
      %v1732 = vsel %vm1675, %v1714, %v1718
      %v1733 = vsel %vm1675, %v1724, %v1712
      %v1734 = vsel %vm1675, %v1726, %v1714
      %v1735 = vld [vmem:[%s1684] ss:$8 sm:$0xf]
      %v1737 = vperm.slane %v1735, 0
      %v1738 = vperm.slane %v1735, 1
      %v1739 = vperm.slane %v1735, 2
      %v1740 = vperm.slane %v1735, 3
      %v1745 = vmul.f32 %v1731, %v1737
      %v1746 = vmul.f32 %v1729, %v1738
      %v1747 = vmul.f32 %v1727, %v1739
      %v1748 = vmul.f32 %v1733, %v1740
      %v1749 = vmul.f32 %v1732, %v1737
      %v1750 = vmul.f32 %v1730, %v1738
      %v1751 = vmul.f32 %v1728, %v1739
      %v1752 = vmul.f32 %v1734, %v1740
      %v1753 = vpack.c.bf16 %v1746, %v1745
      %v1754 = vpack.c.bf16 %v1748, %v1747
      %v1755 = vpack.c.bf16 %v1750, %v1749
      %v1756 = vpack.c.bf16 %v1752, %v1751
      %1757 = vst [vmem:[#allocation2 + $0x3a0] sm:$0xff] %v1753
      %1758 = vst [vmem:[#allocation2 + $0x3a8] sm:$0xff] %v1754
      %1759 = vst [vmem:[#allocation2 + $0x3b0] sm:$0xff] %v1755
      %1760 = vst [vmem:[#allocation2 + $0x3b8] sm:$0xff] %v1756
      %1761 = vrot.lane.b32.xlu0 %v300, 121
      %v1762 = vpop.permute.xlu0 %1761
      %1763 = vrot.lane.b32.xlu0 %v304, 121
      %v1764 = vpop.permute.xlu0 %1763
      %1765 = vrot.lane.b32.xlu0 %v301, 121
      %v1766 = vpop.permute.xlu0 %1765
      %1767 = vrot.lane.b32.xlu0 %v305, 121
      %v1768 = vpop.permute.xlu0 %1767
      %1769 = vrot.lane.b32.xlu0 %v302, 121
      %v1770 = vpop.permute.xlu0 %1769
      %1771 = vrot.lane.b32.xlu0 %v306, 121
      %v1772 = vpop.permute.xlu0 %1771
      %1773 = vrot.lane.b32.xlu0 %v303, 121
      %v1774 = vpop.permute.xlu0 %1773
      %1775 = vrot.lane.b32.xlu0 %v307, 121
      %v1776 = vpop.permute.xlu0 %1775
      %vm1777 = vcmp.lt.s32.totalorder %v333, 121
      %v1778 = vsel %vm1777, %v1770, %v1774
      %v1779 = vsel %vm1777, %v1772, %v1776
      %v1780 = vsel %vm1777, %v1766, %v1770
      %v1781 = vsel %vm1777, %v1768, %v1772
      %v1782 = vsel %vm1777, %v1762, %v1766
      %v1783 = vsel %vm1777, %v1764, %v1768
      %v1784 = vsel %vm1777, %v1774, %v1762
      %v1785 = vsel %vm1777, %v1776, %v1764
      %s1786 = scalar_lea.vmem %s2, 39
      %v1787 = vld [vmem:[%s1786] ss:$8 sm:$0xf]
      %v1789 = vperm.slane %v1787, 0
      %v1790 = vperm.slane %v1787, 1
      %v1791 = vperm.slane %v1787, 2
      %v1792 = vperm.slane %v1787, 3
      %v1797 = vmul.f32 %v1782, %v1789
      %v1798 = vmul.f32 %v1780, %v1790
      %v1799 = vmul.f32 %v1778, %v1791
      %v1800 = vmul.f32 %v1784, %v1792
      %v1801 = vmul.f32 %v1783, %v1789
      %v1802 = vmul.f32 %v1781, %v1790
      %v1803 = vmul.f32 %v1779, %v1791
      %v1804 = vmul.f32 %v1785, %v1792
      %v1805 = vpack.c.bf16 %v1798, %v1797
      %v1806 = vpack.c.bf16 %v1800, %v1799
      %v1807 = vpack.c.bf16 %v1802, %v1801
      %v1808 = vpack.c.bf16 %v1804, %v1803
      %1809 = vst [vmem:[#allocation2 + $0x3c0] sm:$0xff] %v1805
      %1810 = vst [vmem:[#allocation2 + $0x3c8] sm:$0xff] %v1806
      %1811 = vst [vmem:[#allocation2 + $0x3d0] sm:$0xff] %v1807
      %1812 = vst [vmem:[#allocation2 + $0x3d8] sm:$0xff] %v1808
      %1813 = vrot.lane.b32.xlu0 %v308, 121
      %v1814 = vpop.permute.xlu0 %1813
      %1815 = vrot.lane.b32.xlu0 %v312, 121
      %v1816 = vpop.permute.xlu0 %1815
      %1817 = vrot.lane.b32.xlu0 %v309, 121
      %v1818 = vpop.permute.xlu0 %1817
      %1819 = vrot.lane.b32.xlu0 %v313, 121
      %v1820 = vpop.permute.xlu0 %1819
      %1821 = vrot.lane.b32.xlu0 %v310, 121
      %v1822 = vpop.permute.xlu0 %1821
      %1823 = vrot.lane.b32.xlu0 %v314, 121
      %v1824 = vpop.permute.xlu0 %1823
      %1825 = vrot.lane.b32.xlu0 %v311, 121
      %v1826 = vpop.permute.xlu0 %1825
      %1827 = vrot.lane.b32.xlu0 %v315, 121
      %v1828 = vpop.permute.xlu0 %1827
      %v1829 = vsel %vm1777, %v1822, %v1826
      %v1830 = vsel %vm1777, %v1824, %v1828
      %v1831 = vsel %vm1777, %v1818, %v1822
      %v1832 = vsel %vm1777, %v1820, %v1824
      %v1833 = vsel %vm1777, %v1814, %v1818
      %v1834 = vsel %vm1777, %v1816, %v1820
      %v1835 = vsel %vm1777, %v1826, %v1814
      %v1836 = vsel %vm1777, %v1828, %v1816
      %v1837 = vld [vmem:[%s1786] ss:$8 sm:$0xf]
      %v1839 = vperm.slane %v1837, 0
      %v1840 = vperm.slane %v1837, 1
      %v1841 = vperm.slane %v1837, 2
      %v1842 = vperm.slane %v1837, 3
      %v1847 = vmul.f32 %v1833, %v1839
      %v1848 = vmul.f32 %v1831, %v1840
      %v1849 = vmul.f32 %v1829, %v1841
      %v1850 = vmul.f32 %v1835, %v1842
      %v1851 = vmul.f32 %v1834, %v1839
      %v1852 = vmul.f32 %v1832, %v1840
      %v1853 = vmul.f32 %v1830, %v1841
      %v1854 = vmul.f32 %v1836, %v1842
      %v1855 = vpack.c.bf16 %v1848, %v1847
      %v1856 = vpack.c.bf16 %v1850, %v1849
      %v1857 = vpack.c.bf16 %v1852, %v1851
      %v1858 = vpack.c.bf16 %v1854, %v1853
      %1859 = vst [vmem:[#allocation2 + $0x3e0] sm:$0xff] %v1855
      %1860 = vst [vmem:[#allocation2 + $0x3e8] sm:$0xff] %v1856
      %1861 = vst [vmem:[#allocation2 + $0x3f0] sm:$0xff] %v1857
      %1862 = vst [vmem:[#allocation2 + $0x3f8] sm:$0xff] %v1858
      %1863 = vrot.lane.b32.xlu0 %v300, 120
      %v1864 = vpop.permute.xlu0 %1863
      %1865 = vrot.lane.b32.xlu0 %v304, 120
      %v1866 = vpop.permute.xlu0 %1865
      %1867 = vrot.lane.b32.xlu0 %v301, 120
      %v1868 = vpop.permute.xlu0 %1867
      %1869 = vrot.lane.b32.xlu0 %v305, 120
      %v1870 = vpop.permute.xlu0 %1869
      %1871 = vrot.lane.b32.xlu0 %v302, 120
      %v1872 = vpop.permute.xlu0 %1871
      %1873 = vrot.lane.b32.xlu0 %v306, 120
      %v1874 = vpop.permute.xlu0 %1873
      %1875 = vrot.lane.b32.xlu0 %v303, 120
      %v1876 = vpop.permute.xlu0 %1875
      %1877 = vrot.lane.b32.xlu0 %v307, 120
      %v1878 = vpop.permute.xlu0 %1877
      %vm1879 = vcmp.lt.s32.totalorder %v333, 120
      %v1880 = vsel %vm1879, %v1872, %v1876
      %v1881 = vsel %vm1879, %v1874, %v1878
      %v1882 = vsel %vm1879, %v1868, %v1872
      %v1883 = vsel %vm1879, %v1870, %v1874
      %v1884 = vsel %vm1879, %v1864, %v1868
      %v1885 = vsel %vm1879, %v1866, %v1870
      %v1886 = vsel %vm1879, %v1876, %v1864
      %v1887 = vsel %vm1879, %v1878, %v1866
      %s1888 = scalar_lea.vmem %s2, 64
      %v1889 = vld [vmem:[%s1888] ss:$8 sm:$0xf]
      %v1891 = vperm.slane %v1889, 0
      %v1892 = vperm.slane %v1889, 1
      %v1893 = vperm.slane %v1889, 2
      %v1894 = vperm.slane %v1889, 3
      %v1899 = vmul.f32 %v1884, %v1891
      %v1900 = vmul.f32 %v1882, %v1892
      %v1901 = vmul.f32 %v1880, %v1893
      %v1902 = vmul.f32 %v1886, %v1894
      %v1903 = vmul.f32 %v1885, %v1891
      %v1904 = vmul.f32 %v1883, %v1892
      %v1905 = vmul.f32 %v1881, %v1893
      %v1906 = vmul.f32 %v1887, %v1894
      %v1907 = vpack.c.bf16 %v1900, %v1899
      %v1908 = vpack.c.bf16 %v1902, %v1901
      %v1909 = vpack.c.bf16 %v1904, %v1903
      %v1910 = vpack.c.bf16 %v1906, %v1905
      %1911 = vst [vmem:[#allocation2 + $0x400] sm:$0xff] %v1907
      %1912 = vst [vmem:[#allocation2 + $0x408] sm:$0xff] %v1908
      %1913 = vst [vmem:[#allocation2 + $0x410] sm:$0xff] %v1909
      %1914 = vst [vmem:[#allocation2 + $0x418] sm:$0xff] %v1910
      %1915 = vrot.lane.b32.xlu0 %v308, 120
      %v1916 = vpop.permute.xlu0 %1915
      %1917 = vrot.lane.b32.xlu0 %v312, 120
      %v1918 = vpop.permute.xlu0 %1917
      %1919 = vrot.lane.b32.xlu0 %v309, 120
      %v1920 = vpop.permute.xlu0 %1919
      %1921 = vrot.lane.b32.xlu0 %v313, 120
      %v1922 = vpop.permute.xlu0 %1921
      %1923 = vrot.lane.b32.xlu0 %v310, 120
      %v1924 = vpop.permute.xlu0 %1923
      %1925 = vrot.lane.b32.xlu0 %v314, 120
      %v1926 = vpop.permute.xlu0 %1925
      %1927 = vrot.lane.b32.xlu0 %v311, 120
      %v1928 = vpop.permute.xlu0 %1927
      %1929 = vrot.lane.b32.xlu0 %v315, 120
      %v1930 = vpop.permute.xlu0 %1929
      %v1931 = vsel %vm1879, %v1924, %v1928
      %v1932 = vsel %vm1879, %v1926, %v1930
      %v1933 = vsel %vm1879, %v1920, %v1924
      %v1934 = vsel %vm1879, %v1922, %v1926
      %v1935 = vsel %vm1879, %v1916, %v1920
      %v1936 = vsel %vm1879, %v1918, %v1922
      %v1937 = vsel %vm1879, %v1928, %v1916
      %v1938 = vsel %vm1879, %v1930, %v1918
      %v1939 = vld [vmem:[%s1888] ss:$8 sm:$0xf]
      %v1941 = vperm.slane %v1939, 0
      %v1942 = vperm.slane %v1939, 1
      %v1943 = vperm.slane %v1939, 2
      %v1944 = vperm.slane %v1939, 3
      %v1949 = vmul.f32 %v1935, %v1941
      %v1950 = vmul.f32 %v1933, %v1942
      %v1951 = vmul.f32 %v1931, %v1943
      %v1952 = vmul.f32 %v1937, %v1944
      %v1953 = vmul.f32 %v1936, %v1941
      %v1954 = vmul.f32 %v1934, %v1942
      %v1955 = vmul.f32 %v1932, %v1943
      %v1956 = vmul.f32 %v1938, %v1944
      %v1957 = vpack.c.bf16 %v1950, %v1949
      %v1958 = vpack.c.bf16 %v1952, %v1951
      %v1959 = vpack.c.bf16 %v1954, %v1953
      %v1960 = vpack.c.bf16 %v1956, %v1955
      %1961 = vst [vmem:[#allocation2 + $0x420] sm:$0xff] %v1957
      %1962 = vst [vmem:[#allocation2 + $0x428] sm:$0xff] %v1958
      %1963 = vst [vmem:[#allocation2 + $0x430] sm:$0xff] %v1959
      %1964 = vst [vmem:[#allocation2 + $0x438] sm:$0xff] %v1960
      %1965 = vrot.lane.b32.xlu0 %v300, 119
      %v1966 = vpop.permute.xlu0 %1965
      %1967 = vrot.lane.b32.xlu0 %v304, 119
      %v1968 = vpop.permute.xlu0 %1967
      %1969 = vrot.lane.b32.xlu0 %v301, 119
      %v1970 = vpop.permute.xlu0 %1969
      %1971 = vrot.lane.b32.xlu0 %v305, 119
      %v1972 = vpop.permute.xlu0 %1971
      %1973 = vrot.lane.b32.xlu0 %v302, 119
      %v1974 = vpop.permute.xlu0 %1973
      %1975 = vrot.lane.b32.xlu0 %v306, 119
      %v1976 = vpop.permute.xlu0 %1975
      %1977 = vrot.lane.b32.xlu0 %v303, 119
      %v1978 = vpop.permute.xlu0 %1977
      %1979 = vrot.lane.b32.xlu0 %v307, 119
      %v1980 = vpop.permute.xlu0 %1979
      %vm1981 = vcmp.lt.s32.totalorder %v333, 119
      %v1982 = vsel %vm1981, %v1974, %v1978
      %v1983 = vsel %vm1981, %v1976, %v1980
      %v1984 = vsel %vm1981, %v1970, %v1974
      %v1985 = vsel %vm1981, %v1972, %v1976
      %v1986 = vsel %vm1981, %v1966, %v1970
      %v1987 = vsel %vm1981, %v1968, %v1972
      %v1988 = vsel %vm1981, %v1978, %v1966
      %v1989 = vsel %vm1981, %v1980, %v1968
      %s1990 = scalar_lea.vmem %s2, 65
      %v1991 = vld [vmem:[%s1990] ss:$8 sm:$0xf]
      %v1993 = vperm.slane %v1991, 0
      %v1994 = vperm.slane %v1991, 1
      %v1995 = vperm.slane %v1991, 2
      %v1996 = vperm.slane %v1991, 3
      %v2001 = vmul.f32 %v1986, %v1993
      %v2002 = vmul.f32 %v1984, %v1994
      %v2003 = vmul.f32 %v1982, %v1995
      %v2004 = vmul.f32 %v1988, %v1996
      %v2005 = vmul.f32 %v1987, %v1993
      %v2006 = vmul.f32 %v1985, %v1994
      %v2007 = vmul.f32 %v1983, %v1995
      %v2008 = vmul.f32 %v1989, %v1996
      %v2009 = vpack.c.bf16 %v2002, %v2001
      %v2010 = vpack.c.bf16 %v2004, %v2003
      %v2011 = vpack.c.bf16 %v2006, %v2005
      %v2012 = vpack.c.bf16 %v2008, %v2007
      %2013 = vst [vmem:[#allocation2 + $0x440] sm:$0xff] %v2009
      %2014 = vst [vmem:[#allocation2 + $0x448] sm:$0xff] %v2010
      %2015 = vst [vmem:[#allocation2 + $0x450] sm:$0xff] %v2011
      %2016 = vst [vmem:[#allocation2 + $0x458] sm:$0xff] %v2012
      %2017 = vrot.lane.b32.xlu0 %v308, 119
      %v2018 = vpop.permute.xlu0 %2017
      %2019 = vrot.lane.b32.xlu0 %v312, 119
      %v2020 = vpop.permute.xlu0 %2019
      %2021 = vrot.lane.b32.xlu0 %v309, 119
      %v2022 = vpop.permute.xlu0 %2021
      %2023 = vrot.lane.b32.xlu0 %v313, 119
      %v2024 = vpop.permute.xlu0 %2023
      %2025 = vrot.lane.b32.xlu0 %v310, 119
      %v2026 = vpop.permute.xlu0 %2025
      %2027 = vrot.lane.b32.xlu0 %v314, 119
      %v2028 = vpop.permute.xlu0 %2027
      %2029 = vrot.lane.b32.xlu0 %v311, 119
      %v2030 = vpop.permute.xlu0 %2029
      %2031 = vrot.lane.b32.xlu0 %v315, 119
      %v2032 = vpop.permute.xlu0 %2031
      %v2033 = vsel %vm1981, %v2026, %v2030
      %v2034 = vsel %vm1981, %v2028, %v2032
      %v2035 = vsel %vm1981, %v2022, %v2026
      %v2036 = vsel %vm1981, %v2024, %v2028
      %v2037 = vsel %vm1981, %v2018, %v2022
      %v2038 = vsel %vm1981, %v2020, %v2024
      %v2039 = vsel %vm1981, %v2030, %v2018
      %v2040 = vsel %vm1981, %v2032, %v2020
      %v2041 = vld [vmem:[%s1990] ss:$8 sm:$0xf]
      %v2043 = vperm.slane %v2041, 0
      %v2044 = vperm.slane %v2041, 1
      %v2045 = vperm.slane %v2041, 2
      %v2046 = vperm.slane %v2041, 3
      %v2051 = vmul.f32 %v2037, %v2043
      %v2052 = vmul.f32 %v2035, %v2044
      %v2053 = vmul.f32 %v2033, %v2045
      %v2054 = vmul.f32 %v2039, %v2046
      %v2055 = vmul.f32 %v2038, %v2043
      %v2056 = vmul.f32 %v2036, %v2044
      %v2057 = vmul.f32 %v2034, %v2045
      %v2058 = vmul.f32 %v2040, %v2046
      %v2059 = vpack.c.bf16 %v2052, %v2051
      %v2060 = vpack.c.bf16 %v2054, %v2053
      %v2061 = vpack.c.bf16 %v2056, %v2055
      %v2062 = vpack.c.bf16 %v2058, %v2057
      %2063 = vst [vmem:[#allocation2 + $0x460] sm:$0xff] %v2059
      %2064 = vst [vmem:[#allocation2 + $0x468] sm:$0xff] %v2060
      %2065 = vst [vmem:[#allocation2 + $0x470] sm:$0xff] %v2061
      %2066 = vst [vmem:[#allocation2 + $0x478] sm:$0xff] %v2062
      %s2067 = scalar_lea.vmem %s2, 66
      %v2068 = vld [vmem:[%s2067] ss:$8 sm:$0xf]
      %v2070 = vperm.slane %v2068, 0
      %v2071 = vperm.slane %v2068, 1
      %v2072 = vperm.slane %v2068, 2
      %v2073 = vperm.slane %v2068, 3
      %v2078 = vmul.f32 %v339, %v2070
      %v2079 = vmul.f32 %v337, %v2071
      %v2080 = vmul.f32 %v335, %v2072
      %v2081 = vmul.f32 %v341, %v2073
      %v2082 = vmul.f32 %v340, %v2070
      %v2083 = vmul.f32 %v338, %v2071
      %v2084 = vmul.f32 %v336, %v2072
      %v2085 = vmul.f32 %v342, %v2073
      %v2086 = vpack.c.bf16 %v2079, %v2078
      %v2087 = vpack.c.bf16 %v2081, %v2080
      %v2088 = vpack.c.bf16 %v2083, %v2082
      %v2089 = vpack.c.bf16 %v2085, %v2084
      %2090 = vst [vmem:[#allocation2 + $0x480] sm:$0xff] %v2086
      %2091 = vst [vmem:[#allocation2 + $0x488] sm:$0xff] %v2087
      %2092 = vst [vmem:[#allocation2 + $0x490] sm:$0xff] %v2088
      %2093 = vst [vmem:[#allocation2 + $0x498] sm:$0xff] %v2089
      %v2094 = vld [vmem:[%s2067] ss:$8 sm:$0xf]
      %v2096 = vperm.slane %v2094, 0
      %v2097 = vperm.slane %v2094, 1
      %v2098 = vperm.slane %v2094, 2
      %v2099 = vperm.slane %v2094, 3
      %v2104 = vmul.f32 %v389, %v2096
      %v2105 = vmul.f32 %v387, %v2097
      %v2106 = vmul.f32 %v385, %v2098
      %v2107 = vmul.f32 %v391, %v2099
      %v2108 = vmul.f32 %v390, %v2096
      %v2109 = vmul.f32 %v388, %v2097
      %v2110 = vmul.f32 %v386, %v2098
      %v2111 = vmul.f32 %v392, %v2099
      %v2112 = vpack.c.bf16 %v2105, %v2104
      %v2113 = vpack.c.bf16 %v2107, %v2106
      %v2114 = vpack.c.bf16 %v2109, %v2108
      %v2115 = vpack.c.bf16 %v2111, %v2110
      %2116 = vst [vmem:[#allocation2 + $0x4a0] sm:$0xff] %v2112
      %2117 = vst [vmem:[#allocation2 + $0x4a8] sm:$0xff] %v2113
      %2118 = vst [vmem:[#allocation2 + $0x4b0] sm:$0xff] %v2114
      %2119 = vst [vmem:[#allocation2 + $0x4b8] sm:$0xff] %v2115
      %s2120 = scalar_lea.vmem %s2, 67
      %v2121 = vld [vmem:[%s2120] ss:$8 sm:$0xf]
      %v2123 = vperm.slane %v2121, 0
      %v2124 = vperm.slane %v2121, 1
      %v2125 = vperm.slane %v2121, 2
      %v2126 = vperm.slane %v2121, 3
      %v2131 = vmul.f32 %v440, %v2123
      %v2132 = vmul.f32 %v438, %v2124
      %v2133 = vmul.f32 %v436, %v2125
      %v2134 = vmul.f32 %v442, %v2126
      %v2135 = vmul.f32 %v441, %v2123
      %v2136 = vmul.f32 %v439, %v2124
      %v2137 = vmul.f32 %v437, %v2125
      %v2138 = vmul.f32 %v443, %v2126
      %v2139 = vpack.c.bf16 %v2132, %v2131
      %v2140 = vpack.c.bf16 %v2134, %v2133
      %v2141 = vpack.c.bf16 %v2136, %v2135
      %v2142 = vpack.c.bf16 %v2138, %v2137
      %2143 = vst [vmem:[#allocation2 + $0x4c0] sm:$0xff] %v2139
      %2144 = vst [vmem:[#allocation2 + $0x4c8] sm:$0xff] %v2140
      %2145 = vst [vmem:[#allocation2 + $0x4d0] sm:$0xff] %v2141
      %2146 = vst [vmem:[#allocation2 + $0x4d8] sm:$0xff] %v2142
      %v2147 = vld [vmem:[%s2120] ss:$8 sm:$0xf]
      %v2149 = vperm.slane %v2147, 0
      %v2150 = vperm.slane %v2147, 1
      %v2151 = vperm.slane %v2147, 2
      %v2152 = vperm.slane %v2147, 3
      %v2157 = vmul.f32 %v491, %v2149
      %v2158 = vmul.f32 %v489, %v2150
      %v2159 = vmul.f32 %v487, %v2151
      %v2160 = vmul.f32 %v493, %v2152
      %v2161 = vmul.f32 %v492, %v2149
      %v2162 = vmul.f32 %v490, %v2150
      %v2163 = vmul.f32 %v488, %v2151
      %v2164 = vmul.f32 %v494, %v2152
      %v2165 = vpack.c.bf16 %v2158, %v2157
      %v2166 = vpack.c.bf16 %v2160, %v2159
      %v2167 = vpack.c.bf16 %v2162, %v2161
      %v2168 = vpack.c.bf16 %v2164, %v2163
      %2169 = vst [vmem:[#allocation2 + $0x4e0] sm:$0xff] %v2165
      %2170 = vst [vmem:[#allocation2 + $0x4e8] sm:$0xff] %v2166
      %2171 = vst [vmem:[#allocation2 + $0x4f0] sm:$0xff] %v2167
      %2172 = vst [vmem:[#allocation2 + $0x4f8] sm:$0xff] %v2168
      %s2173 = scalar_lea.vmem %s2, 68
      %v2174 = vld [vmem:[%s2173] ss:$8 sm:$0xf]
      %v2176 = vperm.slane %v2174, 0
      %v2177 = vperm.slane %v2174, 1
      %v2178 = vperm.slane %v2174, 2
      %v2179 = vperm.slane %v2174, 3
      %v2184 = vmul.f32 %v542, %v2176
      %v2185 = vmul.f32 %v540, %v2177
      %v2186 = vmul.f32 %v538, %v2178
      %v2187 = vmul.f32 %v544, %v2179
      %v2188 = vmul.f32 %v543, %v2176
      %v2189 = vmul.f32 %v541, %v2177
      %v2190 = vmul.f32 %v539, %v2178
      %v2191 = vmul.f32 %v545, %v2179
      %v2192 = vpack.c.bf16 %v2185, %v2184
      %v2193 = vpack.c.bf16 %v2187, %v2186
      %v2194 = vpack.c.bf16 %v2189, %v2188
      %v2195 = vpack.c.bf16 %v2191, %v2190
      %2196 = vst [vmem:[#allocation2 + $0x500] sm:$0xff] %v2192
      %2197 = vst [vmem:[#allocation2 + $0x508] sm:$0xff] %v2193
      %2198 = vst [vmem:[#allocation2 + $0x510] sm:$0xff] %v2194
      %2199 = vst [vmem:[#allocation2 + $0x518] sm:$0xff] %v2195
      %v2200 = vld [vmem:[%s2173] ss:$8 sm:$0xf]
      %v2202 = vperm.slane %v2200, 0
      %v2203 = vperm.slane %v2200, 1
      %v2204 = vperm.slane %v2200, 2
      %v2205 = vperm.slane %v2200, 3
      %v2210 = vmul.f32 %v593, %v2202
      %v2211 = vmul.f32 %v591, %v2203
      %v2212 = vmul.f32 %v589, %v2204
      %v2213 = vmul.f32 %v595, %v2205
      %v2214 = vmul.f32 %v594, %v2202
      %v2215 = vmul.f32 %v592, %v2203
      %v2216 = vmul.f32 %v590, %v2204
      %v2217 = vmul.f32 %v596, %v2205
      %v2218 = vpack.c.bf16 %v2211, %v2210
      %v2219 = vpack.c.bf16 %v2213, %v2212
      %v2220 = vpack.c.bf16 %v2215, %v2214
      %v2221 = vpack.c.bf16 %v2217, %v2216
      %2222 = vst [vmem:[#allocation2 + $0x520] sm:$0xff] %v2218
      %2223 = vst [vmem:[#allocation2 + $0x528] sm:$0xff] %v2219
      %2224 = vst [vmem:[#allocation2 + $0x530] sm:$0xff] %v2220
      %2225 = vst [vmem:[#allocation2 + $0x538] sm:$0xff] %v2221
      %s2226 = scalar_lea.vmem %s2, 69
      %v2227 = vld [vmem:[%s2226] ss:$8 sm:$0xf]
      %v2229 = vperm.slane %v2227, 0
      %v2230 = vperm.slane %v2227, 1
      %v2231 = vperm.slane %v2227, 2
      %v2232 = vperm.slane %v2227, 3
      %v2237 = vmul.f32 %v644, %v2229
      %v2238 = vmul.f32 %v642, %v2230
      %v2239 = vmul.f32 %v640, %v2231
      %v2240 = vmul.f32 %v646, %v2232
      %v2241 = vmul.f32 %v645, %v2229
      %v2242 = vmul.f32 %v643, %v2230
      %v2243 = vmul.f32 %v641, %v2231
      %v2244 = vmul.f32 %v647, %v2232
      %v2245 = vpack.c.bf16 %v2238, %v2237
      %v2246 = vpack.c.bf16 %v2240, %v2239
      %v2247 = vpack.c.bf16 %v2242, %v2241
      %v2248 = vpack.c.bf16 %v2244, %v2243
      %2249 = vst [vmem:[#allocation2 + $0x540] sm:$0xff] %v2245
      %2250 = vst [vmem:[#allocation2 + $0x548] sm:$0xff] %v2246
      %2251 = vst [vmem:[#allocation2 + $0x550] sm:$0xff] %v2247
      %2252 = vst [vmem:[#allocation2 + $0x558] sm:$0xff] %v2248
      %v2253 = vld [vmem:[%s2226] ss:$8 sm:$0xf]
      %v2255 = vperm.slane %v2253, 0
      %v2256 = vperm.slane %v2253, 1
      %v2257 = vperm.slane %v2253, 2
      %v2258 = vperm.slane %v2253, 3
      %v2263 = vmul.f32 %v695, %v2255
      %v2264 = vmul.f32 %v693, %v2256
      %v2265 = vmul.f32 %v691, %v2257
      %v2266 = vmul.f32 %v697, %v2258
      %v2267 = vmul.f32 %v696, %v2255
      %v2268 = vmul.f32 %v694, %v2256
      %v2269 = vmul.f32 %v692, %v2257
      %v2270 = vmul.f32 %v698, %v2258
      %v2271 = vpack.c.bf16 %v2264, %v2263
      %v2272 = vpack.c.bf16 %v2266, %v2265
      %v2273 = vpack.c.bf16 %v2268, %v2267
      %v2274 = vpack.c.bf16 %v2270, %v2269
      %2275 = vst [vmem:[#allocation2 + $0x560] sm:$0xff] %v2271
      %2276 = vst [vmem:[#allocation2 + $0x568] sm:$0xff] %v2272
      %2277 = vst [vmem:[#allocation2 + $0x570] sm:$0xff] %v2273
      %2278 = vst [vmem:[#allocation2 + $0x578] sm:$0xff] %v2274
      %s2279 = scalar_lea.vmem %s2, 70
      %v2280 = vld [vmem:[%s2279] ss:$8 sm:$0xf]
      %v2282 = vperm.slane %v2280, 0
      %v2283 = vperm.slane %v2280, 1
      %v2284 = vperm.slane %v2280, 2
      %v2285 = vperm.slane %v2280, 3
      %v2290 = vmul.f32 %v746, %v2282
      %v2291 = vmul.f32 %v744, %v2283
      %v2292 = vmul.f32 %v742, %v2284
      %v2293 = vmul.f32 %v748, %v2285
      %v2294 = vmul.f32 %v747, %v2282
      %v2295 = vmul.f32 %v745, %v2283
      %v2296 = vmul.f32 %v743, %v2284
      %v2297 = vmul.f32 %v749, %v2285
      %v2298 = vpack.c.bf16 %v2291, %v2290
      %v2299 = vpack.c.bf16 %v2293, %v2292
      %v2300 = vpack.c.bf16 %v2295, %v2294
      %v2301 = vpack.c.bf16 %v2297, %v2296
      %2302 = vst [vmem:[#allocation2 + $0x580] sm:$0xff] %v2298
      %2303 = vst [vmem:[#allocation2 + $0x588] sm:$0xff] %v2299
      %2304 = vst [vmem:[#allocation2 + $0x590] sm:$0xff] %v2300
      %2305 = vst [vmem:[#allocation2 + $0x598] sm:$0xff] %v2301
      %v2306 = vld [vmem:[%s2279] ss:$8 sm:$0xf]
      %v2308 = vperm.slane %v2306, 0
      %v2309 = vperm.slane %v2306, 1
      %v2310 = vperm.slane %v2306, 2
      %v2311 = vperm.slane %v2306, 3
      %v2316 = vmul.f32 %v797, %v2308
      %v2317 = vmul.f32 %v795, %v2309
      %v2318 = vmul.f32 %v793, %v2310
      %v2319 = vmul.f32 %v799, %v2311
      %v2320 = vmul.f32 %v798, %v2308
      %v2321 = vmul.f32 %v796, %v2309
      %v2322 = vmul.f32 %v794, %v2310
      %v2323 = vmul.f32 %v800, %v2311
      %v2324 = vpack.c.bf16 %v2317, %v2316
      %v2325 = vpack.c.bf16 %v2319, %v2318
      %v2326 = vpack.c.bf16 %v2321, %v2320
      %v2327 = vpack.c.bf16 %v2323, %v2322
      %2328 = vst [vmem:[#allocation2 + $0x5a0] sm:$0xff] %v2324
      %2329 = vst [vmem:[#allocation2 + $0x5a8] sm:$0xff] %v2325
      %2330 = vst [vmem:[#allocation2 + $0x5b0] sm:$0xff] %v2326
      %2331 = vst [vmem:[#allocation2 + $0x5b8] sm:$0xff] %v2327
      %s2332 = scalar_lea.vmem %s2, 71
      %v2333 = vld [vmem:[%s2332] ss:$8 sm:$0xf]
      %v2335 = vperm.slane %v2333, 0
      %v2336 = vperm.slane %v2333, 1
      %v2337 = vperm.slane %v2333, 2
      %v2338 = vperm.slane %v2333, 3
      %v2343 = vmul.f32 %v848, %v2335
      %v2344 = vmul.f32 %v846, %v2336
      %v2345 = vmul.f32 %v844, %v2337
      %v2346 = vmul.f32 %v850, %v2338
      %v2347 = vmul.f32 %v849, %v2335
      %v2348 = vmul.f32 %v847, %v2336
      %v2349 = vmul.f32 %v845, %v2337
      %v2350 = vmul.f32 %v851, %v2338
      %v2351 = vpack.c.bf16 %v2344, %v2343
      %v2352 = vpack.c.bf16 %v2346, %v2345
      %v2353 = vpack.c.bf16 %v2348, %v2347
      %v2354 = vpack.c.bf16 %v2350, %v2349
      %2355 = vst [vmem:[#allocation2 + $0x5c0] sm:$0xff] %v2351
      %2356 = vst [vmem:[#allocation2 + $0x5c8] sm:$0xff] %v2352
      %2357 = vst [vmem:[#allocation2 + $0x5d0] sm:$0xff] %v2353
      %2358 = vst [vmem:[#allocation2 + $0x5d8] sm:$0xff] %v2354
      %v2359 = vld [vmem:[%s2332] ss:$8 sm:$0xf]
      %v2361 = vperm.slane %v2359, 0
      %v2362 = vperm.slane %v2359, 1
      %v2363 = vperm.slane %v2359, 2
      %v2364 = vperm.slane %v2359, 3
      %v2369 = vmul.f32 %v899, %v2361
      %v2370 = vmul.f32 %v897, %v2362
      %v2371 = vmul.f32 %v895, %v2363
      %v2372 = vmul.f32 %v901, %v2364
      %v2373 = vmul.f32 %v900, %v2361
      %v2374 = vmul.f32 %v898, %v2362
      %v2375 = vmul.f32 %v896, %v2363
      %v2376 = vmul.f32 %v902, %v2364
      %v2377 = vpack.c.bf16 %v2370, %v2369
      %v2378 = vpack.c.bf16 %v2372, %v2371
      %v2379 = vpack.c.bf16 %v2374, %v2373
      %v2380 = vpack.c.bf16 %v2376, %v2375
      %2381 = vst [vmem:[#allocation2 + $0x5e0] sm:$0xff] %v2377
      %2382 = vst [vmem:[#allocation2 + $0x5e8] sm:$0xff] %v2378
      %2383 = vst [vmem:[#allocation2 + $0x5f0] sm:$0xff] %v2379
      %2384 = vst [vmem:[#allocation2 + $0x5f8] sm:$0xff] %v2380
      %s2385 = scalar_lea.vmem %s2, 96
      %v2386 = vld [vmem:[%s2385] ss:$8 sm:$0xf]
      %v2388 = vperm.slane %v2386, 0
      %v2389 = vperm.slane %v2386, 1
      %v2390 = vperm.slane %v2386, 2
      %v2391 = vperm.slane %v2386, 3
      %v2396 = vmul.f32 %v950, %v2388
      %v2397 = vmul.f32 %v948, %v2389
      %v2398 = vmul.f32 %v946, %v2390
      %v2399 = vmul.f32 %v952, %v2391
      %v2400 = vmul.f32 %v951, %v2388
      %v2401 = vmul.f32 %v949, %v2389
      %v2402 = vmul.f32 %v947, %v2390
      %v2403 = vmul.f32 %v953, %v2391
      %v2404 = vpack.c.bf16 %v2397, %v2396
      %v2405 = vpack.c.bf16 %v2399, %v2398
      %v2406 = vpack.c.bf16 %v2401, %v2400
      %v2407 = vpack.c.bf16 %v2403, %v2402
      %2408 = vst [vmem:[#allocation2 + $0x600] sm:$0xff] %v2404
      %2409 = vst [vmem:[#allocation2 + $0x608] sm:$0xff] %v2405
      %2410 = vst [vmem:[#allocation2 + $0x610] sm:$0xff] %v2406
      %2411 = vst [vmem:[#allocation2 + $0x618] sm:$0xff] %v2407
      %v2412 = vld [vmem:[%s2385] ss:$8 sm:$0xf]
      %v2414 = vperm.slane %v2412, 0
      %v2415 = vperm.slane %v2412, 1
      %v2416 = vperm.slane %v2412, 2
      %v2417 = vperm.slane %v2412, 3
      %v2422 = vmul.f32 %v1001, %v2414
      %v2423 = vmul.f32 %v999, %v2415
      %v2424 = vmul.f32 %v997, %v2416
      %v2425 = vmul.f32 %v1003, %v2417
      %v2426 = vmul.f32 %v1002, %v2414
      %v2427 = vmul.f32 %v1000, %v2415
      %v2428 = vmul.f32 %v998, %v2416
      %v2429 = vmul.f32 %v1004, %v2417
      %v2430 = vpack.c.bf16 %v2423, %v2422
      %v2431 = vpack.c.bf16 %v2425, %v2424
      %v2432 = vpack.c.bf16 %v2427, %v2426
      %v2433 = vpack.c.bf16 %v2429, %v2428
      %2434 = vst [vmem:[#allocation2 + $0x620] sm:$0xff] %v2430
      %2435 = vst [vmem:[#allocation2 + $0x628] sm:$0xff] %v2431
      %2436 = vst [vmem:[#allocation2 + $0x630] sm:$0xff] %v2432
      %2437 = vst [vmem:[#allocation2 + $0x638] sm:$0xff] %v2433
      %s2438 = scalar_lea.vmem %s2, 97
      %v2439 = vld [vmem:[%s2438] ss:$8 sm:$0xf]
      %v2441 = vperm.slane %v2439, 0
      %v2442 = vperm.slane %v2439, 1
      %v2443 = vperm.slane %v2439, 2
      %v2444 = vperm.slane %v2439, 3
      %v2449 = vmul.f32 %v1052, %v2441
      %v2450 = vmul.f32 %v1050, %v2442
      %v2451 = vmul.f32 %v1048, %v2443
      %v2452 = vmul.f32 %v1054, %v2444
      %v2453 = vmul.f32 %v1053, %v2441
      %v2454 = vmul.f32 %v1051, %v2442
      %v2455 = vmul.f32 %v1049, %v2443
      %v2456 = vmul.f32 %v1055, %v2444
      %v2457 = vpack.c.bf16 %v2450, %v2449
      %v2458 = vpack.c.bf16 %v2452, %v2451
      %v2459 = vpack.c.bf16 %v2454, %v2453
      %v2460 = vpack.c.bf16 %v2456, %v2455
      %2461 = vst [vmem:[#allocation2 + $0x640] sm:$0xff] %v2457
      %2462 = vst [vmem:[#allocation2 + $0x648] sm:$0xff] %v2458
      %2463 = vst [vmem:[#allocation2 + $0x650] sm:$0xff] %v2459
      %2464 = vst [vmem:[#allocation2 + $0x658] sm:$0xff] %v2460
      %v2465 = vld [vmem:[%s2438] ss:$8 sm:$0xf]
      %v2467 = vperm.slane %v2465, 0
      %v2468 = vperm.slane %v2465, 1
      %v2469 = vperm.slane %v2465, 2
      %v2470 = vperm.slane %v2465, 3
      %v2475 = vmul.f32 %v1103, %v2467
      %v2476 = vmul.f32 %v1101, %v2468
      %v2477 = vmul.f32 %v1099, %v2469
      %v2478 = vmul.f32 %v1105, %v2470
      %v2479 = vmul.f32 %v1104, %v2467
      %v2480 = vmul.f32 %v1102, %v2468
      %v2481 = vmul.f32 %v1100, %v2469
      %v2482 = vmul.f32 %v1106, %v2470
      %v2483 = vpack.c.bf16 %v2476, %v2475
      %v2484 = vpack.c.bf16 %v2478, %v2477
      %v2485 = vpack.c.bf16 %v2480, %v2479
      %v2486 = vpack.c.bf16 %v2482, %v2481
      %2487 = vst [vmem:[#allocation2 + $0x660] sm:$0xff] %v2483
      %2488 = vst [vmem:[#allocation2 + $0x668] sm:$0xff] %v2484
      %2489 = vst [vmem:[#allocation2 + $0x670] sm:$0xff] %v2485
      %2490 = vst [vmem:[#allocation2 + $0x678] sm:$0xff] %v2486
      %s2491 = scalar_lea.vmem %s2, 98
      %v2492 = vld [vmem:[%s2491] ss:$8 sm:$0xf]
      %v2494 = vperm.slane %v2492, 0
      %v2495 = vperm.slane %v2492, 1
      %v2496 = vperm.slane %v2492, 2
      %v2497 = vperm.slane %v2492, 3
      %v2502 = vmul.f32 %v1154, %v2494
      %v2503 = vmul.f32 %v1152, %v2495
      %v2504 = vmul.f32 %v1150, %v2496
      %v2505 = vmul.f32 %v1156, %v2497
      %v2506 = vmul.f32 %v1155, %v2494
      %v2507 = vmul.f32 %v1153, %v2495
      %v2508 = vmul.f32 %v1151, %v2496
      %v2509 = vmul.f32 %v1157, %v2497
      %v2510 = vpack.c.bf16 %v2503, %v2502
      %v2511 = vpack.c.bf16 %v2505, %v2504
      %v2512 = vpack.c.bf16 %v2507, %v2506
      %v2513 = vpack.c.bf16 %v2509, %v2508
      %2514 = vst [vmem:[#allocation2 + $0x680] sm:$0xff] %v2510
      %2515 = vst [vmem:[#allocation2 + $0x688] sm:$0xff] %v2511
      %2516 = vst [vmem:[#allocation2 + $0x690] sm:$0xff] %v2512
      %2517 = vst [vmem:[#allocation2 + $0x698] sm:$0xff] %v2513
      %v2518 = vld [vmem:[%s2491] ss:$8 sm:$0xf]
      %v2520 = vperm.slane %v2518, 0
      %v2521 = vperm.slane %v2518, 1
      %v2522 = vperm.slane %v2518, 2
      %v2523 = vperm.slane %v2518, 3
      %v2528 = vmul.f32 %v1205, %v2520
      %v2529 = vmul.f32 %v1203, %v2521
      %v2530 = vmul.f32 %v1201, %v2522
      %v2531 = vmul.f32 %v1207, %v2523
      %v2532 = vmul.f32 %v1206, %v2520
      %v2533 = vmul.f32 %v1204, %v2521
      %v2534 = vmul.f32 %v1202, %v2522
      %v2535 = vmul.f32 %v1208, %v2523
      %v2536 = vpack.c.bf16 %v2529, %v2528
      %v2537 = vpack.c.bf16 %v2531, %v2530
      %v2538 = vpack.c.bf16 %v2533, %v2532
      %v2539 = vpack.c.bf16 %v2535, %v2534
      %2540 = vst [vmem:[#allocation2 + $0x6a0] sm:$0xff] %v2536
      %2541 = vst [vmem:[#allocation2 + $0x6a8] sm:$0xff] %v2537
      %2542 = vst [vmem:[#allocation2 + $0x6b0] sm:$0xff] %v2538
      %2543 = vst [vmem:[#allocation2 + $0x6b8] sm:$0xff] %v2539
      %v2544 = vld [vmem:[%s3] sm:$0xff]
      %v2545 = vld [vmem:[%s3 + $0x8] sm:$0xff]
      %v2546 = vld [vmem:[%s3 + $0x10] sm:$0xff]
      %v2547 = vld [vmem:[%s3 + $0x18] sm:$0xf]
      %v2548 = vld [vmem:[%s3 + $0x1c] sm:$0xff]
      %v2549 = vld [vmem:[%s3 + $0x24] sm:$0xff]
      %v2550 = vld [vmem:[%s3 + $0x2c] sm:$0xff]
      %v2551 = vld [vmem:[%s3 + $0x34] sm:$0xf]
      %v2552 = vld [vmem:[#allocation2] sm:$0xff]
      %v2553 = vld [vmem:[#allocation2 + $0x8] sm:$0xff]
      %v2554 = vld [vmem:[#allocation2 + $0x10] sm:$0xff]
      %v2555 = vld [vmem:[#allocation2 + $0x18] sm:$0xff]
      %v2556 = vld [vmem:[#allocation2 + $0x20] sm:$0xff]
      %v2557 = vld [vmem:[#allocation2 + $0x28] sm:$0xff]
      %v2558 = vld [vmem:[#allocation2 + $0x30] sm:$0xff]
      %v2559 = vld [vmem:[#allocation2 + $0x38] sm:$0xff]
      %v2560 = vld [vmem:[#allocation2 + $0x40] sm:$0xff]
      %v2561 = vld [vmem:[#allocation2 + $0x48] sm:$0xff]
      %v2562 = vld [vmem:[#allocation2 + $0x50] sm:$0xff]
      %v2563 = vld [vmem:[#allocation2 + $0x58] sm:$0xff]
      %v2564 = vld [vmem:[#allocation2 + $0x60] sm:$0xff]
      %v2565 = vld [vmem:[#allocation2 + $0x68] sm:$0xff]
      %v2566 = vld [vmem:[#allocation2 + $0x70] sm:$0xff]
      %v2567 = vld [vmem:[#allocation2 + $0x78] sm:$0xff]
      %v2568 = vld [vmem:[#allocation2 + $0x80] sm:$0xff]
      %v2569 = vld [vmem:[#allocation2 + $0x88] sm:$0xff]
      %v2570 = vld [vmem:[#allocation2 + $0x90] sm:$0xff]
      %v2571 = vld [vmem:[#allocation2 + $0x98] sm:$0xff]
      %v2572 = vld [vmem:[#allocation2 + $0xa0] sm:$0xff]
      %v2573 = vld [vmem:[#allocation2 + $0xa8] sm:$0xff]
      %v2574 = vld [vmem:[#allocation2 + $0xb0] sm:$0xff]
      %v2575 = vld [vmem:[#allocation2 + $0xb8] sm:$0xff]
      %v2576 = vld [vmem:[#allocation2 + $0xc0] sm:$0xff]
      %v2577 = vld [vmem:[#allocation2 + $0xc8] sm:$0xff]
      %v2578 = vld [vmem:[#allocation2 + $0xd0] sm:$0xff]
      %v2579 = vld [vmem:[#allocation2 + $0xd8] sm:$0xff]
      %v2580 = vld [vmem:[#allocation2 + $0xe0] sm:$0xff]
      %v2581 = vld [vmem:[#allocation2 + $0xe8] sm:$0xff]
      %v2582 = vld [vmem:[#allocation2 + $0xf0] sm:$0xff]
      %v2583 = vld [vmem:[#allocation2 + $0xf8] sm:$0xff]
      %v2584 = vld [vmem:[#allocation2 + $0x100] sm:$0xff]
      %v2585 = vld [vmem:[#allocation2 + $0x108] sm:$0xff]
      %v2586 = vld [vmem:[#allocation2 + $0x110] sm:$0xff]
      %v2587 = vld [vmem:[#allocation2 + $0x118] sm:$0xff]
      %v2588 = vld [vmem:[#allocation2 + $0x120] sm:$0xff]
      %v2589 = vld [vmem:[#allocation2 + $0x128] sm:$0xff]
      %v2590 = vld [vmem:[#allocation2 + $0x130] sm:$0xff]
      %v2591 = vld [vmem:[#allocation2 + $0x138] sm:$0xff]
      %v2592 = vld [vmem:[#allocation2 + $0x140] sm:$0xff]
      %v2593 = vld [vmem:[#allocation2 + $0x148] sm:$0xff]
      %v2594 = vld [vmem:[#allocation2 + $0x150] sm:$0xff]
      %v2595 = vld [vmem:[#allocation2 + $0x158] sm:$0xff]
      %v2596 = vld [vmem:[#allocation2 + $0x160] sm:$0xff]
      %v2597 = vld [vmem:[#allocation2 + $0x168] sm:$0xff]
      %v2598 = vld [vmem:[#allocation2 + $0x170] sm:$0xff]
      %v2599 = vld [vmem:[#allocation2 + $0x178] sm:$0xff]
      %v2600 = vld [vmem:[#allocation2 + $0x180] sm:$0xff]
      %v2601 = vld [vmem:[#allocation2 + $0x188] sm:$0xff]
      %v2602 = vld [vmem:[#allocation2 + $0x190] sm:$0xff]
      %v2603 = vld [vmem:[#allocation2 + $0x198] sm:$0xff]
      %v2604 = vld [vmem:[#allocation2 + $0x1a0] sm:$0xff]
      %v2605 = vld [vmem:[#allocation2 + $0x1a8] sm:$0xff]
      %v2606 = vld [vmem:[#allocation2 + $0x1b0] sm:$0xff]
      %v2607 = vld [vmem:[#allocation2 + $0x1b8] sm:$0xff]
      %v2608 = vld [vmem:[#allocation2 + $0x1c0] sm:$0xff]
      %v2609 = vld [vmem:[#allocation2 + $0x1c8] sm:$0xff]
      %v2610 = vld [vmem:[#allocation2 + $0x1d0] sm:$0xff]
      %v2611 = vld [vmem:[#allocation2 + $0x1d8] sm:$0xff]
      %v2612 = vld [vmem:[#allocation2 + $0x1e0] sm:$0xff]
      %v2613 = vld [vmem:[#allocation2 + $0x1e8] sm:$0xff]
      %v2614 = vld [vmem:[#allocation2 + $0x1f0] sm:$0xff]
      %v2615 = vld [vmem:[#allocation2 + $0x1f8] sm:$0xff]
      %v2616 = vld [vmem:[#allocation2 + $0x200] sm:$0xff]
      %v2617 = vld [vmem:[#allocation2 + $0x208] sm:$0xff]
      %v2618 = vld [vmem:[#allocation2 + $0x210] sm:$0xff]
      %v2619 = vld [vmem:[#allocation2 + $0x218] sm:$0xff]
      %v2620 = vld [vmem:[#allocation2 + $0x220] sm:$0xff]
      %v2621 = vld [vmem:[#allocation2 + $0x228] sm:$0xff]
      %v2622 = vld [vmem:[#allocation2 + $0x230] sm:$0xff]
      %v2623 = vld [vmem:[#allocation2 + $0x238] sm:$0xff]
      %v2624 = vld [vmem:[#allocation2 + $0x240] sm:$0xff]
      %v2625 = vld [vmem:[#allocation2 + $0x248] sm:$0xff]
      %v2626 = vld [vmem:[#allocation2 + $0x250] sm:$0xff]
      %v2627 = vld [vmem:[#allocation2 + $0x258] sm:$0xff]
      %v2628 = vld [vmem:[#allocation2 + $0x260] sm:$0xff]
      %v2629 = vld [vmem:[#allocation2 + $0x268] sm:$0xff]
      %v2630 = vld [vmem:[#allocation2 + $0x270] sm:$0xff]
      %v2631 = vld [vmem:[#allocation2 + $0x278] sm:$0xff]
      %v2632 = vld [vmem:[#allocation2 + $0x280] sm:$0xff]
      %v2633 = vld [vmem:[#allocation2 + $0x288] sm:$0xff]
      %v2634 = vld [vmem:[#allocation2 + $0x290] sm:$0xff]
      %v2635 = vld [vmem:[#allocation2 + $0x298] sm:$0xff]
      %v2636 = vld [vmem:[#allocation2 + $0x2a0] sm:$0xff]
      %v2637 = vld [vmem:[#allocation2 + $0x2a8] sm:$0xff]
      %v2638 = vld [vmem:[#allocation2 + $0x2b0] sm:$0xff]
      %v2639 = vld [vmem:[#allocation2 + $0x2b8] sm:$0xff]
      %v2640 = vld [vmem:[#allocation2 + $0x2c0] sm:$0xff]
      %v2641 = vld [vmem:[#allocation2 + $0x2c8] sm:$0xff]
      %v2642 = vld [vmem:[#allocation2 + $0x2d0] sm:$0xff]
      %v2643 = vld [vmem:[#allocation2 + $0x2d8] sm:$0xff]
      %v2644 = vld [vmem:[#allocation2 + $0x2e0] sm:$0xff]
      %v2645 = vld [vmem:[#allocation2 + $0x2e8] sm:$0xff]
      %v2646 = vld [vmem:[#allocation2 + $0x2f0] sm:$0xff]
      %v2647 = vld [vmem:[#allocation2 + $0x2f8] sm:$0xff]
      %v2648 = vld [vmem:[#allocation2 + $0x300] sm:$0xff]
      %v2649 = vld [vmem:[#allocation2 + $0x308] sm:$0xff]
      %v2650 = vld [vmem:[#allocation2 + $0x310] sm:$0xff]
      %v2651 = vld [vmem:[#allocation2 + $0x318] sm:$0xff]
      %v2652 = vld [vmem:[#allocation2 + $0x320] sm:$0xff]
      %v2653 = vld [vmem:[#allocation2 + $0x328] sm:$0xff]
      %v2654 = vld [vmem:[#allocation2 + $0x330] sm:$0xff]
      %v2655 = vld [vmem:[#allocation2 + $0x338] sm:$0xff]
      %v2656 = vld [vmem:[#allocation2 + $0x340] sm:$0xff]
      %v2657 = vld [vmem:[#allocation2 + $0x348] sm:$0xff]
      %v2658 = vld [vmem:[#allocation2 + $0x350] sm:$0xff]
      %v2659 = vld [vmem:[#allocation2 + $0x358] sm:$0xff]
      %v2660 = vld [vmem:[#allocation2 + $0x360] sm:$0xff]
      %v2661 = vld [vmem:[#allocation2 + $0x368] sm:$0xff]
      %v2662 = vld [vmem:[#allocation2 + $0x370] sm:$0xff]
      %v2663 = vld [vmem:[#allocation2 + $0x378] sm:$0xff]
      %v2664 = vld [vmem:[#allocation2 + $0x380] sm:$0xff]
      %v2665 = vld [vmem:[#allocation2 + $0x388] sm:$0xff]
      %v2666 = vld [vmem:[#allocation2 + $0x390] sm:$0xff]
      %v2667 = vld [vmem:[#allocation2 + $0x398] sm:$0xff]
      %v2668 = vld [vmem:[#allocation2 + $0x3a0] sm:$0xff]
      %v2669 = vld [vmem:[#allocation2 + $0x3a8] sm:$0xff]
      %v2670 = vld [vmem:[#allocation2 + $0x3b0] sm:$0xff]
      %v2671 = vld [vmem:[#allocation2 + $0x3b8] sm:$0xff]
      %v2672 = vld [vmem:[#allocation2 + $0x3c0] sm:$0xff]
      %v2673 = vld [vmem:[#allocation2 + $0x3c8] sm:$0xff]
      %v2674 = vld [vmem:[#allocation2 + $0x3d0] sm:$0xff]
      %v2675 = vld [vmem:[#allocation2 + $0x3d8] sm:$0xff]
      %v2676 = vld [vmem:[#allocation2 + $0x3e0] sm:$0xff]
      %v2677 = vld [vmem:[#allocation2 + $0x3e8] sm:$0xff]
      %v2678 = vld [vmem:[#allocation2 + $0x3f0] sm:$0xff]
      %v2679 = vld [vmem:[#allocation2 + $0x3f8] sm:$0xff]
      %v2680 = vld [vmem:[#allocation2 + $0x400] sm:$0xff]
      %v2681 = vld [vmem:[#allocation2 + $0x408] sm:$0xff]
      %v2682 = vld [vmem:[#allocation2 + $0x410] sm:$0xff]
      %v2683 = vld [vmem:[#allocation2 + $0x418] sm:$0xff]
      %v2684 = vld [vmem:[#allocation2 + $0x420] sm:$0xff]
      %v2685 = vld [vmem:[#allocation2 + $0x428] sm:$0xff]
      %v2686 = vld [vmem:[#allocation2 + $0x430] sm:$0xff]
      %v2687 = vld [vmem:[#allocation2 + $0x438] sm:$0xff]
      %v2688 = vld [vmem:[#allocation2 + $0x440] sm:$0xff]
      %v2689 = vld [vmem:[#allocation2 + $0x448] sm:$0xff]
      %v2690 = vld [vmem:[#allocation2 + $0x450] sm:$0xff]
      %v2691 = vld [vmem:[#allocation2 + $0x458] sm:$0xff]
      %v2692 = vld [vmem:[#allocation2 + $0x460] sm:$0xff]
      %v2693 = vld [vmem:[#allocation2 + $0x468] sm:$0xff]
      %v2694 = vld [vmem:[#allocation2 + $0x470] sm:$0xff]
      %v2695 = vld [vmem:[#allocation2 + $0x478] sm:$0xff]
      %v2696 = vld [vmem:[#allocation2 + $0x480] sm:$0xff]
      %v2697 = vld [vmem:[#allocation2 + $0x488] sm:$0xff]
      %v2698 = vld [vmem:[#allocation2 + $0x490] sm:$0xff]
      %v2699 = vld [vmem:[#allocation2 + $0x498] sm:$0xff]
      %v2700 = vld [vmem:[#allocation2 + $0x4a0] sm:$0xff]
      %v2701 = vld [vmem:[#allocation2 + $0x4a8] sm:$0xff]
      %v2702 = vld [vmem:[#allocation2 + $0x4b0] sm:$0xff]
      %v2703 = vld [vmem:[#allocation2 + $0x4b8] sm:$0xff]
      %v2704 = vld [vmem:[#allocation2 + $0x4c0] sm:$0xff]
      %v2705 = vld [vmem:[#allocation2 + $0x4c8] sm:$0xff]
      %v2706 = vld [vmem:[#allocation2 + $0x4d0] sm:$0xff]
      %v2707 = vld [vmem:[#allocation2 + $0x4d8] sm:$0xff]
      %v2708 = vld [vmem:[#allocation2 + $0x4e0] sm:$0xff]
      %v2709 = vld [vmem:[#allocation2 + $0x4e8] sm:$0xff]
      %v2710 = vld [vmem:[#allocation2 + $0x4f0] sm:$0xff]
      %v2711 = vld [vmem:[#allocation2 + $0x4f8] sm:$0xff]
      %v2712 = vld [vmem:[#allocation2 + $0x500] sm:$0xff]
      %v2713 = vld [vmem:[#allocation2 + $0x508] sm:$0xff]
      %v2714 = vld [vmem:[#allocation2 + $0x510] sm:$0xff]
      %v2715 = vld [vmem:[#allocation2 + $0x518] sm:$0xff]
      %v2716 = vld [vmem:[#allocation2 + $0x520] sm:$0xff]
      %v2717 = vld [vmem:[#allocation2 + $0x528] sm:$0xff]
      %v2718 = vld [vmem:[#allocation2 + $0x530] sm:$0xff]
      %v2719 = vld [vmem:[#allocation2 + $0x538] sm:$0xff]
      %v2720 = vld [vmem:[#allocation2 + $0x540] sm:$0xff]
      %v2721 = vld [vmem:[#allocation2 + $0x548] sm:$0xff]
      %v2722 = vld [vmem:[#allocation2 + $0x550] sm:$0xff]
      %v2723 = vld [vmem:[#allocation2 + $0x558] sm:$0xff]
      %v2724 = vld [vmem:[#allocation2 + $0x560] sm:$0xff]
      %v2725 = vld [vmem:[#allocation2 + $0x568] sm:$0xff]
      %v2726 = vld [vmem:[#allocation2 + $0x570] sm:$0xff]
      %v2727 = vld [vmem:[#allocation2 + $0x578] sm:$0xff]
      %v2728 = vld [vmem:[#allocation2 + $0x580] sm:$0xff]
      %v2729 = vld [vmem:[#allocation2 + $0x588] sm:$0xff]
      %v2730 = vld [vmem:[#allocation2 + $0x590] sm:$0xff]
      %v2731 = vld [vmem:[#allocation2 + $0x598] sm:$0xff]
      %v2732 = vld [vmem:[#allocation2 + $0x5a0] sm:$0xff]
      %v2733 = vld [vmem:[#allocation2 + $0x5a8] sm:$0xff]
      %v2734 = vld [vmem:[#allocation2 + $0x5b0] sm:$0xff]
      %v2735 = vld [vmem:[#allocation2 + $0x5b8] sm:$0xff]
      %v2736 = vld [vmem:[#allocation2 + $0x5c0] sm:$0xff]
      %v2737 = vld [vmem:[#allocation2 + $0x5c8] sm:$0xff]
      %v2738 = vld [vmem:[#allocation2 + $0x5d0] sm:$0xff]
      %v2739 = vld [vmem:[#allocation2 + $0x5d8] sm:$0xff]
      %v2740 = vld [vmem:[#allocation2 + $0x5e0] sm:$0xff]
      %v2741 = vld [vmem:[#allocation2 + $0x5e8] sm:$0xff]
      %v2742 = vld [vmem:[#allocation2 + $0x5f0] sm:$0xff]
      %v2743 = vld [vmem:[#allocation2 + $0x5f8] sm:$0xff]
      %v2744 = vld [vmem:[#allocation2 + $0x600] sm:$0xff]
      %v2745 = vld [vmem:[#allocation2 + $0x608] sm:$0xff]
      %v2746 = vld [vmem:[#allocation2 + $0x610] sm:$0xff]
      %v2747 = vld [vmem:[#allocation2 + $0x618] sm:$0xff]
      %v2748 = vld [vmem:[#allocation2 + $0x620] sm:$0xff]
      %v2749 = vld [vmem:[#allocation2 + $0x628] sm:$0xff]
      %v2750 = vld [vmem:[#allocation2 + $0x630] sm:$0xff]
      %v2751 = vld [vmem:[#allocation2 + $0x638] sm:$0xff]
      %v2752 = vld [vmem:[#allocation2 + $0x640] sm:$0xff]
      %v2753 = vld [vmem:[#allocation2 + $0x648] sm:$0xff]
      %v2754 = vld [vmem:[#allocation2 + $0x650] sm:$0xff]
      %v2755 = vld [vmem:[#allocation2 + $0x658] sm:$0xff]
      %v2756 = vld [vmem:[#allocation2 + $0x660] sm:$0xff]
      %v2757 = vld [vmem:[#allocation2 + $0x668] sm:$0xff]
      %v2758 = vld [vmem:[#allocation2 + $0x670] sm:$0xff]
      %v2759 = vld [vmem:[#allocation2 + $0x678] sm:$0xff]
      %v2760 = vld [vmem:[#allocation2 + $0x680] sm:$0xff]
      %v2761 = vld [vmem:[#allocation2 + $0x688] sm:$0xff]
      %v2762 = vld [vmem:[#allocation2 + $0x690] sm:$0xff]
      %v2763 = vld [vmem:[#allocation2 + $0x698] sm:$0xff]
      %v2764 = vld [vmem:[#allocation2 + $0x6a0] sm:$0xff]
      %v2765 = vld [vmem:[#allocation2 + $0x6a8] sm:$0xff]
      %v2766 = vld [vmem:[#allocation2 + $0x6b0] sm:$0xff]
      %v2767 = vld [vmem:[#allocation2 + $0x6b8] sm:$0xff]
      %v2768 = vld [vmem:[%s5] sm:$0xff]
      %v2769 = vld [vmem:[%s5 + $0x8] sm:$0xff]
      %2771 = vset.pattern.permute.xlu0 0
      %2772 = vperm.xlu0 %2771, %v2768
      %v2773 = vpop.permute.xlu0 %2772
      %2776 = vset.pattern.permute.xlu0 0
      %2777 = vperm.xlu0 %2776, %v2769
      %v2778 = vpop.permute.xlu0 %2777
      %v2788 = vunpack.c.l.b16 %v2544
      %v2789 = vunpack.c.h.b16 %v2544
      %v2790 = vunpack.c.l.b16 %v2545
      %v2791 = vunpack.c.h.b16 %v2545
      %v2792 = vunpack.c.l.b16 %v2546
      %v2793 = vunpack.c.h.b16 %v2546
      %v2794 = vunpack.c.l.b16 %v2547
      %v2795 = vunpack.c.l.b16 %v2548
      %v2796 = vunpack.c.h.b16 %v2548
      %v2797 = vunpack.c.l.b16 %v2549
      %v2798 = vunpack.c.h.b16 %v2549
      %v2799 = vunpack.c.l.b16 %v2550
      %v2800 = vunpack.c.h.b16 %v2550
      %v2801 = vunpack.c.l.b16 %v2551
      %v2802 = vpack.c.b16 %v2795, %v2788
      %v2803 = vpack.c.b16 %v2796, %v2789
      %v2804 = vpack.c.b16 %v2797, %v2790
      %v2805 = vpack.c.b16 %v2798, %v2791
      %v2806 = vpack.c.b16 %v2799, %v2792
      %v2807 = vpack.c.b16 %v2800, %v2793
      %v2808 = vpack.c.b16 %v2801, %v2794
      %v3031 = vunpack.c.l.b16 %v2552
      %v3032 = vunpack.c.h.b16 %v2552
      %v3033 = vunpack.c.l.b16 %v2553
      %v3034 = vunpack.c.h.b16 %v2553
      %v3035 = vunpack.c.l.b16 %v2554
      %v3036 = vunpack.c.h.b16 %v2554
      %v3037 = vunpack.c.l.b16 %v2555
      %v3038 = vunpack.c.h.b16 %v2555
      %v3039 = vunpack.c.l.b16 %v2556
      %v3040 = vunpack.c.h.b16 %v2556
      %v3041 = vunpack.c.l.b16 %v2557
      %v3042 = vunpack.c.h.b16 %v2557
      %v3043 = vunpack.c.l.b16 %v2558
      %v3044 = vunpack.c.h.b16 %v2558
      %v3045 = vunpack.c.l.b16 %v2559
      %v3046 = vunpack.c.h.b16 %v2559
      %v3047 = vunpack.c.l.b16 %v2560
      %v3048 = vunpack.c.h.b16 %v2560
      %v3049 = vunpack.c.l.b16 %v2561
      %v3050 = vunpack.c.h.b16 %v2561
      %v3051 = vunpack.c.l.b16 %v2562
      %v3052 = vunpack.c.h.b16 %v2562
      %v3053 = vunpack.c.l.b16 %v2563
      %v3054 = vunpack.c.h.b16 %v2563
      %v3055 = vunpack.c.l.b16 %v2564
      %v3056 = vunpack.c.h.b16 %v2564
      %v3057 = vunpack.c.l.b16 %v2565
      %v3058 = vunpack.c.h.b16 %v2565
      %v3059 = vunpack.c.l.b16 %v2566
      %v3060 = vunpack.c.h.b16 %v2566
      %v3061 = vunpack.c.l.b16 %v2567
      %v3062 = vunpack.c.h.b16 %v2567
      %v3063 = vunpack.c.l.b16 %v2568
      %v3064 = vunpack.c.h.b16 %v2568
      %v3065 = vunpack.c.l.b16 %v2569
      %v3066 = vunpack.c.h.b16 %v2569
      %v3067 = vunpack.c.l.b16 %v2570
      %v3068 = vunpack.c.h.b16 %v2570
      %v3069 = vunpack.c.l.b16 %v2571
      %v3070 = vunpack.c.h.b16 %v2571
      %v3071 = vunpack.c.l.b16 %v2572
      %v3072 = vunpack.c.h.b16 %v2572
      %v3073 = vunpack.c.l.b16 %v2573
      %v3074 = vunpack.c.h.b16 %v2573
      %v3075 = vunpack.c.l.b16 %v2574
      %v3076 = vunpack.c.h.b16 %v2574
      %v3077 = vunpack.c.l.b16 %v2575
      %v3078 = vunpack.c.h.b16 %v2575
      %v3079 = vunpack.c.l.b16 %v2576
      %v3080 = vunpack.c.h.b16 %v2576
      %v3081 = vunpack.c.l.b16 %v2577
      %v3082 = vunpack.c.h.b16 %v2577
      %v3083 = vunpack.c.l.b16 %v2578
      %v3084 = vunpack.c.h.b16 %v2578
      %v3085 = vunpack.c.l.b16 %v2579
      %v3086 = vunpack.c.h.b16 %v2579
      %v3087 = vunpack.c.l.b16 %v2580
      %v3088 = vunpack.c.h.b16 %v2580
      %v3089 = vunpack.c.l.b16 %v2581
      %v3090 = vunpack.c.h.b16 %v2581
      %v3091 = vunpack.c.l.b16 %v2582
      %v3092 = vunpack.c.h.b16 %v2582
      %v3093 = vunpack.c.l.b16 %v2583
      %v3094 = vunpack.c.h.b16 %v2583
      %v3095 = vunpack.c.l.b16 %v2584
      %v3096 = vunpack.c.h.b16 %v2584
      %v3097 = vunpack.c.l.b16 %v2585
      %v3098 = vunpack.c.h.b16 %v2585
      %v3099 = vunpack.c.l.b16 %v2586
      %v3100 = vunpack.c.h.b16 %v2586
      %v3101 = vunpack.c.l.b16 %v2587
      %v3102 = vunpack.c.h.b16 %v2587
      %v3103 = vunpack.c.l.b16 %v2588
      %v3104 = vunpack.c.h.b16 %v2588
      %v3105 = vunpack.c.l.b16 %v2589
      %v3106 = vunpack.c.h.b16 %v2589
      %v3107 = vunpack.c.l.b16 %v2590
      %v3108 = vunpack.c.h.b16 %v2590
      %v3109 = vunpack.c.l.b16 %v2591
      %v3110 = vunpack.c.h.b16 %v2591
      %v3111 = vunpack.c.l.b16 %v2592
      %v3112 = vunpack.c.h.b16 %v2592
      %v3113 = vunpack.c.l.b16 %v2593
      %v3114 = vunpack.c.h.b16 %v2593
      %v3115 = vunpack.c.l.b16 %v2594
      %v3116 = vunpack.c.h.b16 %v2594
      %v3117 = vunpack.c.l.b16 %v2595
      %v3118 = vunpack.c.h.b16 %v2595
      %v3119 = vunpack.c.l.b16 %v2596
      %v3120 = vunpack.c.h.b16 %v2596
      %v3121 = vunpack.c.l.b16 %v2597
      %v3122 = vunpack.c.h.b16 %v2597
      %v3123 = vunpack.c.l.b16 %v2598
      %v3124 = vunpack.c.h.b16 %v2598
      %v3125 = vunpack.c.l.b16 %v2599
      %v3126 = vunpack.c.h.b16 %v2599
      %v3127 = vunpack.c.l.b16 %v2600
      %v3128 = vunpack.c.h.b16 %v2600
      %v3129 = vunpack.c.l.b16 %v2601
      %v3130 = vunpack.c.h.b16 %v2601
      %v3131 = vunpack.c.l.b16 %v2602
      %v3132 = vunpack.c.h.b16 %v2602
      %v3133 = vunpack.c.l.b16 %v2603
      %v3134 = vunpack.c.h.b16 %v2603
      %v3135 = vunpack.c.l.b16 %v2604
      %v3136 = vunpack.c.h.b16 %v2604
      %v3137 = vunpack.c.l.b16 %v2605
      %v3138 = vunpack.c.h.b16 %v2605
      %v3139 = vunpack.c.l.b16 %v2606
      %v3140 = vunpack.c.h.b16 %v2606
      %v3141 = vunpack.c.l.b16 %v2607
      %v3142 = vunpack.c.h.b16 %v2607
      %v3143 = vunpack.c.l.b16 %v2608
      %v3144 = vunpack.c.h.b16 %v2608
      %v3145 = vunpack.c.l.b16 %v2609
      %v3146 = vunpack.c.h.b16 %v2609
      %v3147 = vunpack.c.l.b16 %v2610
      %v3148 = vunpack.c.h.b16 %v2610
      %v3149 = vunpack.c.l.b16 %v2611
      %v3150 = vunpack.c.h.b16 %v2611
      %v3151 = vunpack.c.l.b16 %v2612
      %v3152 = vunpack.c.h.b16 %v2612
      %v3153 = vunpack.c.l.b16 %v2613
      %v3154 = vunpack.c.h.b16 %v2613
      %v3155 = vunpack.c.l.b16 %v2614
      %v3156 = vunpack.c.h.b16 %v2614
      %v3157 = vunpack.c.l.b16 %v2615
      %v3158 = vunpack.c.h.b16 %v2615
      %v3159 = vunpack.c.l.b16 %v2616
      %v3160 = vunpack.c.h.b16 %v2616
      %v3161 = vunpack.c.l.b16 %v2617
      %v3162 = vunpack.c.h.b16 %v2617
      %v3163 = vunpack.c.l.b16 %v2618
      %v3164 = vunpack.c.h.b16 %v2618
      %v3165 = vunpack.c.l.b16 %v2619
      %v3166 = vunpack.c.h.b16 %v2619
      %v3167 = vunpack.c.l.b16 %v2620
      %v3168 = vunpack.c.h.b16 %v2620
      %v3169 = vunpack.c.l.b16 %v2621
      %v3170 = vunpack.c.h.b16 %v2621
      %v3171 = vunpack.c.l.b16 %v2622
      %v3172 = vunpack.c.h.b16 %v2622
      %v3173 = vunpack.c.l.b16 %v2623
      %v3174 = vunpack.c.h.b16 %v2623
      %v3175 = vunpack.c.l.b16 %v2624
      %v3176 = vunpack.c.h.b16 %v2624
      %v3177 = vunpack.c.l.b16 %v2625
      %v3178 = vunpack.c.h.b16 %v2625
      %v3179 = vunpack.c.l.b16 %v2626
      %v3180 = vunpack.c.h.b16 %v2626
      %v3181 = vunpack.c.l.b16 %v2627
      %v3182 = vunpack.c.h.b16 %v2627
      %v3183 = vunpack.c.l.b16 %v2628
      %v3184 = vunpack.c.h.b16 %v2628
      %v3185 = vunpack.c.l.b16 %v2629
      %v3186 = vunpack.c.h.b16 %v2629
      %v3187 = vunpack.c.l.b16 %v2630
      %v3188 = vunpack.c.h.b16 %v2630
      %v3189 = vunpack.c.l.b16 %v2631
      %v3190 = vunpack.c.h.b16 %v2631
      %v3191 = vunpack.c.l.b16 %v2632
      %v3192 = vunpack.c.h.b16 %v2632
      %v3193 = vunpack.c.l.b16 %v2633
      %v3194 = vunpack.c.h.b16 %v2633
      %v3195 = vunpack.c.l.b16 %v2634
      %v3196 = vunpack.c.h.b16 %v2634
      %v3197 = vunpack.c.l.b16 %v2635
      %v3198 = vunpack.c.h.b16 %v2635
      %v3199 = vunpack.c.l.b16 %v2636
      %v3200 = vunpack.c.h.b16 %v2636
      %v3201 = vunpack.c.l.b16 %v2637
      %v3202 = vunpack.c.h.b16 %v2637
      %v3203 = vunpack.c.l.b16 %v2638
      %v3204 = vunpack.c.h.b16 %v2638
      %v3205 = vunpack.c.l.b16 %v2639
      %v3206 = vunpack.c.h.b16 %v2639
      %v3207 = vunpack.c.l.b16 %v2640
      %v3208 = vunpack.c.h.b16 %v2640
      %v3209 = vunpack.c.l.b16 %v2641
      %v3210 = vunpack.c.h.b16 %v2641
      %v3211 = vunpack.c.l.b16 %v2642
      %v3212 = vunpack.c.h.b16 %v2642
      %v3213 = vunpack.c.l.b16 %v2643
      %v3214 = vunpack.c.h.b16 %v2643
      %v3215 = vunpack.c.l.b16 %v2644
      %v3216 = vunpack.c.h.b16 %v2644
      %v3217 = vunpack.c.l.b16 %v2645
      %v3218 = vunpack.c.h.b16 %v2645
      %v3219 = vunpack.c.l.b16 %v2646
      %v3220 = vunpack.c.h.b16 %v2646
      %v3221 = vunpack.c.l.b16 %v2647
      %v3222 = vunpack.c.h.b16 %v2647
      %v3223 = vunpack.c.l.b16 %v2648
      %v3224 = vunpack.c.h.b16 %v2648
      %v3225 = vunpack.c.l.b16 %v2649
      %v3226 = vunpack.c.h.b16 %v2649
      %v3227 = vunpack.c.l.b16 %v2650
      %v3228 = vunpack.c.h.b16 %v2650
      %v3229 = vunpack.c.l.b16 %v2651
      %v3230 = vunpack.c.h.b16 %v2651
      %v3231 = vunpack.c.l.b16 %v2652
      %v3232 = vunpack.c.h.b16 %v2652
      %v3233 = vunpack.c.l.b16 %v2653
      %v3234 = vunpack.c.h.b16 %v2653
      %v3235 = vunpack.c.l.b16 %v2654
      %v3236 = vunpack.c.h.b16 %v2654
      %v3237 = vunpack.c.l.b16 %v2655
      %v3238 = vunpack.c.h.b16 %v2655
      %v3239 = vunpack.c.l.b16 %v2656
      %v3240 = vunpack.c.h.b16 %v2656
      %v3241 = vunpack.c.l.b16 %v2657
      %v3242 = vunpack.c.h.b16 %v2657
      %v3243 = vunpack.c.l.b16 %v2658
      %v3244 = vunpack.c.h.b16 %v2658
      %v3245 = vunpack.c.l.b16 %v2659
      %v3246 = vunpack.c.h.b16 %v2659
      %v3247 = vunpack.c.l.b16 %v2660
      %v3248 = vunpack.c.h.b16 %v2660
      %v3249 = vunpack.c.l.b16 %v2661
      %v3250 = vunpack.c.h.b16 %v2661
      %v3251 = vunpack.c.l.b16 %v2662
      %v3252 = vunpack.c.h.b16 %v2662
      %v3253 = vunpack.c.l.b16 %v2663
      %v3254 = vunpack.c.h.b16 %v2663
      %v3255 = vunpack.c.l.b16 %v2664
      %v3256 = vunpack.c.h.b16 %v2664
      %v3257 = vunpack.c.l.b16 %v2665
      %v3258 = vunpack.c.h.b16 %v2665
      %v3259 = vunpack.c.l.b16 %v2666
      %v3260 = vunpack.c.h.b16 %v2666
      %v3261 = vunpack.c.l.b16 %v2667
      %v3262 = vunpack.c.h.b16 %v2667
      %v3263 = vunpack.c.l.b16 %v2668
      %v3264 = vunpack.c.h.b16 %v2668
      %v3265 = vunpack.c.l.b16 %v2669
      %v3266 = vunpack.c.h.b16 %v2669
      %v3267 = vunpack.c.l.b16 %v2670
      %v3268 = vunpack.c.h.b16 %v2670
      %v3269 = vunpack.c.l.b16 %v2671
      %v3270 = vunpack.c.h.b16 %v2671
      %v3271 = vunpack.c.l.b16 %v2672
      %v3272 = vunpack.c.h.b16 %v2672
      %v3273 = vunpack.c.l.b16 %v2673
      %v3274 = vunpack.c.h.b16 %v2673
      %v3275 = vunpack.c.l.b16 %v2674
      %v3276 = vunpack.c.h.b16 %v2674
      %v3277 = vunpack.c.l.b16 %v2675
      %v3278 = vunpack.c.h.b16 %v2675
      %v3279 = vunpack.c.l.b16 %v2676
      %v3280 = vunpack.c.h.b16 %v2676
      %v3281 = vunpack.c.l.b16 %v2677
      %v3282 = vunpack.c.h.b16 %v2677
      %v3283 = vunpack.c.l.b16 %v2678
      %v3284 = vunpack.c.h.b16 %v2678
      %v3285 = vunpack.c.l.b16 %v2679
      %v3286 = vunpack.c.h.b16 %v2679
      %v3287 = vunpack.c.l.b16 %v2680
      %v3288 = vunpack.c.h.b16 %v2680
      %v3289 = vunpack.c.l.b16 %v2681
      %v3290 = vunpack.c.h.b16 %v2681
      %v3291 = vunpack.c.l.b16 %v2682
      %v3292 = vunpack.c.h.b16 %v2682
      %v3293 = vunpack.c.l.b16 %v2683
      %v3294 = vunpack.c.h.b16 %v2683
      %v3295 = vunpack.c.l.b16 %v2684
      %v3296 = vunpack.c.h.b16 %v2684
      %v3297 = vunpack.c.l.b16 %v2685
      %v3298 = vunpack.c.h.b16 %v2685
      %v3299 = vunpack.c.l.b16 %v2686
      %v3300 = vunpack.c.h.b16 %v2686
      %v3301 = vunpack.c.l.b16 %v2687
      %v3302 = vunpack.c.h.b16 %v2687
      %v3303 = vunpack.c.l.b16 %v2688
      %v3304 = vunpack.c.h.b16 %v2688
      %v3305 = vunpack.c.l.b16 %v2689
      %v3306 = vunpack.c.h.b16 %v2689
      %v3307 = vunpack.c.l.b16 %v2690
      %v3308 = vunpack.c.h.b16 %v2690
      %v3309 = vunpack.c.l.b16 %v2691
      %v3310 = vunpack.c.h.b16 %v2691
      %v3311 = vunpack.c.l.b16 %v2692
      %v3312 = vunpack.c.h.b16 %v2692
      %v3313 = vunpack.c.l.b16 %v2693
      %v3314 = vunpack.c.h.b16 %v2693
      %v3315 = vunpack.c.l.b16 %v2694
      %v3316 = vunpack.c.h.b16 %v2694
      %v3317 = vunpack.c.l.b16 %v2695
      %v3318 = vunpack.c.h.b16 %v2695
      %v3319 = vunpack.c.l.b16 %v2696
      %v3320 = vunpack.c.h.b16 %v2696
      %v3321 = vunpack.c.l.b16 %v2697
      %v3322 = vunpack.c.h.b16 %v2697
      %v3323 = vunpack.c.l.b16 %v2698
      %v3324 = vunpack.c.h.b16 %v2698
      %v3325 = vunpack.c.l.b16 %v2699
      %v3326 = vunpack.c.h.b16 %v2699
      %v3327 = vunpack.c.l.b16 %v2700
      %v3328 = vunpack.c.h.b16 %v2700
      %v3329 = vunpack.c.l.b16 %v2701
      %v3330 = vunpack.c.h.b16 %v2701
      %v3331 = vunpack.c.l.b16 %v2702
      %v3332 = vunpack.c.h.b16 %v2702
      %v3333 = vunpack.c.l.b16 %v2703
      %v3334 = vunpack.c.h.b16 %v2703
      %v3335 = vunpack.c.l.b16 %v2704
      %v3336 = vunpack.c.h.b16 %v2704
      %v3337 = vunpack.c.l.b16 %v2705
      %v3338 = vunpack.c.h.b16 %v2705
      %v3339 = vunpack.c.l.b16 %v2706
      %v3340 = vunpack.c.h.b16 %v2706
      %v3341 = vunpack.c.l.b16 %v2707
      %v3342 = vunpack.c.h.b16 %v2707
      %v3343 = vunpack.c.l.b16 %v2708
      %v3344 = vunpack.c.h.b16 %v2708
      %v3345 = vunpack.c.l.b16 %v2709
      %v3346 = vunpack.c.h.b16 %v2709
      %v3347 = vunpack.c.l.b16 %v2710
      %v3348 = vunpack.c.h.b16 %v2710
      %v3349 = vunpack.c.l.b16 %v2711
      %v3350 = vunpack.c.h.b16 %v2711
      %v3351 = vunpack.c.l.b16 %v2712
      %v3352 = vunpack.c.h.b16 %v2712
      %v3353 = vunpack.c.l.b16 %v2713
      %v3354 = vunpack.c.h.b16 %v2713
      %v3355 = vunpack.c.l.b16 %v2714
      %v3356 = vunpack.c.h.b16 %v2714
      %v3357 = vunpack.c.l.b16 %v2715
      %v3358 = vunpack.c.h.b16 %v2715
      %v3359 = vunpack.c.l.b16 %v2716
      %v3360 = vunpack.c.h.b16 %v2716
      %v3361 = vunpack.c.l.b16 %v2717
      %v3362 = vunpack.c.h.b16 %v2717
      %v3363 = vunpack.c.l.b16 %v2718
      %v3364 = vunpack.c.h.b16 %v2718
      %v3365 = vunpack.c.l.b16 %v2719
      %v3366 = vunpack.c.h.b16 %v2719
      %v3367 = vunpack.c.l.b16 %v2720
      %v3368 = vunpack.c.h.b16 %v2720
      %v3369 = vunpack.c.l.b16 %v2721
      %v3370 = vunpack.c.h.b16 %v2721
      %v3371 = vunpack.c.l.b16 %v2722
      %v3372 = vunpack.c.h.b16 %v2722
      %v3373 = vunpack.c.l.b16 %v2723
      %v3374 = vunpack.c.h.b16 %v2723
      %v3375 = vunpack.c.l.b16 %v2724
      %v3376 = vunpack.c.h.b16 %v2724
      %v3377 = vunpack.c.l.b16 %v2725
      %v3378 = vunpack.c.h.b16 %v2725
      %v3379 = vunpack.c.l.b16 %v2726
      %v3380 = vunpack.c.h.b16 %v2726
      %v3381 = vunpack.c.l.b16 %v2727
      %v3382 = vunpack.c.h.b16 %v2727
      %v3383 = vunpack.c.l.b16 %v2728
      %v3384 = vunpack.c.h.b16 %v2728
      %v3385 = vunpack.c.l.b16 %v2729
      %v3386 = vunpack.c.h.b16 %v2729
      %v3387 = vunpack.c.l.b16 %v2730
      %v3388 = vunpack.c.h.b16 %v2730
      %v3389 = vunpack.c.l.b16 %v2731
      %v3390 = vunpack.c.h.b16 %v2731
      %v3391 = vunpack.c.l.b16 %v2732
      %v3392 = vunpack.c.h.b16 %v2732
      %v3393 = vunpack.c.l.b16 %v2733
      %v3394 = vunpack.c.h.b16 %v2733
      %v3395 = vunpack.c.l.b16 %v2734
      %v3396 = vunpack.c.h.b16 %v2734
      %v3397 = vunpack.c.l.b16 %v2735
      %v3398 = vunpack.c.h.b16 %v2735
      %v3399 = vunpack.c.l.b16 %v2736
      %v3400 = vunpack.c.h.b16 %v2736
      %v3401 = vunpack.c.l.b16 %v2737
      %v3402 = vunpack.c.h.b16 %v2737
      %v3403 = vunpack.c.l.b16 %v2738
      %v3404 = vunpack.c.h.b16 %v2738
      %v3405 = vunpack.c.l.b16 %v2739
      %v3406 = vunpack.c.h.b16 %v2739
      %v3407 = vunpack.c.l.b16 %v2740
      %v3408 = vunpack.c.h.b16 %v2740
      %v3409 = vunpack.c.l.b16 %v2741
      %v3410 = vunpack.c.h.b16 %v2741
      %v3411 = vunpack.c.l.b16 %v2742
      %v3412 = vunpack.c.h.b16 %v2742
      %v3413 = vunpack.c.l.b16 %v2743
      %v3414 = vunpack.c.h.b16 %v2743
      %v3415 = vunpack.c.l.b16 %v2744
      %v3416 = vunpack.c.h.b16 %v2744
      %v3417 = vunpack.c.l.b16 %v2745
      %v3418 = vunpack.c.h.b16 %v2745
      %v3419 = vunpack.c.l.b16 %v2746
      %v3420 = vunpack.c.h.b16 %v2746
      %v3421 = vunpack.c.l.b16 %v2747
      %v3422 = vunpack.c.h.b16 %v2747
      %v3423 = vunpack.c.l.b16 %v2748
      %v3424 = vunpack.c.h.b16 %v2748
      %v3425 = vunpack.c.l.b16 %v2749
      %v3426 = vunpack.c.h.b16 %v2749
      %v3427 = vunpack.c.l.b16 %v2750
      %v3428 = vunpack.c.h.b16 %v2750
      %v3429 = vunpack.c.l.b16 %v2751
      %v3430 = vunpack.c.h.b16 %v2751
      %v3431 = vunpack.c.l.b16 %v2752
      %v3432 = vunpack.c.h.b16 %v2752
      %v3433 = vunpack.c.l.b16 %v2753
      %v3434 = vunpack.c.h.b16 %v2753
      %v3435 = vunpack.c.l.b16 %v2754
      %v3436 = vunpack.c.h.b16 %v2754
      %v3437 = vunpack.c.l.b16 %v2755
      %v3438 = vunpack.c.h.b16 %v2755
      %v3439 = vunpack.c.l.b16 %v2756
      %v3440 = vunpack.c.h.b16 %v2756
      %v3441 = vunpack.c.l.b16 %v2757
      %v3442 = vunpack.c.h.b16 %v2757
      %v3443 = vunpack.c.l.b16 %v2758
      %v3444 = vunpack.c.h.b16 %v2758
      %v3445 = vunpack.c.l.b16 %v2759
      %v3446 = vunpack.c.h.b16 %v2759
      %v3447 = vunpack.c.l.b16 %v2760
      %v3448 = vunpack.c.h.b16 %v2760
      %v3449 = vunpack.c.l.b16 %v2761
      %v3450 = vunpack.c.h.b16 %v2761
      %v3451 = vunpack.c.l.b16 %v2762
      %v3452 = vunpack.c.h.b16 %v2762
      %v3453 = vunpack.c.l.b16 %v2763
      %v3454 = vunpack.c.h.b16 %v2763
      %v3455 = vunpack.c.l.b16 %v2764
      %v3456 = vunpack.c.h.b16 %v2764
      %v3457 = vunpack.c.l.b16 %v2765
      %v3458 = vunpack.c.h.b16 %v2765
      %v3459 = vunpack.c.l.b16 %v2766
      %v3460 = vunpack.c.h.b16 %v2766
      %v3461 = vunpack.c.l.b16 %v2767
      %v3462 = vunpack.c.h.b16 %v2767
      %v3463 = vpack.c.b16 %v3035, %v3031
      %v3464 = vpack.c.b16 %v3036, %v3032
      %v3465 = vpack.c.b16 %v3037, %v3033
      %v3466 = vpack.c.b16 %v3038, %v3034
      %v3467 = vpack.c.b16 %v3043, %v3039
      %v3468 = vpack.c.b16 %v3044, %v3040
      %v3469 = vpack.c.b16 %v3045, %v3041
      %v3470 = vpack.c.b16 %v3046, %v3042
      %v3471 = vpack.c.b16 %v3051, %v3047
      %v3472 = vpack.c.b16 %v3052, %v3048
      %v3473 = vpack.c.b16 %v3053, %v3049
      %v3474 = vpack.c.b16 %v3054, %v3050
      %v3475 = vpack.c.b16 %v3059, %v3055
      %v3476 = vpack.c.b16 %v3060, %v3056
      %v3477 = vpack.c.b16 %v3061, %v3057
      %v3478 = vpack.c.b16 %v3062, %v3058
      %v3479 = vpack.c.b16 %v3067, %v3063
      %v3480 = vpack.c.b16 %v3068, %v3064
      %v3481 = vpack.c.b16 %v3069, %v3065
      %v3482 = vpack.c.b16 %v3070, %v3066
      %v3483 = vpack.c.b16 %v3075, %v3071
      %v3484 = vpack.c.b16 %v3076, %v3072
      %v3485 = vpack.c.b16 %v3077, %v3073
      %v3486 = vpack.c.b16 %v3078, %v3074
      %v3487 = vpack.c.b16 %v3083, %v3079
      %v3488 = vpack.c.b16 %v3084, %v3080
      %v3489 = vpack.c.b16 %v3085, %v3081
      %v3490 = vpack.c.b16 %v3086, %v3082
      %v3491 = vpack.c.b16 %v3091, %v3087
      %v3492 = vpack.c.b16 %v3092, %v3088
      %v3493 = vpack.c.b16 %v3093, %v3089
      %v3494 = vpack.c.b16 %v3094, %v3090
      %v3495 = vpack.c.b16 %v3099, %v3095
      %v3496 = vpack.c.b16 %v3100, %v3096
      %v3497 = vpack.c.b16 %v3101, %v3097
      %v3498 = vpack.c.b16 %v3102, %v3098
      %v3499 = vpack.c.b16 %v3107, %v3103
      %v3500 = vpack.c.b16 %v3108, %v3104
      %v3501 = vpack.c.b16 %v3109, %v3105
      %v3502 = vpack.c.b16 %v3110, %v3106
      %v3503 = vpack.c.b16 %v3115, %v3111
      %v3504 = vpack.c.b16 %v3116, %v3112
      %v3505 = vpack.c.b16 %v3117, %v3113
      %v3506 = vpack.c.b16 %v3118, %v3114
      %v3507 = vpack.c.b16 %v3123, %v3119
      %v3508 = vpack.c.b16 %v3124, %v3120
      %v3509 = vpack.c.b16 %v3125, %v3121
      %v3510 = vpack.c.b16 %v3126, %v3122
      %v3511 = vpack.c.b16 %v3131, %v3127
      %v3512 = vpack.c.b16 %v3132, %v3128
      %v3513 = vpack.c.b16 %v3133, %v3129
      %v3514 = vpack.c.b16 %v3134, %v3130
      %v3515 = vpack.c.b16 %v3139, %v3135
      %v3516 = vpack.c.b16 %v3140, %v3136
      %v3517 = vpack.c.b16 %v3141, %v3137
      %v3518 = vpack.c.b16 %v3142, %v3138
      %v3519 = vpack.c.b16 %v3147, %v3143
      %v3520 = vpack.c.b16 %v3148, %v3144
      %v3521 = vpack.c.b16 %v3149, %v3145
      %v3522 = vpack.c.b16 %v3150, %v3146
      %v3523 = vpack.c.b16 %v3155, %v3151
      %v3524 = vpack.c.b16 %v3156, %v3152
      %v3525 = vpack.c.b16 %v3157, %v3153
      %v3526 = vpack.c.b16 %v3158, %v3154
      %v3527 = vpack.c.b16 %v3163, %v3159
      %v3528 = vpack.c.b16 %v3164, %v3160
      %v3529 = vpack.c.b16 %v3165, %v3161
      %v3530 = vpack.c.b16 %v3166, %v3162
      %v3531 = vpack.c.b16 %v3171, %v3167
      %v3532 = vpack.c.b16 %v3172, %v3168
      %v3533 = vpack.c.b16 %v3173, %v3169
      %v3534 = vpack.c.b16 %v3174, %v3170
      %v3535 = vpack.c.b16 %v3179, %v3175
      %v3536 = vpack.c.b16 %v3180, %v3176
      %v3537 = vpack.c.b16 %v3181, %v3177
      %v3538 = vpack.c.b16 %v3182, %v3178
      %v3539 = vpack.c.b16 %v3187, %v3183
      %v3540 = vpack.c.b16 %v3188, %v3184
      %v3541 = vpack.c.b16 %v3189, %v3185
      %v3542 = vpack.c.b16 %v3190, %v3186
      %v3543 = vpack.c.b16 %v3195, %v3191
      %v3544 = vpack.c.b16 %v3196, %v3192
      %v3545 = vpack.c.b16 %v3197, %v3193
      %v3546 = vpack.c.b16 %v3198, %v3194
      %v3547 = vpack.c.b16 %v3203, %v3199
      %v3548 = vpack.c.b16 %v3204, %v3200
      %v3549 = vpack.c.b16 %v3205, %v3201
      %v3550 = vpack.c.b16 %v3206, %v3202
      %v3551 = vpack.c.b16 %v3211, %v3207
      %v3552 = vpack.c.b16 %v3212, %v3208
      %v3553 = vpack.c.b16 %v3213, %v3209
      %v3554 = vpack.c.b16 %v3214, %v3210
      %v3555 = vpack.c.b16 %v3219, %v3215
      %v3556 = vpack.c.b16 %v3220, %v3216
      %v3557 = vpack.c.b16 %v3221, %v3217
      %v3558 = vpack.c.b16 %v3222, %v3218
      %v3559 = vpack.c.b16 %v3227, %v3223
      %v3560 = vpack.c.b16 %v3228, %v3224
      %v3561 = vpack.c.b16 %v3229, %v3225
      %v3562 = vpack.c.b16 %v3230, %v3226
      %v3563 = vpack.c.b16 %v3235, %v3231
      %v3564 = vpack.c.b16 %v3236, %v3232
      %v3565 = vpack.c.b16 %v3237, %v3233
      %v3566 = vpack.c.b16 %v3238, %v3234
      %v3567 = vpack.c.b16 %v3243, %v3239
      %v3568 = vpack.c.b16 %v3244, %v3240
      %v3569 = vpack.c.b16 %v3245, %v3241
      %v3570 = vpack.c.b16 %v3246, %v3242
      %v3571 = vpack.c.b16 %v3251, %v3247
      %v3572 = vpack.c.b16 %v3252, %v3248
      %v3573 = vpack.c.b16 %v3253, %v3249
      %v3574 = vpack.c.b16 %v3254, %v3250
      %v3575 = vpack.c.b16 %v3259, %v3255
      %v3576 = vpack.c.b16 %v3260, %v3256
      %v3577 = vpack.c.b16 %v3261, %v3257
      %v3578 = vpack.c.b16 %v3262, %v3258
      %v3579 = vpack.c.b16 %v3267, %v3263
      %v3580 = vpack.c.b16 %v3268, %v3264
      %v3581 = vpack.c.b16 %v3269, %v3265
      %v3582 = vpack.c.b16 %v3270, %v3266
      %v3583 = vpack.c.b16 %v3275, %v3271
      %v3584 = vpack.c.b16 %v3276, %v3272
      %v3585 = vpack.c.b16 %v3277, %v3273
      %v3586 = vpack.c.b16 %v3278, %v3274
      %v3587 = vpack.c.b16 %v3283, %v3279
      %v3588 = vpack.c.b16 %v3284, %v3280
      %v3589 = vpack.c.b16 %v3285, %v3281
      %v3590 = vpack.c.b16 %v3286, %v3282
      %v3591 = vpack.c.b16 %v3291, %v3287
      %v3592 = vpack.c.b16 %v3292, %v3288
      %v3593 = vpack.c.b16 %v3293, %v3289
      %v3594 = vpack.c.b16 %v3294, %v3290
      %v3595 = vpack.c.b16 %v3299, %v3295
      %v3596 = vpack.c.b16 %v3300, %v3296
      %v3597 = vpack.c.b16 %v3301, %v3297
      %v3598 = vpack.c.b16 %v3302, %v3298
      %v3599 = vpack.c.b16 %v3307, %v3303
      %v3600 = vpack.c.b16 %v3308, %v3304
      %v3601 = vpack.c.b16 %v3309, %v3305
      %v3602 = vpack.c.b16 %v3310, %v3306
      %v3603 = vpack.c.b16 %v3315, %v3311
      %v3604 = vpack.c.b16 %v3316, %v3312
      %v3605 = vpack.c.b16 %v3317, %v3313
      %v3606 = vpack.c.b16 %v3318, %v3314
      %v3607 = vpack.c.b16 %v3323, %v3319
      %v3608 = vpack.c.b16 %v3324, %v3320
      %v3609 = vpack.c.b16 %v3325, %v3321
      %v3610 = vpack.c.b16 %v3326, %v3322
      %v3611 = vpack.c.b16 %v3331, %v3327
      %v3612 = vpack.c.b16 %v3332, %v3328
      %v3613 = vpack.c.b16 %v3333, %v3329
      %v3614 = vpack.c.b16 %v3334, %v3330
      %v3615 = vpack.c.b16 %v3339, %v3335
      %v3616 = vpack.c.b16 %v3340, %v3336
      %v3617 = vpack.c.b16 %v3341, %v3337
      %v3618 = vpack.c.b16 %v3342, %v3338
      %v3619 = vpack.c.b16 %v3347, %v3343
      %v3620 = vpack.c.b16 %v3348, %v3344
      %v3621 = vpack.c.b16 %v3349, %v3345
      %v3622 = vpack.c.b16 %v3350, %v3346
      %v3623 = vpack.c.b16 %v3355, %v3351
      %v3624 = vpack.c.b16 %v3356, %v3352
      %v3625 = vpack.c.b16 %v3357, %v3353
      %v3626 = vpack.c.b16 %v3358, %v3354
      %v3627 = vpack.c.b16 %v3363, %v3359
      %v3628 = vpack.c.b16 %v3364, %v3360
      %v3629 = vpack.c.b16 %v3365, %v3361
      %v3630 = vpack.c.b16 %v3366, %v3362
      %v3631 = vpack.c.b16 %v3371, %v3367
      %v3632 = vpack.c.b16 %v3372, %v3368
      %v3633 = vpack.c.b16 %v3373, %v3369
      %v3634 = vpack.c.b16 %v3374, %v3370
      %v3635 = vpack.c.b16 %v3379, %v3375
      %v3636 = vpack.c.b16 %v3380, %v3376
      %v3637 = vpack.c.b16 %v3381, %v3377
      %v3638 = vpack.c.b16 %v3382, %v3378
      %v3639 = vpack.c.b16 %v3387, %v3383
      %v3640 = vpack.c.b16 %v3388, %v3384
      %v3641 = vpack.c.b16 %v3389, %v3385
      %v3642 = vpack.c.b16 %v3390, %v3386
      %v3643 = vpack.c.b16 %v3395, %v3391
      %v3644 = vpack.c.b16 %v3396, %v3392
      %v3645 = vpack.c.b16 %v3397, %v3393
      %v3646 = vpack.c.b16 %v3398, %v3394
      %v3647 = vpack.c.b16 %v3403, %v3399
      %v3648 = vpack.c.b16 %v3404, %v3400
      %v3649 = vpack.c.b16 %v3405, %v3401
      %v3650 = vpack.c.b16 %v3406, %v3402
      %v3651 = vpack.c.b16 %v3411, %v3407
      %v3652 = vpack.c.b16 %v3412, %v3408
      %v3653 = vpack.c.b16 %v3413, %v3409
      %v3654 = vpack.c.b16 %v3414, %v3410
      %v3655 = vpack.c.b16 %v3419, %v3415
      %v3656 = vpack.c.b16 %v3420, %v3416
      %v3657 = vpack.c.b16 %v3421, %v3417
      %v3658 = vpack.c.b16 %v3422, %v3418
      %v3659 = vpack.c.b16 %v3427, %v3423
      %v3660 = vpack.c.b16 %v3428, %v3424
      %v3661 = vpack.c.b16 %v3429, %v3425
      %v3662 = vpack.c.b16 %v3430, %v3426
      %v3663 = vpack.c.b16 %v3435, %v3431
      %v3664 = vpack.c.b16 %v3436, %v3432
      %v3665 = vpack.c.b16 %v3437, %v3433
      %v3666 = vpack.c.b16 %v3438, %v3434
      %v3667 = vpack.c.b16 %v3443, %v3439
      %v3668 = vpack.c.b16 %v3444, %v3440
      %v3669 = vpack.c.b16 %v3445, %v3441
      %v3670 = vpack.c.b16 %v3446, %v3442
      %v3671 = vpack.c.b16 %v3451, %v3447
      %v3672 = vpack.c.b16 %v3452, %v3448
      %v3673 = vpack.c.b16 %v3453, %v3449
      %v3674 = vpack.c.b16 %v3454, %v3450
      %v3675 = vpack.c.b16 %v3459, %v3455
      %v3676 = vpack.c.b16 %v3460, %v3456
      %v3677 = vpack.c.b16 %v3461, %v3457
      %v3678 = vpack.c.b16 %v3462, %v3458
      %vm3895 = vcmask 785408
      %v3897 = vsel %vm3895, %v2808, 0
      %3899 = vmatpush.bf16.msra.mxu0 %v3491
      %3900 = vmatpush.bf16.msra.mxu0 %v3487
      %3901 = vmatpush.bf16.msra.mxu0 %v3483
      %3902 = vmatpush.bf16.msra.mxu0 %v3479
      %3903 = vmatpush.bf16.msra.mxu0 %v3475
      %3904 = vmatpush.bf16.msra.mxu0 %v3471
      %3905 = vmatpush.bf16.msra.mxu0 %v3467
      %3906 = vmatpush.bf16.msra.mxu0 %v3463
      %3907 = vmatmul.bf16.gmra.mxu0 %v2802
      %v3908 = vpop.f32.mrf.mxu0
      %v3909 = vadd.f32 %v2773, %v3908
      %v3910 = vpop.f32.mrf.mxu0
      %v3911 = vadd.f32 %v2778, %v3910
      %3912 = vdwg.mxu0
      %3913 = vmatpush.bf16.msra.mxu0 %v3523
      %3914 = vmatpush.bf16.msra.mxu0 %v3519
      %3915 = vmatpush.bf16.msra.mxu0 %v3515
      %3916 = vmatpush.bf16.msra.mxu0 %v3511
      %3917 = vmatpush.bf16.msra.mxu0 %v3507
      %3918 = vmatpush.bf16.msra.mxu0 %v3503
      %3919 = vmatpush.bf16.msra.mxu0 %v3499
      %3920 = vmatpush.bf16.msra.mxu0 %v3495
      %3921 = vmatmul.bf16.gmra.mxu0 %v2803
      %v3922 = vpop.f32.mrf.mxu0
      %v3923 = vadd.f32 %v3909, %v3922
      %v3924 = vpop.f32.mrf.mxu0
      %v3925 = vadd.f32 %v3911, %v3924
      %3926 = vdwg.mxu0
      %3927 = vmatpush.bf16.msra.mxu0 %v3555
      %3928 = vmatpush.bf16.msra.mxu0 %v3551
      %3929 = vmatpush.bf16.msra.mxu0 %v3547
      %3930 = vmatpush.bf16.msra.mxu0 %v3543
      %3931 = vmatpush.bf16.msra.mxu0 %v3539
      %3932 = vmatpush.bf16.msra.mxu0 %v3535
      %3933 = vmatpush.bf16.msra.mxu0 %v3531
      %3934 = vmatpush.bf16.msra.mxu0 %v3527
      %3935 = vmatmul.bf16.gmra.mxu0 %v2804
      %v3936 = vpop.f32.mrf.mxu0
      %v3937 = vadd.f32 %v3923, %v3936
      %v3938 = vpop.f32.mrf.mxu0
      %v3939 = vadd.f32 %v3925, %v3938
      %3940 = vdwg.mxu0
      %3941 = vmatpush.bf16.msra.mxu0 %v3587
      %3942 = vmatpush.bf16.msra.mxu0 %v3583
      %3943 = vmatpush.bf16.msra.mxu0 %v3579
      %3944 = vmatpush.bf16.msra.mxu0 %v3575
      %3945 = vmatpush.bf16.msra.mxu0 %v3571
      %3946 = vmatpush.bf16.msra.mxu0 %v3567
      %3947 = vmatpush.bf16.msra.mxu0 %v3563
      %3948 = vmatpush.bf16.msra.mxu0 %v3559
      %3949 = vmatmul.bf16.gmra.mxu0 %v2805
      %v3950 = vpop.f32.mrf.mxu0
      %v3951 = vadd.f32 %v3937, %v3950
      %v3952 = vpop.f32.mrf.mxu0
      %v3953 = vadd.f32 %v3939, %v3952
      %3954 = vdwg.mxu0
      %3955 = vmatpush.bf16.msra.mxu0 %v3619
      %3956 = vmatpush.bf16.msra.mxu0 %v3615
      %3957 = vmatpush.bf16.msra.mxu0 %v3611
      %3958 = vmatpush.bf16.msra.mxu0 %v3607
      %3959 = vmatpush.bf16.msra.mxu0 %v3603
      %3960 = vmatpush.bf16.msra.mxu0 %v3599
      %3961 = vmatpush.bf16.msra.mxu0 %v3595
      %3962 = vmatpush.bf16.msra.mxu0 %v3591
      %3963 = vmatmul.bf16.gmra.mxu0 %v2806
      %v3964 = vpop.f32.mrf.mxu0
      %v3965 = vadd.f32 %v3951, %v3964
      %v3966 = vpop.f32.mrf.mxu0
      %v3967 = vadd.f32 %v3953, %v3966
      %3968 = vdwg.mxu0
      %3969 = vmatpush.bf16.msra.mxu0 %v3651
      %3970 = vmatpush.bf16.msra.mxu0 %v3647
      %3971 = vmatpush.bf16.msra.mxu0 %v3643
      %3972 = vmatpush.bf16.msra.mxu0 %v3639
      %3973 = vmatpush.bf16.msra.mxu0 %v3635
      %3974 = vmatpush.bf16.msra.mxu0 %v3631
      %3975 = vmatpush.bf16.msra.mxu0 %v3627
      %3976 = vmatpush.bf16.msra.mxu0 %v3623
      %3977 = vmatmul.bf16.gmra.mxu0 %v2807
      %v3978 = vpop.f32.mrf.mxu0
      %v3979 = vadd.f32 %v3965, %v3978
      %v3980 = vpop.f32.mrf.mxu0
      %v3981 = vadd.f32 %v3967, %v3980
      %3982 = vdwg.mxu0
      %3983 = vmatpush.bf16.msra.mxu0 0
      %3984 = vmatpush.bf16.msra.mxu0 0
      %3985 = vmatpush.bf16.msra.mxu0 %v3675
      %3986 = vmatpush.bf16.msra.mxu0 %v3671
      %3987 = vmatpush.bf16.msra.mxu0 %v3667
      %3988 = vmatpush.bf16.msra.mxu0 %v3663
      %3989 = vmatpush.bf16.msra.mxu0 %v3659
      %3990 = vmatpush.bf16.msra.mxu0 %v3655
      %3991 = vmatmul.bf16.gmra.mxu0 %v3897
      %v3992 = vpop.f32.mrf.mxu0
      %v3993 = vadd.f32 %v3979, %v3992
      %v3994 = vpop.f32.mrf.mxu0
      %v3995 = vadd.f32 %v3981, %v3994
      %3996 = vdwg.mxu0
      %3997 = vmatpush.bf16.msra.mxu0 %v3492
      %3998 = vmatpush.bf16.msra.mxu0 %v3488
      %3999 = vmatpush.bf16.msra.mxu0 %v3484
      %4000 = vmatpush.bf16.msra.mxu0 %v3480
      %4001 = vmatpush.bf16.msra.mxu0 %v3476
      %4002 = vmatpush.bf16.msra.mxu0 %v3472
      %4003 = vmatpush.bf16.msra.mxu0 %v3468
      %4004 = vmatpush.bf16.msra.mxu0 %v3464
      %4005 = vmatmul.bf16.gmra.mxu0 %v2802
      %v4006 = vpop.f32.mrf.mxu0
      %v4007 = vadd.f32 %v2773, %v4006
      %v4008 = vpop.f32.mrf.mxu0
      %v4009 = vadd.f32 %v2778, %v4008
      %4010 = vdwg.mxu0
      %4011 = vmatpush.bf16.msra.mxu0 %v3524
      %4012 = vmatpush.bf16.msra.mxu0 %v3520
      %4013 = vmatpush.bf16.msra.mxu0 %v3516
      %4014 = vmatpush.bf16.msra.mxu0 %v3512
      %4015 = vmatpush.bf16.msra.mxu0 %v3508
      %4016 = vmatpush.bf16.msra.mxu0 %v3504
      %4017 = vmatpush.bf16.msra.mxu0 %v3500
      %4018 = vmatpush.bf16.msra.mxu0 %v3496
      %4019 = vmatmul.bf16.gmra.mxu0 %v2803
      %v4020 = vpop.f32.mrf.mxu0
      %v4021 = vadd.f32 %v4007, %v4020
      %v4022 = vpop.f32.mrf.mxu0
      %v4023 = vadd.f32 %v4009, %v4022
      %4024 = vdwg.mxu0
      %4025 = vmatpush.bf16.msra.mxu0 %v3556
      %4026 = vmatpush.bf16.msra.mxu0 %v3552
      %4027 = vmatpush.bf16.msra.mxu0 %v3548
      %4028 = vmatpush.bf16.msra.mxu0 %v3544
      %4029 = vmatpush.bf16.msra.mxu0 %v3540
      %4030 = vmatpush.bf16.msra.mxu0 %v3536
      %4031 = vmatpush.bf16.msra.mxu0 %v3532
      %4032 = vmatpush.bf16.msra.mxu0 %v3528
      %4033 = vmatmul.bf16.gmra.mxu0 %v2804
      %v4034 = vpop.f32.mrf.mxu0
      %v4035 = vadd.f32 %v4021, %v4034
      %v4036 = vpop.f32.mrf.mxu0
      %v4037 = vadd.f32 %v4023, %v4036
      %4038 = vdwg.mxu0
      %4039 = vmatpush.bf16.msra.mxu0 %v3588
      %4040 = vmatpush.bf16.msra.mxu0 %v3584
      %4041 = vmatpush.bf16.msra.mxu0 %v3580
      %4042 = vmatpush.bf16.msra.mxu0 %v3576
      %4043 = vmatpush.bf16.msra.mxu0 %v3572
      %4044 = vmatpush.bf16.msra.mxu0 %v3568
      %4045 = vmatpush.bf16.msra.mxu0 %v3564
      %4046 = vmatpush.bf16.msra.mxu0 %v3560
      %4047 = vmatmul.bf16.gmra.mxu0 %v2805
      %v4048 = vpop.f32.mrf.mxu0
      %v4049 = vadd.f32 %v4035, %v4048
      %v4050 = vpop.f32.mrf.mxu0
      %v4051 = vadd.f32 %v4037, %v4050
      %4052 = vdwg.mxu0
      %4053 = vmatpush.bf16.msra.mxu0 %v3620
      %4054 = vmatpush.bf16.msra.mxu0 %v3616
      %4055 = vmatpush.bf16.msra.mxu0 %v3612
      %4056 = vmatpush.bf16.msra.mxu0 %v3608
      %4057 = vmatpush.bf16.msra.mxu0 %v3604
      %4058 = vmatpush.bf16.msra.mxu0 %v3600
      %4059 = vmatpush.bf16.msra.mxu0 %v3596
      %4060 = vmatpush.bf16.msra.mxu0 %v3592
      %4061 = vmatmul.bf16.gmra.mxu0 %v2806
      %v4062 = vpop.f32.mrf.mxu0
      %v4063 = vadd.f32 %v4049, %v4062
      %v4064 = vpop.f32.mrf.mxu0
      %v4065 = vadd.f32 %v4051, %v4064
      %4066 = vdwg.mxu0
      %4067 = vmatpush.bf16.msra.mxu0 %v3652
      %4068 = vmatpush.bf16.msra.mxu0 %v3648
      %4069 = vmatpush.bf16.msra.mxu0 %v3644
      %4070 = vmatpush.bf16.msra.mxu0 %v3640
      %4071 = vmatpush.bf16.msra.mxu0 %v3636
      %4072 = vmatpush.bf16.msra.mxu0 %v3632
      %4073 = vmatpush.bf16.msra.mxu0 %v3628
      %4074 = vmatpush.bf16.msra.mxu0 %v3624
      %4075 = vmatmul.bf16.gmra.mxu0 %v2807
      %v4076 = vpop.f32.mrf.mxu0
      %v4077 = vadd.f32 %v4063, %v4076
      %v4078 = vpop.f32.mrf.mxu0
      %v4079 = vadd.f32 %v4065, %v4078
      %4080 = vdwg.mxu0
      %4081 = vmatpush.bf16.msra.mxu0 0
      %4082 = vmatpush.bf16.msra.mxu0 0
      %4083 = vmatpush.bf16.msra.mxu0 %v3676
      %4084 = vmatpush.bf16.msra.mxu0 %v3672
      %4085 = vmatpush.bf16.msra.mxu0 %v3668
      %4086 = vmatpush.bf16.msra.mxu0 %v3664
      %4087 = vmatpush.bf16.msra.mxu0 %v3660
      %4088 = vmatpush.bf16.msra.mxu0 %v3656
      %4089 = vmatmul.bf16.gmra.mxu0 %v3897
      %v4090 = vpop.f32.mrf.mxu0
      %v4091 = vadd.f32 %v4077, %v4090
      %v4092 = vpop.f32.mrf.mxu0
      %v4093 = vadd.f32 %v4079, %v4092
      %4094 = vdwg.mxu0
      %4095 = vmatpush.bf16.msra.mxu0 %v3493
      %4096 = vmatpush.bf16.msra.mxu0 %v3489
      %4097 = vmatpush.bf16.msra.mxu0 %v3485
      %4098 = vmatpush.bf16.msra.mxu0 %v3481
      %4099 = vmatpush.bf16.msra.mxu0 %v3477
      %4100 = vmatpush.bf16.msra.mxu0 %v3473
      %4101 = vmatpush.bf16.msra.mxu0 %v3469
      %4102 = vmatpush.bf16.msra.mxu0 %v3465
      %4103 = vmatmul.bf16.gmra.mxu0 %v2802
      %v4104 = vpop.f32.mrf.mxu0
      %v4105 = vadd.f32 %v2773, %v4104
      %v4106 = vpop.f32.mrf.mxu0
      %v4107 = vadd.f32 %v2778, %v4106
      %4108 = vdwg.mxu0
      %4109 = vmatpush.bf16.msra.mxu0 %v3525
      %4110 = vmatpush.bf16.msra.mxu0 %v3521
      %4111 = vmatpush.bf16.msra.mxu0 %v3517
      %4112 = vmatpush.bf16.msra.mxu0 %v3513
      %4113 = vmatpush.bf16.msra.mxu0 %v3509
      %4114 = vmatpush.bf16.msra.mxu0 %v3505
      %4115 = vmatpush.bf16.msra.mxu0 %v3501
      %4116 = vmatpush.bf16.msra.mxu0 %v3497
      %4117 = vmatmul.bf16.gmra.mxu0 %v2803
      %v4118 = vpop.f32.mrf.mxu0
      %v4119 = vadd.f32 %v4105, %v4118
      %v4120 = vpop.f32.mrf.mxu0
      %v4121 = vadd.f32 %v4107, %v4120
      %4122 = vdwg.mxu0
      %4123 = vmatpush.bf16.msra.mxu0 %v3557
      %4124 = vmatpush.bf16.msra.mxu0 %v3553
      %4125 = vmatpush.bf16.msra.mxu0 %v3549
      %4126 = vmatpush.bf16.msra.mxu0 %v3545
      %4127 = vmatpush.bf16.msra.mxu0 %v3541
      %4128 = vmatpush.bf16.msra.mxu0 %v3537
      %4129 = vmatpush.bf16.msra.mxu0 %v3533
      %4130 = vmatpush.bf16.msra.mxu0 %v3529
      %4131 = vmatmul.bf16.gmra.mxu0 %v2804
      %v4132 = vpop.f32.mrf.mxu0
      %v4133 = vadd.f32 %v4119, %v4132
      %v4134 = vpop.f32.mrf.mxu0
      %v4135 = vadd.f32 %v4121, %v4134
      %4136 = vdwg.mxu0
      %4137 = vmatpush.bf16.msra.mxu0 %v3589
      %4138 = vmatpush.bf16.msra.mxu0 %v3585
      %4139 = vmatpush.bf16.msra.mxu0 %v3581
      %4140 = vmatpush.bf16.msra.mxu0 %v3577
      %4141 = vmatpush.bf16.msra.mxu0 %v3573
      %4142 = vmatpush.bf16.msra.mxu0 %v3569
      %4143 = vmatpush.bf16.msra.mxu0 %v3565
      %4144 = vmatpush.bf16.msra.mxu0 %v3561
      %4145 = vmatmul.bf16.gmra.mxu0 %v2805
      %v4146 = vpop.f32.mrf.mxu0
      %v4147 = vadd.f32 %v4133, %v4146
      %v4148 = vpop.f32.mrf.mxu0
      %v4149 = vadd.f32 %v4135, %v4148
      %4150 = vdwg.mxu0
      %4151 = vmatpush.bf16.msra.mxu0 %v3621
      %4152 = vmatpush.bf16.msra.mxu0 %v3617
      %4153 = vmatpush.bf16.msra.mxu0 %v3613
      %4154 = vmatpush.bf16.msra.mxu0 %v3609
      %4155 = vmatpush.bf16.msra.mxu0 %v3605
      %4156 = vmatpush.bf16.msra.mxu0 %v3601
      %4157 = vmatpush.bf16.msra.mxu0 %v3597
      %4158 = vmatpush.bf16.msra.mxu0 %v3593
      %4159 = vmatmul.bf16.gmra.mxu0 %v2806
      %v4160 = vpop.f32.mrf.mxu0
      %v4161 = vadd.f32 %v4147, %v4160
      %v4162 = vpop.f32.mrf.mxu0
      %v4163 = vadd.f32 %v4149, %v4162
      %4164 = vdwg.mxu0
      %4165 = vmatpush.bf16.msra.mxu0 %v3653
      %4166 = vmatpush.bf16.msra.mxu0 %v3649
      %4167 = vmatpush.bf16.msra.mxu0 %v3645
      %4168 = vmatpush.bf16.msra.mxu0 %v3641
      %4169 = vmatpush.bf16.msra.mxu0 %v3637
      %4170 = vmatpush.bf16.msra.mxu0 %v3633
      %4171 = vmatpush.bf16.msra.mxu0 %v3629
      %4172 = vmatpush.bf16.msra.mxu0 %v3625
      %4173 = vmatmul.bf16.gmra.mxu0 %v2807
      %v4174 = vpop.f32.mrf.mxu0
      %v4175 = vadd.f32 %v4161, %v4174
      %v4176 = vpop.f32.mrf.mxu0
      %v4177 = vadd.f32 %v4163, %v4176
      %4178 = vdwg.mxu0
      %4179 = vmatpush.bf16.msra.mxu0 0
      %4180 = vmatpush.bf16.msra.mxu0 0
      %4181 = vmatpush.bf16.msra.mxu0 %v3677
      %4182 = vmatpush.bf16.msra.mxu0 %v3673
      %4183 = vmatpush.bf16.msra.mxu0 %v3669
      %4184 = vmatpush.bf16.msra.mxu0 %v3665
      %4185 = vmatpush.bf16.msra.mxu0 %v3661
      %4186 = vmatpush.bf16.msra.mxu0 %v3657
      %4187 = vmatmul.bf16.gmra.mxu0 %v3897
      %v4188 = vpop.f32.mrf.mxu0
      %v4189 = vadd.f32 %v4175, %v4188
      %v4190 = vpop.f32.mrf.mxu0
      %v4191 = vadd.f32 %v4177, %v4190
      %4192 = vdwg.mxu0
      %4193 = vmatpush.bf16.msra.mxu0 %v3494
      %4194 = vmatpush.bf16.msra.mxu0 %v3490
      %4195 = vmatpush.bf16.msra.mxu0 %v3486
      %4196 = vmatpush.bf16.msra.mxu0 %v3482
      %4197 = vmatpush.bf16.msra.mxu0 %v3478
      %4198 = vmatpush.bf16.msra.mxu0 %v3474
      %4199 = vmatpush.bf16.msra.mxu0 %v3470
      %4200 = vmatpush.bf16.msra.mxu0 %v3466
      %4201 = vmatmul.bf16.gmra.mxu0 %v2802
      %v4202 = vpop.f32.mrf.mxu0
      %v4203 = vadd.f32 %v2773, %v4202
      %v4204 = vpop.f32.mrf.mxu0
      %v4205 = vadd.f32 %v2778, %v4204
      %4206 = vdwg.mxu0
      %4207 = vmatpush.bf16.msra.mxu0 %v3526
      %4208 = vmatpush.bf16.msra.mxu0 %v3522
      %4209 = vmatpush.bf16.msra.mxu0 %v3518
      %4210 = vmatpush.bf16.msra.mxu0 %v3514
      %4211 = vmatpush.bf16.msra.mxu0 %v3510
      %4212 = vmatpush.bf16.msra.mxu0 %v3506
      %4213 = vmatpush.bf16.msra.mxu0 %v3502
      %4214 = vmatpush.bf16.msra.mxu0 %v3498
      %4215 = vmatmul.bf16.gmra.mxu0 %v2803
      %v4216 = vpop.f32.mrf.mxu0
      %v4217 = vadd.f32 %v4203, %v4216
      %v4218 = vpop.f32.mrf.mxu0
      %v4219 = vadd.f32 %v4205, %v4218
      %4220 = vdwg.mxu0
      %4221 = vmatpush.bf16.msra.mxu0 %v3558
      %4222 = vmatpush.bf16.msra.mxu0 %v3554
      %4223 = vmatpush.bf16.msra.mxu0 %v3550
      %4224 = vmatpush.bf16.msra.mxu0 %v3546
      %4225 = vmatpush.bf16.msra.mxu0 %v3542
      %4226 = vmatpush.bf16.msra.mxu0 %v3538
      %4227 = vmatpush.bf16.msra.mxu0 %v3534
      %4228 = vmatpush.bf16.msra.mxu0 %v3530
      %4229 = vmatmul.bf16.gmra.mxu0 %v2804
      %v4230 = vpop.f32.mrf.mxu0
      %v4231 = vadd.f32 %v4217, %v4230
      %v4232 = vpop.f32.mrf.mxu0
      %v4233 = vadd.f32 %v4219, %v4232
      %4234 = vdwg.mxu0
      %4235 = vmatpush.bf16.msra.mxu0 %v3590
      %4236 = vmatpush.bf16.msra.mxu0 %v3586
      %4237 = vmatpush.bf16.msra.mxu0 %v3582
      %4238 = vmatpush.bf16.msra.mxu0 %v3578
      %4239 = vmatpush.bf16.msra.mxu0 %v3574
      %4240 = vmatpush.bf16.msra.mxu0 %v3570
      %4241 = vmatpush.bf16.msra.mxu0 %v3566
      %4242 = vmatpush.bf16.msra.mxu0 %v3562
      %4243 = vmatmul.bf16.gmra.mxu0 %v2805
      %v4244 = vpop.f32.mrf.mxu0
      %v4245 = vadd.f32 %v4231, %v4244
      %v4246 = vpop.f32.mrf.mxu0
      %v4247 = vadd.f32 %v4233, %v4246
      %4248 = vdwg.mxu0
      %4249 = vmatpush.bf16.msra.mxu0 %v3622
      %4250 = vmatpush.bf16.msra.mxu0 %v3618
      %4251 = vmatpush.bf16.msra.mxu0 %v3614
      %4252 = vmatpush.bf16.msra.mxu0 %v3610
      %4253 = vmatpush.bf16.msra.mxu0 %v3606
      %4254 = vmatpush.bf16.msra.mxu0 %v3602
      %4255 = vmatpush.bf16.msra.mxu0 %v3598
      %4256 = vmatpush.bf16.msra.mxu0 %v3594
      %4257 = vmatmul.bf16.gmra.mxu0 %v2806
      %v4258 = vpop.f32.mrf.mxu0
      %v4259 = vadd.f32 %v4245, %v4258
      %v4260 = vpop.f32.mrf.mxu0
      %v4261 = vadd.f32 %v4247, %v4260
      %4262 = vdwg.mxu0
      %4263 = vmatpush.bf16.msra.mxu0 %v3654
      %4264 = vmatpush.bf16.msra.mxu0 %v3650
      %4265 = vmatpush.bf16.msra.mxu0 %v3646
      %4266 = vmatpush.bf16.msra.mxu0 %v3642
      %4267 = vmatpush.bf16.msra.mxu0 %v3638
      %4268 = vmatpush.bf16.msra.mxu0 %v3634
      %4269 = vmatpush.bf16.msra.mxu0 %v3630
      %4270 = vmatpush.bf16.msra.mxu0 %v3626
      %4271 = vmatmul.bf16.gmra.mxu0 %v2807
      %v4272 = vpop.f32.mrf.mxu0
      %v4273 = vadd.f32 %v4259, %v4272
      %v4274 = vpop.f32.mrf.mxu0
      %v4275 = vadd.f32 %v4261, %v4274
      %4276 = vdwg.mxu0
      %4277 = vmatpush.bf16.msra.mxu0 0
      %4278 = vmatpush.bf16.msra.mxu0 0
      %4279 = vmatpush.bf16.msra.mxu0 %v3678
      %4280 = vmatpush.bf16.msra.mxu0 %v3674
      %4281 = vmatpush.bf16.msra.mxu0 %v3670
      %4282 = vmatpush.bf16.msra.mxu0 %v3666
      %4283 = vmatpush.bf16.msra.mxu0 %v3662
      %4284 = vmatpush.bf16.msra.mxu0 %v3658
      %4285 = vmatmul.bf16.gmra.mxu0 %v3897
      %v4286 = vpop.f32.mrf.mxu0
      %v4287 = vadd.f32 %v4273, %v4286
      %v4288 = vpop.f32.mrf.mxu0
      %v4289 = vadd.f32 %v4275, %v4288
      %4290 = vdwg.mxu0
      %v4291 = vmax.f32 %v3993, 0.0
      %v4292 = vmax.f32 %v4091, 0.0
      %v4293 = vmax.f32 %v4189, 0.0
      %v4294 = vmax.f32 %v4287, 0.0
      %v4295 = vmax.f32 %v3995, 0.0
      %v4296 = vmax.f32 %v4093, 0.0
      %v4297 = vmax.f32 %v4191, 0.0
      %v4298 = vmax.f32 %v4289, 0.0
      %4299 = vrot.lane.b32.xlu0 %v4291, 73
      %v4300 = vpop.permute.xlu0 %4299
      %4301 = vrot.lane.b32.xlu0 %v4295, 73
      %v4302 = vpop.permute.xlu0 %4301
      %4303 = vrot.lane.b32.xlu0 %v4292, 73
      %v4304 = vpop.permute.xlu0 %4303
      %4305 = vrot.lane.b32.xlu0 %v4296, 73
      %v4306 = vpop.permute.xlu0 %4305
      %4307 = vrot.lane.b32.xlu0 %v4293, 73
      %v4308 = vpop.permute.xlu0 %4307
      %4309 = vrot.lane.b32.xlu0 %v4297, 73
      %v4310 = vpop.permute.xlu0 %4309
      %4311 = vrot.lane.b32.xlu0 %v4294, 73
      %v4312 = vpop.permute.xlu0 %4311
      %4313 = vrot.lane.b32.xlu0 %v4298, 73
      %v4314 = vpop.permute.xlu0 %4313
      %v4315 = vsel %vm334, %v4308, %v4312
      %v4316 = vsel %vm334, %v4310, %v4314
      %v4317 = vsel %vm334, %v4304, %v4308
      %v4318 = vsel %vm334, %v4306, %v4310
      %v4319 = vsel %vm334, %v4300, %v4304
      %v4320 = vsel %vm334, %v4302, %v4306
      %v4321 = vsel %vm334, %v4312, %v4300
      %v4322 = vsel %vm334, %v4314, %v4302
      %v4323 = vld [vmem:[%s2] ss:$8 sm:$0xf]
      %v4325 = vperm.slane %v4323, 0
      %v4326 = vperm.slane %v4323, 1
      %v4327 = vperm.slane %v4323, 2
      %v4328 = vperm.slane %v4323, 3
      %v4333 = vmul.f32 %v4321, %v4325
      %v4334 = vmul.f32 %v4319, %v4326
      %v4335 = vmul.f32 %v4317, %v4327
      %v4336 = vmul.f32 %v4315, %v4328
      %v4337 = vmul.f32 %v4322, %v4325
      %v4338 = vmul.f32 %v4320, %v4326
      %v4339 = vmul.f32 %v4318, %v4327
      %v4340 = vmul.f32 %v4316, %v4328
      %v4341 = vpack.c.bf16 %v4334, %v4333
      %v4342 = vpack.c.bf16 %v4336, %v4335
      %v4343 = vpack.c.bf16 %v4338, %v4337
      %v4344 = vpack.c.bf16 %v4340, %v4339
      %4345 = vst [vmem:[#allocation2] sm:$0xff] %v4341
      %4346 = vst [vmem:[#allocation2 + $0x8] sm:$0xff] %v4342
      %4347 = vst [vmem:[#allocation2 + $0x10] sm:$0xff] %v4343
      %4348 = vst [vmem:[#allocation2 + $0x18] sm:$0xff] %v4344
      %4349 = vrot.lane.b32.xlu0 %v4291, 72
      %v4350 = vpop.permute.xlu0 %4349
      %4351 = vrot.lane.b32.xlu0 %v4295, 72
      %v4352 = vpop.permute.xlu0 %4351
      %4353 = vrot.lane.b32.xlu0 %v4292, 72
      %v4354 = vpop.permute.xlu0 %4353
      %4355 = vrot.lane.b32.xlu0 %v4296, 72
      %v4356 = vpop.permute.xlu0 %4355
      %4357 = vrot.lane.b32.xlu0 %v4293, 72
      %v4358 = vpop.permute.xlu0 %4357
      %4359 = vrot.lane.b32.xlu0 %v4297, 72
      %v4360 = vpop.permute.xlu0 %4359
      %4361 = vrot.lane.b32.xlu0 %v4294, 72
      %v4362 = vpop.permute.xlu0 %4361
      %4363 = vrot.lane.b32.xlu0 %v4298, 72
      %v4364 = vpop.permute.xlu0 %4363
      %v4365 = vsel %vm435, %v4358, %v4362
      %v4366 = vsel %vm435, %v4360, %v4364
      %v4367 = vsel %vm435, %v4354, %v4358
      %v4368 = vsel %vm435, %v4356, %v4360
      %v4369 = vsel %vm435, %v4350, %v4354
      %v4370 = vsel %vm435, %v4352, %v4356
      %v4371 = vsel %vm435, %v4362, %v4350
      %v4372 = vsel %vm435, %v4364, %v4352
      %v4373 = vld [vmem:[%s444] ss:$8 sm:$0xf]
      %v4375 = vperm.slane %v4373, 0
      %v4376 = vperm.slane %v4373, 1
      %v4377 = vperm.slane %v4373, 2
      %v4378 = vperm.slane %v4373, 3
      %v4383 = vmul.f32 %v4371, %v4375
      %v4384 = vmul.f32 %v4369, %v4376
      %v4385 = vmul.f32 %v4367, %v4377
      %v4386 = vmul.f32 %v4365, %v4378
      %v4387 = vmul.f32 %v4372, %v4375
      %v4388 = vmul.f32 %v4370, %v4376
      %v4389 = vmul.f32 %v4368, %v4377
      %v4390 = vmul.f32 %v4366, %v4378
      %v4391 = vpack.c.bf16 %v4384, %v4383
      %v4392 = vpack.c.bf16 %v4386, %v4385
      %v4393 = vpack.c.bf16 %v4388, %v4387
      %v4394 = vpack.c.bf16 %v4390, %v4389
      %4395 = vst [vmem:[#allocation2 + $0x20] sm:$0xff] %v4391
      %4396 = vst [vmem:[#allocation2 + $0x28] sm:$0xff] %v4392
      %4397 = vst [vmem:[#allocation2 + $0x30] sm:$0xff] %v4393
      %4398 = vst [vmem:[#allocation2 + $0x38] sm:$0xff] %v4394
      %4399 = vrot.lane.b32.xlu0 %v4291, 71
      %v4400 = vpop.permute.xlu0 %4399
      %4401 = vrot.lane.b32.xlu0 %v4295, 71
      %v4402 = vpop.permute.xlu0 %4401
      %4403 = vrot.lane.b32.xlu0 %v4292, 71
      %v4404 = vpop.permute.xlu0 %4403
      %4405 = vrot.lane.b32.xlu0 %v4296, 71
      %v4406 = vpop.permute.xlu0 %4405
      %4407 = vrot.lane.b32.xlu0 %v4293, 71
      %v4408 = vpop.permute.xlu0 %4407
      %4409 = vrot.lane.b32.xlu0 %v4297, 71
      %v4410 = vpop.permute.xlu0 %4409
      %4411 = vrot.lane.b32.xlu0 %v4294, 71
      %v4412 = vpop.permute.xlu0 %4411
      %4413 = vrot.lane.b32.xlu0 %v4298, 71
      %v4414 = vpop.permute.xlu0 %4413
      %v4415 = vsel %vm537, %v4408, %v4412
      %v4416 = vsel %vm537, %v4410, %v4414
      %v4417 = vsel %vm537, %v4404, %v4408
      %v4418 = vsel %vm537, %v4406, %v4410
      %v4419 = vsel %vm537, %v4400, %v4404
      %v4420 = vsel %vm537, %v4402, %v4406
      %v4421 = vsel %vm537, %v4412, %v4400
      %v4422 = vsel %vm537, %v4414, %v4402
      %v4423 = vld [vmem:[%s546] ss:$8 sm:$0xf]
      %v4425 = vperm.slane %v4423, 0
      %v4426 = vperm.slane %v4423, 1
      %v4427 = vperm.slane %v4423, 2
      %v4428 = vperm.slane %v4423, 3
      %v4433 = vmul.f32 %v4421, %v4425
      %v4434 = vmul.f32 %v4419, %v4426
      %v4435 = vmul.f32 %v4417, %v4427
      %v4436 = vmul.f32 %v4415, %v4428
      %v4437 = vmul.f32 %v4422, %v4425
      %v4438 = vmul.f32 %v4420, %v4426
      %v4439 = vmul.f32 %v4418, %v4427
      %v4440 = vmul.f32 %v4416, %v4428
      %v4441 = vpack.c.bf16 %v4434, %v4433
      %v4442 = vpack.c.bf16 %v4436, %v4435
      %v4443 = vpack.c.bf16 %v4438, %v4437
      %v4444 = vpack.c.bf16 %v4440, %v4439
      %4445 = vst [vmem:[#allocation2 + $0x40] sm:$0xff] %v4441
      %4446 = vst [vmem:[#allocation2 + $0x48] sm:$0xff] %v4442
      %4447 = vst [vmem:[#allocation2 + $0x50] sm:$0xff] %v4443
      %4448 = vst [vmem:[#allocation2 + $0x58] sm:$0xff] %v4444
      %4449 = vrot.lane.b32.xlu0 %v4291, 65
      %v4450 = vpop.permute.xlu0 %4449
      %4451 = vrot.lane.b32.xlu0 %v4295, 65
      %v4452 = vpop.permute.xlu0 %4451
      %4453 = vrot.lane.b32.xlu0 %v4292, 65
      %v4454 = vpop.permute.xlu0 %4453
      %4455 = vrot.lane.b32.xlu0 %v4296, 65
      %v4456 = vpop.permute.xlu0 %4455
      %4457 = vrot.lane.b32.xlu0 %v4293, 65
      %v4458 = vpop.permute.xlu0 %4457
      %4459 = vrot.lane.b32.xlu0 %v4297, 65
      %v4460 = vpop.permute.xlu0 %4459
      %4461 = vrot.lane.b32.xlu0 %v4294, 65
      %v4462 = vpop.permute.xlu0 %4461
      %4463 = vrot.lane.b32.xlu0 %v4298, 65
      %v4464 = vpop.permute.xlu0 %4463
      %v4465 = vsel %vm639, %v4458, %v4462
      %v4466 = vsel %vm639, %v4460, %v4464
      %v4467 = vsel %vm639, %v4454, %v4458
      %v4468 = vsel %vm639, %v4456, %v4460
      %v4469 = vsel %vm639, %v4450, %v4454
      %v4470 = vsel %vm639, %v4452, %v4456
      %v4471 = vsel %vm639, %v4462, %v4450
      %v4472 = vsel %vm639, %v4464, %v4452
      %v4473 = vld [vmem:[%s648] ss:$8 sm:$0xf]
      %v4475 = vperm.slane %v4473, 0
      %v4476 = vperm.slane %v4473, 1
      %v4477 = vperm.slane %v4473, 2
      %v4478 = vperm.slane %v4473, 3
      %v4483 = vmul.f32 %v4471, %v4475
      %v4484 = vmul.f32 %v4469, %v4476
      %v4485 = vmul.f32 %v4467, %v4477
      %v4486 = vmul.f32 %v4465, %v4478
      %v4487 = vmul.f32 %v4472, %v4475
      %v4488 = vmul.f32 %v4470, %v4476
      %v4489 = vmul.f32 %v4468, %v4477
      %v4490 = vmul.f32 %v4466, %v4478
      %v4491 = vpack.c.bf16 %v4484, %v4483
      %v4492 = vpack.c.bf16 %v4486, %v4485
      %v4493 = vpack.c.bf16 %v4488, %v4487
      %v4494 = vpack.c.bf16 %v4490, %v4489
      %4495 = vst [vmem:[#allocation2 + $0x60] sm:$0xff] %v4491
      %4496 = vst [vmem:[#allocation2 + $0x68] sm:$0xff] %v4492
      %4497 = vst [vmem:[#allocation2 + $0x70] sm:$0xff] %v4493
      %4498 = vst [vmem:[#allocation2 + $0x78] sm:$0xff] %v4494
      %4499 = vrot.lane.b32.xlu0 %v4291, 64
      %v4500 = vpop.permute.xlu0 %4499
      %4501 = vrot.lane.b32.xlu0 %v4295, 64
      %v4502 = vpop.permute.xlu0 %4501
      %4503 = vrot.lane.b32.xlu0 %v4292, 64
      %v4504 = vpop.permute.xlu0 %4503
      %4505 = vrot.lane.b32.xlu0 %v4296, 64
      %v4506 = vpop.permute.xlu0 %4505
      %4507 = vrot.lane.b32.xlu0 %v4293, 64
      %v4508 = vpop.permute.xlu0 %4507
      %4509 = vrot.lane.b32.xlu0 %v4297, 64
      %v4510 = vpop.permute.xlu0 %4509
      %4511 = vrot.lane.b32.xlu0 %v4294, 64
      %v4512 = vpop.permute.xlu0 %4511
      %4513 = vrot.lane.b32.xlu0 %v4298, 64
      %v4514 = vpop.permute.xlu0 %4513
      %v4515 = vsel %vm741, %v4508, %v4512
      %v4516 = vsel %vm741, %v4510, %v4514
      %v4517 = vsel %vm741, %v4504, %v4508
      %v4518 = vsel %vm741, %v4506, %v4510
      %v4519 = vsel %vm741, %v4500, %v4504
      %v4520 = vsel %vm741, %v4502, %v4506
      %v4521 = vsel %vm741, %v4512, %v4500
      %v4522 = vsel %vm741, %v4514, %v4502
      %v4523 = vld [vmem:[%s750] ss:$8 sm:$0xf]
      %v4525 = vperm.slane %v4523, 0
      %v4526 = vperm.slane %v4523, 1
      %v4527 = vperm.slane %v4523, 2
      %v4528 = vperm.slane %v4523, 3
      %v4533 = vmul.f32 %v4521, %v4525
      %v4534 = vmul.f32 %v4519, %v4526
      %v4535 = vmul.f32 %v4517, %v4527
      %v4536 = vmul.f32 %v4515, %v4528
      %v4537 = vmul.f32 %v4522, %v4525
      %v4538 = vmul.f32 %v4520, %v4526
      %v4539 = vmul.f32 %v4518, %v4527
      %v4540 = vmul.f32 %v4516, %v4528
      %v4541 = vpack.c.bf16 %v4534, %v4533
      %v4542 = vpack.c.bf16 %v4536, %v4535
      %v4543 = vpack.c.bf16 %v4538, %v4537
      %v4544 = vpack.c.bf16 %v4540, %v4539
      %4545 = vst [vmem:[#allocation2 + $0x80] sm:$0xff] %v4541
      %4546 = vst [vmem:[#allocation2 + $0x88] sm:$0xff] %v4542
      %4547 = vst [vmem:[#allocation2 + $0x90] sm:$0xff] %v4543
      %4548 = vst [vmem:[#allocation2 + $0x98] sm:$0xff] %v4544
      %4549 = vrot.lane.b32.xlu0 %v4291, 63
      %v4550 = vpop.permute.xlu0 %4549
      %4551 = vrot.lane.b32.xlu0 %v4295, 63
      %v4552 = vpop.permute.xlu0 %4551
      %4553 = vrot.lane.b32.xlu0 %v4292, 63
      %v4554 = vpop.permute.xlu0 %4553
      %4555 = vrot.lane.b32.xlu0 %v4296, 63
      %v4556 = vpop.permute.xlu0 %4555
      %4557 = vrot.lane.b32.xlu0 %v4293, 63
      %v4558 = vpop.permute.xlu0 %4557
      %4559 = vrot.lane.b32.xlu0 %v4297, 63
      %v4560 = vpop.permute.xlu0 %4559
      %4561 = vrot.lane.b32.xlu0 %v4294, 63
      %v4562 = vpop.permute.xlu0 %4561
      %4563 = vrot.lane.b32.xlu0 %v4298, 63
      %v4564 = vpop.permute.xlu0 %4563
      %v4565 = vsel %vm843, %v4558, %v4562
      %v4566 = vsel %vm843, %v4560, %v4564
      %v4567 = vsel %vm843, %v4554, %v4558
      %v4568 = vsel %vm843, %v4556, %v4560
      %v4569 = vsel %vm843, %v4550, %v4554
      %v4570 = vsel %vm843, %v4552, %v4556
      %v4571 = vsel %vm843, %v4562, %v4550
      %v4572 = vsel %vm843, %v4564, %v4552
      %v4573 = vld [vmem:[%s852] ss:$8 sm:$0xf]
      %v4575 = vperm.slane %v4573, 0
      %v4576 = vperm.slane %v4573, 1
      %v4577 = vperm.slane %v4573, 2
      %v4578 = vperm.slane %v4573, 3
      %v4583 = vmul.f32 %v4571, %v4575
      %v4584 = vmul.f32 %v4569, %v4576
      %v4585 = vmul.f32 %v4567, %v4577
      %v4586 = vmul.f32 %v4565, %v4578
      %v4587 = vmul.f32 %v4572, %v4575
      %v4588 = vmul.f32 %v4570, %v4576
      %v4589 = vmul.f32 %v4568, %v4577
      %v4590 = vmul.f32 %v4566, %v4578
      %v4591 = vpack.c.bf16 %v4584, %v4583
      %v4592 = vpack.c.bf16 %v4586, %v4585
      %v4593 = vpack.c.bf16 %v4588, %v4587
      %v4594 = vpack.c.bf16 %v4590, %v4589
      %4595 = vst [vmem:[#allocation2 + $0xa0] sm:$0xff] %v4591
      %4596 = vst [vmem:[#allocation2 + $0xa8] sm:$0xff] %v4592
      %4597 = vst [vmem:[#allocation2 + $0xb0] sm:$0xff] %v4593
      %4598 = vst [vmem:[#allocation2 + $0xb8] sm:$0xff] %v4594
      %4599 = vrot.lane.b32.xlu0 %v4291, 57
      %v4600 = vpop.permute.xlu0 %4599
      %4601 = vrot.lane.b32.xlu0 %v4295, 57
      %v4602 = vpop.permute.xlu0 %4601
      %4603 = vrot.lane.b32.xlu0 %v4292, 57
      %v4604 = vpop.permute.xlu0 %4603
      %4605 = vrot.lane.b32.xlu0 %v4296, 57
      %v4606 = vpop.permute.xlu0 %4605
      %4607 = vrot.lane.b32.xlu0 %v4293, 57
      %v4608 = vpop.permute.xlu0 %4607
      %4609 = vrot.lane.b32.xlu0 %v4297, 57
      %v4610 = vpop.permute.xlu0 %4609
      %4611 = vrot.lane.b32.xlu0 %v4294, 57
      %v4612 = vpop.permute.xlu0 %4611
      %4613 = vrot.lane.b32.xlu0 %v4298, 57
      %v4614 = vpop.permute.xlu0 %4613
      %v4615 = vsel %vm945, %v4608, %v4612
      %v4616 = vsel %vm945, %v4610, %v4614
      %v4617 = vsel %vm945, %v4604, %v4608
      %v4618 = vsel %vm945, %v4606, %v4610
      %v4619 = vsel %vm945, %v4600, %v4604
      %v4620 = vsel %vm945, %v4602, %v4606
      %v4621 = vsel %vm945, %v4612, %v4600
      %v4622 = vsel %vm945, %v4614, %v4602
      %v4623 = vld [vmem:[%s954] ss:$8 sm:$0xf]
      %v4625 = vperm.slane %v4623, 0
      %v4626 = vperm.slane %v4623, 1
      %v4627 = vperm.slane %v4623, 2
      %v4628 = vperm.slane %v4623, 3
      %v4633 = vmul.f32 %v4621, %v4625
      %v4634 = vmul.f32 %v4619, %v4626
      %v4635 = vmul.f32 %v4617, %v4627
      %v4636 = vmul.f32 %v4615, %v4628
      %v4637 = vmul.f32 %v4622, %v4625
      %v4638 = vmul.f32 %v4620, %v4626
      %v4639 = vmul.f32 %v4618, %v4627
      %v4640 = vmul.f32 %v4616, %v4628
      %v4641 = vpack.c.bf16 %v4634, %v4633
      %v4642 = vpack.c.bf16 %v4636, %v4635
      %v4643 = vpack.c.bf16 %v4638, %v4637
      %v4644 = vpack.c.bf16 %v4640, %v4639
      %4645 = vst [vmem:[#allocation2 + $0xc0] sm:$0xff] %v4641
      %4646 = vst [vmem:[#allocation2 + $0xc8] sm:$0xff] %v4642
      %4647 = vst [vmem:[#allocation2 + $0xd0] sm:$0xff] %v4643
      %4648 = vst [vmem:[#allocation2 + $0xd8] sm:$0xff] %v4644
      %4649 = vrot.lane.b32.xlu0 %v4291, 56
      %v4650 = vpop.permute.xlu0 %4649
      %4651 = vrot.lane.b32.xlu0 %v4295, 56
      %v4652 = vpop.permute.xlu0 %4651
      %4653 = vrot.lane.b32.xlu0 %v4292, 56
      %v4654 = vpop.permute.xlu0 %4653
      %4655 = vrot.lane.b32.xlu0 %v4296, 56
      %v4656 = vpop.permute.xlu0 %4655
      %4657 = vrot.lane.b32.xlu0 %v4293, 56
      %v4658 = vpop.permute.xlu0 %4657
      %4659 = vrot.lane.b32.xlu0 %v4297, 56
      %v4660 = vpop.permute.xlu0 %4659
      %4661 = vrot.lane.b32.xlu0 %v4294, 56
      %v4662 = vpop.permute.xlu0 %4661
      %4663 = vrot.lane.b32.xlu0 %v4298, 56
      %v4664 = vpop.permute.xlu0 %4663
      %v4665 = vsel %vm1047, %v4658, %v4662
      %v4666 = vsel %vm1047, %v4660, %v4664
      %v4667 = vsel %vm1047, %v4654, %v4658
      %v4668 = vsel %vm1047, %v4656, %v4660
      %v4669 = vsel %vm1047, %v4650, %v4654
      %v4670 = vsel %vm1047, %v4652, %v4656
      %v4671 = vsel %vm1047, %v4662, %v4650
      %v4672 = vsel %vm1047, %v4664, %v4652
      %v4673 = vld [vmem:[%s1056] ss:$8 sm:$0xf]
      %v4675 = vperm.slane %v4673, 0
      %v4676 = vperm.slane %v4673, 1
      %v4677 = vperm.slane %v4673, 2
      %v4678 = vperm.slane %v4673, 3
      %v4683 = vmul.f32 %v4671, %v4675
      %v4684 = vmul.f32 %v4669, %v4676
      %v4685 = vmul.f32 %v4667, %v4677
      %v4686 = vmul.f32 %v4665, %v4678
      %v4687 = vmul.f32 %v4672, %v4675
      %v4688 = vmul.f32 %v4670, %v4676
      %v4689 = vmul.f32 %v4668, %v4677
      %v4690 = vmul.f32 %v4666, %v4678
      %v4691 = vpack.c.bf16 %v4684, %v4683
      %v4692 = vpack.c.bf16 %v4686, %v4685
      %v4693 = vpack.c.bf16 %v4688, %v4687
      %v4694 = vpack.c.bf16 %v4690, %v4689
      %4695 = vst [vmem:[#allocation2 + $0xe0] sm:$0xff] %v4691
      %4696 = vst [vmem:[#allocation2 + $0xe8] sm:$0xff] %v4692
      %4697 = vst [vmem:[#allocation2 + $0xf0] sm:$0xff] %v4693
      %4698 = vst [vmem:[#allocation2 + $0xf8] sm:$0xff] %v4694
      %4699 = vrot.lane.b32.xlu0 %v4291, 55
      %v4700 = vpop.permute.xlu0 %4699
      %4701 = vrot.lane.b32.xlu0 %v4295, 55
      %v4702 = vpop.permute.xlu0 %4701
      %4703 = vrot.lane.b32.xlu0 %v4292, 55
      %v4704 = vpop.permute.xlu0 %4703
      %4705 = vrot.lane.b32.xlu0 %v4296, 55
      %v4706 = vpop.permute.xlu0 %4705
      %4707 = vrot.lane.b32.xlu0 %v4293, 55
      %v4708 = vpop.permute.xlu0 %4707
      %4709 = vrot.lane.b32.xlu0 %v4297, 55
      %v4710 = vpop.permute.xlu0 %4709
      %4711 = vrot.lane.b32.xlu0 %v4294, 55
      %v4712 = vpop.permute.xlu0 %4711
      %4713 = vrot.lane.b32.xlu0 %v4298, 55
      %v4714 = vpop.permute.xlu0 %4713
      %v4715 = vsel %vm1149, %v4708, %v4712
      %v4716 = vsel %vm1149, %v4710, %v4714
      %v4717 = vsel %vm1149, %v4704, %v4708
      %v4718 = vsel %vm1149, %v4706, %v4710
      %v4719 = vsel %vm1149, %v4700, %v4704
      %v4720 = vsel %vm1149, %v4702, %v4706
      %v4721 = vsel %vm1149, %v4712, %v4700
      %v4722 = vsel %vm1149, %v4714, %v4702
      %v4723 = vld [vmem:[%s1158] ss:$8 sm:$0xf]
      %v4725 = vperm.slane %v4723, 0
      %v4726 = vperm.slane %v4723, 1
      %v4727 = vperm.slane %v4723, 2
      %v4728 = vperm.slane %v4723, 3
      %v4733 = vmul.f32 %v4721, %v4725
      %v4734 = vmul.f32 %v4719, %v4726
      %v4735 = vmul.f32 %v4717, %v4727
      %v4736 = vmul.f32 %v4715, %v4728
      %v4737 = vmul.f32 %v4722, %v4725
      %v4738 = vmul.f32 %v4720, %v4726
      %v4739 = vmul.f32 %v4718, %v4727
      %v4740 = vmul.f32 %v4716, %v4728
      %v4741 = vpack.c.bf16 %v4734, %v4733
      %v4742 = vpack.c.bf16 %v4736, %v4735
      %v4743 = vpack.c.bf16 %v4738, %v4737
      %v4744 = vpack.c.bf16 %v4740, %v4739
      %4745 = vst [vmem:[#allocation2 + $0x100] sm:$0xff] %v4741
      %4746 = vst [vmem:[#allocation2 + $0x108] sm:$0xff] %v4742
      %4747 = vst [vmem:[#allocation2 + $0x110] sm:$0xff] %v4743
      %4748 = vst [vmem:[#allocation2 + $0x118] sm:$0xff] %v4744
      %4749 = vrot.lane.b32.xlu0 %v4291, 9
      %v4750 = vpop.permute.xlu0 %4749
      %4751 = vrot.lane.b32.xlu0 %v4295, 9
      %v4752 = vpop.permute.xlu0 %4751
      %4753 = vrot.lane.b32.xlu0 %v4292, 9
      %v4754 = vpop.permute.xlu0 %4753
      %4755 = vrot.lane.b32.xlu0 %v4296, 9
      %v4756 = vpop.permute.xlu0 %4755
      %4757 = vrot.lane.b32.xlu0 %v4293, 9
      %v4758 = vpop.permute.xlu0 %4757
      %4759 = vrot.lane.b32.xlu0 %v4297, 9
      %v4760 = vpop.permute.xlu0 %4759
      %4761 = vrot.lane.b32.xlu0 %v4294, 9
      %v4762 = vpop.permute.xlu0 %4761
      %4763 = vrot.lane.b32.xlu0 %v4298, 9
      %v4764 = vpop.permute.xlu0 %4763
      %v4765 = vsel %vm1251, %v4758, %v4762
      %v4766 = vsel %vm1251, %v4760, %v4764
      %v4767 = vsel %vm1251, %v4754, %v4758
      %v4768 = vsel %vm1251, %v4756, %v4760
      %v4769 = vsel %vm1251, %v4750, %v4754
      %v4770 = vsel %vm1251, %v4752, %v4756
      %v4771 = vsel %vm1251, %v4762, %v4750
      %v4772 = vsel %vm1251, %v4764, %v4752
      %v4773 = vld [vmem:[%s1260] ss:$8 sm:$0xf]
      %v4775 = vperm.slane %v4773, 0
      %v4776 = vperm.slane %v4773, 1
      %v4777 = vperm.slane %v4773, 2
      %v4778 = vperm.slane %v4773, 3
      %v4783 = vmul.f32 %v4771, %v4775
      %v4784 = vmul.f32 %v4769, %v4776
      %v4785 = vmul.f32 %v4767, %v4777
      %v4786 = vmul.f32 %v4765, %v4778
      %v4787 = vmul.f32 %v4772, %v4775
      %v4788 = vmul.f32 %v4770, %v4776
      %v4789 = vmul.f32 %v4768, %v4777
      %v4790 = vmul.f32 %v4766, %v4778
      %v4791 = vpack.c.bf16 %v4784, %v4783
      %v4792 = vpack.c.bf16 %v4786, %v4785
      %v4793 = vpack.c.bf16 %v4788, %v4787
      %v4794 = vpack.c.bf16 %v4790, %v4789
      %4795 = vst [vmem:[#allocation2 + $0x120] sm:$0xff] %v4791
      %4796 = vst [vmem:[#allocation2 + $0x128] sm:$0xff] %v4792
      %4797 = vst [vmem:[#allocation2 + $0x130] sm:$0xff] %v4793
      %4798 = vst [vmem:[#allocation2 + $0x138] sm:$0xff] %v4794
      %4799 = vrot.lane.b32.xlu0 %v4291, 8
      %v4800 = vpop.permute.xlu0 %4799
      %4801 = vrot.lane.b32.xlu0 %v4295, 8
      %v4802 = vpop.permute.xlu0 %4801
      %4803 = vrot.lane.b32.xlu0 %v4292, 8
      %v4804 = vpop.permute.xlu0 %4803
      %4805 = vrot.lane.b32.xlu0 %v4296, 8
      %v4806 = vpop.permute.xlu0 %4805
      %4807 = vrot.lane.b32.xlu0 %v4293, 8
      %v4808 = vpop.permute.xlu0 %4807
      %4809 = vrot.lane.b32.xlu0 %v4297, 8
      %v4810 = vpop.permute.xlu0 %4809
      %4811 = vrot.lane.b32.xlu0 %v4294, 8
      %v4812 = vpop.permute.xlu0 %4811
      %4813 = vrot.lane.b32.xlu0 %v4298, 8
      %v4814 = vpop.permute.xlu0 %4813
      %v4815 = vsel %vm1353, %v4808, %v4812
      %v4816 = vsel %vm1353, %v4810, %v4814
      %v4817 = vsel %vm1353, %v4804, %v4808
      %v4818 = vsel %vm1353, %v4806, %v4810
      %v4819 = vsel %vm1353, %v4800, %v4804
      %v4820 = vsel %vm1353, %v4802, %v4806
      %v4821 = vsel %vm1353, %v4812, %v4800
      %v4822 = vsel %vm1353, %v4814, %v4802
      %v4823 = vld [vmem:[%s1362] ss:$8 sm:$0xf]
      %v4825 = vperm.slane %v4823, 0
      %v4826 = vperm.slane %v4823, 1
      %v4827 = vperm.slane %v4823, 2
      %v4828 = vperm.slane %v4823, 3
      %v4833 = vmul.f32 %v4821, %v4825
      %v4834 = vmul.f32 %v4819, %v4826
      %v4835 = vmul.f32 %v4817, %v4827
      %v4836 = vmul.f32 %v4815, %v4828
      %v4837 = vmul.f32 %v4822, %v4825
      %v4838 = vmul.f32 %v4820, %v4826
      %v4839 = vmul.f32 %v4818, %v4827
      %v4840 = vmul.f32 %v4816, %v4828
      %v4841 = vpack.c.bf16 %v4834, %v4833
      %v4842 = vpack.c.bf16 %v4836, %v4835
      %v4843 = vpack.c.bf16 %v4838, %v4837
      %v4844 = vpack.c.bf16 %v4840, %v4839
      %4845 = vst [vmem:[#allocation2 + $0x140] sm:$0xff] %v4841
      %4846 = vst [vmem:[#allocation2 + $0x148] sm:$0xff] %v4842
      %4847 = vst [vmem:[#allocation2 + $0x150] sm:$0xff] %v4843
      %4848 = vst [vmem:[#allocation2 + $0x158] sm:$0xff] %v4844
      %4849 = vrot.lane.b32.xlu0 %v4291, 7
      %v4850 = vpop.permute.xlu0 %4849
      %4851 = vrot.lane.b32.xlu0 %v4295, 7
      %v4852 = vpop.permute.xlu0 %4851
      %4853 = vrot.lane.b32.xlu0 %v4292, 7
      %v4854 = vpop.permute.xlu0 %4853
      %4855 = vrot.lane.b32.xlu0 %v4296, 7
      %v4856 = vpop.permute.xlu0 %4855
      %4857 = vrot.lane.b32.xlu0 %v4293, 7
      %v4858 = vpop.permute.xlu0 %4857
      %4859 = vrot.lane.b32.xlu0 %v4297, 7
      %v4860 = vpop.permute.xlu0 %4859
      %4861 = vrot.lane.b32.xlu0 %v4294, 7
      %v4862 = vpop.permute.xlu0 %4861
      %4863 = vrot.lane.b32.xlu0 %v4298, 7
      %v4864 = vpop.permute.xlu0 %4863
      %v4865 = vsel %vm1455, %v4858, %v4862
      %v4866 = vsel %vm1455, %v4860, %v4864
      %v4867 = vsel %vm1455, %v4854, %v4858
      %v4868 = vsel %vm1455, %v4856, %v4860
      %v4869 = vsel %vm1455, %v4850, %v4854
      %v4870 = vsel %vm1455, %v4852, %v4856
      %v4871 = vsel %vm1455, %v4862, %v4850
      %v4872 = vsel %vm1455, %v4864, %v4852
      %v4873 = vld [vmem:[%s1464] ss:$8 sm:$0xf]
      %v4875 = vperm.slane %v4873, 0
      %v4876 = vperm.slane %v4873, 1
      %v4877 = vperm.slane %v4873, 2
      %v4878 = vperm.slane %v4873, 3
      %v4883 = vmul.f32 %v4871, %v4875
      %v4884 = vmul.f32 %v4869, %v4876
      %v4885 = vmul.f32 %v4867, %v4877
      %v4886 = vmul.f32 %v4865, %v4878
      %v4887 = vmul.f32 %v4872, %v4875
      %v4888 = vmul.f32 %v4870, %v4876
      %v4889 = vmul.f32 %v4868, %v4877
      %v4890 = vmul.f32 %v4866, %v4878
      %v4891 = vpack.c.bf16 %v4884, %v4883
      %v4892 = vpack.c.bf16 %v4886, %v4885
      %v4893 = vpack.c.bf16 %v4888, %v4887
      %v4894 = vpack.c.bf16 %v4890, %v4889
      %4895 = vst [vmem:[#allocation2 + $0x160] sm:$0xff] %v4891
      %4896 = vst [vmem:[#allocation2 + $0x168] sm:$0xff] %v4892
      %4897 = vst [vmem:[#allocation2 + $0x170] sm:$0xff] %v4893
      %4898 = vst [vmem:[#allocation2 + $0x178] sm:$0xff] %v4894
      %4899 = vrot.lane.b32.xlu0 %v4291, 1
      %v4900 = vpop.permute.xlu0 %4899
      %4901 = vrot.lane.b32.xlu0 %v4295, 1
      %v4902 = vpop.permute.xlu0 %4901
      %4903 = vrot.lane.b32.xlu0 %v4292, 1
      %v4904 = vpop.permute.xlu0 %4903
      %4905 = vrot.lane.b32.xlu0 %v4296, 1
      %v4906 = vpop.permute.xlu0 %4905
      %4907 = vrot.lane.b32.xlu0 %v4293, 1
      %v4908 = vpop.permute.xlu0 %4907
      %4909 = vrot.lane.b32.xlu0 %v4297, 1
      %v4910 = vpop.permute.xlu0 %4909
      %4911 = vrot.lane.b32.xlu0 %v4294, 1
      %v4912 = vpop.permute.xlu0 %4911
      %4913 = vrot.lane.b32.xlu0 %v4298, 1
      %v4914 = vpop.permute.xlu0 %4913
      %v4915 = vsel %vm1557, %v4908, %v4912
      %v4916 = vsel %vm1557, %v4910, %v4914
      %v4917 = vsel %vm1557, %v4904, %v4908
      %v4918 = vsel %vm1557, %v4906, %v4910
      %v4919 = vsel %vm1557, %v4900, %v4904
      %v4920 = vsel %vm1557, %v4902, %v4906
      %v4921 = vsel %vm1557, %v4912, %v4900
      %v4922 = vsel %vm1557, %v4914, %v4902
      %v4923 = vld [vmem:[%s1566] ss:$8 sm:$0xf]
      %v4925 = vperm.slane %v4923, 0
      %v4926 = vperm.slane %v4923, 1
      %v4927 = vperm.slane %v4923, 2
      %v4928 = vperm.slane %v4923, 3
      %v4933 = vmul.f32 %v4921, %v4925
      %v4934 = vmul.f32 %v4919, %v4926
      %v4935 = vmul.f32 %v4917, %v4927
      %v4936 = vmul.f32 %v4915, %v4928
      %v4937 = vmul.f32 %v4922, %v4925
      %v4938 = vmul.f32 %v4920, %v4926
      %v4939 = vmul.f32 %v4918, %v4927
      %v4940 = vmul.f32 %v4916, %v4928
      %v4941 = vpack.c.bf16 %v4934, %v4933
      %v4942 = vpack.c.bf16 %v4936, %v4935
      %v4943 = vpack.c.bf16 %v4938, %v4937
      %v4944 = vpack.c.bf16 %v4940, %v4939
      %4945 = vst [vmem:[#allocation2 + $0x180] sm:$0xff] %v4941
      %4946 = vst [vmem:[#allocation2 + $0x188] sm:$0xff] %v4942
      %4947 = vst [vmem:[#allocation2 + $0x190] sm:$0xff] %v4943
      %4948 = vst [vmem:[#allocation2 + $0x198] sm:$0xff] %v4944
      %v4949 = vpack.c.bf16 %v4292, %v4291
      %v4950 = vpack.c.bf16 %v4294, %v4293
      %v4951 = vpack.c.bf16 %v4296, %v4295
      %v4952 = vpack.c.bf16 %v4298, %v4297
      %4953 = vst [vmem:[#allocation2 + $0x1a0] sm:$0xff] %v4949
      %4954 = vst [vmem:[#allocation2 + $0x1a8] sm:$0xff] %v4950
      %4955 = vst [vmem:[#allocation2 + $0x1b0] sm:$0xff] %v4951
      %4956 = vst [vmem:[#allocation2 + $0x1b8] sm:$0xff] %v4952
      %4957 = vrot.lane.b32.xlu0 %v4291, 127
      %v4958 = vpop.permute.xlu0 %4957
      %4959 = vrot.lane.b32.xlu0 %v4295, 127
      %v4960 = vpop.permute.xlu0 %4959
      %4961 = vrot.lane.b32.xlu0 %v4292, 127
      %v4962 = vpop.permute.xlu0 %4961
      %4963 = vrot.lane.b32.xlu0 %v4296, 127
      %v4964 = vpop.permute.xlu0 %4963
      %4965 = vrot.lane.b32.xlu0 %v4293, 127
      %v4966 = vpop.permute.xlu0 %4965
      %4967 = vrot.lane.b32.xlu0 %v4297, 127
      %v4968 = vpop.permute.xlu0 %4967
      %4969 = vrot.lane.b32.xlu0 %v4294, 127
      %v4970 = vpop.permute.xlu0 %4969
      %4971 = vrot.lane.b32.xlu0 %v4298, 127
      %v4972 = vpop.permute.xlu0 %4971
      %v4973 = vsel %vm1675, %v4966, %v4970
      %v4974 = vsel %vm1675, %v4968, %v4972
      %v4975 = vsel %vm1675, %v4962, %v4966
      %v4976 = vsel %vm1675, %v4964, %v4968
      %v4977 = vsel %vm1675, %v4958, %v4962
      %v4978 = vsel %vm1675, %v4960, %v4964
      %v4979 = vsel %vm1675, %v4970, %v4958
      %v4980 = vsel %vm1675, %v4972, %v4960
      %v4981 = vld [vmem:[%s1684] ss:$8 sm:$0xf]
      %v4983 = vperm.slane %v4981, 0
      %v4984 = vperm.slane %v4981, 1
      %v4985 = vperm.slane %v4981, 2
      %v4986 = vperm.slane %v4981, 3
      %v4991 = vmul.f32 %v4977, %v4983
      %v4992 = vmul.f32 %v4975, %v4984
      %v4993 = vmul.f32 %v4973, %v4985
      %v4994 = vmul.f32 %v4979, %v4986
      %v4995 = vmul.f32 %v4978, %v4983
      %v4996 = vmul.f32 %v4976, %v4984
      %v4997 = vmul.f32 %v4974, %v4985
      %v4998 = vmul.f32 %v4980, %v4986
      %v4999 = vpack.c.bf16 %v4992, %v4991
      %v5000 = vpack.c.bf16 %v4994, %v4993
      %v5001 = vpack.c.bf16 %v4996, %v4995
      %v5002 = vpack.c.bf16 %v4998, %v4997
      %5003 = vst [vmem:[#allocation2 + $0x1c0] sm:$0xff] %v4999
      %5004 = vst [vmem:[#allocation2 + $0x1c8] sm:$0xff] %v5000
      %5005 = vst [vmem:[#allocation2 + $0x1d0] sm:$0xff] %v5001
      %5006 = vst [vmem:[#allocation2 + $0x1d8] sm:$0xff] %v5002
      %5007 = vrot.lane.b32.xlu0 %v4291, 121
      %v5008 = vpop.permute.xlu0 %5007
      %5009 = vrot.lane.b32.xlu0 %v4295, 121
      %v5010 = vpop.permute.xlu0 %5009
      %5011 = vrot.lane.b32.xlu0 %v4292, 121
      %v5012 = vpop.permute.xlu0 %5011
      %5013 = vrot.lane.b32.xlu0 %v4296, 121
      %v5014 = vpop.permute.xlu0 %5013
      %5015 = vrot.lane.b32.xlu0 %v4293, 121
      %v5016 = vpop.permute.xlu0 %5015
      %5017 = vrot.lane.b32.xlu0 %v4297, 121
      %v5018 = vpop.permute.xlu0 %5017
      %5019 = vrot.lane.b32.xlu0 %v4294, 121
      %v5020 = vpop.permute.xlu0 %5019
      %5021 = vrot.lane.b32.xlu0 %v4298, 121
      %v5022 = vpop.permute.xlu0 %5021
      %v5023 = vsel %vm1777, %v5016, %v5020
      %v5024 = vsel %vm1777, %v5018, %v5022
      %v5025 = vsel %vm1777, %v5012, %v5016
      %v5026 = vsel %vm1777, %v5014, %v5018
      %v5027 = vsel %vm1777, %v5008, %v5012
      %v5028 = vsel %vm1777, %v5010, %v5014
      %v5029 = vsel %vm1777, %v5020, %v5008
      %v5030 = vsel %vm1777, %v5022, %v5010
      %v5031 = vld [vmem:[%s1786] ss:$8 sm:$0xf]
      %v5033 = vperm.slane %v5031, 0
      %v5034 = vperm.slane %v5031, 1
      %v5035 = vperm.slane %v5031, 2
      %v5036 = vperm.slane %v5031, 3
      %v5041 = vmul.f32 %v5027, %v5033
      %v5042 = vmul.f32 %v5025, %v5034
      %v5043 = vmul.f32 %v5023, %v5035
      %v5044 = vmul.f32 %v5029, %v5036
      %v5045 = vmul.f32 %v5028, %v5033
      %v5046 = vmul.f32 %v5026, %v5034
      %v5047 = vmul.f32 %v5024, %v5035
      %v5048 = vmul.f32 %v5030, %v5036
      %v5049 = vpack.c.bf16 %v5042, %v5041
      %v5050 = vpack.c.bf16 %v5044, %v5043
      %v5051 = vpack.c.bf16 %v5046, %v5045
      %v5052 = vpack.c.bf16 %v5048, %v5047
      %5053 = vst [vmem:[#allocation2 + $0x1e0] sm:$0xff] %v5049
      %5054 = vst [vmem:[#allocation2 + $0x1e8] sm:$0xff] %v5050
      %5055 = vst [vmem:[#allocation2 + $0x1f0] sm:$0xff] %v5051
      %5056 = vst [vmem:[#allocation2 + $0x1f8] sm:$0xff] %v5052
      %5057 = vrot.lane.b32.xlu0 %v4291, 120
      %v5058 = vpop.permute.xlu0 %5057
      %5059 = vrot.lane.b32.xlu0 %v4295, 120
      %v5060 = vpop.permute.xlu0 %5059
      %5061 = vrot.lane.b32.xlu0 %v4292, 120
      %v5062 = vpop.permute.xlu0 %5061
      %5063 = vrot.lane.b32.xlu0 %v4296, 120
      %v5064 = vpop.permute.xlu0 %5063
      %5065 = vrot.lane.b32.xlu0 %v4293, 120
      %v5066 = vpop.permute.xlu0 %5065
      %5067 = vrot.lane.b32.xlu0 %v4297, 120
      %v5068 = vpop.permute.xlu0 %5067
      %5069 = vrot.lane.b32.xlu0 %v4294, 120
      %v5070 = vpop.permute.xlu0 %5069
      %5071 = vrot.lane.b32.xlu0 %v4298, 120
      %v5072 = vpop.permute.xlu0 %5071
      %v5073 = vsel %vm1879, %v5066, %v5070
      %v5074 = vsel %vm1879, %v5068, %v5072
      %v5075 = vsel %vm1879, %v5062, %v5066
      %v5076 = vsel %vm1879, %v5064, %v5068
      %v5077 = vsel %vm1879, %v5058, %v5062
      %v5078 = vsel %vm1879, %v5060, %v5064
      %v5079 = vsel %vm1879, %v5070, %v5058
      %v5080 = vsel %vm1879, %v5072, %v5060
      %v5081 = vld [vmem:[%s1888] ss:$8 sm:$0xf]
      %v5083 = vperm.slane %v5081, 0
      %v5084 = vperm.slane %v5081, 1
      %v5085 = vperm.slane %v5081, 2
      %v5086 = vperm.slane %v5081, 3
      %v5091 = vmul.f32 %v5077, %v5083
      %v5092 = vmul.f32 %v5075, %v5084
      %v5093 = vmul.f32 %v5073, %v5085
      %v5094 = vmul.f32 %v5079, %v5086
      %v5095 = vmul.f32 %v5078, %v5083
      %v5096 = vmul.f32 %v5076, %v5084
      %v5097 = vmul.f32 %v5074, %v5085
      %v5098 = vmul.f32 %v5080, %v5086
      %v5099 = vpack.c.bf16 %v5092, %v5091
      %v5100 = vpack.c.bf16 %v5094, %v5093
      %v5101 = vpack.c.bf16 %v5096, %v5095
      %v5102 = vpack.c.bf16 %v5098, %v5097
      %5103 = vst [vmem:[#allocation2 + $0x200] sm:$0xff] %v5099
      %5104 = vst [vmem:[#allocation2 + $0x208] sm:$0xff] %v5100
      %5105 = vst [vmem:[#allocation2 + $0x210] sm:$0xff] %v5101
      %5106 = vst [vmem:[#allocation2 + $0x218] sm:$0xff] %v5102
      %5107 = vrot.lane.b32.xlu0 %v4291, 119
      %v5108 = vpop.permute.xlu0 %5107
      %5109 = vrot.lane.b32.xlu0 %v4295, 119
      %v5110 = vpop.permute.xlu0 %5109
      %5111 = vrot.lane.b32.xlu0 %v4292, 119
      %v5112 = vpop.permute.xlu0 %5111
      %5113 = vrot.lane.b32.xlu0 %v4296, 119
      %v5114 = vpop.permute.xlu0 %5113
      %5115 = vrot.lane.b32.xlu0 %v4293, 119
      %v5116 = vpop.permute.xlu0 %5115
      %5117 = vrot.lane.b32.xlu0 %v4297, 119
      %v5118 = vpop.permute.xlu0 %5117
      %5119 = vrot.lane.b32.xlu0 %v4294, 119
      %v5120 = vpop.permute.xlu0 %5119
      %5121 = vrot.lane.b32.xlu0 %v4298, 119
      %v5122 = vpop.permute.xlu0 %5121
      %v5123 = vsel %vm1981, %v5116, %v5120
      %v5124 = vsel %vm1981, %v5118, %v5122
      %v5125 = vsel %vm1981, %v5112, %v5116
      %v5126 = vsel %vm1981, %v5114, %v5118
      %v5127 = vsel %vm1981, %v5108, %v5112
      %v5128 = vsel %vm1981, %v5110, %v5114
      %v5129 = vsel %vm1981, %v5120, %v5108
      %v5130 = vsel %vm1981, %v5122, %v5110
      %v5131 = vld [vmem:[%s1990] ss:$8 sm:$0xf]
      %v5133 = vperm.slane %v5131, 0
      %v5134 = vperm.slane %v5131, 1
      %v5135 = vperm.slane %v5131, 2
      %v5136 = vperm.slane %v5131, 3
      %v5141 = vmul.f32 %v5127, %v5133
      %v5142 = vmul.f32 %v5125, %v5134
      %v5143 = vmul.f32 %v5123, %v5135
      %v5144 = vmul.f32 %v5129, %v5136
      %v5145 = vmul.f32 %v5128, %v5133
      %v5146 = vmul.f32 %v5126, %v5134
      %v5147 = vmul.f32 %v5124, %v5135
      %v5148 = vmul.f32 %v5130, %v5136
      %v5149 = vpack.c.bf16 %v5142, %v5141
      %v5150 = vpack.c.bf16 %v5144, %v5143
      %v5151 = vpack.c.bf16 %v5146, %v5145
      %v5152 = vpack.c.bf16 %v5148, %v5147
      %5153 = vst [vmem:[#allocation2 + $0x220] sm:$0xff] %v5149
      %5154 = vst [vmem:[#allocation2 + $0x228] sm:$0xff] %v5150
      %5155 = vst [vmem:[#allocation2 + $0x230] sm:$0xff] %v5151
      %5156 = vst [vmem:[#allocation2 + $0x238] sm:$0xff] %v5152
      %v5157 = vld [vmem:[%s2067] ss:$8 sm:$0xf]
      %v5159 = vperm.slane %v5157, 0
      %v5160 = vperm.slane %v5157, 1
      %v5161 = vperm.slane %v5157, 2
      %v5162 = vperm.slane %v5157, 3
      %v5167 = vmul.f32 %v4319, %v5159
      %v5168 = vmul.f32 %v4317, %v5160
      %v5169 = vmul.f32 %v4315, %v5161
      %v5170 = vmul.f32 %v4321, %v5162
      %v5171 = vmul.f32 %v4320, %v5159
      %v5172 = vmul.f32 %v4318, %v5160
      %v5173 = vmul.f32 %v4316, %v5161
      %v5174 = vmul.f32 %v4322, %v5162
      %v5175 = vpack.c.bf16 %v5168, %v5167
      %v5176 = vpack.c.bf16 %v5170, %v5169
      %v5177 = vpack.c.bf16 %v5172, %v5171
      %v5178 = vpack.c.bf16 %v5174, %v5173
      %5179 = vst [vmem:[#allocation2 + $0x240] sm:$0xff] %v5175
      %5180 = vst [vmem:[#allocation2 + $0x248] sm:$0xff] %v5176
      %5181 = vst [vmem:[#allocation2 + $0x250] sm:$0xff] %v5177
      %5182 = vst [vmem:[#allocation2 + $0x258] sm:$0xff] %v5178
      %v5183 = vld [vmem:[%s2120] ss:$8 sm:$0xf]
      %v5185 = vperm.slane %v5183, 0
      %v5186 = vperm.slane %v5183, 1
      %v5187 = vperm.slane %v5183, 2
      %v5188 = vperm.slane %v5183, 3
      %v5193 = vmul.f32 %v4369, %v5185
      %v5194 = vmul.f32 %v4367, %v5186
      %v5195 = vmul.f32 %v4365, %v5187
      %v5196 = vmul.f32 %v4371, %v5188
      %v5197 = vmul.f32 %v4370, %v5185
      %v5198 = vmul.f32 %v4368, %v5186
      %v5199 = vmul.f32 %v4366, %v5187
      %v5200 = vmul.f32 %v4372, %v5188
      %v5201 = vpack.c.bf16 %v5194, %v5193
      %v5202 = vpack.c.bf16 %v5196, %v5195
      %v5203 = vpack.c.bf16 %v5198, %v5197
      %v5204 = vpack.c.bf16 %v5200, %v5199
      %5205 = vst [vmem:[#allocation2 + $0x260] sm:$0xff] %v5201
      %5206 = vst [vmem:[#allocation2 + $0x268] sm:$0xff] %v5202
      %5207 = vst [vmem:[#allocation2 + $0x270] sm:$0xff] %v5203
      %5208 = vst [vmem:[#allocation2 + $0x278] sm:$0xff] %v5204
      %v5209 = vld [vmem:[%s2173] ss:$8 sm:$0xf]
      %v5211 = vperm.slane %v5209, 0
      %v5212 = vperm.slane %v5209, 1
      %v5213 = vperm.slane %v5209, 2
      %v5214 = vperm.slane %v5209, 3
      %v5219 = vmul.f32 %v4419, %v5211
      %v5220 = vmul.f32 %v4417, %v5212
      %v5221 = vmul.f32 %v4415, %v5213
      %v5222 = vmul.f32 %v4421, %v5214
      %v5223 = vmul.f32 %v4420, %v5211
      %v5224 = vmul.f32 %v4418, %v5212
      %v5225 = vmul.f32 %v4416, %v5213
      %v5226 = vmul.f32 %v4422, %v5214
      %v5227 = vpack.c.bf16 %v5220, %v5219
      %v5228 = vpack.c.bf16 %v5222, %v5221
      %v5229 = vpack.c.bf16 %v5224, %v5223
      %v5230 = vpack.c.bf16 %v5226, %v5225
      %5231 = vst [vmem:[#allocation2 + $0x280] sm:$0xff] %v5227
      %5232 = vst [vmem:[#allocation2 + $0x288] sm:$0xff] %v5228
      %5233 = vst [vmem:[#allocation2 + $0x290] sm:$0xff] %v5229
      %5234 = vst [vmem:[#allocation2 + $0x298] sm:$0xff] %v5230
      %v5235 = vld [vmem:[%s2226] ss:$8 sm:$0xf]
      %v5237 = vperm.slane %v5235, 0
      %v5238 = vperm.slane %v5235, 1
      %v5239 = vperm.slane %v5235, 2
      %v5240 = vperm.slane %v5235, 3
      %v5245 = vmul.f32 %v4469, %v5237
      %v5246 = vmul.f32 %v4467, %v5238
      %v5247 = vmul.f32 %v4465, %v5239
      %v5248 = vmul.f32 %v4471, %v5240
      %v5249 = vmul.f32 %v4470, %v5237
      %v5250 = vmul.f32 %v4468, %v5238
      %v5251 = vmul.f32 %v4466, %v5239
      %v5252 = vmul.f32 %v4472, %v5240
      %v5253 = vpack.c.bf16 %v5246, %v5245
      %v5254 = vpack.c.bf16 %v5248, %v5247
      %v5255 = vpack.c.bf16 %v5250, %v5249
      %v5256 = vpack.c.bf16 %v5252, %v5251
      %5257 = vst [vmem:[#allocation2 + $0x2a0] sm:$0xff] %v5253
      %5258 = vst [vmem:[#allocation2 + $0x2a8] sm:$0xff] %v5254
      %5259 = vst [vmem:[#allocation2 + $0x2b0] sm:$0xff] %v5255
      %5260 = vst [vmem:[#allocation2 + $0x2b8] sm:$0xff] %v5256
      %v5261 = vld [vmem:[%s2279] ss:$8 sm:$0xf]
      %v5263 = vperm.slane %v5261, 0
      %v5264 = vperm.slane %v5261, 1
      %v5265 = vperm.slane %v5261, 2
      %v5266 = vperm.slane %v5261, 3
      %v5271 = vmul.f32 %v4519, %v5263
      %v5272 = vmul.f32 %v4517, %v5264
      %v5273 = vmul.f32 %v4515, %v5265
      %v5274 = vmul.f32 %v4521, %v5266
      %v5275 = vmul.f32 %v4520, %v5263
      %v5276 = vmul.f32 %v4518, %v5264
      %v5277 = vmul.f32 %v4516, %v5265
      %v5278 = vmul.f32 %v4522, %v5266
      %v5279 = vpack.c.bf16 %v5272, %v5271
      %v5280 = vpack.c.bf16 %v5274, %v5273
      %v5281 = vpack.c.bf16 %v5276, %v5275
      %v5282 = vpack.c.bf16 %v5278, %v5277
      %5283 = vst [vmem:[#allocation2 + $0x2c0] sm:$0xff] %v5279
      %5284 = vst [vmem:[#allocation2 + $0x2c8] sm:$0xff] %v5280
      %5285 = vst [vmem:[#allocation2 + $0x2d0] sm:$0xff] %v5281
      %5286 = vst [vmem:[#allocation2 + $0x2d8] sm:$0xff] %v5282
      %v5287 = vld [vmem:[%s2332] ss:$8 sm:$0xf]
      %v5289 = vperm.slane %v5287, 0
      %v5290 = vperm.slane %v5287, 1
      %v5291 = vperm.slane %v5287, 2
      %v5292 = vperm.slane %v5287, 3
      %v5297 = vmul.f32 %v4569, %v5289
      %v5298 = vmul.f32 %v4567, %v5290
      %v5299 = vmul.f32 %v4565, %v5291
      %v5300 = vmul.f32 %v4571, %v5292
      %v5301 = vmul.f32 %v4570, %v5289
      %v5302 = vmul.f32 %v4568, %v5290
      %v5303 = vmul.f32 %v4566, %v5291
      %v5304 = vmul.f32 %v4572, %v5292
      %v5305 = vpack.c.bf16 %v5298, %v5297
      %v5306 = vpack.c.bf16 %v5300, %v5299
      %v5307 = vpack.c.bf16 %v5302, %v5301
      %v5308 = vpack.c.bf16 %v5304, %v5303
      %5309 = vst [vmem:[#allocation2 + $0x2e0] sm:$0xff] %v5305
      %5310 = vst [vmem:[#allocation2 + $0x2e8] sm:$0xff] %v5306
      %5311 = vst [vmem:[#allocation2 + $0x2f0] sm:$0xff] %v5307
      %5312 = vst [vmem:[#allocation2 + $0x2f8] sm:$0xff] %v5308
      %v5313 = vld [vmem:[%s2385] ss:$8 sm:$0xf]
      %v5315 = vperm.slane %v5313, 0
      %v5316 = vperm.slane %v5313, 1
      %v5317 = vperm.slane %v5313, 2
      %v5318 = vperm.slane %v5313, 3
      %v5323 = vmul.f32 %v4619, %v5315
      %v5324 = vmul.f32 %v4617, %v5316
      %v5325 = vmul.f32 %v4615, %v5317
      %v5326 = vmul.f32 %v4621, %v5318
      %v5327 = vmul.f32 %v4620, %v5315
      %v5328 = vmul.f32 %v4618, %v5316
      %v5329 = vmul.f32 %v4616, %v5317
      %v5330 = vmul.f32 %v4622, %v5318
      %v5331 = vpack.c.bf16 %v5324, %v5323
      %v5332 = vpack.c.bf16 %v5326, %v5325
      %v5333 = vpack.c.bf16 %v5328, %v5327
      %v5334 = vpack.c.bf16 %v5330, %v5329
      %5335 = vst [vmem:[#allocation2 + $0x300] sm:$0xff] %v5331
      %5336 = vst [vmem:[#allocation2 + $0x308] sm:$0xff] %v5332
      %5337 = vst [vmem:[#allocation2 + $0x310] sm:$0xff] %v5333
      %5338 = vst [vmem:[#allocation2 + $0x318] sm:$0xff] %v5334
      %v5339 = vld [vmem:[%s2438] ss:$8 sm:$0xf]
      %v5341 = vperm.slane %v5339, 0
      %v5342 = vperm.slane %v5339, 1
      %v5343 = vperm.slane %v5339, 2
      %v5344 = vperm.slane %v5339, 3
      %v5349 = vmul.f32 %v4669, %v5341
      %v5350 = vmul.f32 %v4667, %v5342
      %v5351 = vmul.f32 %v4665, %v5343
      %v5352 = vmul.f32 %v4671, %v5344
      %v5353 = vmul.f32 %v4670, %v5341
      %v5354 = vmul.f32 %v4668, %v5342
      %v5355 = vmul.f32 %v4666, %v5343
      %v5356 = vmul.f32 %v4672, %v5344
      %v5357 = vpack.c.bf16 %v5350, %v5349
      %v5358 = vpack.c.bf16 %v5352, %v5351
      %v5359 = vpack.c.bf16 %v5354, %v5353
      %v5360 = vpack.c.bf16 %v5356, %v5355
      %5361 = vst [vmem:[#allocation2 + $0x320] sm:$0xff] %v5357
      %5362 = vst [vmem:[#allocation2 + $0x328] sm:$0xff] %v5358
      %5363 = vst [vmem:[#allocation2 + $0x330] sm:$0xff] %v5359
      %5364 = vst [vmem:[#allocation2 + $0x338] sm:$0xff] %v5360
      %v5365 = vld [vmem:[%s2491] ss:$8 sm:$0xf]
      %v5367 = vperm.slane %v5365, 0
      %v5368 = vperm.slane %v5365, 1
      %v5369 = vperm.slane %v5365, 2
      %v5370 = vperm.slane %v5365, 3
      %v5375 = vmul.f32 %v4719, %v5367
      %v5376 = vmul.f32 %v4717, %v5368
      %v5377 = vmul.f32 %v4715, %v5369
      %v5378 = vmul.f32 %v4721, %v5370
      %v5379 = vmul.f32 %v4720, %v5367
      %v5380 = vmul.f32 %v4718, %v5368
      %v5381 = vmul.f32 %v4716, %v5369
      %v5382 = vmul.f32 %v4722, %v5370
      %v5383 = vpack.c.bf16 %v5376, %v5375
      %v5384 = vpack.c.bf16 %v5378, %v5377
      %v5385 = vpack.c.bf16 %v5380, %v5379
      %v5386 = vpack.c.bf16 %v5382, %v5381
      %5387 = vst [vmem:[#allocation2 + $0x340] sm:$0xff] %v5383
      %5388 = vst [vmem:[#allocation2 + $0x348] sm:$0xff] %v5384
      %5389 = vst [vmem:[#allocation2 + $0x350] sm:$0xff] %v5385
      %5390 = vst [vmem:[#allocation2 + $0x358] sm:$0xff] %v5386
      %v5391 = vld [vmem:[%s4] sm:$0xff]
      %v5392 = vld [vmem:[%s4 + $0x8] sm:$0xff]
      %v5393 = vld [vmem:[%s4 + $0x10] sm:$0xff]
      %v5394 = vld [vmem:[%s4 + $0x18] sm:$0xff]
      %v5395 = vld [vmem:[#allocation2] sm:$0xff]
      %v5396 = vld [vmem:[#allocation2 + $0x8] sm:$0xff]
      %v5397 = vld [vmem:[#allocation2 + $0x10] sm:$0xff]
      %v5398 = vld [vmem:[#allocation2 + $0x18] sm:$0xff]
      %v5399 = vld [vmem:[#allocation2 + $0x20] sm:$0xff]
      %v5400 = vld [vmem:[#allocation2 + $0x28] sm:$0xff]
      %v5401 = vld [vmem:[#allocation2 + $0x30] sm:$0xff]
      %v5402 = vld [vmem:[#allocation2 + $0x38] sm:$0xff]
      %v5403 = vld [vmem:[#allocation2 + $0x40] sm:$0xff]
      %v5404 = vld [vmem:[#allocation2 + $0x48] sm:$0xff]
      %v5405 = vld [vmem:[#allocation2 + $0x50] sm:$0xff]
      %v5406 = vld [vmem:[#allocation2 + $0x58] sm:$0xff]
      %v5407 = vld [vmem:[#allocation2 + $0x60] sm:$0xff]
      %v5408 = vld [vmem:[#allocation2 + $0x68] sm:$0xff]
      %v5409 = vld [vmem:[#allocation2 + $0x70] sm:$0xff]
      %v5410 = vld [vmem:[#allocation2 + $0x78] sm:$0xff]
      %v5411 = vld [vmem:[#allocation2 + $0x80] sm:$0xff]
      %v5412 = vld [vmem:[#allocation2 + $0x88] sm:$0xff]
      %v5413 = vld [vmem:[#allocation2 + $0x90] sm:$0xff]
      %v5414 = vld [vmem:[#allocation2 + $0x98] sm:$0xff]
      %v5415 = vld [vmem:[#allocation2 + $0xa0] sm:$0xff]
      %v5416 = vld [vmem:[#allocation2 + $0xa8] sm:$0xff]
      %v5417 = vld [vmem:[#allocation2 + $0xb0] sm:$0xff]
      %v5418 = vld [vmem:[#allocation2 + $0xb8] sm:$0xff]
      %v5419 = vld [vmem:[#allocation2 + $0xc0] sm:$0xff]
      %v5420 = vld [vmem:[#allocation2 + $0xc8] sm:$0xff]
      %v5421 = vld [vmem:[#allocation2 + $0xd0] sm:$0xff]
      %v5422 = vld [vmem:[#allocation2 + $0xd8] sm:$0xff]
      %v5423 = vld [vmem:[#allocation2 + $0xe0] sm:$0xff]
      %v5424 = vld [vmem:[#allocation2 + $0xe8] sm:$0xff]
      %v5425 = vld [vmem:[#allocation2 + $0xf0] sm:$0xff]
      %v5426 = vld [vmem:[#allocation2 + $0xf8] sm:$0xff]
      %v5427 = vld [vmem:[#allocation2 + $0x100] sm:$0xff]
      %v5428 = vld [vmem:[#allocation2 + $0x108] sm:$0xff]
      %v5429 = vld [vmem:[#allocation2 + $0x110] sm:$0xff]
      %v5430 = vld [vmem:[#allocation2 + $0x118] sm:$0xff]
      %v5431 = vld [vmem:[#allocation2 + $0x120] sm:$0xff]
      %v5432 = vld [vmem:[#allocation2 + $0x128] sm:$0xff]
      %v5433 = vld [vmem:[#allocation2 + $0x130] sm:$0xff]
      %v5434 = vld [vmem:[#allocation2 + $0x138] sm:$0xff]
      %v5435 = vld [vmem:[#allocation2 + $0x140] sm:$0xff]
      %v5436 = vld [vmem:[#allocation2 + $0x148] sm:$0xff]
      %v5437 = vld [vmem:[#allocation2 + $0x150] sm:$0xff]
      %v5438 = vld [vmem:[#allocation2 + $0x158] sm:$0xff]
      %v5439 = vld [vmem:[#allocation2 + $0x160] sm:$0xff]
      %v5440 = vld [vmem:[#allocation2 + $0x168] sm:$0xff]
      %v5441 = vld [vmem:[#allocation2 + $0x170] sm:$0xff]
      %v5442 = vld [vmem:[#allocation2 + $0x178] sm:$0xff]
      %v5443 = vld [vmem:[#allocation2 + $0x180] sm:$0xff]
      %v5444 = vld [vmem:[#allocation2 + $0x188] sm:$0xff]
      %v5445 = vld [vmem:[#allocation2 + $0x190] sm:$0xff]
      %v5446 = vld [vmem:[#allocation2 + $0x198] sm:$0xff]
      %v5447 = vld [vmem:[#allocation2 + $0x1a0] sm:$0xff]
      %v5448 = vld [vmem:[#allocation2 + $0x1a8] sm:$0xff]
      %v5449 = vld [vmem:[#allocation2 + $0x1b0] sm:$0xff]
      %v5450 = vld [vmem:[#allocation2 + $0x1b8] sm:$0xff]
      %v5451 = vld [vmem:[#allocation2 + $0x1c0] sm:$0xff]
      %v5452 = vld [vmem:[#allocation2 + $0x1c8] sm:$0xff]
      %v5453 = vld [vmem:[#allocation2 + $0x1d0] sm:$0xff]
      %v5454 = vld [vmem:[#allocation2 + $0x1d8] sm:$0xff]
      %v5455 = vld [vmem:[#allocation2 + $0x1e0] sm:$0xff]
      %v5456 = vld [vmem:[#allocation2 + $0x1e8] sm:$0xff]
      %v5457 = vld [vmem:[#allocation2 + $0x1f0] sm:$0xff]
      %v5458 = vld [vmem:[#allocation2 + $0x1f8] sm:$0xff]
      %v5459 = vld [vmem:[#allocation2 + $0x200] sm:$0xff]
      %v5460 = vld [vmem:[#allocation2 + $0x208] sm:$0xff]
      %v5461 = vld [vmem:[#allocation2 + $0x210] sm:$0xff]
      %v5462 = vld [vmem:[#allocation2 + $0x218] sm:$0xff]
      %v5463 = vld [vmem:[#allocation2 + $0x220] sm:$0xff]
      %v5464 = vld [vmem:[#allocation2 + $0x228] sm:$0xff]
      %v5465 = vld [vmem:[#allocation2 + $0x230] sm:$0xff]
      %v5466 = vld [vmem:[#allocation2 + $0x238] sm:$0xff]
      %v5467 = vld [vmem:[#allocation2 + $0x240] sm:$0xff]
      %v5468 = vld [vmem:[#allocation2 + $0x248] sm:$0xff]
      %v5469 = vld [vmem:[#allocation2 + $0x250] sm:$0xff]
      %v5470 = vld [vmem:[#allocation2 + $0x258] sm:$0xff]
      %v5471 = vld [vmem:[#allocation2 + $0x260] sm:$0xff]
      %v5472 = vld [vmem:[#allocation2 + $0x268] sm:$0xff]
      %v5473 = vld [vmem:[#allocation2 + $0x270] sm:$0xff]
      %v5474 = vld [vmem:[#allocation2 + $0x278] sm:$0xff]
      %v5475 = vld [vmem:[#allocation2 + $0x280] sm:$0xff]
      %v5476 = vld [vmem:[#allocation2 + $0x288] sm:$0xff]
      %v5477 = vld [vmem:[#allocation2 + $0x290] sm:$0xff]
      %v5478 = vld [vmem:[#allocation2 + $0x298] sm:$0xff]
      %v5479 = vld [vmem:[#allocation2 + $0x2a0] sm:$0xff]
      %v5480 = vld [vmem:[#allocation2 + $0x2a8] sm:$0xff]
      %v5481 = vld [vmem:[#allocation2 + $0x2b0] sm:$0xff]
      %v5482 = vld [vmem:[#allocation2 + $0x2b8] sm:$0xff]
      %v5483 = vld [vmem:[#allocation2 + $0x2c0] sm:$0xff]
      %v5484 = vld [vmem:[#allocation2 + $0x2c8] sm:$0xff]
      %v5485 = vld [vmem:[#allocation2 + $0x2d0] sm:$0xff]
      %v5486 = vld [vmem:[#allocation2 + $0x2d8] sm:$0xff]
      %v5487 = vld [vmem:[#allocation2 + $0x2e0] sm:$0xff]
      %v5488 = vld [vmem:[#allocation2 + $0x2e8] sm:$0xff]
      %v5489 = vld [vmem:[#allocation2 + $0x2f0] sm:$0xff]
      %v5490 = vld [vmem:[#allocation2 + $0x2f8] sm:$0xff]
      %v5491 = vld [vmem:[#allocation2 + $0x300] sm:$0xff]
      %v5492 = vld [vmem:[#allocation2 + $0x308] sm:$0xff]
      %v5493 = vld [vmem:[#allocation2 + $0x310] sm:$0xff]
      %v5494 = vld [vmem:[#allocation2 + $0x318] sm:$0xff]
      %v5495 = vld [vmem:[#allocation2 + $0x320] sm:$0xff]
      %v5496 = vld [vmem:[#allocation2 + $0x328] sm:$0xff]
      %v5497 = vld [vmem:[#allocation2 + $0x330] sm:$0xff]
      %v5498 = vld [vmem:[#allocation2 + $0x338] sm:$0xff]
      %v5499 = vld [vmem:[#allocation2 + $0x340] sm:$0xff]
      %v5500 = vld [vmem:[#allocation2 + $0x348] sm:$0xff]
      %v5501 = vld [vmem:[#allocation2 + $0x350] sm:$0xff]
      %v5502 = vld [vmem:[#allocation2 + $0x358] sm:$0xff]
      %v5503 = vld [vmem:[%s6] sm:$0xff]
      %v5504 = vld [vmem:[%s6 + $0x8] sm:$0xff]
      %5506 = vset.pattern.permute.xlu0 0
      %5507 = vperm.xlu0 %5506, %v5503
      %v5508 = vpop.permute.xlu0 %5507
      %5511 = vset.pattern.permute.xlu0 0
      %5512 = vperm.xlu0 %5511, %v5504
      %v5513 = vpop.permute.xlu0 %5512
      %v5519 = vunpack.c.l.b16 %v5391
      %v5520 = vunpack.c.h.b16 %v5391
      %v5521 = vunpack.c.l.b16 %v5392
      %v5522 = vunpack.c.h.b16 %v5392
      %v5523 = vunpack.c.l.b16 %v5393
      %v5524 = vunpack.c.h.b16 %v5393
      %v5525 = vunpack.c.l.b16 %v5394
      %v5526 = vunpack.c.h.b16 %v5394
      %v5527 = vpack.c.b16 %v5523, %v5519
      %v5528 = vpack.c.b16 %v5524, %v5520
      %v5529 = vpack.c.b16 %v5525, %v5521
      %v5530 = vpack.c.b16 %v5526, %v5522
      %v5642 = vunpack.c.l.b16 %v5395
      %v5643 = vunpack.c.h.b16 %v5395
      %v5644 = vunpack.c.l.b16 %v5396
      %v5645 = vunpack.c.h.b16 %v5396
      %v5646 = vunpack.c.l.b16 %v5397
      %v5647 = vunpack.c.h.b16 %v5397
      %v5648 = vunpack.c.l.b16 %v5398
      %v5649 = vunpack.c.h.b16 %v5398
      %v5650 = vunpack.c.l.b16 %v5399
      %v5651 = vunpack.c.h.b16 %v5399
      %v5652 = vunpack.c.l.b16 %v5400
      %v5653 = vunpack.c.h.b16 %v5400
      %v5654 = vunpack.c.l.b16 %v5401
      %v5655 = vunpack.c.h.b16 %v5401
      %v5656 = vunpack.c.l.b16 %v5402
      %v5657 = vunpack.c.h.b16 %v5402
      %v5658 = vunpack.c.l.b16 %v5403
      %v5659 = vunpack.c.h.b16 %v5403
      %v5660 = vunpack.c.l.b16 %v5404
      %v5661 = vunpack.c.h.b16 %v5404
      %v5662 = vunpack.c.l.b16 %v5405
      %v5663 = vunpack.c.h.b16 %v5405
      %v5664 = vunpack.c.l.b16 %v5406
      %v5665 = vunpack.c.h.b16 %v5406
      %v5666 = vunpack.c.l.b16 %v5407
      %v5667 = vunpack.c.h.b16 %v5407
      %v5668 = vunpack.c.l.b16 %v5408
      %v5669 = vunpack.c.h.b16 %v5408
      %v5670 = vunpack.c.l.b16 %v5409
      %v5671 = vunpack.c.h.b16 %v5409
      %v5672 = vunpack.c.l.b16 %v5410
      %v5673 = vunpack.c.h.b16 %v5410
      %v5674 = vunpack.c.l.b16 %v5411
      %v5675 = vunpack.c.h.b16 %v5411
      %v5676 = vunpack.c.l.b16 %v5412
      %v5677 = vunpack.c.h.b16 %v5412
      %v5678 = vunpack.c.l.b16 %v5413
      %v5679 = vunpack.c.h.b16 %v5413
      %v5680 = vunpack.c.l.b16 %v5414
      %v5681 = vunpack.c.h.b16 %v5414
      %v5682 = vunpack.c.l.b16 %v5415
      %v5683 = vunpack.c.h.b16 %v5415
      %v5684 = vunpack.c.l.b16 %v5416
      %v5685 = vunpack.c.h.b16 %v5416
      %v5686 = vunpack.c.l.b16 %v5417
      %v5687 = vunpack.c.h.b16 %v5417
      %v5688 = vunpack.c.l.b16 %v5418
      %v5689 = vunpack.c.h.b16 %v5418
      %v5690 = vunpack.c.l.b16 %v5419
      %v5691 = vunpack.c.h.b16 %v5419
      %v5692 = vunpack.c.l.b16 %v5420
      %v5693 = vunpack.c.h.b16 %v5420
      %v5694 = vunpack.c.l.b16 %v5421
      %v5695 = vunpack.c.h.b16 %v5421
      %v5696 = vunpack.c.l.b16 %v5422
      %v5697 = vunpack.c.h.b16 %v5422
      %v5698 = vunpack.c.l.b16 %v5423
      %v5699 = vunpack.c.h.b16 %v5423
      %v5700 = vunpack.c.l.b16 %v5424
      %v5701 = vunpack.c.h.b16 %v5424
      %v5702 = vunpack.c.l.b16 %v5425
      %v5703 = vunpack.c.h.b16 %v5425
      %v5704 = vunpack.c.l.b16 %v5426
      %v5705 = vunpack.c.h.b16 %v5426
      %v5706 = vunpack.c.l.b16 %v5427
      %v5707 = vunpack.c.h.b16 %v5427
      %v5708 = vunpack.c.l.b16 %v5428
      %v5709 = vunpack.c.h.b16 %v5428
      %v5710 = vunpack.c.l.b16 %v5429
      %v5711 = vunpack.c.h.b16 %v5429
      %v5712 = vunpack.c.l.b16 %v5430
      %v5713 = vunpack.c.h.b16 %v5430
      %v5714 = vunpack.c.l.b16 %v5431
      %v5715 = vunpack.c.h.b16 %v5431
      %v5716 = vunpack.c.l.b16 %v5432
      %v5717 = vunpack.c.h.b16 %v5432
      %v5718 = vunpack.c.l.b16 %v5433
      %v5719 = vunpack.c.h.b16 %v5433
      %v5720 = vunpack.c.l.b16 %v5434
      %v5721 = vunpack.c.h.b16 %v5434
      %v5722 = vunpack.c.l.b16 %v5435
      %v5723 = vunpack.c.h.b16 %v5435
      %v5724 = vunpack.c.l.b16 %v5436
      %v5725 = vunpack.c.h.b16 %v5436
      %v5726 = vunpack.c.l.b16 %v5437
      %v5727 = vunpack.c.h.b16 %v5437
      %v5728 = vunpack.c.l.b16 %v5438
      %v5729 = vunpack.c.h.b16 %v5438
      %v5730 = vunpack.c.l.b16 %v5439
      %v5731 = vunpack.c.h.b16 %v5439
      %v5732 = vunpack.c.l.b16 %v5440
      %v5733 = vunpack.c.h.b16 %v5440
      %v5734 = vunpack.c.l.b16 %v5441
      %v5735 = vunpack.c.h.b16 %v5441
      %v5736 = vunpack.c.l.b16 %v5442
      %v5737 = vunpack.c.h.b16 %v5442
      %v5738 = vunpack.c.l.b16 %v5443
      %v5739 = vunpack.c.h.b16 %v5443
      %v5740 = vunpack.c.l.b16 %v5444
      %v5741 = vunpack.c.h.b16 %v5444
      %v5742 = vunpack.c.l.b16 %v5445
      %v5743 = vunpack.c.h.b16 %v5445
      %v5744 = vunpack.c.l.b16 %v5446
      %v5745 = vunpack.c.h.b16 %v5446
      %v5746 = vunpack.c.l.b16 %v5447
      %v5747 = vunpack.c.h.b16 %v5447
      %v5748 = vunpack.c.l.b16 %v5448
      %v5749 = vunpack.c.h.b16 %v5448
      %v5750 = vunpack.c.l.b16 %v5449
      %v5751 = vunpack.c.h.b16 %v5449
      %v5752 = vunpack.c.l.b16 %v5450
      %v5753 = vunpack.c.h.b16 %v5450
      %v5754 = vunpack.c.l.b16 %v5451
      %v5755 = vunpack.c.h.b16 %v5451
      %v5756 = vunpack.c.l.b16 %v5452
      %v5757 = vunpack.c.h.b16 %v5452
      %v5758 = vunpack.c.l.b16 %v5453
      %v5759 = vunpack.c.h.b16 %v5453
      %v5760 = vunpack.c.l.b16 %v5454
      %v5761 = vunpack.c.h.b16 %v5454
      %v5762 = vunpack.c.l.b16 %v5455
      %v5763 = vunpack.c.h.b16 %v5455
      %v5764 = vunpack.c.l.b16 %v5456
      %v5765 = vunpack.c.h.b16 %v5456
      %v5766 = vunpack.c.l.b16 %v5457
      %v5767 = vunpack.c.h.b16 %v5457
      %v5768 = vunpack.c.l.b16 %v5458
      %v5769 = vunpack.c.h.b16 %v5458
      %v5770 = vunpack.c.l.b16 %v5459
      %v5771 = vunpack.c.h.b16 %v5459
      %v5772 = vunpack.c.l.b16 %v5460
      %v5773 = vunpack.c.h.b16 %v5460
      %v5774 = vunpack.c.l.b16 %v5461
      %v5775 = vunpack.c.h.b16 %v5461
      %v5776 = vunpack.c.l.b16 %v5462
      %v5777 = vunpack.c.h.b16 %v5462
      %v5778 = vunpack.c.l.b16 %v5463
      %v5779 = vunpack.c.h.b16 %v5463
      %v5780 = vunpack.c.l.b16 %v5464
      %v5781 = vunpack.c.h.b16 %v5464
      %v5782 = vunpack.c.l.b16 %v5465
      %v5783 = vunpack.c.h.b16 %v5465
      %v5784 = vunpack.c.l.b16 %v5466
      %v5785 = vunpack.c.h.b16 %v5466
      %v5786 = vunpack.c.l.b16 %v5467
      %v5787 = vunpack.c.h.b16 %v5467
      %v5788 = vunpack.c.l.b16 %v5468
      %v5789 = vunpack.c.h.b16 %v5468
      %v5790 = vunpack.c.l.b16 %v5469
      %v5791 = vunpack.c.h.b16 %v5469
      %v5792 = vunpack.c.l.b16 %v5470
      %v5793 = vunpack.c.h.b16 %v5470
      %v5794 = vunpack.c.l.b16 %v5471
      %v5795 = vunpack.c.h.b16 %v5471
      %v5796 = vunpack.c.l.b16 %v5472
      %v5797 = vunpack.c.h.b16 %v5472
      %v5798 = vunpack.c.l.b16 %v5473
      %v5799 = vunpack.c.h.b16 %v5473
      %v5800 = vunpack.c.l.b16 %v5474
      %v5801 = vunpack.c.h.b16 %v5474
      %v5802 = vunpack.c.l.b16 %v5475
      %v5803 = vunpack.c.h.b16 %v5475
      %v5804 = vunpack.c.l.b16 %v5476
      %v5805 = vunpack.c.h.b16 %v5476
      %v5806 = vunpack.c.l.b16 %v5477
      %v5807 = vunpack.c.h.b16 %v5477
      %v5808 = vunpack.c.l.b16 %v5478
      %v5809 = vunpack.c.h.b16 %v5478
      %v5810 = vunpack.c.l.b16 %v5479
      %v5811 = vunpack.c.h.b16 %v5479
      %v5812 = vunpack.c.l.b16 %v5480
      %v5813 = vunpack.c.h.b16 %v5480
      %v5814 = vunpack.c.l.b16 %v5481
      %v5815 = vunpack.c.h.b16 %v5481
      %v5816 = vunpack.c.l.b16 %v5482
      %v5817 = vunpack.c.h.b16 %v5482
      %v5818 = vunpack.c.l.b16 %v5483
      %v5819 = vunpack.c.h.b16 %v5483
      %v5820 = vunpack.c.l.b16 %v5484
      %v5821 = vunpack.c.h.b16 %v5484
      %v5822 = vunpack.c.l.b16 %v5485
      %v5823 = vunpack.c.h.b16 %v5485
      %v5824 = vunpack.c.l.b16 %v5486
      %v5825 = vunpack.c.h.b16 %v5486
      %v5826 = vunpack.c.l.b16 %v5487
      %v5827 = vunpack.c.h.b16 %v5487
      %v5828 = vunpack.c.l.b16 %v5488
      %v5829 = vunpack.c.h.b16 %v5488
      %v5830 = vunpack.c.l.b16 %v5489
      %v5831 = vunpack.c.h.b16 %v5489
      %v5832 = vunpack.c.l.b16 %v5490
      %v5833 = vunpack.c.h.b16 %v5490
      %v5834 = vunpack.c.l.b16 %v5491
      %v5835 = vunpack.c.h.b16 %v5491
      %v5836 = vunpack.c.l.b16 %v5492
      %v5837 = vunpack.c.h.b16 %v5492
      %v5838 = vunpack.c.l.b16 %v5493
      %v5839 = vunpack.c.h.b16 %v5493
      %v5840 = vunpack.c.l.b16 %v5494
      %v5841 = vunpack.c.h.b16 %v5494
      %v5842 = vunpack.c.l.b16 %v5495
      %v5843 = vunpack.c.h.b16 %v5495
      %v5844 = vunpack.c.l.b16 %v5496
      %v5845 = vunpack.c.h.b16 %v5496
      %v5846 = vunpack.c.l.b16 %v5497
      %v5847 = vunpack.c.h.b16 %v5497
      %v5848 = vunpack.c.l.b16 %v5498
      %v5849 = vunpack.c.h.b16 %v5498
      %v5850 = vunpack.c.l.b16 %v5499
      %v5851 = vunpack.c.h.b16 %v5499
      %v5852 = vunpack.c.l.b16 %v5500
      %v5853 = vunpack.c.h.b16 %v5500
      %v5854 = vunpack.c.l.b16 %v5501
      %v5855 = vunpack.c.h.b16 %v5501
      %v5856 = vunpack.c.l.b16 %v5502
      %v5857 = vunpack.c.h.b16 %v5502
      %v5858 = vpack.c.b16 %v5646, %v5642
      %v5859 = vpack.c.b16 %v5647, %v5643
      %v5860 = vpack.c.b16 %v5648, %v5644
      %v5861 = vpack.c.b16 %v5649, %v5645
      %v5862 = vpack.c.b16 %v5654, %v5650
      %v5863 = vpack.c.b16 %v5655, %v5651
      %v5864 = vpack.c.b16 %v5656, %v5652
      %v5865 = vpack.c.b16 %v5657, %v5653
      %v5866 = vpack.c.b16 %v5662, %v5658
      %v5867 = vpack.c.b16 %v5663, %v5659
      %v5868 = vpack.c.b16 %v5664, %v5660
      %v5869 = vpack.c.b16 %v5665, %v5661
      %v5870 = vpack.c.b16 %v5670, %v5666
      %v5871 = vpack.c.b16 %v5671, %v5667
      %v5872 = vpack.c.b16 %v5672, %v5668
      %v5873 = vpack.c.b16 %v5673, %v5669
      %v5874 = vpack.c.b16 %v5678, %v5674
      %v5875 = vpack.c.b16 %v5679, %v5675
      %v5876 = vpack.c.b16 %v5680, %v5676
      %v5877 = vpack.c.b16 %v5681, %v5677
      %v5878 = vpack.c.b16 %v5686, %v5682
      %v5879 = vpack.c.b16 %v5687, %v5683
      %v5880 = vpack.c.b16 %v5688, %v5684
      %v5881 = vpack.c.b16 %v5689, %v5685
      %v5882 = vpack.c.b16 %v5694, %v5690
      %v5883 = vpack.c.b16 %v5695, %v5691
      %v5884 = vpack.c.b16 %v5696, %v5692
      %v5885 = vpack.c.b16 %v5697, %v5693
      %v5886 = vpack.c.b16 %v5702, %v5698
      %v5887 = vpack.c.b16 %v5703, %v5699
      %v5888 = vpack.c.b16 %v5704, %v5700
      %v5889 = vpack.c.b16 %v5705, %v5701
      %v5890 = vpack.c.b16 %v5710, %v5706
      %v5891 = vpack.c.b16 %v5711, %v5707
      %v5892 = vpack.c.b16 %v5712, %v5708
      %v5893 = vpack.c.b16 %v5713, %v5709
      %v5894 = vpack.c.b16 %v5718, %v5714
      %v5895 = vpack.c.b16 %v5719, %v5715
      %v5896 = vpack.c.b16 %v5720, %v5716
      %v5897 = vpack.c.b16 %v5721, %v5717
      %v5898 = vpack.c.b16 %v5726, %v5722
      %v5899 = vpack.c.b16 %v5727, %v5723
      %v5900 = vpack.c.b16 %v5728, %v5724
      %v5901 = vpack.c.b16 %v5729, %v5725
      %v5902 = vpack.c.b16 %v5734, %v5730
      %v5903 = vpack.c.b16 %v5735, %v5731
      %v5904 = vpack.c.b16 %v5736, %v5732
      %v5905 = vpack.c.b16 %v5737, %v5733
      %v5906 = vpack.c.b16 %v5742, %v5738
      %v5907 = vpack.c.b16 %v5743, %v5739
      %v5908 = vpack.c.b16 %v5744, %v5740
      %v5909 = vpack.c.b16 %v5745, %v5741
      %v5910 = vpack.c.b16 %v5750, %v5746
      %v5911 = vpack.c.b16 %v5751, %v5747
      %v5912 = vpack.c.b16 %v5752, %v5748
      %v5913 = vpack.c.b16 %v5753, %v5749
      %v5914 = vpack.c.b16 %v5758, %v5754
      %v5915 = vpack.c.b16 %v5759, %v5755
      %v5916 = vpack.c.b16 %v5760, %v5756
      %v5917 = vpack.c.b16 %v5761, %v5757
      %v5918 = vpack.c.b16 %v5766, %v5762
      %v5919 = vpack.c.b16 %v5767, %v5763
      %v5920 = vpack.c.b16 %v5768, %v5764
      %v5921 = vpack.c.b16 %v5769, %v5765
      %v5922 = vpack.c.b16 %v5774, %v5770
      %v5923 = vpack.c.b16 %v5775, %v5771
      %v5924 = vpack.c.b16 %v5776, %v5772
      %v5925 = vpack.c.b16 %v5777, %v5773
      %v5926 = vpack.c.b16 %v5782, %v5778
      %v5927 = vpack.c.b16 %v5783, %v5779
      %v5928 = vpack.c.b16 %v5784, %v5780
      %v5929 = vpack.c.b16 %v5785, %v5781
      %v5930 = vpack.c.b16 %v5790, %v5786
      %v5931 = vpack.c.b16 %v5791, %v5787
      %v5932 = vpack.c.b16 %v5792, %v5788
      %v5933 = vpack.c.b16 %v5793, %v5789
      %v5934 = vpack.c.b16 %v5798, %v5794
      %v5935 = vpack.c.b16 %v5799, %v5795
      %v5936 = vpack.c.b16 %v5800, %v5796
      %v5937 = vpack.c.b16 %v5801, %v5797
      %v5938 = vpack.c.b16 %v5806, %v5802
      %v5939 = vpack.c.b16 %v5807, %v5803
      %v5940 = vpack.c.b16 %v5808, %v5804
      %v5941 = vpack.c.b16 %v5809, %v5805
      %v5942 = vpack.c.b16 %v5814, %v5810
      %v5943 = vpack.c.b16 %v5815, %v5811
      %v5944 = vpack.c.b16 %v5816, %v5812
      %v5945 = vpack.c.b16 %v5817, %v5813
      %v5946 = vpack.c.b16 %v5822, %v5818
      %v5947 = vpack.c.b16 %v5823, %v5819
      %v5948 = vpack.c.b16 %v5824, %v5820
      %v5949 = vpack.c.b16 %v5825, %v5821
      %v5950 = vpack.c.b16 %v5830, %v5826
      %v5951 = vpack.c.b16 %v5831, %v5827
      %v5952 = vpack.c.b16 %v5832, %v5828
      %v5953 = vpack.c.b16 %v5833, %v5829
      %v5954 = vpack.c.b16 %v5838, %v5834
      %v5955 = vpack.c.b16 %v5839, %v5835
      %v5956 = vpack.c.b16 %v5840, %v5836
      %v5957 = vpack.c.b16 %v5841, %v5837
      %v5958 = vpack.c.b16 %v5846, %v5842
      %v5959 = vpack.c.b16 %v5847, %v5843
      %v5960 = vpack.c.b16 %v5848, %v5844
      %v5961 = vpack.c.b16 %v5849, %v5845
      %v5962 = vpack.c.b16 %v5854, %v5850
      %v5963 = vpack.c.b16 %v5855, %v5851
      %v5964 = vpack.c.b16 %v5856, %v5852
      %v5965 = vpack.c.b16 %v5857, %v5853
      %vm6074 = vcmask 392192
      %v6076 = vsel %vm6074, %v5530, 0
      %6078 = vmatpush.bf16.msra.mxu0 %v5886
      %6079 = vmatpush.bf16.msra.mxu0 %v5882
      %6080 = vmatpush.bf16.msra.mxu0 %v5878
      %6081 = vmatpush.bf16.msra.mxu0 %v5874
      %6082 = vmatpush.bf16.msra.mxu0 %v5870
      %6083 = vmatpush.bf16.msra.mxu0 %v5866
      %6084 = vmatpush.bf16.msra.mxu0 %v5862
      %6085 = vmatpush.bf16.msra.mxu0 %v5858
      %6086 = vmatmul.bf16.gmra.mxu0 %v5527
      %v6087 = vpop.f32.mrf.mxu0
      %v6088 = vadd.f32 %v5508, %v6087
      %v6089 = vpop.f32.mrf.mxu0
      %v6090 = vadd.f32 %v5513, %v6089
      %6091 = vdwg.mxu0
      %6092 = vmatpush.bf16.msra.mxu0 %v5918
      %6093 = vmatpush.bf16.msra.mxu0 %v5914
      %6094 = vmatpush.bf16.msra.mxu0 %v5910
      %6095 = vmatpush.bf16.msra.mxu0 %v5906
      %6096 = vmatpush.bf16.msra.mxu0 %v5902
      %6097 = vmatpush.bf16.msra.mxu0 %v5898
      %6098 = vmatpush.bf16.msra.mxu0 %v5894
      %6099 = vmatpush.bf16.msra.mxu0 %v5890
      %6100 = vmatmul.bf16.gmra.mxu0 %v5528
      %v6101 = vpop.f32.mrf.mxu0
      %v6102 = vadd.f32 %v6088, %v6101
      %v6103 = vpop.f32.mrf.mxu0
      %v6104 = vadd.f32 %v6090, %v6103
      %6105 = vdwg.mxu0
      %6106 = vmatpush.bf16.msra.mxu0 %v5950
      %6107 = vmatpush.bf16.msra.mxu0 %v5946
      %6108 = vmatpush.bf16.msra.mxu0 %v5942
      %6109 = vmatpush.bf16.msra.mxu0 %v5938
      %6110 = vmatpush.bf16.msra.mxu0 %v5934
      %6111 = vmatpush.bf16.msra.mxu0 %v5930
      %6112 = vmatpush.bf16.msra.mxu0 %v5926
      %6113 = vmatpush.bf16.msra.mxu0 %v5922
      %6114 = vmatmul.bf16.gmra.mxu0 %v5529
      %v6115 = vpop.f32.mrf.mxu0
      %v6116 = vadd.f32 %v6102, %v6115
      %v6117 = vpop.f32.mrf.mxu0
      %v6118 = vadd.f32 %v6104, %v6117
      %6119 = vdwg.mxu0
      %6120 = vmatpush.bf16.msra.mxu0 0
      %6121 = vmatpush.bf16.msra.mxu0 0
      %6122 = vmatpush.bf16.msra.mxu0 0
      %6123 = vmatpush.bf16.msra.mxu0 0
      %6124 = vmatpush.bf16.msra.mxu0 0
      %6125 = vmatpush.bf16.msra.mxu0 %v5962
      %6126 = vmatpush.bf16.msra.mxu0 %v5958
      %6127 = vmatpush.bf16.msra.mxu0 %v5954
      %6128 = vmatmul.bf16.gmra.mxu0 %v6076
      %v6129 = vpop.f32.mrf.mxu0
      %v6130 = vadd.f32 %v6116, %v6129
      %v6131 = vpop.f32.mrf.mxu0
      %v6132 = vadd.f32 %v6118, %v6131
      %6133 = vdwg.mxu0
      %6134 = vmatpush.bf16.msra.mxu0 %v5887
      %6135 = vmatpush.bf16.msra.mxu0 %v5883
      %6136 = vmatpush.bf16.msra.mxu0 %v5879
      %6137 = vmatpush.bf16.msra.mxu0 %v5875
      %6138 = vmatpush.bf16.msra.mxu0 %v5871
      %6139 = vmatpush.bf16.msra.mxu0 %v5867
      %6140 = vmatpush.bf16.msra.mxu0 %v5863
      %6141 = vmatpush.bf16.msra.mxu0 %v5859
      %6142 = vmatmul.bf16.gmra.mxu0 %v5527
      %v6143 = vpop.f32.mrf.mxu0
      %v6144 = vadd.f32 %v5508, %v6143
      %v6145 = vpop.f32.mrf.mxu0
      %v6146 = vadd.f32 %v5513, %v6145
      %6147 = vdwg.mxu0
      %6148 = vmatpush.bf16.msra.mxu0 %v5919
      %6149 = vmatpush.bf16.msra.mxu0 %v5915
      %6150 = vmatpush.bf16.msra.mxu0 %v5911
      %6151 = vmatpush.bf16.msra.mxu0 %v5907
      %6152 = vmatpush.bf16.msra.mxu0 %v5903
      %6153 = vmatpush.bf16.msra.mxu0 %v5899
      %6154 = vmatpush.bf16.msra.mxu0 %v5895
      %6155 = vmatpush.bf16.msra.mxu0 %v5891
      %6156 = vmatmul.bf16.gmra.mxu0 %v5528
      %v6157 = vpop.f32.mrf.mxu0
      %v6158 = vadd.f32 %v6144, %v6157
      %v6159 = vpop.f32.mrf.mxu0
      %v6160 = vadd.f32 %v6146, %v6159
      %6161 = vdwg.mxu0
      %6162 = vmatpush.bf16.msra.mxu0 %v5951
      %6163 = vmatpush.bf16.msra.mxu0 %v5947
      %6164 = vmatpush.bf16.msra.mxu0 %v5943
      %6165 = vmatpush.bf16.msra.mxu0 %v5939
      %6166 = vmatpush.bf16.msra.mxu0 %v5935
      %6167 = vmatpush.bf16.msra.mxu0 %v5931
      %6168 = vmatpush.bf16.msra.mxu0 %v5927
      %6169 = vmatpush.bf16.msra.mxu0 %v5923
      %6170 = vmatmul.bf16.gmra.mxu0 %v5529
      %v6171 = vpop.f32.mrf.mxu0
      %v6172 = vadd.f32 %v6158, %v6171
      %v6173 = vpop.f32.mrf.mxu0
      %v6174 = vadd.f32 %v6160, %v6173
      %6175 = vdwg.mxu0
      %6176 = vmatpush.bf16.msra.mxu0 0
      %6177 = vmatpush.bf16.msra.mxu0 0
      %6178 = vmatpush.bf16.msra.mxu0 0
      %6179 = vmatpush.bf16.msra.mxu0 0
      %6180 = vmatpush.bf16.msra.mxu0 0
      %6181 = vmatpush.bf16.msra.mxu0 %v5963
      %6182 = vmatpush.bf16.msra.mxu0 %v5959
      %6183 = vmatpush.bf16.msra.mxu0 %v5955
      %6184 = vmatmul.bf16.gmra.mxu0 %v6076
      %v6185 = vpop.f32.mrf.mxu0
      %v6186 = vadd.f32 %v6172, %v6185
      %v6187 = vpop.f32.mrf.mxu0
      %v6188 = vadd.f32 %v6174, %v6187
      %6189 = vdwg.mxu0
      %6190 = vmatpush.bf16.msra.mxu0 %v5888
      %6191 = vmatpush.bf16.msra.mxu0 %v5884
      %6192 = vmatpush.bf16.msra.mxu0 %v5880
      %6193 = vmatpush.bf16.msra.mxu0 %v5876
      %6194 = vmatpush.bf16.msra.mxu0 %v5872
      %6195 = vmatpush.bf16.msra.mxu0 %v5868
      %6196 = vmatpush.bf16.msra.mxu0 %v5864
      %6197 = vmatpush.bf16.msra.mxu0 %v5860
      %6198 = vmatmul.bf16.gmra.mxu0 %v5527
      %v6199 = vpop.f32.mrf.mxu0
      %v6200 = vadd.f32 %v5508, %v6199
      %v6201 = vpop.f32.mrf.mxu0
      %v6202 = vadd.f32 %v5513, %v6201
      %6203 = vdwg.mxu0
      %6204 = vmatpush.bf16.msra.mxu0 %v5920
      %6205 = vmatpush.bf16.msra.mxu0 %v5916
      %6206 = vmatpush.bf16.msra.mxu0 %v5912
      %6207 = vmatpush.bf16.msra.mxu0 %v5908
      %6208 = vmatpush.bf16.msra.mxu0 %v5904
      %6209 = vmatpush.bf16.msra.mxu0 %v5900
      %6210 = vmatpush.bf16.msra.mxu0 %v5896
      %6211 = vmatpush.bf16.msra.mxu0 %v5892
      %6212 = vmatmul.bf16.gmra.mxu0 %v5528
      %v6213 = vpop.f32.mrf.mxu0
      %v6214 = vadd.f32 %v6200, %v6213
      %v6215 = vpop.f32.mrf.mxu0
      %v6216 = vadd.f32 %v6202, %v6215
      %6217 = vdwg.mxu0
      %6218 = vmatpush.bf16.msra.mxu0 %v5952
      %6219 = vmatpush.bf16.msra.mxu0 %v5948
      %6220 = vmatpush.bf16.msra.mxu0 %v5944
      %6221 = vmatpush.bf16.msra.mxu0 %v5940
      %6222 = vmatpush.bf16.msra.mxu0 %v5936
      %6223 = vmatpush.bf16.msra.mxu0 %v5932
      %6224 = vmatpush.bf16.msra.mxu0 %v5928
      %6225 = vmatpush.bf16.msra.mxu0 %v5924
      %6226 = vmatmul.bf16.gmra.mxu0 %v5529
      %v6227 = vpop.f32.mrf.mxu0
      %v6228 = vadd.f32 %v6214, %v6227
      %v6229 = vpop.f32.mrf.mxu0
      %v6230 = vadd.f32 %v6216, %v6229
      %6231 = vdwg.mxu0
      %6232 = vmatpush.bf16.msra.mxu0 0
      %6233 = vmatpush.bf16.msra.mxu0 0
      %6234 = vmatpush.bf16.msra.mxu0 0
      %6235 = vmatpush.bf16.msra.mxu0 0
      %6236 = vmatpush.bf16.msra.mxu0 0
      %6237 = vmatpush.bf16.msra.mxu0 %v5964
      %6238 = vmatpush.bf16.msra.mxu0 %v5960
      %6239 = vmatpush.bf16.msra.mxu0 %v5956
      %6240 = vmatmul.bf16.gmra.mxu0 %v6076
      %v6241 = vpop.f32.mrf.mxu0
      %v6242 = vadd.f32 %v6228, %v6241
      %v6243 = vpop.f32.mrf.mxu0
      %v6244 = vadd.f32 %v6230, %v6243
      %6245 = vdwg.mxu0
      %6246 = vmatpush.bf16.msra.mxu0 %v5889
      %6247 = vmatpush.bf16.msra.mxu0 %v5885
      %6248 = vmatpush.bf16.msra.mxu0 %v5881
      %6249 = vmatpush.bf16.msra.mxu0 %v5877
      %6250 = vmatpush.bf16.msra.mxu0 %v5873
      %6251 = vmatpush.bf16.msra.mxu0 %v5869
      %6252 = vmatpush.bf16.msra.mxu0 %v5865
      %6253 = vmatpush.bf16.msra.mxu0 %v5861
      %6254 = vmatmul.bf16.gmra.mxu0 %v5527
      %v6255 = vpop.f32.mrf.mxu0
      %v6256 = vadd.f32 %v5508, %v6255
      %v6257 = vpop.f32.mrf.mxu0
      %v6258 = vadd.f32 %v5513, %v6257
      %6259 = vdwg.mxu0
      %6260 = vmatpush.bf16.msra.mxu0 %v5921
      %6261 = vmatpush.bf16.msra.mxu0 %v5917
      %6262 = vmatpush.bf16.msra.mxu0 %v5913
      %6263 = vmatpush.bf16.msra.mxu0 %v5909
      %6264 = vmatpush.bf16.msra.mxu0 %v5905
      %6265 = vmatpush.bf16.msra.mxu0 %v5901
      %6266 = vmatpush.bf16.msra.mxu0 %v5897
      %6267 = vmatpush.bf16.msra.mxu0 %v5893
      %6268 = vmatmul.bf16.gmra.mxu0 %v5528
      %v6269 = vpop.f32.mrf.mxu0
      %v6270 = vadd.f32 %v6256, %v6269
      %v6271 = vpop.f32.mrf.mxu0
      %v6272 = vadd.f32 %v6258, %v6271
      %6273 = vdwg.mxu0
      %6274 = vmatpush.bf16.msra.mxu0 %v5953
      %6275 = vmatpush.bf16.msra.mxu0 %v5949
      %6276 = vmatpush.bf16.msra.mxu0 %v5945
      %6277 = vmatpush.bf16.msra.mxu0 %v5941
      %6278 = vmatpush.bf16.msra.mxu0 %v5937
      %6279 = vmatpush.bf16.msra.mxu0 %v5933
      %6280 = vmatpush.bf16.msra.mxu0 %v5929
      %6281 = vmatpush.bf16.msra.mxu0 %v5925
      %6282 = vmatmul.bf16.gmra.mxu0 %v5529
      %v6283 = vpop.f32.mrf.mxu0
      %v6284 = vadd.f32 %v6270, %v6283
      %v6285 = vpop.f32.mrf.mxu0
      %v6286 = vadd.f32 %v6272, %v6285
      %6287 = vdwg.mxu0
      %6288 = vmatpush.bf16.msra.mxu0 0
      %6289 = vmatpush.bf16.msra.mxu0 0
      %6290 = vmatpush.bf16.msra.mxu0 0
      %6291 = vmatpush.bf16.msra.mxu0 0
      %6292 = vmatpush.bf16.msra.mxu0 0
      %6293 = vmatpush.bf16.msra.mxu0 %v5965
      %6294 = vmatpush.bf16.msra.mxu0 %v5961
      %6295 = vmatpush.bf16.msra.mxu0 %v5957
      %6296 = vmatmul.bf16.gmra.mxu0 %v6076
      %v6297 = vpop.f32.mrf.mxu0
      %v6298 = vadd.f32 %v6284, %v6297
      %v6299 = vpop.f32.mrf.mxu0
      %v6300 = vadd.f32 %v6286, %v6299
      %6301 = vdwg.mxu0
      %v6302 = vmax.f32 %v6130, 0.0
      %v6303 = vmax.f32 %v6186, 0.0
      %v6304 = vmax.f32 %v6242, 0.0
      %v6305 = vmax.f32 %v6298, 0.0
      %v6306 = vmax.f32 %v6132, 0.0
      %v6307 = vmax.f32 %v6188, 0.0
      %v6308 = vmax.f32 %v6244, 0.0
      %v6309 = vmax.f32 %v6300, 0.0
      %6310 = vst [vmem:[%s298] sm:$0xff] %v6302
      %6311 = vst [vmem:[%s298 + $0x8] sm:$0xff] %v6303
      %6312 = vst [vmem:[%s298 + $0x10] sm:$0xff] %v6304
      %6313 = vst [vmem:[%s298 + $0x18] sm:$0xff] %v6305
      %6314 = vst [vmem:[%s298 + $0x20] sm:$0xff] %v6306
      %6315 = vst [vmem:[%s298 + $0x28] sm:$0xff] %v6307
      %6316 = vst [vmem:[%s298 + $0x30] sm:$0xff] %v6308
      %6317 = vst [vmem:[%s298 + $0x38] sm:$0xff] %v6309
      %p6318 = scmp.lt.s32.totalorder %s18, 1
      %s6319 = scalar_select %p6318, %s18, 1
      %s6320 = smul.addr %s6319, 8
      %s6321 = smul.addr %s6320, 8
      %s6322 = scalar_lea.vmem %s7, %s6321
      // Predicated region
      $region49: #{up3d_forward.1} parent=47 // pred_check
        %p6323 = pneg %p193
      $region50: #{up3d_forward.1} parent=47 // pred_check_branch
        %6325 = sbr.rel (%p6323) target = $region52
      $region51: #{up3d_forward.1} parent=47 // pred_region
        _
      $region52: #{up3d_forward.1} parent=47 // pred_fallthru
        _
    $region48: #{up3d_forward.1} parent=5 // pred_fallthru
      _
    %p6326 = scmp.le.s32.totalorder 2, %s13
    // Predicated region
    $region53: #{up3d_forward.1} parent=5 // pred_check
      %p6327 = pneg %p6326
    $region54: #{up3d_forward.1} parent=5 // pred_check_branch
      %6329 = sbr.rel (%p6327) target = $region56
    $region55: #{up3d_forward.1} parent=5 // pred_region
      %s6330 = ssub.s32 %s13, 2
      // Predicated region
      $region57: #{up3d_forward.1} parent=55 // pred_check
        %p6331 = pneg %p199
      $region58: #{up3d_forward.1} parent=55 // pred_check_branch
        %6333 = sbr.rel (%p6331) target = $region60
      $region59: #{up3d_forward.1} parent=55 // pred_region
        %p6334 = scmp.lt.s32.totalorder %s19, 1
        %s6335 = scalar_select %p6334, %s19, 1
        %s6336 = smul.addr %s6335, 8
        %s6337 = smul.addr %s6336, 8
        %s6338 = scalar_lea.vmem %s7, %s6337
      $region60: #{up3d_forward.1} parent=55 // pred_fallthru
        _
    $region56: #{up3d_forward.1} parent=5 // pred_fallthru
      _
  $region6: #{up3d_forward.1} parent=0 // loop_footer
    %s17 = sadd.s32 1, %s13
  $region7: #{up3d_forward.1} parent=0 // loop_footer_branch
    %12 = sbr.rel target = $region3
  $region8: #{up3d_forward.1} parent=0 // loop_exit
    _

</llo_original>
